<compile_context>
chip_gen: v6e
topology: v6e:2x2x1
jax: 0.10.0
libtpu: 0.0.40
codegen_flags: <defaults>
</compile_context>

<pallas_src>
import jax
import jax.numpy as jnp
from jax import lax
from jax.experimental import pallas as pl
from jax.experimental.pallas import tpu as pltpu

EPS = 1e-5


def _pick_row_tile(Ho, C, C2, budget_bytes=8 * 1024 * 1024):
    """Output rows per grid step.

    Accounts for (a) every (1, We)/(1, Wo) minor tile of a block occupying a full
    (8, 128) f32 VMEM tile and (b) the x2 double buffering of the BlockSpec pipeline,
    so the same code stays inside v7x's smaller VMEM.
    """
    tile_bytes = 8 * 128 * 4
    # per output row: 2 column phases x (2 row parities x C) input tiles + C2 output tiles
    bytes_per_row = 2 * (2 * 2 * C + C2) * tile_bytes
    cap = max(1, budget_bytes // bytes_per_row)
    th = 1
    for d in range(1, Ho + 1):          # largest divisor of Ho within the VMEM budget
        if Ho % d == 0 and d <= cap:
            th = d
    return th


def _make_kernels(C, C2, TH, Wo):
    """Build the two kernels (shared pool+conv helper), closed over static sizes."""

    def _pool_conv(xe_ref, xo_ref, xeh_ref, xoh_ref, w_ref):
        # xe/xo blocks: (C, TH, 2, 1, We)  [row-pair chunks x row parity x even/odd cols]
        # halo blocks : (C, 1, 2, 1, We)   [first row-pair of the next tile]
        # w_ref       : SMEM (C2, C), already scaled by 1/9 (avg-pool factor folded in)
        ae = xe_ref[...].astype(jnp.float32)
        ao = xo_ref[...].astype(jnp.float32)
        he = xeh_ref[...].astype(jnp.float32)
        hd = xoh_ref[...].astype(jnp.float32)

        # Row planes for the three vertical taps of every output row.  All of these are
        # leading-dim selections (the minor dims stay (1, We)), so no relayouts.
        e0 = ae[:, :, 0]          # (C, TH, 1, We): padded rows 2*(r0+i)   (even cols)
        e1 = ae[:, :, 1]          #                 padded rows 2*(r0+i)+1 (even cols)
        o0 = ao[:, :, 0]          #                 padded rows 2*(r0+i)   (odd cols)
        o1 = ao[:, :, 1]          #                 padded rows 2*(r0+i)+1 (odd cols)
        he0 = he[:, :, 0]         # (C, 1, 1, We):  padded row 2*(r0+TH)   (even cols)
        hd0 = hd[:, :, 0]         #                 padded row 2*(r0+TH)   (odd cols)
        if TH > 1:
            e2 = jnp.concatenate([e0[:, 1:], he0], axis=1)   # padded rows 2*(r0+i)+2
            o2 = jnp.concatenate([o0[:, 1:], hd0], axis=1)
        else:
            e2, o2 = he0, hd0

        # Horizontal 3 taps of the window: even col wo, odd col wo, even col wo+1.
        def hsum(e, o):
            return e[..., 0:Wo] + o[..., 0:Wo] + e[..., 1:Wo + 1]

        s = hsum(e0, o0) + hsum(e1, o1) + hsum(e2, o2)       # (C, TH, 1, Wo): 3x3 sum

        # 1x1 conv as VPU scalar-broadcast MACs (tiny C/C2); the conv bias is dropped
        # because the training-mode BatchNorm that follows cancels it exactly.
        ys = []
        for oc in range(C2):
            acc = w_ref[oc, 0] * s[0]
            for c in range(1, C):
                acc = acc + w_ref[oc, c] * s[c]
            ys.append(acc)                                   # (TH, 1, Wo) f32
        return ys

    def stats_kernel(xe_ref, xo_ref, xeh_ref, xoh_ref, w_ref, s1_ref, s2_ref):
        ys = _pool_conv(xe_ref, xo_ref, xeh_ref, xoh_ref, w_ref)
        y = jnp.stack(ys, axis=0)                            # (C2, TH, 1, Wo)
        # per-tile BN partials (f32 accumulation)
        s1_ref[0] = jnp.sum(jnp.sum(y, axis=1), axis=-1, keepdims=True)        # (C2,1,1)
        s2_ref[0] = jnp.sum(jnp.sum(y * y, axis=1), axis=-1, keepdims=True)    # (C2,1,1)

    def apply_kernel(xe_ref, xo_ref, xeh_ref, xoh_ref, w_ref, sc_ref, sh_ref, o_ref):
        ys = _pool_conv(xe_ref, xo_ref, xeh_ref, xoh_ref, w_ref)
        outs = [jnp.maximum(ys[oc] * sc_ref[oc] + sh_ref[oc], 0.0) for oc in range(C2)]
        o_ref[...] = jnp.stack(outs, axis=0)                 # (C2, TH, 1, Wo)

    return stats_kernel, apply_kernel


def ds_forward(x, w_conv, b_conv, gamma, beta, eps=EPS):
    """DS forward. x: (N, C, H, W) f32 (H, W even). Returns (N, 2C, H//2, W//2) f32."""
    N, C, H, W = x.shape
    assert H % 2 == 0 and W % 2 == 0, "this kernel assumes even spatial dims"
    C2 = 2 * C
    Ho, Wo = H // 2, W // 2
    We = Wo + 1            # even (= odd) column-phase width of the padded input
    HP2 = Ho + 1           # stride-2 row pairs of the padded input
    del b_conv             # exactly cancelled by BN's batch-mean subtraction

    # ---- glue (indexing only): pad once, split even/odd column phases, group rows into
    # stride-2 pairs, insert a unit sub-lane dim so every BlockSpec is layout-legal for
    # any row-tile size.  Materializes ~1.0x the padded input (vs. the old 2.25x slab).
    xp = jnp.pad(x, ((0, 0), (0, 0), (1, 1), (1, 1)))                    # (N, C, H+2, W+2)
    xe = xp[:, :, :, 0::2].reshape(N * C, HP2, 2, 1, We)                 # even columns
    xo = xp[:, :, :, 1::2].reshape(N * C, HP2, 2, 1, We)                 # odd columns

    # fold the 1/9 avg-pool factor into the 1x1-conv weight; kept in SMEM as scalars
    w9 = w_conv.reshape(C2, C).astype(jnp.float32) * (1.0 / 9.0)

    TH = _pick_row_tile(Ho, C, C2)
    T = Ho // TH

    stats_kernel, apply_kernel = _make_kernels(C, C2, TH, Wo)

    main_spec = pl.BlockSpec((C, TH, 2, 1, We), lambda n, t: (n, t, 0, 0, 0))
    halo_spec = pl.BlockSpec((C, 1, 2, 1, We), lambda n, t: (n, (t + 1) * TH, 0, 0, 0))
    smem_spec = pl.BlockSpec(memory_space=pltpu.MemorySpace.SMEM)
    cparams = pltpu.CompilerParams(
        dimension_semantics=("parallel", "parallel"),
        vmem_limit_bytes=32 * 1024 * 1024)

    # ---- pass 1: per-tile BatchNorm partial sums --------------------------------------
    sum1, sum2 = pl.pallas_call(
        stats_kernel,
        out_shape=(jax.ShapeDtypeStruct((N * T, C2, 1, 1), jnp.float32),
                   jax.ShapeDtypeStruct((N * T, C2, 1, 1), jnp.float32)),
        grid=(N, T),
        in_specs=[main_spec, main_spec, halo_spec, halo_spec, smem_spec],
        out_specs=(pl.BlockSpec((1, C2, 1, 1), lambda n, t: (n * T + t, 0, 0, 0)),
                   pl.BlockSpec((1, C2, 1, 1), lambda n, t: (n * T + t, 0, 0, 0))),
        compiler_params=cparams,
    )(xe, xo, xe, xo, w9)

    # tiny epilogue: fold the partials into the fused BN scale/shift.
    # (Naive E[y^2]-E[y]^2 in f32; for very large M switch to a Welford-style combine.)
    m = float(N * Ho * Wo)
    mean = jnp.sum(sum1, axis=0).reshape(C2) / m
    var = jnp.maximum(jnp.sum(sum2, axis=0).reshape(C2) / m - mean * mean, 0.0)
    scale = gamma.astype(jnp.float32) * lax.rsqrt(var + eps)
    shift = beta.astype(jnp.float32) - mean * scale

    # ---- pass 2: recompute pool+conv per tile, apply fused BN affine + ReLU -----------
    out = pl.pallas_call(
        apply_kernel,
        out_shape=jax.ShapeDtypeStruct((N * C2, Ho, 1, Wo), jnp.float32),
        grid=(N, T),
        in_specs=[main_spec, main_spec, halo_spec, halo_spec,
                  smem_spec, smem_spec, smem_spec],
        out_specs=pl.BlockSpec((C2, TH, 1, Wo), lambda n, t: (n, t, 0, 0)),
        compiler_params=cparams,
    )(xe, xo, xe, xo, w9, scale, shift)

    return out.reshape(N, C2, Ho, Wo)          # NCHW, no wrapper transpose needed


def ds_reference(x_nchw, w_conv, b_conv, gamma, beta):
    """Pure-JAX reference matching the PyTorch forward (training-mode BN)."""
    N, C, H, W = x_nchw.shape
    C2 = 2 * C
    xp = jnp.pad(x_nchw, ((0, 0), (0, 0), (1, 1), (1, 1)))
    summed = lax.reduce_window(xp, 0.0, lax.add,
                               (1, 1, 3, 3), (1, 1, 2, 2), "VALID")
    pooled = summed / 9.0                                    # count_include_pad=True
    w2 = w_conv.reshape(C2, C)
    y = jnp.einsum("nchw,oc->nohw", pooled, w2) + b_conv[None, :, None, None]
    mean = jnp.mean(y, axis=(0, 2, 3), keepdims=True)
    var = jnp.mean((y - mean) ** 2, axis=(0, 2, 3), keepdims=True)
    z = (y - mean) / jnp.sqrt(var + EPS)
    z = z * gamma[None, :, None, None] + beta[None, :, None, None]
    return jnp.maximum(z, 0.0)


if __name__ == "__main__":
    key = jax.random.PRNGKey(0)
    k_x, k_w, k_b, k_g, k_be = jax.random.split(key, 5)

    N, C, H, W = 2, 4, 16, 16
    C2 = 2 * C

    x = jax.random.normal(k_x, (N, C, H, W), dtype=jnp.float32)
    # nn.Conv2d(C, 2C, 1, 1) parameters (deterministic synthetic init)
    w_conv = jax.random.normal(k_w, (C2, C, 1, 1), dtype=jnp.float32) * 0.2
    b_conv = jax.random.normal(k_b, (C2,), dtype=jnp.float32) * 0.1
    # nn.BatchNorm2d(2C) affine parameters
    gamma = 1.0 + 0.1 * jax.random.normal(k_g, (C2,), dtype=jnp.float32)
    beta = 0.1 * jax.random.normal(k_be, (C2,), dtype=jnp.float32)

    fwd = jax.jit(ds_forward)
    out = jax.block_until_ready(fwd(x, w_conv, b_conv, gamma, beta))
    ref = jax.block_until_ready(ds_reference(x, w_conv, b_conv, gamma, beta))

    assert out.shape == (N, C2, H // 2, W // 2), out.shape
    err = float(jnp.max(jnp.abs(out - ref)))
    assert jnp.allclose(out, ref, atol=1e-4, rtol=1e-4), err

    print("KERNEL_OK")
</pallas_src>

<mosaic_0001>
module attributes {stable_mosaic.version = 11 : i64} {
  func.func @stats_kernel(%arg0: i32, %arg1: i32, %arg2: memref<4x8x2x1x9xf32, #tpu.memory_space<vmem>>, %arg3: memref<4x8x2x1x9xf32, #tpu.memory_space<vmem>>, %arg4: memref<4x1x2x1x9xf32, #tpu.memory_space<vmem>>, %arg5: memref<4x1x2x1x9xf32, #tpu.memory_space<vmem>>, %arg6: memref<8x4xf32, #tpu.memory_space<smem>>, %arg7: memref<1x8x1x1xf32, #tpu.memory_space<vmem>>, %arg8: memref<1x8x1x1xf32, #tpu.memory_space<vmem>>) attributes {dimension_semantics = [#tpu.dimension_semantics<parallel>, #tpu.dimension_semantics<parallel>], iteration_bounds = array<i64: 2, 1>, scalar_prefetch = 0 : i64, scratch_operands = 0 : i64, tpu.core_type = #tpu.core_type<tc>, window_params = [{transform_indices = @transform_0, window_bounds = array<i64: 4, 8, 2, 1, 9>}, {transform_indices = @transform_1, window_bounds = array<i64: 4, 8, 2, 1, 9>}, {transform_indices = @transform_2, window_bounds = array<i64: 4, 1, 2, 1, 9>}, {transform_indices = @transform_3, window_bounds = array<i64: 4, 1, 2, 1, 9>}, {transform_indices = @transform_4, window_bounds = array<i64: 8, 4>}, {transform_indices = @transform_5, window_bounds = array<i64: 1, 8, 1, 1>}, {transform_indices = @transform_6, window_bounds = array<i64: 1, 8, 1, 1>}]} {
    %c0 = arith.constant 0 : index
    %c0_0 = arith.constant 0 : index
    %c0_1 = arith.constant 0 : index
    %c0_2 = arith.constant 0 : index
    %c0_3 = arith.constant 0 : index
    %0 = vector.load %arg2[%c0, %c0_0, %c0_1, %c0_2, %c0_3] : memref<4x8x2x1x9xf32, #tpu.memory_space<vmem>>, vector<4x8x2x1x9xf32>
    %c0_4 = arith.constant 0 : index
    %c0_5 = arith.constant 0 : index
    %c0_6 = arith.constant 0 : index
    %c0_7 = arith.constant 0 : index
    %c0_8 = arith.constant 0 : index
    %1 = vector.load %arg3[%c0_4, %c0_5, %c0_6, %c0_7, %c0_8] : memref<4x8x2x1x9xf32, #tpu.memory_space<vmem>>, vector<4x8x2x1x9xf32>
    %c0_9 = arith.constant 0 : index
    %c0_10 = arith.constant 0 : index
    %c0_11 = arith.constant 0 : index
    %c0_12 = arith.constant 0 : index
    %c0_13 = arith.constant 0 : index
    %2 = vector.load %arg4[%c0_9, %c0_10, %c0_11, %c0_12, %c0_13] : memref<4x1x2x1x9xf32, #tpu.memory_space<vmem>>, vector<4x1x2x1x9xf32>
    %c0_14 = arith.constant 0 : index
    %c0_15 = arith.constant 0 : index
    %c0_16 = arith.constant 0 : index
    %c0_17 = arith.constant 0 : index
    %c0_18 = arith.constant 0 : index
    %3 = vector.load %arg5[%c0_14, %c0_15, %c0_16, %c0_17, %c0_18] : memref<4x1x2x1x9xf32, #tpu.memory_space<vmem>>, vector<4x1x2x1x9xf32>
    %4 = vector.extract_strided_slice %0 {offsets = [0, 0, 0, 0, 0], sizes = [4, 8, 1, 1, 9], strides = [1, 1, 1, 1, 1]} : vector<4x8x2x1x9xf32> to vector<4x8x1x1x9xf32>
    %5 = vector.shape_cast %4 : vector<4x8x1x1x9xf32> to vector<4x8x1x9xf32>
    %6 = vector.extract_strided_slice %0 {offsets = [0, 0, 1, 0, 0], sizes = [4, 8, 1, 1, 9], strides = [1, 1, 1, 1, 1]} : vector<4x8x2x1x9xf32> to vector<4x8x1x1x9xf32>
    %7 = vector.shape_cast %6 : vector<4x8x1x1x9xf32> to vector<4x8x1x9xf32>
    %8 = vector.extract_strided_slice %1 {offsets = [0, 0, 0, 0, 0], sizes = [4, 8, 1, 1, 9], strides = [1, 1, 1, 1, 1]} : vector<4x8x2x1x9xf32> to vector<4x8x1x1x9xf32>
    %9 = vector.shape_cast %8 : vector<4x8x1x1x9xf32> to vector<4x8x1x9xf32>
    %10 = vector.extract_strided_slice %1 {offsets = [0, 0, 1, 0, 0], sizes = [4, 8, 1, 1, 9], strides = [1, 1, 1, 1, 1]} : vector<4x8x2x1x9xf32> to vector<4x8x1x1x9xf32>
    %11 = vector.shape_cast %10 : vector<4x8x1x1x9xf32> to vector<4x8x1x9xf32>
    %12 = vector.extract_strided_slice %2 {offsets = [0, 0, 0, 0, 0], sizes = [4, 1, 1, 1, 9], strides = [1, 1, 1, 1, 1]} : vector<4x1x2x1x9xf32> to vector<4x1x1x1x9xf32>
    %13 = vector.shape_cast %12 : vector<4x1x1x1x9xf32> to vector<4x1x1x9xf32>
    %14 = vector.extract_strided_slice %3 {offsets = [0, 0, 0, 0, 0], sizes = [4, 1, 1, 1, 9], strides = [1, 1, 1, 1, 1]} : vector<4x1x2x1x9xf32> to vector<4x1x1x1x9xf32>
    %15 = vector.shape_cast %14 : vector<4x1x1x1x9xf32> to vector<4x1x1x9xf32>
    %16 = vector.extract_strided_slice %5 {offsets = [0, 1, 0, 0], sizes = [4, 7, 1, 9], strides = [1, 1, 1, 1]} : vector<4x8x1x9xf32> to vector<4x7x1x9xf32>
    %17 = tpu.concatenate %16, %13 in 1 : vector<4x7x1x9xf32>, vector<4x1x1x9xf32> -> vector<4x8x1x9xf32>
    %18 = vector.extract_strided_slice %9 {offsets = [0, 1, 0, 0], sizes = [4, 7, 1, 9], strides = [1, 1, 1, 1]} : vector<4x8x1x9xf32> to vector<4x7x1x9xf32>
    %19 = tpu.concatenate %18, %15 in 1 : vector<4x7x1x9xf32>, vector<4x1x1x9xf32> -> vector<4x8x1x9xf32>
    %20 = vector.extract_strided_slice %5 {offsets = [0, 0, 0, 0], sizes = [4, 8, 1, 8], strides = [1, 1, 1, 1]} : vector<4x8x1x9xf32> to vector<4x8x1x8xf32>
    %21 = vector.extract_strided_slice %9 {offsets = [0, 0, 0, 0], sizes = [4, 8, 1, 8], strides = [1, 1, 1, 1]} : vector<4x8x1x9xf32> to vector<4x8x1x8xf32>
    %22 = arith.addf %20, %21 : vector<4x8x1x8xf32>
    %23 = vector.extract_strided_slice %5 {offsets = [0, 0, 0, 1], sizes = [4, 8, 1, 8], strides = [1, 1, 1, 1]} : vector<4x8x1x9xf32> to vector<4x8x1x8xf32>
    %24 = arith.addf %22, %23 : vector<4x8x1x8xf32>
    %25 = vector.extract_strided_slice %7 {offsets = [0, 0, 0, 0], sizes = [4, 8, 1, 8], strides = [1, 1, 1, 1]} : vector<4x8x1x9xf32> to vector<4x8x1x8xf32>
    %26 = vector.extract_strided_slice %11 {offsets = [0, 0, 0, 0], sizes = [4, 8, 1, 8], strides = [1, 1, 1, 1]} : vector<4x8x1x9xf32> to vector<4x8x1x8xf32>
    %27 = arith.addf %25, %26 : vector<4x8x1x8xf32>
    %28 = vector.extract_strided_slice %7 {offsets = [0, 0, 0, 1], sizes = [4, 8, 1, 8], strides = [1, 1, 1, 1]} : vector<4x8x1x9xf32> to vector<4x8x1x8xf32>
    %29 = arith.addf %27, %28 : vector<4x8x1x8xf32>
    %30 = arith.addf %24, %29 : vector<4x8x1x8xf32>
    %31 = vector.extract_strided_slice %17 {offsets = [0, 0, 0, 0], sizes = [4, 8, 1, 8], strides = [1, 1, 1, 1]} : vector<4x8x1x9xf32> to vector<4x8x1x8xf32>
    %32 = vector.extract_strided_slice %19 {offsets = [0, 0, 0, 0], sizes = [4, 8, 1, 8], strides = [1, 1, 1, 1]} : vector<4x8x1x9xf32> to vector<4x8x1x8xf32>
    %33 = arith.addf %31, %32 : vector<4x8x1x8xf32>
    %34 = vector.extract_strided_slice %17 {offsets = [0, 0, 0, 1], sizes = [4, 8, 1, 8], strides = [1, 1, 1, 1]} : vector<4x8x1x9xf32> to vector<4x8x1x8xf32>
    %35 = arith.addf %33, %34 : vector<4x8x1x8xf32>
    %36 = arith.addf %30, %35 : vector<4x8x1x8xf32>
    %c0_19 = arith.constant 0 : index
    %c0_20 = arith.constant 0 : index
    %37 = memref.load %arg6[%c0_19, %c0_20] : memref<8x4xf32, #tpu.memory_space<smem>>
    %38 = vector.extract_strided_slice %36 {offsets = [0, 0, 0, 0], sizes = [1, 8, 1, 8], strides = [1, 1, 1, 1]} : vector<4x8x1x8xf32> to vector<1x8x1x8xf32>
    %39 = vector.shape_cast %38 : vector<1x8x1x8xf32> to vector<8x1x8xf32>
    %40 = vector.broadcast %37 : f32 to vector<8x1x8xf32>
    %41 = arith.mulf %40, %39 : vector<8x1x8xf32>
    %c0_21 = arith.constant 0 : index
    %c1 = arith.constant 1 : index
    %42 = memref.load %arg6[%c0_21, %c1] : memref<8x4xf32, #tpu.memory_space<smem>>
    %43 = vector.extract_strided_slice %36 {offsets = [1, 0, 0, 0], sizes = [1, 8, 1, 8], strides = [1, 1, 1, 1]} : vector<4x8x1x8xf32> to vector<1x8x1x8xf32>
    %44 = vector.shape_cast %43 : vector<1x8x1x8xf32> to vector<8x1x8xf32>
    %45 = vector.broadcast %42 : f32 to vector<8x1x8xf32>
    %46 = arith.mulf %45, %44 : vector<8x1x8xf32>
    %47 = arith.addf %41, %46 : vector<8x1x8xf32>
    %c0_22 = arith.constant 0 : index
    %c2 = arith.constant 2 : index
    %48 = memref.load %arg6[%c0_22, %c2] : memref<8x4xf32, #tpu.memory_space<smem>>
    %49 = vector.extract_strided_slice %36 {offsets = [2, 0, 0, 0], sizes = [1, 8, 1, 8], strides = [1, 1, 1, 1]} : vector<4x8x1x8xf32> to vector<1x8x1x8xf32>
    %50 = vector.shape_cast %49 : vector<1x8x1x8xf32> to vector<8x1x8xf32>
    %51 = vector.broadcast %48 : f32 to vector<8x1x8xf32>
    %52 = arith.mulf %51, %50 : vector<8x1x8xf32>
    %53 = arith.addf %47, %52 : vector<8x1x8xf32>
    %c0_23 = arith.constant 0 : index
    %c3 = arith.constant 3 : index
    %54 = memref.load %arg6[%c0_23, %c3] : memref<8x4xf32, #tpu.memory_space<smem>>
    %55 = vector.extract_strided_slice %36 {offsets = [3, 0, 0, 0], sizes = [1, 8, 1, 8], strides = [1, 1, 1, 1]} : vector<4x8x1x8xf32> to vector<1x8x1x8xf32>
    %56 = vector.shape_cast %55 : vector<1x8x1x8xf32> to vector<8x1x8xf32>
    %57 = vector.broadcast %54 : f32 to vector<8x1x8xf32>
    %58 = arith.mulf %57, %56 : vector<8x1x8xf32>
    %59 = arith.addf %53, %58 : vector<8x1x8xf32>
    %c1_24 = arith.constant 1 : index
    %c0_25 = arith.constant 0 : index
    %60 = memref.load %arg6[%c1_24, %c0_25] : memref<8x4xf32, #tpu.memory_space<smem>>
    %61 = vector.extract_strided_slice %36 {offsets = [0, 0, 0, 0], sizes = [1, 8, 1, 8], strides = [1, 1, 1, 1]} : vector<4x8x1x8xf32> to vector<1x8x1x8xf32>
    %62 = vector.shape_cast %61 : vector<1x8x1x8xf32> to vector<8x1x8xf32>
    %63 = vector.broadcast %60 : f32 to vector<8x1x8xf32>
    %64 = arith.mulf %63, %62 : vector<8x1x8xf32>
    %c1_26 = arith.constant 1 : index
    %c1_27 = arith.constant 1 : index
    %65 = memref.load %arg6[%c1_26, %c1_27] : memref<8x4xf32, #tpu.memory_space<smem>>
    %66 = vector.extract_strided_slice %36 {offsets = [1, 0, 0, 0], sizes = [1, 8, 1, 8], strides = [1, 1, 1, 1]} : vector<4x8x1x8xf32> to vector<1x8x1x8xf32>
    %67 = vector.shape_cast %66 : vector<1x8x1x8xf32> to vector<8x1x8xf32>
    %68 = vector.broadcast %65 : f32 to vector<8x1x8xf32>
    %69 = arith.mulf %68, %67 : vector<8x1x8xf32>
    %70 = arith.addf %64, %69 : vector<8x1x8xf32>
    %c1_28 = arith.constant 1 : index
    %c2_29 = arith.constant 2 : index
    %71 = memref.load %arg6[%c1_28, %c2_29] : memref<8x4xf32, #tpu.memory_space<smem>>
    %72 = vector.extract_strided_slice %36 {offsets = [2, 0, 0, 0], sizes = [1, 8, 1, 8], strides = [1, 1, 1, 1]} : vector<4x8x1x8xf32> to vector<1x8x1x8xf32>
    %73 = vector.shape_cast %72 : vector<1x8x1x8xf32> to vector<8x1x8xf32>
    %74 = vector.broadcast %71 : f32 to vector<8x1x8xf32>
    %75 = arith.mulf %74, %73 : vector<8x1x8xf32>
    %76 = arith.addf %70, %75 : vector<8x1x8xf32>
    %c1_30 = arith.constant 1 : index
    %c3_31 = arith.constant 3 : index
    %77 = memref.load %arg6[%c1_30, %c3_31] : memref<8x4xf32, #tpu.memory_space<smem>>
    %78 = vector.extract_strided_slice %36 {offsets = [3, 0, 0, 0], sizes = [1, 8, 1, 8], strides = [1, 1, 1, 1]} : vector<4x8x1x8xf32> to vector<1x8x1x8xf32>
    %79 = vector.shape_cast %78 : vector<1x8x1x8xf32> to vector<8x1x8xf32>
    %80 = vector.broadcast %77 : f32 to vector<8x1x8xf32>
    %81 = arith.mulf %80, %79 : vector<8x1x8xf32>
    %82 = arith.addf %76, %81 : vector<8x1x8xf32>
    %c2_32 = arith.constant 2 : index
    %c0_33 = arith.constant 0 : index
    %83 = memref.load %arg6[%c2_32, %c0_33] : memref<8x4xf32, #tpu.memory_space<smem>>
    %84 = vector.extract_strided_slice %36 {offsets = [0, 0, 0, 0], sizes = [1, 8, 1, 8], strides = [1, 1, 1, 1]} : vector<4x8x1x8xf32> to vector<1x8x1x8xf32>
    %85 = vector.shape_cast %84 : vector<1x8x1x8xf32> to vector<8x1x8xf32>
    %86 = vector.broadcast %83 : f32 to vector<8x1x8xf32>
    %87 = arith.mulf %86, %85 : vector<8x1x8xf32>
    %c2_34 = arith.constant 2 : index
    %c1_35 = arith.constant 1 : index
    %88 = memref.load %arg6[%c2_34, %c1_35] : memref<8x4xf32, #tpu.memory_space<smem>>
    %89 = vector.extract_strided_slice %36 {offsets = [1, 0, 0, 0], sizes = [1, 8, 1, 8], strides = [1, 1, 1, 1]} : vector<4x8x1x8xf32> to vector<1x8x1x8xf32>
    %90 = vector.shape_cast %89 : vector<1x8x1x8xf32> to vector<8x1x8xf32>
    %91 = vector.broadcast %88 : f32 to vector<8x1x8xf32>
    %92 = arith.mulf %91, %90 : vector<8x1x8xf32>
    %93 = arith.addf %87, %92 : vector<8x1x8xf32>
    %c2_36 = arith.constant 2 : index
    %c2_37 = arith.constant 2 : index
    %94 = memref.load %arg6[%c2_36, %c2_37] : memref<8x4xf32, #tpu.memory_space<smem>>
    %95 = vector.extract_strided_slice %36 {offsets = [2, 0, 0, 0], sizes = [1, 8, 1, 8], strides = [1, 1, 1, 1]} : vector<4x8x1x8xf32> to vector<1x8x1x8xf32>
    %96 = vector.shape_cast %95 : vector<1x8x1x8xf32> to vector<8x1x8xf32>
    %97 = vector.broadcast %94 : f32 to vector<8x1x8xf32>
    %98 = arith.mulf %97, %96 : vector<8x1x8xf32>
    %99 = arith.addf %93, %98 : vector<8x1x8xf32>
    %c2_38 = arith.constant 2 : index
    %c3_39 = arith.constant 3 : index
    %100 = memref.load %arg6[%c2_38, %c3_39] : memref<8x4xf32, #tpu.memory_space<smem>>
    %101 = vector.extract_strided_slice %36 {offsets = [3, 0, 0, 0], sizes = [1, 8, 1, 8], strides = [1, 1, 1, 1]} : vector<4x8x1x8xf32> to vector<1x8x1x8xf32>
    %102 = vector.shape_cast %101 : vector<1x8x1x8xf32> to vector<8x1x8xf32>
    %103 = vector.broadcast %100 : f32 to vector<8x1x8xf32>
    %104 = arith.mulf %103, %102 : vector<8x1x8xf32>
    %105 = arith.addf %99, %104 : vector<8x1x8xf32>
    %c3_40 = arith.constant 3 : index
    %c0_41 = arith.constant 0 : index
    %106 = memref.load %arg6[%c3_40, %c0_41] : memref<8x4xf32, #tpu.memory_space<smem>>
    %107 = vector.extract_strided_slice %36 {offsets = [0, 0, 0, 0], sizes = [1, 8, 1, 8], strides = [1, 1, 1, 1]} : vector<4x8x1x8xf32> to vector<1x8x1x8xf32>
    %108 = vector.shape_cast %107 : vector<1x8x1x8xf32> to vector<8x1x8xf32>
    %109 = vector.broadcast %106 : f32 to vector<8x1x8xf32>
    %110 = arith.mulf %109, %108 : vector<8x1x8xf32>
    %c3_42 = arith.constant 3 : index
    %c1_43 = arith.constant 1 : index
    %111 = memref.load %arg6[%c3_42, %c1_43] : memref<8x4xf32, #tpu.memory_space<smem>>
    %112 = vector.extract_strided_slice %36 {offsets = [1, 0, 0, 0], sizes = [1, 8, 1, 8], strides = [1, 1, 1, 1]} : vector<4x8x1x8xf32> to vector<1x8x1x8xf32>
    %113 = vector.shape_cast %112 : vector<1x8x1x8xf32> to vector<8x1x8xf32>
    %114 = vector.broadcast %111 : f32 to vector<8x1x8xf32>
    %115 = arith.mulf %114, %113 : vector<8x1x8xf32>
    %116 = arith.addf %110, %115 : vector<8x1x8xf32>
    %c3_44 = arith.constant 3 : index
    %c2_45 = arith.constant 2 : index
    %117 = memref.load %arg6[%c3_44, %c2_45] : memref<8x4xf32, #tpu.memory_space<smem>>
    %118 = vector.extract_strided_slice %36 {offsets = [2, 0, 0, 0], sizes = [1, 8, 1, 8], strides = [1, 1, 1, 1]} : vector<4x8x1x8xf32> to vector<1x8x1x8xf32>
    %119 = vector.shape_cast %118 : vector<1x8x1x8xf32> to vector<8x1x8xf32>
    %120 = vector.broadcast %117 : f32 to vector<8x1x8xf32>
    %121 = arith.mulf %120, %119 : vector<8x1x8xf32>
    %122 = arith.addf %116, %121 : vector<8x1x8xf32>
    %c3_46 = arith.constant 3 : index
    %c3_47 = arith.constant 3 : index
    %123 = memref.load %arg6[%c3_46, %c3_47] : memref<8x4xf32, #tpu.memory_space<smem>>
    %124 = vector.extract_strided_slice %36 {offsets = [3, 0, 0, 0], sizes = [1, 8, 1, 8], strides = [1, 1, 1, 1]} : vector<4x8x1x8xf32> to vector<1x8x1x8xf32>
    %125 = vector.shape_cast %124 : vector<1x8x1x8xf32> to vector<8x1x8xf32>
    %126 = vector.broadcast %123 : f32 to vector<8x1x8xf32>
    %127 = arith.mulf %126, %125 : vector<8x1x8xf32>
    %128 = arith.addf %122, %127 : vector<8x1x8xf32>
    %c4 = arith.constant 4 : index
    %c0_48 = arith.constant 0 : index
    %129 = memref.load %arg6[%c4, %c0_48] : memref<8x4xf32, #tpu.memory_space<smem>>
    %130 = vector.extract_strided_slice %36 {offsets = [0, 0, 0, 0], sizes = [1, 8, 1, 8], strides = [1, 1, 1, 1]} : vector<4x8x1x8xf32> to vector<1x8x1x8xf32>
    %131 = vector.shape_cast %130 : vector<1x8x1x8xf32> to vector<8x1x8xf32>
    %132 = vector.broadcast %129 : f32 to vector<8x1x8xf32>
    %133 = arith.mulf %132, %131 : vector<8x1x8xf32>
    %c4_49 = arith.constant 4 : index
    %c1_50 = arith.constant 1 : index
    %134 = memref.load %arg6[%c4_49, %c1_50] : memref<8x4xf32, #tpu.memory_space<smem>>
    %135 = vector.extract_strided_slice %36 {offsets = [1, 0, 0, 0], sizes = [1, 8, 1, 8], strides = [1, 1, 1, 1]} : vector<4x8x1x8xf32> to vector<1x8x1x8xf32>
    %136 = vector.shape_cast %135 : vector<1x8x1x8xf32> to vector<8x1x8xf32>
    %137 = vector.broadcast %134 : f32 to vector<8x1x8xf32>
    %138 = arith.mulf %137, %136 : vector<8x1x8xf32>
    %139 = arith.addf %133, %138 : vector<8x1x8xf32>
    %c4_51 = arith.constant 4 : index
    %c2_52 = arith.constant 2 : index
    %140 = memref.load %arg6[%c4_51, %c2_52] : memref<8x4xf32, #tpu.memory_space<smem>>
    %141 = vector.extract_strided_slice %36 {offsets = [2, 0, 0, 0], sizes = [1, 8, 1, 8], strides = [1, 1, 1, 1]} : vector<4x8x1x8xf32> to vector<1x8x1x8xf32>
    %142 = vector.shape_cast %141 : vector<1x8x1x8xf32> to vector<8x1x8xf32>
    %143 = vector.broadcast %140 : f32 to vector<8x1x8xf32>
    %144 = arith.mulf %143, %142 : vector<8x1x8xf32>
    %145 = arith.addf %139, %144 : vector<8x1x8xf32>
    %c4_53 = arith.constant 4 : index
    %c3_54 = arith.constant 3 : index
    %146 = memref.load %arg6[%c4_53, %c3_54] : memref<8x4xf32, #tpu.memory_space<smem>>
    %147 = vector.extract_strided_slice %36 {offsets = [3, 0, 0, 0], sizes = [1, 8, 1, 8], strides = [1, 1, 1, 1]} : vector<4x8x1x8xf32> to vector<1x8x1x8xf32>
    %148 = vector.shape_cast %147 : vector<1x8x1x8xf32> to vector<8x1x8xf32>
    %149 = vector.broadcast %146 : f32 to vector<8x1x8xf32>
    %150 = arith.mulf %149, %148 : vector<8x1x8xf32>
    %151 = arith.addf %145, %150 : vector<8x1x8xf32>
    %c5 = arith.constant 5 : index
    %c0_55 = arith.constant 0 : index
    %152 = memref.load %arg6[%c5, %c0_55] : memref<8x4xf32, #tpu.memory_space<smem>>
    %153 = vector.extract_strided_slice %36 {offsets = [0, 0, 0, 0], sizes = [1, 8, 1, 8], strides = [1, 1, 1, 1]} : vector<4x8x1x8xf32> to vector<1x8x1x8xf32>
    %154 = vector.shape_cast %153 : vector<1x8x1x8xf32> to vector<8x1x8xf32>
    %155 = vector.broadcast %152 : f32 to vector<8x1x8xf32>
    %156 = arith.mulf %155, %154 : vector<8x1x8xf32>
    %c5_56 = arith.constant 5 : index
    %c1_57 = arith.constant 1 : index
    %157 = memref.load %arg6[%c5_56, %c1_57] : memref<8x4xf32, #tpu.memory_space<smem>>
    %158 = vector.extract_strided_slice %36 {offsets = [1, 0, 0, 0], sizes = [1, 8, 1, 8], strides = [1, 1, 1, 1]} : vector<4x8x1x8xf32> to vector<1x8x1x8xf32>
    %159 = vector.shape_cast %158 : vector<1x8x1x8xf32> to vector<8x1x8xf32>
    %160 = vector.broadcast %157 : f32 to vector<8x1x8xf32>
    %161 = arith.mulf %160, %159 : vector<8x1x8xf32>
    %162 = arith.addf %156, %161 : vector<8x1x8xf32>
    %c5_58 = arith.constant 5 : index
    %c2_59 = arith.constant 2 : index
    %163 = memref.load %arg6[%c5_58, %c2_59] : memref<8x4xf32, #tpu.memory_space<smem>>
    %164 = vector.extract_strided_slice %36 {offsets = [2, 0, 0, 0], sizes = [1, 8, 1, 8], strides = [1, 1, 1, 1]} : vector<4x8x1x8xf32> to vector<1x8x1x8xf32>
    %165 = vector.shape_cast %164 : vector<1x8x1x8xf32> to vector<8x1x8xf32>
    %166 = vector.broadcast %163 : f32 to vector<8x1x8xf32>
    %167 = arith.mulf %166, %165 : vector<8x1x8xf32>
    %168 = arith.addf %162, %167 : vector<8x1x8xf32>
    %c5_60 = arith.constant 5 : index
    %c3_61 = arith.constant 3 : index
    %169 = memref.load %arg6[%c5_60, %c3_61] : memref<8x4xf32, #tpu.memory_space<smem>>
    %170 = vector.extract_strided_slice %36 {offsets = [3, 0, 0, 0], sizes = [1, 8, 1, 8], strides = [1, 1, 1, 1]} : vector<4x8x1x8xf32> to vector<1x8x1x8xf32>
    %171 = vector.shape_cast %170 : vector<1x8x1x8xf32> to vector<8x1x8xf32>
    %172 = vector.broadcast %169 : f32 to vector<8x1x8xf32>
    %173 = arith.mulf %172, %171 : vector<8x1x8xf32>
    %174 = arith.addf %168, %173 : vector<8x1x8xf32>
    %c6 = arith.constant 6 : index
    %c0_62 = arith.constant 0 : index
    %175 = memref.load %arg6[%c6, %c0_62] : memref<8x4xf32, #tpu.memory_space<smem>>
    %176 = vector.extract_strided_slice %36 {offsets = [0, 0, 0, 0], sizes = [1, 8, 1, 8], strides = [1, 1, 1, 1]} : vector<4x8x1x8xf32> to vector<1x8x1x8xf32>
    %177 = vector.shape_cast %176 : vector<1x8x1x8xf32> to vector<8x1x8xf32>
    %178 = vector.broadcast %175 : f32 to vector<8x1x8xf32>
    %179 = arith.mulf %178, %177 : vector<8x1x8xf32>
    %c6_63 = arith.constant 6 : index
    %c1_64 = arith.constant 1 : index
    %180 = memref.load %arg6[%c6_63, %c1_64] : memref<8x4xf32, #tpu.memory_space<smem>>
    %181 = vector.extract_strided_slice %36 {offsets = [1, 0, 0, 0], sizes = [1, 8, 1, 8], strides = [1, 1, 1, 1]} : vector<4x8x1x8xf32> to vector<1x8x1x8xf32>
    %182 = vector.shape_cast %181 : vector<1x8x1x8xf32> to vector<8x1x8xf32>
    %183 = vector.broadcast %180 : f32 to vector<8x1x8xf32>
    %184 = arith.mulf %183, %182 : vector<8x1x8xf32>
    %185 = arith.addf %179, %184 : vector<8x1x8xf32>
    %c6_65 = arith.constant 6 : index
    %c2_66 = arith.constant 2 : index
    %186 = memref.load %arg6[%c6_65, %c2_66] : memref<8x4xf32, #tpu.memory_space<smem>>
    %187 = vector.extract_strided_slice %36 {offsets = [2, 0, 0, 0], sizes = [1, 8, 1, 8], strides = [1, 1, 1, 1]} : vector<4x8x1x8xf32> to vector<1x8x1x8xf32>
    %188 = vector.shape_cast %187 : vector<1x8x1x8xf32> to vector<8x1x8xf32>
    %189 = vector.broadcast %186 : f32 to vector<8x1x8xf32>
    %190 = arith.mulf %189, %188 : vector<8x1x8xf32>
    %191 = arith.addf %185, %190 : vector<8x1x8xf32>
    %c6_67 = arith.constant 6 : index
    %c3_68 = arith.constant 3 : index
    %192 = memref.load %arg6[%c6_67, %c3_68] : memref<8x4xf32, #tpu.memory_space<smem>>
    %193 = vector.extract_strided_slice %36 {offsets = [3, 0, 0, 0], sizes = [1, 8, 1, 8], strides = [1, 1, 1, 1]} : vector<4x8x1x8xf32> to vector<1x8x1x8xf32>
    %194 = vector.shape_cast %193 : vector<1x8x1x8xf32> to vector<8x1x8xf32>
    %195 = vector.broadcast %192 : f32 to vector<8x1x8xf32>
    %196 = arith.mulf %195, %194 : vector<8x1x8xf32>
    %197 = arith.addf %191, %196 : vector<8x1x8xf32>
    %c7 = arith.constant 7 : index
    %c0_69 = arith.constant 0 : index
    %198 = memref.load %arg6[%c7, %c0_69] : memref<8x4xf32, #tpu.memory_space<smem>>
    %199 = vector.extract_strided_slice %36 {offsets = [0, 0, 0, 0], sizes = [1, 8, 1, 8], strides = [1, 1, 1, 1]} : vector<4x8x1x8xf32> to vector<1x8x1x8xf32>
    %200 = vector.shape_cast %199 : vector<1x8x1x8xf32> to vector<8x1x8xf32>
    %201 = vector.broadcast %198 : f32 to vector<8x1x8xf32>
    %202 = arith.mulf %201, %200 : vector<8x1x8xf32>
    %c7_70 = arith.constant 7 : index
    %c1_71 = arith.constant 1 : index
    %203 = memref.load %arg6[%c7_70, %c1_71] : memref<8x4xf32, #tpu.memory_space<smem>>
    %204 = vector.extract_strided_slice %36 {offsets = [1, 0, 0, 0], sizes = [1, 8, 1, 8], strides = [1, 1, 1, 1]} : vector<4x8x1x8xf32> to vector<1x8x1x8xf32>
    %205 = vector.shape_cast %204 : vector<1x8x1x8xf32> to vector<8x1x8xf32>
    %206 = vector.broadcast %203 : f32 to vector<8x1x8xf32>
    %207 = arith.mulf %206, %205 : vector<8x1x8xf32>
    %208 = arith.addf %202, %207 : vector<8x1x8xf32>
    %c7_72 = arith.constant 7 : index
    %c2_73 = arith.constant 2 : index
    %209 = memref.load %arg6[%c7_72, %c2_73] : memref<8x4xf32, #tpu.memory_space<smem>>
    %210 = vector.extract_strided_slice %36 {offsets = [2, 0, 0, 0], sizes = [1, 8, 1, 8], strides = [1, 1, 1, 1]} : vector<4x8x1x8xf32> to vector<1x8x1x8xf32>
    %211 = vector.shape_cast %210 : vector<1x8x1x8xf32> to vector<8x1x8xf32>
    %212 = vector.broadcast %209 : f32 to vector<8x1x8xf32>
    %213 = arith.mulf %212, %211 : vector<8x1x8xf32>
    %214 = arith.addf %208, %213 : vector<8x1x8xf32>
    %c7_74 = arith.constant 7 : index
    %c3_75 = arith.constant 3 : index
    %215 = memref.load %arg6[%c7_74, %c3_75] : memref<8x4xf32, #tpu.memory_space<smem>>
    %216 = vector.extract_strided_slice %36 {offsets = [3, 0, 0, 0], sizes = [1, 8, 1, 8], strides = [1, 1, 1, 1]} : vector<4x8x1x8xf32> to vector<1x8x1x8xf32>
    %217 = vector.shape_cast %216 : vector<1x8x1x8xf32> to vector<8x1x8xf32>
    %218 = vector.broadcast %215 : f32 to vector<8x1x8xf32>
    %219 = arith.mulf %218, %217 : vector<8x1x8xf32>
    %220 = arith.addf %214, %219 : vector<8x1x8xf32>
    %221 = vector.shape_cast %59 : vector<8x1x8xf32> to vector<1x8x1x8xf32>
    %222 = vector.shape_cast %82 : vector<8x1x8xf32> to vector<1x8x1x8xf32>
    %223 = vector.shape_cast %105 : vector<8x1x8xf32> to vector<1x8x1x8xf32>
    %224 = vector.shape_cast %128 : vector<8x1x8xf32> to vector<1x8x1x8xf32>
    %225 = vector.shape_cast %151 : vector<8x1x8xf32> to vector<1x8x1x8xf32>
    %226 = vector.shape_cast %174 : vector<8x1x8xf32> to vector<1x8x1x8xf32>
    %227 = vector.shape_cast %197 : vector<8x1x8xf32> to vector<1x8x1x8xf32>
    %228 = vector.shape_cast %220 : vector<8x1x8xf32> to vector<1x8x1x8xf32>
    %229 = tpu.concatenate %221, %222, %223, %224, %225, %226, %227, %228 in 0 : vector<1x8x1x8xf32>, vector<1x8x1x8xf32>, vector<1x8x1x8xf32>, vector<1x8x1x8xf32>, vector<1x8x1x8xf32>, vector<1x8x1x8xf32>, vector<1x8x1x8xf32>, vector<1x8x1x8xf32> -> vector<8x8x1x8xf32>
    %cst = arith.constant dense<0.000000e+00> : vector<8x1x8xf32>
    %230 = vector.multi_reduction <add>, %229, %cst [1] : vector<8x8x1x8xf32> to vector<8x1x8xf32>
    %cst_76 = arith.constant dense<0.000000e+00> : vector<8x1xf32>
    %231 = vector.multi_reduction <add>, %230, %cst_76 [2] : vector<8x1x8xf32> to vector<8x1xf32>
    %232 = vector.shape_cast %231 : vector<8x1xf32> to vector<8x1x1xf32>
    %c0_77 = arith.constant 0 : index
    %c0_78 = arith.constant 0 : index
    %c0_79 = arith.constant 0 : index
    %c0_80 = arith.constant 0 : index
    %233 = vector.load %arg7[%c0_77, %c0_78, %c0_79, %c0_80] : memref<1x8x1x1xf32, #tpu.memory_space<vmem>>, vector<1x8x1x1xf32>
    %234 = vector.shape_cast %233 : vector<1x8x1x1xf32> to vector<8x1x1xf32>
    %235 = vector.shape_cast %232 : vector<8x1x1xf32> to vector<1x8x1x1xf32>
    tpu.vector_store %arg7[%c0_77, %c0_78, %c0_79, %c0_80], %235 {strides = array<i32>} : memref<1x8x1x1xf32, #tpu.memory_space<vmem>>, vector<1x8x1x1xf32>,
    %236 = arith.mulf %229, %229 : vector<8x8x1x8xf32>
    %cst_81 = arith.constant dense<0.000000e+00> : vector<8x1x8xf32>
    %237 = vector.multi_reduction <add>, %236, %cst_81 [1] : vector<8x8x1x8xf32> to vector<8x1x8xf32>
    %cst_82 = arith.constant dense<0.000000e+00> : vector<8x1xf32>
    %238 = vector.multi_reduction <add>, %237, %cst_82 [2] : vector<8x1x8xf32> to vector<8x1xf32>
    %239 = vector.shape_cast %238 : vector<8x1xf32> to vector<8x1x1xf32>
    %c0_83 = arith.constant 0 : index
    %c0_84 = arith.constant 0 : index
    %c0_85 = arith.constant 0 : index
    %c0_86 = arith.constant 0 : index
    %240 = vector.load %arg8[%c0_83, %c0_84, %c0_85, %c0_86] : memref<1x8x1x1xf32, #tpu.memory_space<vmem>>, vector<1x8x1x1xf32>
    %241 = vector.shape_cast %240 : vector<1x8x1x1xf32> to vector<8x1x1xf32>
    %242 = vector.shape_cast %239 : vector<8x1x1xf32> to vector<1x8x1x1xf32>
    tpu.vector_store %arg8[%c0_83, %c0_84, %c0_85, %c0_86], %242 {strides = array<i32>} : memref<1x8x1x1xf32, #tpu.memory_space<vmem>>, vector<1x8x1x1xf32>,
    return
  }
  func.func @transform_0(%arg0: i32, %arg1: i32) -> (i32, i32, i32, i32, i32) {
    %c0_i32 = arith.constant 0 : i32
    %c0_i32_0 = arith.constant 0 : i32
    %c0_i32_1 = arith.constant 0 : i32
    %c0_i32_2 = arith.constant 0 : i32
    return %arg0, %arg1, %c0_i32, %c0_i32_0, %c0_i32_1 : i32, i32, i32, i32, i32
  }
  func.func @transform_1(%arg0: i32, %arg1: i32) -> (i32, i32, i32, i32, i32) {
    %c0_i32 = arith.constant 0 : i32
    %c0_i32_0 = arith.constant 0 : i32
    %c0_i32_1 = arith.constant 0 : i32
    %c0_i32_2 = arith.constant 0 : i32
    return %arg0, %arg1, %c0_i32, %c0_i32_0, %c0_i32_1 : i32, i32, i32, i32, i32
  }
  func.func @transform_2(%arg0: i32, %arg1: i32) -> (i32, i32, i32, i32, i32) {
    %c1_i32 = arith.constant 1 : i32
    %0 = arith.addi %arg1, %c1_i32 : i32
    %c8_i32 = arith.constant 8 : i32
    %1 = arith.muli %0, %c8_i32 : i32
    %c0_i32 = arith.constant 0 : i32
    %c0_i32_0 = arith.constant 0 : i32
    %c0_i32_1 = arith.constant 0 : i32
    %c0_i32_2 = arith.constant 0 : i32
    return %arg0, %1, %c0_i32, %c0_i32_0, %c0_i32_1 : i32, i32, i32, i32, i32
  }
  func.func @transform_3(%arg0: i32, %arg1: i32) -> (i32, i32, i32, i32, i32) {
    %c1_i32 = arith.constant 1 : i32
    %0 = arith.addi %arg1, %c1_i32 : i32
    %c8_i32 = arith.constant 8 : i32
    %1 = arith.muli %0, %c8_i32 : i32
    %c0_i32 = arith.constant 0 : i32
    %c0_i32_0 = arith.constant 0 : i32
    %c0_i32_1 = arith.constant 0 : i32
    %c0_i32_2 = arith.constant 0 : i32
    return %arg0, %1, %c0_i32, %c0_i32_0, %c0_i32_1 : i32, i32, i32, i32, i32
  }
  func.func @transform_4(%arg0: i32, %arg1: i32) -> (i32, i32) {
    %c0_i32 = arith.constant 0 : i32
    %c0_i32_0 = arith.constant 0 : i32
    %c0_i32_1 = arith.constant 0 : i32
    return %c0_i32, %c0_i32_0 : i32, i32
  }
  func.func @transform_5(%arg0: i32, %arg1: i32) -> (i32, i32, i32, i32) {
    %c1_i32 = arith.constant 1 : i32
    %0 = arith.muli %arg0, %c1_i32 : i32
    %1 = arith.addi %0, %arg1 : i32
    %c0_i32 = arith.constant 0 : i32
    %c0_i32_0 = arith.constant 0 : i32
    %c0_i32_1 = arith.constant 0 : i32
    %c0_i32_2 = arith.constant 0 : i32
    return %1, %c0_i32, %c0_i32_0, %c0_i32_1 : i32, i32, i32, i32
  }
  func.func @transform_6(%arg0: i32, %arg1: i32) -> (i32, i32, i32, i32) {
    %c1_i32 = arith.constant 1 : i32
    %0 = arith.muli %arg0, %c1_i32 : i32
    %1 = arith.addi %0, %arg1 : i32
    %c0_i32 = arith.constant 0 : i32
    %c0_i32_0 = arith.constant 0 : i32
    %c0_i32_1 = arith.constant 0 : i32
    %c0_i32_2 = arith.constant 0 : i32
    return %1, %c0_i32, %c0_i32_0, %c0_i32_1 : i32, i32, i32, i32
  }
}

module attributes {stable_mosaic.version = 11 : i64} {
  func.func @apply_kernel(%arg0: i32, %arg1: i32, %arg2: memref<4x8x2x1x9xf32, #tpu.memory_space<vmem>>, %arg3: memref<4x8x2x1x9xf32, #tpu.memory_space<vmem>>, %arg4: memref<4x1x2x1x9xf32, #tpu.memory_space<vmem>>, %arg5: memref<4x1x2x1x9xf32, #tpu.memory_space<vmem>>, %arg6: memref<8x4xf32, #tpu.memory_space<smem>>, %arg7: memref<8xf32, #tpu.memory_space<smem>>, %arg8: memref<8xf32, #tpu.memory_space<smem>>, %arg9: memref<8x8x1x8xf32, #tpu.memory_space<vmem>>) attributes {dimension_semantics = [#tpu.dimension_semantics<parallel>, #tpu.dimension_semantics<parallel>], iteration_bounds = array<i64: 2, 1>, scalar_prefetch = 0 : i64, scratch_operands = 0 : i64, tpu.core_type = #tpu.core_type<tc>, window_params = [{transform_indices = @transform_0, window_bounds = array<i64: 4, 8, 2, 1, 9>}, {transform_indices = @transform_1, window_bounds = array<i64: 4, 8, 2, 1, 9>}, {transform_indices = @transform_2, window_bounds = array<i64: 4, 1, 2, 1, 9>}, {transform_indices = @transform_3, window_bounds = array<i64: 4, 1, 2, 1, 9>}, {transform_indices = @transform_4, window_bounds = array<i64: 8, 4>}, {transform_indices = @transform_5, window_bounds = array<i64: 8>}, {transform_indices = @transform_6, window_bounds = array<i64: 8>}, {transform_indices = @transform_7, window_bounds = array<i64: 8, 8, 1, 8>}]} {
    %c0 = arith.constant 0 : index
    %c0_0 = arith.constant 0 : index
    %c0_1 = arith.constant 0 : index
    %c0_2 = arith.constant 0 : index
    %c0_3 = arith.constant 0 : index
    %0 = vector.load %arg2[%c0, %c0_0, %c0_1, %c0_2, %c0_3] : memref<4x8x2x1x9xf32, #tpu.memory_space<vmem>>, vector<4x8x2x1x9xf32>
    %c0_4 = arith.constant 0 : index
    %c0_5 = arith.constant 0 : index
    %c0_6 = arith.constant 0 : index
    %c0_7 = arith.constant 0 : index
    %c0_8 = arith.constant 0 : index
    %1 = vector.load %arg3[%c0_4, %c0_5, %c0_6, %c0_7, %c0_8] : memref<4x8x2x1x9xf32, #tpu.memory_space<vmem>>, vector<4x8x2x1x9xf32>
    %c0_9 = arith.constant 0 : index
    %c0_10 = arith.constant 0 : index
    %c0_11 = arith.constant 0 : index
    %c0_12 = arith.constant 0 : index
    %c0_13 = arith.constant 0 : index
    %2 = vector.load %arg4[%c0_9, %c0_10, %c0_11, %c0_12, %c0_13] : memref<4x1x2x1x9xf32, #tpu.memory_space<vmem>>, vector<4x1x2x1x9xf32>
    %c0_14 = arith.constant 0 : index
    %c0_15 = arith.constant 0 : index
    %c0_16 = arith.constant 0 : index
    %c0_17 = arith.constant 0 : index
    %c0_18 = arith.constant 0 : index
    %3 = vector.load %arg5[%c0_14, %c0_15, %c0_16, %c0_17, %c0_18] : memref<4x1x2x1x9xf32, #tpu.memory_space<vmem>>, vector<4x1x2x1x9xf32>
    %4 = vector.extract_strided_slice %0 {offsets = [0, 0, 0, 0, 0], sizes = [4, 8, 1, 1, 9], strides = [1, 1, 1, 1, 1]} : vector<4x8x2x1x9xf32> to vector<4x8x1x1x9xf32>
    %5 = vector.shape_cast %4 : vector<4x8x1x1x9xf32> to vector<4x8x1x9xf32>
    %6 = vector.extract_strided_slice %0 {offsets = [0, 0, 1, 0, 0], sizes = [4, 8, 1, 1, 9], strides = [1, 1, 1, 1, 1]} : vector<4x8x2x1x9xf32> to vector<4x8x1x1x9xf32>
    %7 = vector.shape_cast %6 : vector<4x8x1x1x9xf32> to vector<4x8x1x9xf32>
    %8 = vector.extract_strided_slice %1 {offsets = [0, 0, 0, 0, 0], sizes = [4, 8, 1, 1, 9], strides = [1, 1, 1, 1, 1]} : vector<4x8x2x1x9xf32> to vector<4x8x1x1x9xf32>
    %9 = vector.shape_cast %8 : vector<4x8x1x1x9xf32> to vector<4x8x1x9xf32>
    %10 = vector.extract_strided_slice %1 {offsets = [0, 0, 1, 0, 0], sizes = [4, 8, 1, 1, 9], strides = [1, 1, 1, 1, 1]} : vector<4x8x2x1x9xf32> to vector<4x8x1x1x9xf32>
    %11 = vector.shape_cast %10 : vector<4x8x1x1x9xf32> to vector<4x8x1x9xf32>
    %12 = vector.extract_strided_slice %2 {offsets = [0, 0, 0, 0, 0], sizes = [4, 1, 1, 1, 9], strides = [1, 1, 1, 1, 1]} : vector<4x1x2x1x9xf32> to vector<4x1x1x1x9xf32>
    %13 = vector.shape_cast %12 : vector<4x1x1x1x9xf32> to vector<4x1x1x9xf32>
    %14 = vector.extract_strided_slice %3 {offsets = [0, 0, 0, 0, 0], sizes = [4, 1, 1, 1, 9], strides = [1, 1, 1, 1, 1]} : vector<4x1x2x1x9xf32> to vector<4x1x1x1x9xf32>
    %15 = vector.shape_cast %14 : vector<4x1x1x1x9xf32> to vector<4x1x1x9xf32>
    %16 = vector.extract_strided_slice %5 {offsets = [0, 1, 0, 0], sizes = [4, 7, 1, 9], strides = [1, 1, 1, 1]} : vector<4x8x1x9xf32> to vector<4x7x1x9xf32>
    %17 = tpu.concatenate %16, %13 in 1 : vector<4x7x1x9xf32>, vector<4x1x1x9xf32> -> vector<4x8x1x9xf32>
    %18 = vector.extract_strided_slice %9 {offsets = [0, 1, 0, 0], sizes = [4, 7, 1, 9], strides = [1, 1, 1, 1]} : vector<4x8x1x9xf32> to vector<4x7x1x9xf32>
    %19 = tpu.concatenate %18, %15 in 1 : vector<4x7x1x9xf32>, vector<4x1x1x9xf32> -> vector<4x8x1x9xf32>
    %20 = vector.extract_strided_slice %5 {offsets = [0, 0, 0, 0], sizes = [4, 8, 1, 8], strides = [1, 1, 1, 1]} : vector<4x8x1x9xf32> to vector<4x8x1x8xf32>
    %21 = vector.extract_strided_slice %9 {offsets = [0, 0, 0, 0], sizes = [4, 8, 1, 8], strides = [1, 1, 1, 1]} : vector<4x8x1x9xf32> to vector<4x8x1x8xf32>
    %22 = arith.addf %20, %21 : vector<4x8x1x8xf32>
    %23 = vector.extract_strided_slice %5 {offsets = [0, 0, 0, 1], sizes = [4, 8, 1, 8], strides = [1, 1, 1, 1]} : vector<4x8x1x9xf32> to vector<4x8x1x8xf32>
    %24 = arith.addf %22, %23 : vector<4x8x1x8xf32>
    %25 = vector.extract_strided_slice %7 {offsets = [0, 0, 0, 0], sizes = [4, 8, 1, 8], strides = [1, 1, 1, 1]} : vector<4x8x1x9xf32> to vector<4x8x1x8xf32>
    %26 = vector.extract_strided_slice %11 {offsets = [0, 0, 0, 0], sizes = [4, 8, 1, 8], strides = [1, 1, 1, 1]} : vector<4x8x1x9xf32> to vector<4x8x1x8xf32>
    %27 = arith.addf %25, %26 : vector<4x8x1x8xf32>
    %28 = vector.extract_strided_slice %7 {offsets = [0, 0, 0, 1], sizes = [4, 8, 1, 8], strides = [1, 1, 1, 1]} : vector<4x8x1x9xf32> to vector<4x8x1x8xf32>
    %29 = arith.addf %27, %28 : vector<4x8x1x8xf32>
    %30 = arith.addf %24, %29 : vector<4x8x1x8xf32>
    %31 = vector.extract_strided_slice %17 {offsets = [0, 0, 0, 0], sizes = [4, 8, 1, 8], strides = [1, 1, 1, 1]} : vector<4x8x1x9xf32> to vector<4x8x1x8xf32>
    %32 = vector.extract_strided_slice %19 {offsets = [0, 0, 0, 0], sizes = [4, 8, 1, 8], strides = [1, 1, 1, 1]} : vector<4x8x1x9xf32> to vector<4x8x1x8xf32>
    %33 = arith.addf %31, %32 : vector<4x8x1x8xf32>
    %34 = vector.extract_strided_slice %17 {offsets = [0, 0, 0, 1], sizes = [4, 8, 1, 8], strides = [1, 1, 1, 1]} : vector<4x8x1x9xf32> to vector<4x8x1x8xf32>
    %35 = arith.addf %33, %34 : vector<4x8x1x8xf32>
    %36 = arith.addf %30, %35 : vector<4x8x1x8xf32>
    %c0_19 = arith.constant 0 : index
    %c0_20 = arith.constant 0 : index
    %37 = memref.load %arg6[%c0_19, %c0_20] : memref<8x4xf32, #tpu.memory_space<smem>>
    %38 = vector.extract_strided_slice %36 {offsets = [0, 0, 0, 0], sizes = [1, 8, 1, 8], strides = [1, 1, 1, 1]} : vector<4x8x1x8xf32> to vector<1x8x1x8xf32>
    %39 = vector.shape_cast %38 : vector<1x8x1x8xf32> to vector<8x1x8xf32>
    %40 = vector.broadcast %37 : f32 to vector<8x1x8xf32>
    %41 = arith.mulf %40, %39 : vector<8x1x8xf32>
    %c0_21 = arith.constant 0 : index
    %c1 = arith.constant 1 : index
    %42 = memref.load %arg6[%c0_21, %c1] : memref<8x4xf32, #tpu.memory_space<smem>>
    %43 = vector.extract_strided_slice %36 {offsets = [1, 0, 0, 0], sizes = [1, 8, 1, 8], strides = [1, 1, 1, 1]} : vector<4x8x1x8xf32> to vector<1x8x1x8xf32>
    %44 = vector.shape_cast %43 : vector<1x8x1x8xf32> to vector<8x1x8xf32>
    %45 = vector.broadcast %42 : f32 to vector<8x1x8xf32>
    %46 = arith.mulf %45, %44 : vector<8x1x8xf32>
    %47 = arith.addf %41, %46 : vector<8x1x8xf32>
    %c0_22 = arith.constant 0 : index
    %c2 = arith.constant 2 : index
    %48 = memref.load %arg6[%c0_22, %c2] : memref<8x4xf32, #tpu.memory_space<smem>>
    %49 = vector.extract_strided_slice %36 {offsets = [2, 0, 0, 0], sizes = [1, 8, 1, 8], strides = [1, 1, 1, 1]} : vector<4x8x1x8xf32> to vector<1x8x1x8xf32>
    %50 = vector.shape_cast %49 : vector<1x8x1x8xf32> to vector<8x1x8xf32>
    %51 = vector.broadcast %48 : f32 to vector<8x1x8xf32>
    %52 = arith.mulf %51, %50 : vector<8x1x8xf32>
    %53 = arith.addf %47, %52 : vector<8x1x8xf32>
    %c0_23 = arith.constant 0 : index
    %c3 = arith.constant 3 : index
    %54 = memref.load %arg6[%c0_23, %c3] : memref<8x4xf32, #tpu.memory_space<smem>>
    %55 = vector.extract_strided_slice %36 {offsets = [3, 0, 0, 0], sizes = [1, 8, 1, 8], strides = [1, 1, 1, 1]} : vector<4x8x1x8xf32> to vector<1x8x1x8xf32>
    %56 = vector.shape_cast %55 : vector<1x8x1x8xf32> to vector<8x1x8xf32>
    %57 = vector.broadcast %54 : f32 to vector<8x1x8xf32>
    %58 = arith.mulf %57, %56 : vector<8x1x8xf32>
    %59 = arith.addf %53, %58 : vector<8x1x8xf32>
    %c1_24 = arith.constant 1 : index
    %c0_25 = arith.constant 0 : index
    %60 = memref.load %arg6[%c1_24, %c0_25] : memref<8x4xf32, #tpu.memory_space<smem>>
    %61 = vector.extract_strided_slice %36 {offsets = [0, 0, 0, 0], sizes = [1, 8, 1, 8], strides = [1, 1, 1, 1]} : vector<4x8x1x8xf32> to vector<1x8x1x8xf32>
    %62 = vector.shape_cast %61 : vector<1x8x1x8xf32> to vector<8x1x8xf32>
    %63 = vector.broadcast %60 : f32 to vector<8x1x8xf32>
    %64 = arith.mulf %63, %62 : vector<8x1x8xf32>
    %c1_26 = arith.constant 1 : index
    %c1_27 = arith.constant 1 : index
    %65 = memref.load %arg6[%c1_26, %c1_27] : memref<8x4xf32, #tpu.memory_space<smem>>
    %66 = vector.extract_strided_slice %36 {offsets = [1, 0, 0, 0], sizes = [1, 8, 1, 8], strides = [1, 1, 1, 1]} : vector<4x8x1x8xf32> to vector<1x8x1x8xf32>
    %67 = vector.shape_cast %66 : vector<1x8x1x8xf32> to vector<8x1x8xf32>
    %68 = vector.broadcast %65 : f32 to vector<8x1x8xf32>
    %69 = arith.mulf %68, %67 : vector<8x1x8xf32>
    %70 = arith.addf %64, %69 : vector<8x1x8xf32>
    %c1_28 = arith.constant 1 : index
    %c2_29 = arith.constant 2 : index
    %71 = memref.load %arg6[%c1_28, %c2_29] : memref<8x4xf32, #tpu.memory_space<smem>>
    %72 = vector.extract_strided_slice %36 {offsets = [2, 0, 0, 0], sizes = [1, 8, 1, 8], strides = [1, 1, 1, 1]} : vector<4x8x1x8xf32> to vector<1x8x1x8xf32>
    %73 = vector.shape_cast %72 : vector<1x8x1x8xf32> to vector<8x1x8xf32>
    %74 = vector.broadcast %71 : f32 to vector<8x1x8xf32>
    %75 = arith.mulf %74, %73 : vector<8x1x8xf32>
    %76 = arith.addf %70, %75 : vector<8x1x8xf32>
    %c1_30 = arith.constant 1 : index
    %c3_31 = arith.constant 3 : index
    %77 = memref.load %arg6[%c1_30, %c3_31] : memref<8x4xf32, #tpu.memory_space<smem>>
    %78 = vector.extract_strided_slice %36 {offsets = [3, 0, 0, 0], sizes = [1, 8, 1, 8], strides = [1, 1, 1, 1]} : vector<4x8x1x8xf32> to vector<1x8x1x8xf32>
    %79 = vector.shape_cast %78 : vector<1x8x1x8xf32> to vector<8x1x8xf32>
    %80 = vector.broadcast %77 : f32 to vector<8x1x8xf32>
    %81 = arith.mulf %80, %79 : vector<8x1x8xf32>
    %82 = arith.addf %76, %81 : vector<8x1x8xf32>
    %c2_32 = arith.constant 2 : index
    %c0_33 = arith.constant 0 : index
    %83 = memref.load %arg6[%c2_32, %c0_33] : memref<8x4xf32, #tpu.memory_space<smem>>
    %84 = vector.extract_strided_slice %36 {offsets = [0, 0, 0, 0], sizes = [1, 8, 1, 8], strides = [1, 1, 1, 1]} : vector<4x8x1x8xf32> to vector<1x8x1x8xf32>
    %85 = vector.shape_cast %84 : vector<1x8x1x8xf32> to vector<8x1x8xf32>
    %86 = vector.broadcast %83 : f32 to vector<8x1x8xf32>
    %87 = arith.mulf %86, %85 : vector<8x1x8xf32>
    %c2_34 = arith.constant 2 : index
    %c1_35 = arith.constant 1 : index
    %88 = memref.load %arg6[%c2_34, %c1_35] : memref<8x4xf32, #tpu.memory_space<smem>>
    %89 = vector.extract_strided_slice %36 {offsets = [1, 0, 0, 0], sizes = [1, 8, 1, 8], strides = [1, 1, 1, 1]} : vector<4x8x1x8xf32> to vector<1x8x1x8xf32>
    %90 = vector.shape_cast %89 : vector<1x8x1x8xf32> to vector<8x1x8xf32>
    %91 = vector.broadcast %88 : f32 to vector<8x1x8xf32>
    %92 = arith.mulf %91, %90 : vector<8x1x8xf32>
    %93 = arith.addf %87, %92 : vector<8x1x8xf32>
    %c2_36 = arith.constant 2 : index
    %c2_37 = arith.constant 2 : index
    %94 = memref.load %arg6[%c2_36, %c2_37] : memref<8x4xf32, #tpu.memory_space<smem>>
    %95 = vector.extract_strided_slice %36 {offsets = [2, 0, 0, 0], sizes = [1, 8, 1, 8], strides = [1, 1, 1, 1]} : vector<4x8x1x8xf32> to vector<1x8x1x8xf32>
    %96 = vector.shape_cast %95 : vector<1x8x1x8xf32> to vector<8x1x8xf32>
    %97 = vector.broadcast %94 : f32 to vector<8x1x8xf32>
    %98 = arith.mulf %97, %96 : vector<8x1x8xf32>
    %99 = arith.addf %93, %98 : vector<8x1x8xf32>
    %c2_38 = arith.constant 2 : index
    %c3_39 = arith.constant 3 : index
    %100 = memref.load %arg6[%c2_38, %c3_39] : memref<8x4xf32, #tpu.memory_space<smem>>
    %101 = vector.extract_strided_slice %36 {offsets = [3, 0, 0, 0], sizes = [1, 8, 1, 8], strides = [1, 1, 1, 1]} : vector<4x8x1x8xf32> to vector<1x8x1x8xf32>
    %102 = vector.shape_cast %101 : vector<1x8x1x8xf32> to vector<8x1x8xf32>
    %103 = vector.broadcast %100 : f32 to vector<8x1x8xf32>
    %104 = arith.mulf %103, %102 : vector<8x1x8xf32>
    %105 = arith.addf %99, %104 : vector<8x1x8xf32>
    %c3_40 = arith.constant 3 : index
    %c0_41 = arith.constant 0 : index
    %106 = memref.load %arg6[%c3_40, %c0_41] : memref<8x4xf32, #tpu.memory_space<smem>>
    %107 = vector.extract_strided_slice %36 {offsets = [0, 0, 0, 0], sizes = [1, 8, 1, 8], strides = [1, 1, 1, 1]} : vector<4x8x1x8xf32> to vector<1x8x1x8xf32>
    %108 = vector.shape_cast %107 : vector<1x8x1x8xf32> to vector<8x1x8xf32>
    %109 = vector.broadcast %106 : f32 to vector<8x1x8xf32>
    %110 = arith.mulf %109, %108 : vector<8x1x8xf32>
    %c3_42 = arith.constant 3 : index
    %c1_43 = arith.constant 1 : index
    %111 = memref.load %arg6[%c3_42, %c1_43] : memref<8x4xf32, #tpu.memory_space<smem>>
    %112 = vector.extract_strided_slice %36 {offsets = [1, 0, 0, 0], sizes = [1, 8, 1, 8], strides = [1, 1, 1, 1]} : vector<4x8x1x8xf32> to vector<1x8x1x8xf32>
    %113 = vector.shape_cast %112 : vector<1x8x1x8xf32> to vector<8x1x8xf32>
    %114 = vector.broadcast %111 : f32 to vector<8x1x8xf32>
    %115 = arith.mulf %114, %113 : vector<8x1x8xf32>
    %116 = arith.addf %110, %115 : vector<8x1x8xf32>
    %c3_44 = arith.constant 3 : index
    %c2_45 = arith.constant 2 : index
    %117 = memref.load %arg6[%c3_44, %c2_45] : memref<8x4xf32, #tpu.memory_space<smem>>
    %118 = vector.extract_strided_slice %36 {offsets = [2, 0, 0, 0], sizes = [1, 8, 1, 8], strides = [1, 1, 1, 1]} : vector<4x8x1x8xf32> to vector<1x8x1x8xf32>
    %119 = vector.shape_cast %118 : vector<1x8x1x8xf32> to vector<8x1x8xf32>
    %120 = vector.broadcast %117 : f32 to vector<8x1x8xf32>
    %121 = arith.mulf %120, %119 : vector<8x1x8xf32>
    %122 = arith.addf %116, %121 : vector<8x1x8xf32>
    %c3_46 = arith.constant 3 : index
    %c3_47 = arith.constant 3 : index
    %123 = memref.load %arg6[%c3_46, %c3_47] : memref<8x4xf32, #tpu.memory_space<smem>>
    %124 = vector.extract_strided_slice %36 {offsets = [3, 0, 0, 0], sizes = [1, 8, 1, 8], strides = [1, 1, 1, 1]} : vector<4x8x1x8xf32> to vector<1x8x1x8xf32>
    %125 = vector.shape_cast %124 : vector<1x8x1x8xf32> to vector<8x1x8xf32>
    %126 = vector.broadcast %123 : f32 to vector<8x1x8xf32>
    %127 = arith.mulf %126, %125 : vector<8x1x8xf32>
    %128 = arith.addf %122, %127 : vector<8x1x8xf32>
    %c4 = arith.constant 4 : index
    %c0_48 = arith.constant 0 : index
    %129 = memref.load %arg6[%c4, %c0_48] : memref<8x4xf32, #tpu.memory_space<smem>>
    %130 = vector.extract_strided_slice %36 {offsets = [0, 0, 0, 0], sizes = [1, 8, 1, 8], strides = [1, 1, 1, 1]} : vector<4x8x1x8xf32> to vector<1x8x1x8xf32>
    %131 = vector.shape_cast %130 : vector<1x8x1x8xf32> to vector<8x1x8xf32>
    %132 = vector.broadcast %129 : f32 to vector<8x1x8xf32>
    %133 = arith.mulf %132, %131 : vector<8x1x8xf32>
    %c4_49 = arith.constant 4 : index
    %c1_50 = arith.constant 1 : index
    %134 = memref.load %arg6[%c4_49, %c1_50] : memref<8x4xf32, #tpu.memory_space<smem>>
    %135 = vector.extract_strided_slice %36 {offsets = [1, 0, 0, 0], sizes = [1, 8, 1, 8], strides = [1, 1, 1, 1]} : vector<4x8x1x8xf32> to vector<1x8x1x8xf32>
    %136 = vector.shape_cast %135 : vector<1x8x1x8xf32> to vector<8x1x8xf32>
    %137 = vector.broadcast %134 : f32 to vector<8x1x8xf32>
    %138 = arith.mulf %137, %136 : vector<8x1x8xf32>
    %139 = arith.addf %133, %138 : vector<8x1x8xf32>
    %c4_51 = arith.constant 4 : index
    %c2_52 = arith.constant 2 : index
    %140 = memref.load %arg6[%c4_51, %c2_52] : memref<8x4xf32, #tpu.memory_space<smem>>
    %141 = vector.extract_strided_slice %36 {offsets = [2, 0, 0, 0], sizes = [1, 8, 1, 8], strides = [1, 1, 1, 1]} : vector<4x8x1x8xf32> to vector<1x8x1x8xf32>
    %142 = vector.shape_cast %141 : vector<1x8x1x8xf32> to vector<8x1x8xf32>
    %143 = vector.broadcast %140 : f32 to vector<8x1x8xf32>
    %144 = arith.mulf %143, %142 : vector<8x1x8xf32>
    %145 = arith.addf %139, %144 : vector<8x1x8xf32>
    %c4_53 = arith.constant 4 : index
    %c3_54 = arith.constant 3 : index
    %146 = memref.load %arg6[%c4_53, %c3_54] : memref<8x4xf32, #tpu.memory_space<smem>>
    %147 = vector.extract_strided_slice %36 {offsets = [3, 0, 0, 0], sizes = [1, 8, 1, 8], strides = [1, 1, 1, 1]} : vector<4x8x1x8xf32> to vector<1x8x1x8xf32>
    %148 = vector.shape_cast %147 : vector<1x8x1x8xf32> to vector<8x1x8xf32>
    %149 = vector.broadcast %146 : f32 to vector<8x1x8xf32>
    %150 = arith.mulf %149, %148 : vector<8x1x8xf32>
    %151 = arith.addf %145, %150 : vector<8x1x8xf32>
    %c5 = arith.constant 5 : index
    %c0_55 = arith.constant 0 : index
    %152 = memref.load %arg6[%c5, %c0_55] : memref<8x4xf32, #tpu.memory_space<smem>>
    %153 = vector.extract_strided_slice %36 {offsets = [0, 0, 0, 0], sizes = [1, 8, 1, 8], strides = [1, 1, 1, 1]} : vector<4x8x1x8xf32> to vector<1x8x1x8xf32>
    %154 = vector.shape_cast %153 : vector<1x8x1x8xf32> to vector<8x1x8xf32>
    %155 = vector.broadcast %152 : f32 to vector<8x1x8xf32>
    %156 = arith.mulf %155, %154 : vector<8x1x8xf32>
    %c5_56 = arith.constant 5 : index
    %c1_57 = arith.constant 1 : index
    %157 = memref.load %arg6[%c5_56, %c1_57] : memref<8x4xf32, #tpu.memory_space<smem>>
    %158 = vector.extract_strided_slice %36 {offsets = [1, 0, 0, 0], sizes = [1, 8, 1, 8], strides = [1, 1, 1, 1]} : vector<4x8x1x8xf32> to vector<1x8x1x8xf32>
    %159 = vector.shape_cast %158 : vector<1x8x1x8xf32> to vector<8x1x8xf32>
    %160 = vector.broadcast %157 : f32 to vector<8x1x8xf32>
    %161 = arith.mulf %160, %159 : vector<8x1x8xf32>
    %162 = arith.addf %156, %161 : vector<8x1x8xf32>
    %c5_58 = arith.constant 5 : index
    %c2_59 = arith.constant 2 : index
    %163 = memref.load %arg6[%c5_58, %c2_59] : memref<8x4xf32, #tpu.memory_space<smem>>
    %164 = vector.extract_strided_slice %36 {offsets = [2, 0, 0, 0], sizes = [1, 8, 1, 8], strides = [1, 1, 1, 1]} : vector<4x8x1x8xf32> to vector<1x8x1x8xf32>
    %165 = vector.shape_cast %164 : vector<1x8x1x8xf32> to vector<8x1x8xf32>
    %166 = vector.broadcast %163 : f32 to vector<8x1x8xf32>
    %167 = arith.mulf %166, %165 : vector<8x1x8xf32>
    %168 = arith.addf %162, %167 : vector<8x1x8xf32>
    %c5_60 = arith.constant 5 : index
    %c3_61 = arith.constant 3 : index
    %169 = memref.load %arg6[%c5_60, %c3_61] : memref<8x4xf32, #tpu.memory_space<smem>>
    %170 = vector.extract_strided_slice %36 {offsets = [3, 0, 0, 0], sizes = [1, 8, 1, 8], strides = [1, 1, 1, 1]} : vector<4x8x1x8xf32> to vector<1x8x1x8xf32>
    %171 = vector.shape_cast %170 : vector<1x8x1x8xf32> to vector<8x1x8xf32>
    %172 = vector.broadcast %169 : f32 to vector<8x1x8xf32>
    %173 = arith.mulf %172, %171 : vector<8x1x8xf32>
    %174 = arith.addf %168, %173 : vector<8x1x8xf32>
    %c6 = arith.constant 6 : index
    %c0_62 = arith.constant 0 : index
    %175 = memref.load %arg6[%c6, %c0_62] : memref<8x4xf32, #tpu.memory_space<smem>>
    %176 = vector.extract_strided_slice %36 {offsets = [0, 0, 0, 0], sizes = [1, 8, 1, 8], strides = [1, 1, 1, 1]} : vector<4x8x1x8xf32> to vector<1x8x1x8xf32>
    %177 = vector.shape_cast %176 : vector<1x8x1x8xf32> to vector<8x1x8xf32>
    %178 = vector.broadcast %175 : f32 to vector<8x1x8xf32>
    %179 = arith.mulf %178, %177 : vector<8x1x8xf32>
    %c6_63 = arith.constant 6 : index
    %c1_64 = arith.constant 1 : index
    %180 = memref.load %arg6[%c6_63, %c1_64] : memref<8x4xf32, #tpu.memory_space<smem>>
    %181 = vector.extract_strided_slice %36 {offsets = [1, 0, 0, 0], sizes = [1, 8, 1, 8], strides = [1, 1, 1, 1]} : vector<4x8x1x8xf32> to vector<1x8x1x8xf32>
    %182 = vector.shape_cast %181 : vector<1x8x1x8xf32> to vector<8x1x8xf32>
    %183 = vector.broadcast %180 : f32 to vector<8x1x8xf32>
    %184 = arith.mulf %183, %182 : vector<8x1x8xf32>
    %185 = arith.addf %179, %184 : vector<8x1x8xf32>
    %c6_65 = arith.constant 6 : index
    %c2_66 = arith.constant 2 : index
    %186 = memref.load %arg6[%c6_65, %c2_66] : memref<8x4xf32, #tpu.memory_space<smem>>
    %187 = vector.extract_strided_slice %36 {offsets = [2, 0, 0, 0], sizes = [1, 8, 1, 8], strides = [1, 1, 1, 1]} : vector<4x8x1x8xf32> to vector<1x8x1x8xf32>
    %188 = vector.shape_cast %187 : vector<1x8x1x8xf32> to vector<8x1x8xf32>
    %189 = vector.broadcast %186 : f32 to vector<8x1x8xf32>
    %190 = arith.mulf %189, %188 : vector<8x1x8xf32>
    %191 = arith.addf %185, %190 : vector<8x1x8xf32>
    %c6_67 = arith.constant 6 : index
    %c3_68 = arith.constant 3 : index
    %192 = memref.load %arg6[%c6_67, %c3_68] : memref<8x4xf32, #tpu.memory_space<smem>>
    %193 = vector.extract_strided_slice %36 {offsets = [3, 0, 0, 0], sizes = [1, 8, 1, 8], strides = [1, 1, 1, 1]} : vector<4x8x1x8xf32> to vector<1x8x1x8xf32>
    %194 = vector.shape_cast %193 : vector<1x8x1x8xf32> to vector<8x1x8xf32>
    %195 = vector.broadcast %192 : f32 to vector<8x1x8xf32>
    %196 = arith.mulf %195, %194 : vector<8x1x8xf32>
    %197 = arith.addf %191, %196 : vector<8x1x8xf32>
    %c7 = arith.constant 7 : index
    %c0_69 = arith.constant 0 : index
    %198 = memref.load %arg6[%c7, %c0_69] : memref<8x4xf32, #tpu.memory_space<smem>>
    %199 = vector.extract_strided_slice %36 {offsets = [0, 0, 0, 0], sizes = [1, 8, 1, 8], strides = [1, 1, 1, 1]} : vector<4x8x1x8xf32> to vector<1x8x1x8xf32>
    %200 = vector.shape_cast %199 : vector<1x8x1x8xf32> to vector<8x1x8xf32>
    %201 = vector.broadcast %198 : f32 to vector<8x1x8xf32>
    %202 = arith.mulf %201, %200 : vector<8x1x8xf32>
    %c7_70 = arith.constant 7 : index
    %c1_71 = arith.constant 1 : index
    %203 = memref.load %arg6[%c7_70, %c1_71] : memref<8x4xf32, #tpu.memory_space<smem>>
    %204 = vector.extract_strided_slice %36 {offsets = [1, 0, 0, 0], sizes = [1, 8, 1, 8], strides = [1, 1, 1, 1]} : vector<4x8x1x8xf32> to vector<1x8x1x8xf32>
    %205 = vector.shape_cast %204 : vector<1x8x1x8xf32> to vector<8x1x8xf32>
    %206 = vector.broadcast %203 : f32 to vector<8x1x8xf32>
    %207 = arith.mulf %206, %205 : vector<8x1x8xf32>
    %208 = arith.addf %202, %207 : vector<8x1x8xf32>
    %c7_72 = arith.constant 7 : index
    %c2_73 = arith.constant 2 : index
    %209 = memref.load %arg6[%c7_72, %c2_73] : memref<8x4xf32, #tpu.memory_space<smem>>
    %210 = vector.extract_strided_slice %36 {offsets = [2, 0, 0, 0], sizes = [1, 8, 1, 8], strides = [1, 1, 1, 1]} : vector<4x8x1x8xf32> to vector<1x8x1x8xf32>
    %211 = vector.shape_cast %210 : vector<1x8x1x8xf32> to vector<8x1x8xf32>
    %212 = vector.broadcast %209 : f32 to vector<8x1x8xf32>
    %213 = arith.mulf %212, %211 : vector<8x1x8xf32>
    %214 = arith.addf %208, %213 : vector<8x1x8xf32>
    %c7_74 = arith.constant 7 : index
    %c3_75 = arith.constant 3 : index
    %215 = memref.load %arg6[%c7_74, %c3_75] : memref<8x4xf32, #tpu.memory_space<smem>>
    %216 = vector.extract_strided_slice %36 {offsets = [3, 0, 0, 0], sizes = [1, 8, 1, 8], strides = [1, 1, 1, 1]} : vector<4x8x1x8xf32> to vector<1x8x1x8xf32>
    %217 = vector.shape_cast %216 : vector<1x8x1x8xf32> to vector<8x1x8xf32>
    %218 = vector.broadcast %215 : f32 to vector<8x1x8xf32>
    %219 = arith.mulf %218, %217 : vector<8x1x8xf32>
    %220 = arith.addf %214, %219 : vector<8x1x8xf32>
    %c0_76 = arith.constant 0 : index
    %221 = memref.load %arg7[%c0_76] : memref<8xf32, #tpu.memory_space<smem>>
    %222 = vector.broadcast %221 : f32 to vector<8x1x8xf32>
    %223 = arith.mulf %59, %222 : vector<8x1x8xf32>
    %c0_77 = arith.constant 0 : index
    %224 = memref.load %arg8[%c0_77] : memref<8xf32, #tpu.memory_space<smem>>
    %225 = vector.broadcast %224 : f32 to vector<8x1x8xf32>
    %226 = arith.addf %223, %225 : vector<8x1x8xf32>
    %cst = arith.constant 0.000000e+00 : f32
    %227 = vector.broadcast %cst : f32 to vector<8x1x8xf32>
    %228 = arith.maximumf %226, %227 : vector<8x1x8xf32>
    %c1_78 = arith.constant 1 : index
    %229 = memref.load %arg7[%c1_78] : memref<8xf32, #tpu.memory_space<smem>>
    %230 = vector.broadcast %229 : f32 to vector<8x1x8xf32>
    %231 = arith.mulf %82, %230 : vector<8x1x8xf32>
    %c1_79 = arith.constant 1 : index
    %232 = memref.load %arg8[%c1_79] : memref<8xf32, #tpu.memory_space<smem>>
    %233 = vector.broadcast %232 : f32 to vector<8x1x8xf32>
    %234 = arith.addf %231, %233 : vector<8x1x8xf32>
    %cst_80 = arith.constant 0.000000e+00 : f32
    %235 = vector.broadcast %cst_80 : f32 to vector<8x1x8xf32>
    %236 = arith.maximumf %234, %235 : vector<8x1x8xf32>
    %c2_81 = arith.constant 2 : index
    %237 = memref.load %arg7[%c2_81] : memref<8xf32, #tpu.memory_space<smem>>
    %238 = vector.broadcast %237 : f32 to vector<8x1x8xf32>
    %239 = arith.mulf %105, %238 : vector<8x1x8xf32>
    %c2_82 = arith.constant 2 : index
    %240 = memref.load %arg8[%c2_82] : memref<8xf32, #tpu.memory_space<smem>>
    %241 = vector.broadcast %240 : f32 to vector<8x1x8xf32>
    %242 = arith.addf %239, %241 : vector<8x1x8xf32>
    %cst_83 = arith.constant 0.000000e+00 : f32
    %243 = vector.broadcast %cst_83 : f32 to vector<8x1x8xf32>
    %244 = arith.maximumf %242, %243 : vector<8x1x8xf32>
    %c3_84 = arith.constant 3 : index
    %245 = memref.load %arg7[%c3_84] : memref<8xf32, #tpu.memory_space<smem>>
    %246 = vector.broadcast %245 : f32 to vector<8x1x8xf32>
    %247 = arith.mulf %128, %246 : vector<8x1x8xf32>
    %c3_85 = arith.constant 3 : index
    %248 = memref.load %arg8[%c3_85] : memref<8xf32, #tpu.memory_space<smem>>
    %249 = vector.broadcast %248 : f32 to vector<8x1x8xf32>
    %250 = arith.addf %247, %249 : vector<8x1x8xf32>
    %cst_86 = arith.constant 0.000000e+00 : f32
    %251 = vector.broadcast %cst_86 : f32 to vector<8x1x8xf32>
    %252 = arith.maximumf %250, %251 : vector<8x1x8xf32>
    %c4_87 = arith.constant 4 : index
    %253 = memref.load %arg7[%c4_87] : memref<8xf32, #tpu.memory_space<smem>>
    %254 = vector.broadcast %253 : f32 to vector<8x1x8xf32>
    %255 = arith.mulf %151, %254 : vector<8x1x8xf32>
    %c4_88 = arith.constant 4 : index
    %256 = memref.load %arg8[%c4_88] : memref<8xf32, #tpu.memory_space<smem>>
    %257 = vector.broadcast %256 : f32 to vector<8x1x8xf32>
    %258 = arith.addf %255, %257 : vector<8x1x8xf32>
    %cst_89 = arith.constant 0.000000e+00 : f32
    %259 = vector.broadcast %cst_89 : f32 to vector<8x1x8xf32>
    %260 = arith.maximumf %258, %259 : vector<8x1x8xf32>
    %c5_90 = arith.constant 5 : index
    %261 = memref.load %arg7[%c5_90] : memref<8xf32, #tpu.memory_space<smem>>
    %262 = vector.broadcast %261 : f32 to vector<8x1x8xf32>
    %263 = arith.mulf %174, %262 : vector<8x1x8xf32>
    %c5_91 = arith.constant 5 : index
    %264 = memref.load %arg8[%c5_91] : memref<8xf32, #tpu.memory_space<smem>>
    %265 = vector.broadcast %264 : f32 to vector<8x1x8xf32>
    %266 = arith.addf %263, %265 : vector<8x1x8xf32>
    %cst_92 = arith.constant 0.000000e+00 : f32
    %267 = vector.broadcast %cst_92 : f32 to vector<8x1x8xf32>
    %268 = arith.maximumf %266, %267 : vector<8x1x8xf32>
    %c6_93 = arith.constant 6 : index
    %269 = memref.load %arg7[%c6_93] : memref<8xf32, #tpu.memory_space<smem>>
    %270 = vector.broadcast %269 : f32 to vector<8x1x8xf32>
    %271 = arith.mulf %197, %270 : vector<8x1x8xf32>
    %c6_94 = arith.constant 6 : index
    %272 = memref.load %arg8[%c6_94] : memref<8xf32, #tpu.memory_space<smem>>
    %273 = vector.broadcast %272 : f32 to vector<8x1x8xf32>
    %274 = arith.addf %271, %273 : vector<8x1x8xf32>
    %cst_95 = arith.constant 0.000000e+00 : f32
    %275 = vector.broadcast %cst_95 : f32 to vector<8x1x8xf32>
    %276 = arith.maximumf %274, %275 : vector<8x1x8xf32>
    %c7_96 = arith.constant 7 : index
    %277 = memref.load %arg7[%c7_96] : memref<8xf32, #tpu.memory_space<smem>>
    %278 = vector.broadcast %277 : f32 to vector<8x1x8xf32>
    %279 = arith.mulf %220, %278 : vector<8x1x8xf32>
    %c7_97 = arith.constant 7 : index
    %280 = memref.load %arg8[%c7_97] : memref<8xf32, #tpu.memory_space<smem>>
    %281 = vector.broadcast %280 : f32 to vector<8x1x8xf32>
    %282 = arith.addf %279, %281 : vector<8x1x8xf32>
    %cst_98 = arith.constant 0.000000e+00 : f32
    %283 = vector.broadcast %cst_98 : f32 to vector<8x1x8xf32>
    %284 = arith.maximumf %282, %283 : vector<8x1x8xf32>
    %285 = vector.shape_cast %228 : vector<8x1x8xf32> to vector<1x8x1x8xf32>
    %286 = vector.shape_cast %236 : vector<8x1x8xf32> to vector<1x8x1x8xf32>
    %287 = vector.shape_cast %244 : vector<8x1x8xf32> to vector<1x8x1x8xf32>
    %288 = vector.shape_cast %252 : vector<8x1x8xf32> to vector<1x8x1x8xf32>
    %289 = vector.shape_cast %260 : vector<8x1x8xf32> to vector<1x8x1x8xf32>
    %290 = vector.shape_cast %268 : vector<8x1x8xf32> to vector<1x8x1x8xf32>
    %291 = vector.shape_cast %276 : vector<8x1x8xf32> to vector<1x8x1x8xf32>
    %292 = vector.shape_cast %284 : vector<8x1x8xf32> to vector<1x8x1x8xf32>
    %293 = tpu.concatenate %285, %286, %287, %288, %289, %290, %291, %292 in 0 : vector<1x8x1x8xf32>, vector<1x8x1x8xf32>, vector<1x8x1x8xf32>, vector<1x8x1x8xf32>, vector<1x8x1x8xf32>, vector<1x8x1x8xf32>, vector<1x8x1x8xf32>, vector<1x8x1x8xf32> -> vector<8x8x1x8xf32>
    %c0_99 = arith.constant 0 : index
    %c0_100 = arith.constant 0 : index
    %c0_101 = arith.constant 0 : index
    %c0_102 = arith.constant 0 : index
    %294 = vector.load %arg9[%c0_99, %c0_100, %c0_101, %c0_102] : memref<8x8x1x8xf32, #tpu.memory_space<vmem>>, vector<8x8x1x8xf32>
    tpu.vector_store %arg9[%c0_99, %c0_100, %c0_101, %c0_102], %293 {strides = array<i32>} : memref<8x8x1x8xf32, #tpu.memory_space<vmem>>, vector<8x8x1x8xf32>,
    return
  }
  func.func @transform_0(%arg0: i32, %arg1: i32) -> (i32, i32, i32, i32, i32) {
    %c0_i32 = arith.constant 0 : i32
    %c0_i32_0 = arith.constant 0 : i32
    %c0_i32_1 = arith.constant 0 : i32
    %c0_i32_2 = arith.constant 0 : i32
    return %arg0, %arg1, %c0_i32, %c0_i32_0, %c0_i32_1 : i32, i32, i32, i32, i32
  }
  func.func @transform_1(%arg0: i32, %arg1: i32) -> (i32, i32, i32, i32, i32) {
    %c0_i32 = arith.constant 0 : i32
    %c0_i32_0 = arith.constant 0 : i32
    %c0_i32_1 = arith.constant 0 : i32
    %c0_i32_2 = arith.constant 0 : i32
    return %arg0, %arg1, %c0_i32, %c0_i32_0, %c0_i32_1 : i32, i32, i32, i32, i32
  }
  func.func @transform_2(%arg0: i32, %arg1: i32) -> (i32, i32, i32, i32, i32) {
    %c1_i32 = arith.constant 1 : i32
    %0 = arith.addi %arg1, %c1_i32 : i32
    %c8_i32 = arith.constant 8 : i32
    %1 = arith.muli %0, %c8_i32 : i32
    %c0_i32 = arith.constant 0 : i32
    %c0_i32_0 = arith.constant 0 : i32
    %c0_i32_1 = arith.constant 0 : i32
    %c0_i32_2 = arith.constant 0 : i32
    return %arg0, %1, %c0_i32, %c0_i32_0, %c0_i32_1 : i32, i32, i32, i32, i32
  }
  func.func @transform_3(%arg0: i32, %arg1: i32) -> (i32, i32, i32, i32, i32) {
    %c1_i32 = arith.constant 1 : i32
    %0 = arith.addi %arg1, %c1_i32 : i32
    %c8_i32 = arith.constant 8 : i32
    %1 = arith.muli %0, %c8_i32 : i32
    %c0_i32 = arith.constant 0 : i32
    %c0_i32_0 = arith.constant 0 : i32
    %c0_i32_1 = arith.constant 0 : i32
    %c0_i32_2 = arith.constant 0 : i32
    return %arg0, %1, %c0_i32, %c0_i32_0, %c0_i32_1 : i32, i32, i32, i32, i32
  }
  func.func @transform_4(%arg0: i32, %arg1: i32) -> (i32, i32) {
    %c0_i32 = arith.constant 0 : i32
    %c0_i32_0 = arith.constant 0 : i32
    %c0_i32_1 = arith.constant 0 : i32
    return %c0_i32, %c0_i32_0 : i32, i32
  }
  func.func @transform_5(%arg0: i32, %arg1: i32) -> i32 {
    %c0_i32 = arith.constant 0 : i32
    %c0_i32_0 = arith.constant 0 : i32
    return %c0_i32 : i32
  }
  func.func @transform_6(%arg0: i32, %arg1: i32) -> i32 {
    %c0_i32 = arith.constant 0 : i32
    %c0_i32_0 = arith.constant 0 : i32
    return %c0_i32 : i32
  }
  func.func @transform_7(%arg0: i32, %arg1: i32) -> (i32, i32, i32, i32) {
    %c0_i32 = arith.constant 0 : i32
    %c0_i32_0 = arith.constant 0 : i32
    %c0_i32_1 = arith.constant 0 : i32
    return %arg0, %arg1, %c0_i32, %c0_i32_0 : i32, i32, i32, i32
  }
}

</mosaic_0001>

<llo_original>
// kernel: ds_forward.2
$region0: #{ds_forward.2}
  #allocation0 [shape = 'u32[]', space=smem, size = 0x4, offset = 0x4, fixed_abs, tag = 'smem constant byte address 0x4 - core index']
  #allocation1 [shape = 'u32[144,128]{1,0:T(1,128)}', space=vmem, size = 0x12000, scoped, tag = 'internal scratch']
  %s0 = inlined_call_operand.vmem [shape: f32[8,9,2,1,9], index: 0, kind: input, shape index: {}, may-alias: {0,2}]
  %s1 = inlined_call_operand.vmem [shape: f32[8,9,2,1,9], index: 1, kind: input, shape index: {}, may-alias: {1,3}]
  %s2 = inlined_call_operand.vmem [shape: f32[8,9,2,1,9], index: 2, kind: input, shape index: {}, may-alias: {0,2}]
  %s3 = inlined_call_operand.vmem [shape: f32[8,9,2,1,9], index: 3, kind: input, shape index: {}, may-alias: {1,3}]
  %s4 = inlined_call_operand.vmem [shape: f32[8,4], index: 4, kind: input, shape index: {}]
  %s5 = inlined_call_operand.vmem [shape: f32[2,8,1,1], index: 5, kind: output, shape index: {0}]
  %s6 = inlined_call_operand.vmem [shape: f32[2,8,1,1], index: 6, kind: output, shape index: {1}]
  %7 = xla_tuple %s5, %s6
  %s8 = sld [smem:[#allocation0]]
  $region279: #{ds_forward.2} parent=0
    _
  %s10 = ssub.s32 1, %s8
  %s11 = scalar_select 0, %s10, %s8
  $region1: #{ds_forward.2} parent=0
    #allocation2 [shape = 'u8[65536]{0}', space=vmem, size = 0x10000, scoped, tag = 'input window, operand 0']
    #allocation3 [shape = 'u8[65536]{0}', space=vmem, size = 0x10000, scoped, tag = 'input window, operand 1']
    #allocation4 [shape = 'u8[8192]{0}', space=vmem, size = 0x2000, scoped, tag = 'input window, operand 2']
    #allocation5 [shape = 'u8[8192]{0}', space=vmem, size = 0x2000, scoped, tag = 'input window, operand 3']
    #allocation6 [shape = 'u8[4096]{0}', space=smem, size = 0x1000, scoped, tag = 'input window, operand 4, single buffered']
    #allocation7 [shape = 's32[2]{0}', space=sflag, size = 0x8, scoped, tag = 'scoped memory for ds_forward.2']
    %12 = vsyncpa [#allocation7], 0
    loop: start=0, step=1, limit=4
    $region2: #{ds_forward.2} parent=1 // loop_pre_header
      _
    $region3: #{ds_forward.2} parent=1 // loop_header
      %s14 = sphi 0, %s18
      %p15 = scmp.ge.s32.totalorder %s14, 4
      %s21 = sphi 0, %s33
      %s22 = sphi 0, %s29
      %s23 = sphi 0, %s21
      %s24 = sphi 0, %s22
      %s25 = sphi 0, %s23
      %s26 = sphi 0, %s24
      %s38 = sphi 0, %s40
      %s41 = sphi 0, %s38
      %s42 = sphi 0, %s41
      %s58 = sphi 0, %s42
      %s66 = sphi 0, %s68
      %s69 = sphi 0, %s66
      %s70 = sphi 0, %s69
      %s86 = sphi 0, %s70
      %s98 = sphi 0, %s100
      %s101 = sphi 0, %s98
      %s102 = sphi 0, %s101
      %s118 = sphi 0, %s102
      %s130 = sphi 0, %s132
      %s133 = sphi 0, %s130
      %s134 = sphi 0, %s133
      %s150 = sphi 0, %s134
      %s154 = sphi 0, %s154
      %s156 = sphi 0, %s154
      %s157 = sphi 0, %s156
      %s171 = sphi 0, %s157
      %s179 = sphi 0, %s181
      %s182 = sphi 0, %s179
      %s183 = sphi 0, %s182
      %s199 = sphi 0, %s183
      %s207 = sphi 0, %s209
      %s210 = sphi 0, %s207
      %s211 = sphi 0, %s210
      %s227 = sphi 0, %s211
    $region4: #{ds_forward.2} parent=1 // loop_header_branch
      %17 = sbr.rel (%p15) target = $region8
    $region5: #{ds_forward.2} parent=1 // loop_body
      %s19 = ssub.s32 %s14, 1
      %s20 = ssub.s32 %s14, 2
      %s27 = sadd.s32 1, %s22
      %p28 = scmp.ge.s32.totalorder %s27, 1
      %s29 = scalar_select %p28, 0, %s27
      %s30 = sadd.s32 1, %s21
      %s31 = scalar_select %p28, %s30, %s21
      %p32 = scmp.ge.s32.totalorder %s31, 2
      %s33 = scalar_select %p32, 0, %s31
      %s34 = ssub.s32 %s21, %s33
      %s35 = ssub.s32 %s22, %s29
      %s36 = sor.u32 %s34, %s35
      %p37 = scmp.eq.s32.totalorder %s36, 0
      %s39 = sadd.s32 %s38, 1
      %s40 = scalar_select %p37, %s38, %s39
      %p43 = pneg %p37
      %p44 = scmp.eq.s32.totalorder %s14, 1
      %p45 = por %p43, %p44
      %p46 = scmp.ne.s32.totalorder %s38, %s41
      %p47 = scmp.eq.s32.totalorder %s14, 0
      %p48 = por %p46, %p47
      %p49 = scmp.ne.s32.totalorder %s38, %s41
      %p50 = scmp.eq.s32.totalorder %s19, 1
      %p51 = por %p49, %p50
      %p52 = scmp.ne.s32.totalorder %s41, %s42
      %p53 = scmp.eq.s32.totalorder %s19, 0
      %p54 = por %p52, %p53
      %p55 = scmp.ne.s32.totalorder %s41, %s42
      %p56 = scmp.eq.s32.totalorder %s20, 1
      %p57 = por %p55, %p56
      %p59 = scmp.ne.s32.totalorder %s42, %s58
      %p60 = scmp.eq.s32.totalorder %s20, 0
      %p61 = por %p59, %p60
      %s62 = ssub.s32 %s21, %s33
      %s63 = ssub.s32 %s22, %s29
      %s64 = sor.u32 %s62, %s63
      %p65 = scmp.eq.s32.totalorder %s64, 0
      %s67 = sadd.s32 %s66, 1
      %s68 = scalar_select %p65, %s66, %s67
      %p71 = pneg %p65
      %p72 = scmp.eq.s32.totalorder %s14, 1
      %p73 = por %p71, %p72
      %p74 = scmp.ne.s32.totalorder %s66, %s69
      %p75 = scmp.eq.s32.totalorder %s14, 0
      %p76 = por %p74, %p75
      %p77 = scmp.ne.s32.totalorder %s66, %s69
      %p78 = scmp.eq.s32.totalorder %s19, 1
      %p79 = por %p77, %p78
      %p80 = scmp.ne.s32.totalorder %s69, %s70
      %p81 = scmp.eq.s32.totalorder %s19, 0
      %p82 = por %p80, %p81
      %p83 = scmp.ne.s32.totalorder %s69, %s70
      %p84 = scmp.eq.s32.totalorder %s20, 1
      %p85 = por %p83, %p84
      %p87 = scmp.ne.s32.totalorder %s70, %s86
      %p88 = scmp.eq.s32.totalorder %s20, 0
      %p89 = por %p87, %p88
      %s90 = sadd.s32 %s22, 1
      %s91 = smul.u32 %s90, 8
      %s92 = sadd.s32 %s29, 1
      %s93 = smul.u32 %s92, 8
      %s94 = ssub.s32 %s21, %s33
      %s95 = ssub.s32 %s91, %s93
      %s96 = sor.u32 %s94, %s95
      %p97 = scmp.eq.s32.totalorder %s96, 0
      %s99 = sadd.s32 %s98, 1
      %s100 = scalar_select %p97, %s98, %s99
      %p103 = pneg %p97
      %p104 = scmp.eq.s32.totalorder %s14, 1
      %p105 = por %p103, %p104
      %p106 = scmp.ne.s32.totalorder %s98, %s101
      %p107 = scmp.eq.s32.totalorder %s14, 0
      %p108 = por %p106, %p107
      %p109 = scmp.ne.s32.totalorder %s98, %s101
      %p110 = scmp.eq.s32.totalorder %s19, 1
      %p111 = por %p109, %p110
      %p112 = scmp.ne.s32.totalorder %s101, %s102
      %p113 = scmp.eq.s32.totalorder %s19, 0
      %p114 = por %p112, %p113
      %p115 = scmp.ne.s32.totalorder %s101, %s102
      %p116 = scmp.eq.s32.totalorder %s20, 1
      %p117 = por %p115, %p116
      %p119 = scmp.ne.s32.totalorder %s102, %s118
      %p120 = scmp.eq.s32.totalorder %s20, 0
      %p121 = por %p119, %p120
      %s122 = sadd.s32 %s22, 1
      %s123 = smul.u32 %s122, 8
      %s124 = sadd.s32 %s29, 1
      %s125 = smul.u32 %s124, 8
      %s126 = ssub.s32 %s21, %s33
      %s127 = ssub.s32 %s123, %s125
      %s128 = sor.u32 %s126, %s127
      %p129 = scmp.eq.s32.totalorder %s128, 0
      %s131 = sadd.s32 %s130, 1
      %s132 = scalar_select %p129, %s130, %s131
      %p135 = pneg %p129
      %p136 = scmp.eq.s32.totalorder %s14, 1
      %p137 = por %p135, %p136
      %p138 = scmp.ne.s32.totalorder %s130, %s133
      %p139 = scmp.eq.s32.totalorder %s14, 0
      %p140 = por %p138, %p139
      %p141 = scmp.ne.s32.totalorder %s130, %s133
      %p142 = scmp.eq.s32.totalorder %s19, 1
      %p143 = por %p141, %p142
      %p144 = scmp.ne.s32.totalorder %s133, %s134
      %p145 = scmp.eq.s32.totalorder %s19, 0
      %p146 = por %p144, %p145
      %p147 = scmp.ne.s32.totalorder %s133, %s134
      %p148 = scmp.eq.s32.totalorder %s20, 1
      %p149 = por %p147, %p148
      %p151 = scmp.ne.s32.totalorder %s134, %s150
      %p152 = scmp.eq.s32.totalorder %s20, 0
      %p153 = por %p151, %p152
      %s155 = sadd.s32 %s154, 1
      %p158 = scmp.eq.s32.totalorder %s14, 1
      %p159 = scmp.ne.s32.totalorder %s154, %s156
      %p160 = scmp.eq.s32.totalorder %s14, 0
      %p161 = por %p159, %p160
      %p162 = scmp.ne.s32.totalorder %s154, %s156
      %p163 = scmp.eq.s32.totalorder %s19, 1
      %p164 = por %p162, %p163
      %p165 = scmp.ne.s32.totalorder %s156, %s157
      %p166 = scmp.eq.s32.totalorder %s19, 0
      %p167 = por %p165, %p166
      %p168 = scmp.ne.s32.totalorder %s156, %s157
      %p169 = scmp.eq.s32.totalorder %s20, 1
      %p170 = por %p168, %p169
      %p172 = scmp.ne.s32.totalorder %s157, %s171
      %p173 = scmp.eq.s32.totalorder %s20, 0
      %p174 = por %p172, %p173
      %s175 = sadd.s32 %s21, %s22
      %s176 = sadd.s32 %s33, %s29
      %s177 = ssub.s32 %s175, %s176
      %p178 = scmp.eq.s32.totalorder %s177, 0
      %s180 = sadd.s32 %s179, 1
      %s181 = scalar_select %p178, %s179, %s180
      %p184 = pneg %p178
      %p185 = scmp.eq.s32.totalorder %s14, 1
      %p186 = por %p184, %p185
      %p187 = scmp.ne.s32.totalorder %s179, %s182
      %p188 = scmp.eq.s32.totalorder %s14, 0
      %p189 = por %p187, %p188
      %p190 = scmp.ne.s32.totalorder %s179, %s182
      %p191 = scmp.eq.s32.totalorder %s19, 1
      %p192 = por %p190, %p191
      %p193 = scmp.ne.s32.totalorder %s182, %s183
      %p194 = scmp.eq.s32.totalorder %s19, 0
      %p195 = por %p193, %p194
      %p196 = scmp.ne.s32.totalorder %s182, %s183
      %p197 = scmp.eq.s32.totalorder %s20, 1
      %p198 = por %p196, %p197
      %p200 = scmp.ne.s32.totalorder %s183, %s199
      %p201 = scmp.eq.s32.totalorder %s20, 0
      %p202 = por %p200, %p201
      %s203 = sadd.s32 %s21, %s22
      %s204 = sadd.s32 %s33, %s29
      %s205 = ssub.s32 %s203, %s204
      %p206 = scmp.eq.s32.totalorder %s205, 0
      %s208 = sadd.s32 %s207, 1
      %s209 = scalar_select %p206, %s207, %s208
      %p212 = pneg %p206
      %p213 = scmp.eq.s32.totalorder %s14, 1
      %p214 = por %p212, %p213
      %p215 = scmp.ne.s32.totalorder %s207, %s210
      %p216 = scmp.eq.s32.totalorder %s14, 0
      %p217 = por %p215, %p216
      %p218 = scmp.ne.s32.totalorder %s207, %s210
      %p219 = scmp.eq.s32.totalorder %s19, 1
      %p220 = por %p218, %p219
      %p221 = scmp.ne.s32.totalorder %s210, %s211
      %p222 = scmp.eq.s32.totalorder %s19, 0
      %p223 = por %p221, %p222
      %p224 = scmp.ne.s32.totalorder %s210, %s211
      %p225 = scmp.eq.s32.totalorder %s20, 1
      %p226 = por %p224, %p225
      %p228 = scmp.ne.s32.totalorder %s211, %s227
      %p229 = scmp.eq.s32.totalorder %s20, 0
      %p230 = por %p228, %p229
      %p231 = scmp.le.s32.totalorder 1, %s14
      %p232 = scmp.lt.s32.totalorder %s14, 3
      %p233 = pnand %p231, %p232
      %p234 = pneg %p233
      // Predicated region
      $region9: #{ds_forward.2} parent=5 // pred_check
        _
      $region10: #{ds_forward.2} parent=5 // pred_check_branch
        %236 = sbr.rel (%p233) target = $region12
      $region11: #{ds_forward.2} parent=5 // pred_region
        %s237 = ssub.s32 %s14, 1
        // Predicated region
        $region13: #{ds_forward.2} parent=11 // pred_check
          %p238 = pneg %p167
        $region14: #{ds_forward.2} parent=11 // pred_check_branch
          %240 = sbr.rel (%p238) target = $region16
        $region15: #{ds_forward.2} parent=11 // pred_region
          %s242 = ssub.s32 128, 128
          %243 = vsyncadd [#allocation7], %s242
          %s245 = sshll.u32 %s4, 4
          %s246 = int_to_ptr.vmem [resolvable:$true] %s245
          %248 = dma.vmem_to_smem %s246, 128, [#allocation6], [#allocation7]
        $region16: #{ds_forward.2} parent=11 // pred_fallthru
          _
      $region12: #{ds_forward.2} parent=5 // pred_fallthru
        _
      %p249 = scmp.lt.s32.totalorder %s14, 2
      // Predicated region
      $region17: #{ds_forward.2} parent=5 // pred_check
        %p250 = pneg %p249
      $region18: #{ds_forward.2} parent=5 // pred_check_branch
        %252 = sbr.rel (%p250) target = $region20
      $region19: #{ds_forward.2} parent=5 // pred_region
        // Predicated region
        $region21: #{ds_forward.2} parent=19 // pred_check
          %p253 = pneg %p48
        $region22: #{ds_forward.2} parent=19 // pred_check_branch
          %255 = sbr.rel (%p253) target = $region24
        $region23: #{ds_forward.2} parent=19 // pred_region
          %s256 = sand.u32 %s38, 1
          %s257 = sand.u32 %s38, 1
          %s258 = smul.addr %s257, 64
          %s259 = scalar_lea.vmem [#allocation2], %s258
          %s260 = smul.u32 4, %s21
          %s261 = smul.u32 8, %s22
          %s262 = ssub.s32 9, %s261
          %p263 = scmp.lt.s32.totalorder %s262, 8
          %s264 = scalar_select %p263, %s262, 8
          %s265 = smul.u32 64, %s264
          %s266 = smul.u32 %s265, 2
          %p267 = scmp.ne.s32.totalorder 0, %s266
          %s268 = smul.addr %s261, 2
          %s269 = smul.addr %s260, 18
          %s270 = sadd.s32 %s268, %s269
          %s271 = scalar_lea.vmem %s0, %s270
          %s272 = smul.u32 %s264, 2
          // Predicated region
          $region25: #{ds_forward.2} parent=23 // pred_check
            %p273 = pneg %p267
          $region26: #{ds_forward.2} parent=23 // pred_check_branch
            %275 = sbr.rel (%p273) target = $region28
          $region27: #{ds_forward.2} parent=23 // pred_region
            %p276 = scmp.lt.u32.totalorder %s272, 8
            %p277 = pneg %p276
            // Predicated region
            $region29: #{ds_forward.2} parent=27 // pred_check
              _
            $region30: #{ds_forward.2} parent=27 // pred_check_branch
              %279 = sbr.rel (%p276) target = $region32
            $region31: #{ds_forward.2} parent=27 // pred_region
              %s301 = sand.u32 %s272, 7
              %p302 = scmp.eq.s32.totalorder %s301, 0
              // Predicated region
              $region44: #{ds_forward.2} parent=31 // pred_check
                %p303 = pneg %p302
              $region45: #{ds_forward.2} parent=31 // pred_check_branch
                %305 = sbr.rel (%p303) target = $region47
              $region46: #{ds_forward.2} parent=31 // pred_region
                %s306 = sshrl.u32 %s272, 3
                %s307 = sshrl.u32 %s306, 4
                // While loop
                $region48: #{ds_forward.2} parent=46 // loop_pre_header
                  _
                $region49: #{ds_forward.2} parent=46 // loop_header
                  %s311 = sphi 0, %s313
                  %p312 = scmp.ge.s32.totalorder %s311, %s307
                  %s316 = sphi 0, %s449
                  %s317 = sphi %s271, %s452
                  %s318 = sphi %s259, %s453
                $region50: #{ds_forward.2} parent=46 // loop_header_branch
                  %315 = sbr.rel (%p312) target = $region54
                $region51: #{ds_forward.2} parent=46 // loop_body
                  %v319 = vld [vmem:[%s317] sm:$0xff]
                  %320 = vst [vmem:[%s318] sm:$0xff] %v319
                  %v321 = vld [vmem:[%s317 + $0x8] sm:$0xff]
                  %322 = vst [vmem:[%s318 + $0x8] sm:$0xff] %v321
                  %v323 = vld [vmem:[%s317 + $0x10] sm:$0xff]
                  %324 = vst [vmem:[%s318 + $0x10] sm:$0xff] %v323
                  %v325 = vld [vmem:[%s317 + $0x18] sm:$0xff]
                  %326 = vst [vmem:[%s318 + $0x18] sm:$0xff] %v325
                  %v327 = vld [vmem:[%s317 + $0x20] sm:$0xff]
                  %328 = vst [vmem:[%s318 + $0x20] sm:$0xff] %v327
                  %v329 = vld [vmem:[%s317 + $0x28] sm:$0xff]
                  %330 = vst [vmem:[%s318 + $0x28] sm:$0xff] %v329
                  %v331 = vld [vmem:[%s317 + $0x30] sm:$0xff]
                  %332 = vst [vmem:[%s318 + $0x30] sm:$0xff] %v331
                  %v333 = vld [vmem:[%s317 + $0x38] sm:$0xff]
                  %334 = vst [vmem:[%s318 + $0x38] sm:$0xff] %v333
                  %v335 = vld [vmem:[%s317 + $0x40] sm:$0xff]
                  %336 = vst [vmem:[%s318 + $0x40] sm:$0xff] %v335
                  %v337 = vld [vmem:[%s317 + $0x48] sm:$0xff]
                  %338 = vst [vmem:[%s318 + $0x48] sm:$0xff] %v337
                  %v339 = vld [vmem:[%s317 + $0x50] sm:$0xff]
                  %340 = vst [vmem:[%s318 + $0x50] sm:$0xff] %v339
                  %v341 = vld [vmem:[%s317 + $0x58] sm:$0xff]
                  %342 = vst [vmem:[%s318 + $0x58] sm:$0xff] %v341
                  %v343 = vld [vmem:[%s317 + $0x60] sm:$0xff]
                  %344 = vst [vmem:[%s318 + $0x60] sm:$0xff] %v343
                  %v345 = vld [vmem:[%s317 + $0x68] sm:$0xff]
                  %346 = vst [vmem:[%s318 + $0x68] sm:$0xff] %v345
                  %v347 = vld [vmem:[%s317 + $0x70] sm:$0xff]
                  %348 = vst [vmem:[%s318 + $0x70] sm:$0xff] %v347
                  %v349 = vld [vmem:[%s317 + $0x78] sm:$0xff]
                  %350 = vst [vmem:[%s318 + $0x78] sm:$0xff] %v349
                  %v351 = vld [vmem:[%s317 + $0x12] sm:$0xff]
                  %352 = vst [vmem:[%s318 + $0x10] sm:$0xff] %v351
                  %v353 = vld [vmem:[%s317 + $0x1a] sm:$0xff]
                  %354 = vst [vmem:[%s318 + $0x18] sm:$0xff] %v353
                  %v355 = vld [vmem:[%s317 + $0x22] sm:$0xff]
                  %356 = vst [vmem:[%s318 + $0x20] sm:$0xff] %v355
                  %v357 = vld [vmem:[%s317 + $0x2a] sm:$0xff]
                  %358 = vst [vmem:[%s318 + $0x28] sm:$0xff] %v357
                  %v359 = vld [vmem:[%s317 + $0x32] sm:$0xff]
                  %360 = vst [vmem:[%s318 + $0x30] sm:$0xff] %v359
                  %v361 = vld [vmem:[%s317 + $0x3a] sm:$0xff]
                  %362 = vst [vmem:[%s318 + $0x38] sm:$0xff] %v361
                  %v363 = vld [vmem:[%s317 + $0x42] sm:$0xff]
                  %364 = vst [vmem:[%s318 + $0x40] sm:$0xff] %v363
                  %v365 = vld [vmem:[%s317 + $0x4a] sm:$0xff]
                  %366 = vst [vmem:[%s318 + $0x48] sm:$0xff] %v365
                  %v367 = vld [vmem:[%s317 + $0x52] sm:$0xff]
                  %368 = vst [vmem:[%s318 + $0x50] sm:$0xff] %v367
                  %v369 = vld [vmem:[%s317 + $0x5a] sm:$0xff]
                  %370 = vst [vmem:[%s318 + $0x58] sm:$0xff] %v369
                  %v371 = vld [vmem:[%s317 + $0x62] sm:$0xff]
                  %372 = vst [vmem:[%s318 + $0x60] sm:$0xff] %v371
                  %v373 = vld [vmem:[%s317 + $0x6a] sm:$0xff]
                  %374 = vst [vmem:[%s318 + $0x68] sm:$0xff] %v373
                  %v375 = vld [vmem:[%s317 + $0x72] sm:$0xff]
                  %376 = vst [vmem:[%s318 + $0x70] sm:$0xff] %v375
                  %v377 = vld [vmem:[%s317 + $0x7a] sm:$0xff]
                  %378 = vst [vmem:[%s318 + $0x78] sm:$0xff] %v377
                  %v379 = vld [vmem:[%s317 + $0x82] sm:$0xff]
                  %380 = vst [vmem:[%s318 + $0x80] sm:$0xff] %v379
                  %v381 = vld [vmem:[%s317 + $0x8a] sm:$0xff]
                  %382 = vst [vmem:[%s318 + $0x88] sm:$0xff] %v381
                  %v383 = vld [vmem:[%s317 + $0x24] sm:$0xff]
                  %384 = vst [vmem:[%s318 + $0x20] sm:$0xff] %v383
                  %v385 = vld [vmem:[%s317 + $0x2c] sm:$0xff]
                  %386 = vst [vmem:[%s318 + $0x28] sm:$0xff] %v385
                  %v387 = vld [vmem:[%s317 + $0x34] sm:$0xff]
                  %388 = vst [vmem:[%s318 + $0x30] sm:$0xff] %v387
                  %v389 = vld [vmem:[%s317 + $0x3c] sm:$0xff]
                  %390 = vst [vmem:[%s318 + $0x38] sm:$0xff] %v389
                  %v391 = vld [vmem:[%s317 + $0x44] sm:$0xff]
                  %392 = vst [vmem:[%s318 + $0x40] sm:$0xff] %v391
                  %v393 = vld [vmem:[%s317 + $0x4c] sm:$0xff]
                  %394 = vst [vmem:[%s318 + $0x48] sm:$0xff] %v393
                  %v395 = vld [vmem:[%s317 + $0x54] sm:$0xff]
                  %396 = vst [vmem:[%s318 + $0x50] sm:$0xff] %v395
                  %v397 = vld [vmem:[%s317 + $0x5c] sm:$0xff]
                  %398 = vst [vmem:[%s318 + $0x58] sm:$0xff] %v397
                  %v399 = vld [vmem:[%s317 + $0x64] sm:$0xff]
                  %400 = vst [vmem:[%s318 + $0x60] sm:$0xff] %v399
                  %v401 = vld [vmem:[%s317 + $0x6c] sm:$0xff]
                  %402 = vst [vmem:[%s318 + $0x68] sm:$0xff] %v401
                  %v403 = vld [vmem:[%s317 + $0x74] sm:$0xff]
                  %404 = vst [vmem:[%s318 + $0x70] sm:$0xff] %v403
                  %v405 = vld [vmem:[%s317 + $0x7c] sm:$0xff]
                  %406 = vst [vmem:[%s318 + $0x78] sm:$0xff] %v405
                  %v407 = vld [vmem:[%s317 + $0x84] sm:$0xff]
                  %408 = vst [vmem:[%s318 + $0x80] sm:$0xff] %v407
                  %v409 = vld [vmem:[%s317 + $0x8c] sm:$0xff]
                  %410 = vst [vmem:[%s318 + $0x88] sm:$0xff] %v409
                  %v411 = vld [vmem:[%s317 + $0x94] sm:$0xff]
                  %412 = vst [vmem:[%s318 + $0x90] sm:$0xff] %v411
                  %v413 = vld [vmem:[%s317 + $0x9c] sm:$0xff]
                  %414 = vst [vmem:[%s318 + $0x98] sm:$0xff] %v413
                  %v415 = vld [vmem:[%s317 + $0x36] sm:$0xff]
                  %416 = vst [vmem:[%s318 + $0x30] sm:$0xff] %v415
                  %v417 = vld [vmem:[%s317 + $0x3e] sm:$0xff]
                  %418 = vst [vmem:[%s318 + $0x38] sm:$0xff] %v417
                  %v419 = vld [vmem:[%s317 + $0x46] sm:$0xff]
                  %420 = vst [vmem:[%s318 + $0x40] sm:$0xff] %v419
                  %v421 = vld [vmem:[%s317 + $0x4e] sm:$0xff]
                  %422 = vst [vmem:[%s318 + $0x48] sm:$0xff] %v421
                  %v423 = vld [vmem:[%s317 + $0x56] sm:$0xff]
                  %424 = vst [vmem:[%s318 + $0x50] sm:$0xff] %v423
                  %v425 = vld [vmem:[%s317 + $0x5e] sm:$0xff]
                  %426 = vst [vmem:[%s318 + $0x58] sm:$0xff] %v425
                  %v427 = vld [vmem:[%s317 + $0x66] sm:$0xff]
                  %428 = vst [vmem:[%s318 + $0x60] sm:$0xff] %v427
                  %v429 = vld [vmem:[%s317 + $0x6e] sm:$0xff]
                  %430 = vst [vmem:[%s318 + $0x68] sm:$0xff] %v429
                  %v431 = vld [vmem:[%s317 + $0x76] sm:$0xff]
                  %432 = vst [vmem:[%s318 + $0x70] sm:$0xff] %v431
                  %v433 = vld [vmem:[%s317 + $0x7e] sm:$0xff]
                  %434 = vst [vmem:[%s318 + $0x78] sm:$0xff] %v433
                  %v435 = vld [vmem:[%s317 + $0x86] sm:$0xff]
                  %436 = vst [vmem:[%s318 + $0x80] sm:$0xff] %v435
                  %v437 = vld [vmem:[%s317 + $0x8e] sm:$0xff]
                  %438 = vst [vmem:[%s318 + $0x88] sm:$0xff] %v437
                  %v439 = vld [vmem:[%s317 + $0x96] sm:$0xff]
                  %440 = vst [vmem:[%s318 + $0x90] sm:$0xff] %v439
                  %v441 = vld [vmem:[%s317 + $0x9e] sm:$0xff]
                  %442 = vst [vmem:[%s318 + $0x98] sm:$0xff] %v441
                  %v443 = vld [vmem:[%s317 + $0xa6] sm:$0xff]
                  %444 = vst [vmem:[%s318 + $0xa0] sm:$0xff] %v443
                  %v445 = vld [vmem:[%s317 + $0xae] sm:$0xff]
                  %446 = vst [vmem:[%s318 + $0xa8] sm:$0xff] %v445
                  %s447 = sadd.s32 1, %s316
                  %p448 = scmp.ge.s32.totalorder %s447, %s307
                  %s449 = scalar_select %p448, 0, %s447
                  %s450 = smul.u32 %s449, 128
                  %s451 = smul.u32 %s449, 128
                  %s452 = scalar_lea.vmem %s271, %s450
                  %s453 = scalar_lea.vmem %s259, %s451 [#allocation2]
                $region52: #{ds_forward.2} parent=46 // loop_footer
                  %s313 = sadd.s32 %s311, 1
                $region53: #{ds_forward.2} parent=46 // loop_footer_branch
                  %310 = sbr.rel target = $region49
                $region54: #{ds_forward.2} parent=46 // loop_exit
                  _
                %s454 = sshrl.u32 %s306, 4
                %s455 = sand.u32 %s306, 15
                %s456 = smul.u32 %s454, 16
                %s457 = smul.u32 128, %s456
                %s458 = sshra.s32 %s457, 4
                %s459 = scalar_lea.vmem %s271, %s458
                %s460 = smul.u32 128, %s456
                %s461 = sshra.s32 %s460, 4
                %s462 = scalar_lea.vmem %s259, %s461 [#allocation2]
                // While loop
                $region55: #{ds_forward.2} parent=46 // loop_pre_header
                  _
                $region56: #{ds_forward.2} parent=46 // loop_header
                  %s466 = sphi 0, %s468
                  %p467 = scmp.ge.s32.totalorder %s466, %s455
                  %s471 = sphi 0, %s484
                  %s472 = sphi %s459, %s487
                  %s473 = sphi %s462, %s488
                $region57: #{ds_forward.2} parent=46 // loop_header_branch
                  %470 = sbr.rel (%p467) target = $region61
                $region58: #{ds_forward.2} parent=46 // loop_body
                  %v474 = vld [vmem:[%s472] sm:$0xff]
                  %475 = vst [vmem:[%s473] sm:$0xff] %v474
                  %v476 = vld [vmem:[%s472 + $0x12] sm:$0xff]
                  %477 = vst [vmem:[%s473 + $0x10] sm:$0xff] %v476
                  %v478 = vld [vmem:[%s472 + $0x24] sm:$0xff]
                  %479 = vst [vmem:[%s473 + $0x20] sm:$0xff] %v478
                  %v480 = vld [vmem:[%s472 + $0x36] sm:$0xff]
                  %481 = vst [vmem:[%s473 + $0x30] sm:$0xff] %v480
                  %s482 = sadd.s32 1, %s471
                  %p483 = scmp.ge.s32.totalorder %s482, %s455
                  %s484 = scalar_select %p483, 0, %s482
                  %s485 = smul.u32 %s484, 8
                  %s486 = smul.u32 %s484, 8
                  %s487 = scalar_lea.vmem %s459, %s485
                  %s488 = scalar_lea.vmem %s462, %s486 [#allocation2]
                $region59: #{ds_forward.2} parent=46 // loop_footer
                  %s468 = sadd.s32 %s466, 1
                $region60: #{ds_forward.2} parent=46 // loop_footer_branch
                  %465 = sbr.rel target = $region56
                $region61: #{ds_forward.2} parent=46 // loop_exit
                  _
              $region47: #{ds_forward.2} parent=31 // pred_fallthru
                _
              %p489 = pneg %p302
              // Predicated region
              $region62: #{ds_forward.2} parent=31 // pred_check
                _
              $region63: #{ds_forward.2} parent=31 // pred_check_branch
                %491 = sbr.rel (%p302) target = $region65
              $region64: #{ds_forward.2} parent=31 // pred_region
                %s492 = sand.u32 %s272, 7
                %s493 = ssub.s32 %s272, %s492
                %s494 = scalar_lea.vmem %s271, %s493
                %s495 = ssub.s32 %s272, %s492
                %s496 = scalar_lea.vmem %s259, %s495 [#allocation2]
                %s497 = sshrl.u32 %s272, 3
                %s498 = sshrl.u32 %s497, 4
                // While loop
                $region66: #{ds_forward.2} parent=64 // loop_pre_header
                  _
                $region67: #{ds_forward.2} parent=64 // loop_header
                  %s502 = sphi 0, %s504
                  %p503 = scmp.ge.s32.totalorder %s502, %s498
                  %s507 = sphi 0, %s640
                  %s508 = sphi %s271, %s643
                  %s509 = sphi %s259, %s644
                $region68: #{ds_forward.2} parent=64 // loop_header_branch
                  %506 = sbr.rel (%p503) target = $region72
                $region69: #{ds_forward.2} parent=64 // loop_body
                  %v510 = vld [vmem:[%s508] sm:$0xff]
                  %511 = vst [vmem:[%s509] sm:$0xff] %v510
                  %v512 = vld [vmem:[%s508 + $0x8] sm:$0xff]
                  %513 = vst [vmem:[%s509 + $0x8] sm:$0xff] %v512
                  %v514 = vld [vmem:[%s508 + $0x10] sm:$0xff]
                  %515 = vst [vmem:[%s509 + $0x10] sm:$0xff] %v514
                  %v516 = vld [vmem:[%s508 + $0x18] sm:$0xff]
                  %517 = vst [vmem:[%s509 + $0x18] sm:$0xff] %v516
                  %v518 = vld [vmem:[%s508 + $0x20] sm:$0xff]
                  %519 = vst [vmem:[%s509 + $0x20] sm:$0xff] %v518
                  %v520 = vld [vmem:[%s508 + $0x28] sm:$0xff]
                  %521 = vst [vmem:[%s509 + $0x28] sm:$0xff] %v520
                  %v522 = vld [vmem:[%s508 + $0x30] sm:$0xff]
                  %523 = vst [vmem:[%s509 + $0x30] sm:$0xff] %v522
                  %v524 = vld [vmem:[%s508 + $0x38] sm:$0xff]
                  %525 = vst [vmem:[%s509 + $0x38] sm:$0xff] %v524
                  %v526 = vld [vmem:[%s508 + $0x40] sm:$0xff]
                  %527 = vst [vmem:[%s509 + $0x40] sm:$0xff] %v526
                  %v528 = vld [vmem:[%s508 + $0x48] sm:$0xff]
                  %529 = vst [vmem:[%s509 + $0x48] sm:$0xff] %v528
                  %v530 = vld [vmem:[%s508 + $0x50] sm:$0xff]
                  %531 = vst [vmem:[%s509 + $0x50] sm:$0xff] %v530
                  %v532 = vld [vmem:[%s508 + $0x58] sm:$0xff]
                  %533 = vst [vmem:[%s509 + $0x58] sm:$0xff] %v532
                  %v534 = vld [vmem:[%s508 + $0x60] sm:$0xff]
                  %535 = vst [vmem:[%s509 + $0x60] sm:$0xff] %v534
                  %v536 = vld [vmem:[%s508 + $0x68] sm:$0xff]
                  %537 = vst [vmem:[%s509 + $0x68] sm:$0xff] %v536
                  %v538 = vld [vmem:[%s508 + $0x70] sm:$0xff]
                  %539 = vst [vmem:[%s509 + $0x70] sm:$0xff] %v538
                  %v540 = vld [vmem:[%s508 + $0x78] sm:$0xff]
                  %541 = vst [vmem:[%s509 + $0x78] sm:$0xff] %v540
                  %v542 = vld [vmem:[%s508 + $0x12] sm:$0xff]
                  %543 = vst [vmem:[%s509 + $0x10] sm:$0xff] %v542
                  %v544 = vld [vmem:[%s508 + $0x1a] sm:$0xff]
                  %545 = vst [vmem:[%s509 + $0x18] sm:$0xff] %v544
                  %v546 = vld [vmem:[%s508 + $0x22] sm:$0xff]
                  %547 = vst [vmem:[%s509 + $0x20] sm:$0xff] %v546
                  %v548 = vld [vmem:[%s508 + $0x2a] sm:$0xff]
                  %549 = vst [vmem:[%s509 + $0x28] sm:$0xff] %v548
                  %v550 = vld [vmem:[%s508 + $0x32] sm:$0xff]
                  %551 = vst [vmem:[%s509 + $0x30] sm:$0xff] %v550
                  %v552 = vld [vmem:[%s508 + $0x3a] sm:$0xff]
                  %553 = vst [vmem:[%s509 + $0x38] sm:$0xff] %v552
                  %v554 = vld [vmem:[%s508 + $0x42] sm:$0xff]
                  %555 = vst [vmem:[%s509 + $0x40] sm:$0xff] %v554
                  %v556 = vld [vmem:[%s508 + $0x4a] sm:$0xff]
                  %557 = vst [vmem:[%s509 + $0x48] sm:$0xff] %v556
                  %v558 = vld [vmem:[%s508 + $0x52] sm:$0xff]
                  %559 = vst [vmem:[%s509 + $0x50] sm:$0xff] %v558
                  %v560 = vld [vmem:[%s508 + $0x5a] sm:$0xff]
                  %561 = vst [vmem:[%s509 + $0x58] sm:$0xff] %v560
                  %v562 = vld [vmem:[%s508 + $0x62] sm:$0xff]
                  %563 = vst [vmem:[%s509 + $0x60] sm:$0xff] %v562
                  %v564 = vld [vmem:[%s508 + $0x6a] sm:$0xff]
                  %565 = vst [vmem:[%s509 + $0x68] sm:$0xff] %v564
                  %v566 = vld [vmem:[%s508 + $0x72] sm:$0xff]
                  %567 = vst [vmem:[%s509 + $0x70] sm:$0xff] %v566
                  %v568 = vld [vmem:[%s508 + $0x7a] sm:$0xff]
                  %569 = vst [vmem:[%s509 + $0x78] sm:$0xff] %v568
                  %v570 = vld [vmem:[%s508 + $0x82] sm:$0xff]
                  %571 = vst [vmem:[%s509 + $0x80] sm:$0xff] %v570
                  %v572 = vld [vmem:[%s508 + $0x8a] sm:$0xff]
                  %573 = vst [vmem:[%s509 + $0x88] sm:$0xff] %v572
                  %v574 = vld [vmem:[%s508 + $0x24] sm:$0xff]
                  %575 = vst [vmem:[%s509 + $0x20] sm:$0xff] %v574
                  %v576 = vld [vmem:[%s508 + $0x2c] sm:$0xff]
                  %577 = vst [vmem:[%s509 + $0x28] sm:$0xff] %v576
                  %v578 = vld [vmem:[%s508 + $0x34] sm:$0xff]
                  %579 = vst [vmem:[%s509 + $0x30] sm:$0xff] %v578
                  %v580 = vld [vmem:[%s508 + $0x3c] sm:$0xff]
                  %581 = vst [vmem:[%s509 + $0x38] sm:$0xff] %v580
                  %v582 = vld [vmem:[%s508 + $0x44] sm:$0xff]
                  %583 = vst [vmem:[%s509 + $0x40] sm:$0xff] %v582
                  %v584 = vld [vmem:[%s508 + $0x4c] sm:$0xff]
                  %585 = vst [vmem:[%s509 + $0x48] sm:$0xff] %v584
                  %v586 = vld [vmem:[%s508 + $0x54] sm:$0xff]
                  %587 = vst [vmem:[%s509 + $0x50] sm:$0xff] %v586
                  %v588 = vld [vmem:[%s508 + $0x5c] sm:$0xff]
                  %589 = vst [vmem:[%s509 + $0x58] sm:$0xff] %v588
                  %v590 = vld [vmem:[%s508 + $0x64] sm:$0xff]
                  %591 = vst [vmem:[%s509 + $0x60] sm:$0xff] %v590
                  %v592 = vld [vmem:[%s508 + $0x6c] sm:$0xff]
                  %593 = vst [vmem:[%s509 + $0x68] sm:$0xff] %v592
                  %v594 = vld [vmem:[%s508 + $0x74] sm:$0xff]
                  %595 = vst [vmem:[%s509 + $0x70] sm:$0xff] %v594
                  %v596 = vld [vmem:[%s508 + $0x7c] sm:$0xff]
                  %597 = vst [vmem:[%s509 + $0x78] sm:$0xff] %v596
                  %v598 = vld [vmem:[%s508 + $0x84] sm:$0xff]
                  %599 = vst [vmem:[%s509 + $0x80] sm:$0xff] %v598
                  %v600 = vld [vmem:[%s508 + $0x8c] sm:$0xff]
                  %601 = vst [vmem:[%s509 + $0x88] sm:$0xff] %v600
                  %v602 = vld [vmem:[%s508 + $0x94] sm:$0xff]
                  %603 = vst [vmem:[%s509 + $0x90] sm:$0xff] %v602
                  %v604 = vld [vmem:[%s508 + $0x9c] sm:$0xff]
                  %605 = vst [vmem:[%s509 + $0x98] sm:$0xff] %v604
                  %v606 = vld [vmem:[%s508 + $0x36] sm:$0xff]
                  %607 = vst [vmem:[%s509 + $0x30] sm:$0xff] %v606
                  %v608 = vld [vmem:[%s508 + $0x3e] sm:$0xff]
                  %609 = vst [vmem:[%s509 + $0x38] sm:$0xff] %v608
                  %v610 = vld [vmem:[%s508 + $0x46] sm:$0xff]
                  %611 = vst [vmem:[%s509 + $0x40] sm:$0xff] %v610
                  %v612 = vld [vmem:[%s508 + $0x4e] sm:$0xff]
                  %613 = vst [vmem:[%s509 + $0x48] sm:$0xff] %v612
                  %v614 = vld [vmem:[%s508 + $0x56] sm:$0xff]
                  %615 = vst [vmem:[%s509 + $0x50] sm:$0xff] %v614
                  %v616 = vld [vmem:[%s508 + $0x5e] sm:$0xff]
                  %617 = vst [vmem:[%s509 + $0x58] sm:$0xff] %v616
                  %v618 = vld [vmem:[%s508 + $0x66] sm:$0xff]
                  %619 = vst [vmem:[%s509 + $0x60] sm:$0xff] %v618
                  %v620 = vld [vmem:[%s508 + $0x6e] sm:$0xff]
                  %621 = vst [vmem:[%s509 + $0x68] sm:$0xff] %v620
                  %v622 = vld [vmem:[%s508 + $0x76] sm:$0xff]
                  %623 = vst [vmem:[%s509 + $0x70] sm:$0xff] %v622
                  %v624 = vld [vmem:[%s508 + $0x7e] sm:$0xff]
                  %625 = vst [vmem:[%s509 + $0x78] sm:$0xff] %v624
                  %v626 = vld [vmem:[%s508 + $0x86] sm:$0xff]
                  %627 = vst [vmem:[%s509 + $0x80] sm:$0xff] %v626
                  %v628 = vld [vmem:[%s508 + $0x8e] sm:$0xff]
                  %629 = vst [vmem:[%s509 + $0x88] sm:$0xff] %v628
                  %v630 = vld [vmem:[%s508 + $0x96] sm:$0xff]
                  %631 = vst [vmem:[%s509 + $0x90] sm:$0xff] %v630
                  %v632 = vld [vmem:[%s508 + $0x9e] sm:$0xff]
                  %633 = vst [vmem:[%s509 + $0x98] sm:$0xff] %v632
                  %v634 = vld [vmem:[%s508 + $0xa6] sm:$0xff]
                  %635 = vst [vmem:[%s509 + $0xa0] sm:$0xff] %v634
                  %v636 = vld [vmem:[%s508 + $0xae] sm:$0xff]
                  %637 = vst [vmem:[%s509 + $0xa8] sm:$0xff] %v636
                  %s638 = sadd.s32 1, %s507
                  %p639 = scmp.ge.s32.totalorder %s638, %s498
                  %s640 = scalar_select %p639, 0, %s638
                  %s641 = smul.u32 %s640, 128
                  %s642 = smul.u32 %s640, 128
                  %s643 = scalar_lea.vmem %s271, %s641
                  %s644 = scalar_lea.vmem %s259, %s642 [#allocation2]
                $region70: #{ds_forward.2} parent=64 // loop_footer
                  %s504 = sadd.s32 %s502, 1
                $region71: #{ds_forward.2} parent=64 // loop_footer_branch
                  %501 = sbr.rel target = $region67
                $region72: #{ds_forward.2} parent=64 // loop_exit
                  _
                %s645 = sshrl.u32 %s497, 4
                %s646 = sand.u32 %s497, 15
                %s647 = smul.u32 %s645, 16
                %s648 = smul.u32 128, %s647
                %s649 = sshra.s32 %s648, 4
                %s650 = scalar_lea.vmem %s271, %s649
                %s651 = smul.u32 128, %s647
                %s652 = sshra.s32 %s651, 4
                %s653 = scalar_lea.vmem %s259, %s652 [#allocation2]
                // While loop
                $region73: #{ds_forward.2} parent=64 // loop_pre_header
                  _
                $region74: #{ds_forward.2} parent=64 // loop_header
                  %s657 = sphi 0, %s659
                  %p658 = scmp.ge.s32.totalorder %s657, %s646
                  %s662 = sphi 0, %s675
                  %s663 = sphi %s650, %s678
                  %s664 = sphi %s653, %s679
                $region75: #{ds_forward.2} parent=64 // loop_header_branch
                  %661 = sbr.rel (%p658) target = $region79
                $region76: #{ds_forward.2} parent=64 // loop_body
                  %v665 = vld [vmem:[%s663] sm:$0xff]
                  %666 = vst [vmem:[%s664] sm:$0xff] %v665
                  %v667 = vld [vmem:[%s663 + $0x12] sm:$0xff]
                  %668 = vst [vmem:[%s664 + $0x10] sm:$0xff] %v667
                  %v669 = vld [vmem:[%s663 + $0x24] sm:$0xff]
                  %670 = vst [vmem:[%s664 + $0x20] sm:$0xff] %v669
                  %v671 = vld [vmem:[%s663 + $0x36] sm:$0xff]
                  %672 = vst [vmem:[%s664 + $0x30] sm:$0xff] %v671
                  %s673 = sadd.s32 1, %s662
                  %p674 = scmp.ge.s32.totalorder %s673, %s646
                  %s675 = scalar_select %p674, 0, %s673
                  %s676 = smul.u32 %s675, 8
                  %s677 = smul.u32 %s675, 8
                  %s678 = scalar_lea.vmem %s650, %s676
                  %s679 = scalar_lea.vmem %s653, %s677 [#allocation2]
                $region77: #{ds_forward.2} parent=64 // loop_footer
                  %s659 = sadd.s32 %s657, 1
                $region78: #{ds_forward.2} parent=64 // loop_footer_branch
                  %656 = sbr.rel target = $region74
                $region79: #{ds_forward.2} parent=64 // loop_exit
                  _
                %s680 = sshll.u32 1, %s492
                %s681 = ssub.s32 %s680, 1
                loop: start=0, step=1, limit=1
                $region80: #{ds_forward.2} parent=64 // loop_pre_header
                  _
                $region81: #{ds_forward.2} parent=64 // loop_header
                  %s683 = sphi 0, %s687
                  %p684 = scmp.ge.s32.totalorder %s683, 1
                  %s688 = sphi %s494, %s494
                  %s689 = sphi %s496, %s496
                $region82: #{ds_forward.2} parent=64 // loop_header_branch
                  %686 = sbr.rel (%p684) target = $region86
                $region83: #{ds_forward.2} parent=64 // loop_body
                  %v690 = vld [vmem:[%s688] sm:%s681]
                  %691 = vst [vmem:[%s689] sm:%s681] %v690
                  %v692 = vld [vmem:[%s688 + $0x12] sm:%s681]
                  %693 = vst [vmem:[%s689 + $0x10] sm:%s681] %v692
                  %v694 = vld [vmem:[%s688 + $0x24] sm:%s681]
                  %695 = vst [vmem:[%s689 + $0x20] sm:%s681] %v694
                  %v696 = vld [vmem:[%s688 + $0x36] sm:%s681]
                  %697 = vst [vmem:[%s689 + $0x30] sm:%s681] %v696
                $region84: #{ds_forward.2} parent=64 // loop_footer
                  %s687 = sadd.s32 1, %s683
                $region85: #{ds_forward.2} parent=64 // loop_footer_branch
                  %682 = sbr.rel target = $region81
                $region86: #{ds_forward.2} parent=64 // loop_exit
                  _
              $region65: #{ds_forward.2} parent=31 // pred_fallthru
                _
            $region32: #{ds_forward.2} parent=27 // pred_fallthru
              _
            // Predicated region
            $region33: #{ds_forward.2} parent=27 // pred_check
              %p280 = pneg %p276
            $region34: #{ds_forward.2} parent=27 // pred_check_branch
              %282 = sbr.rel (%p280) target = $region36
            $region35: #{ds_forward.2} parent=27 // pred_region
              %s283 = sshll.u32 1, %s272
              %s284 = ssub.s32 %s283, 1
              loop: start=0, step=1, limit=1
              $region37: #{ds_forward.2} parent=35 // loop_pre_header
                _
              $region38: #{ds_forward.2} parent=35 // loop_header
                %s286 = sphi 0, %s290
                %p287 = scmp.ge.s32.totalorder %s286, 1
                %s291 = sphi %s271, %s271
                %s292 = sphi %s259, %s259
              $region39: #{ds_forward.2} parent=35 // loop_header_branch
                %289 = sbr.rel (%p287) target = $region43
              $region40: #{ds_forward.2} parent=35 // loop_body
                %v293 = vld [vmem:[%s291] sm:%s284]
                %294 = vst [vmem:[%s292] sm:%s284] %v293
                %v295 = vld [vmem:[%s291 + $0x12] sm:%s284]
                %296 = vst [vmem:[%s292 + $0x10] sm:%s284] %v295
                %v297 = vld [vmem:[%s291 + $0x24] sm:%s284]
                %298 = vst [vmem:[%s292 + $0x20] sm:%s284] %v297
                %v299 = vld [vmem:[%s291 + $0x36] sm:%s284]
                %300 = vst [vmem:[%s292 + $0x30] sm:%s284] %v299
              $region41: #{ds_forward.2} parent=35 // loop_footer
                %s290 = sadd.s32 1, %s286
              $region42: #{ds_forward.2} parent=35 // loop_footer_branch
                %285 = sbr.rel target = $region38
              $region43: #{ds_forward.2} parent=35 // loop_exit
                _
            $region36: #{ds_forward.2} parent=27 // pred_fallthru
              _
          $region28: #{ds_forward.2} parent=23 // pred_fallthru
            _
          %698 = vnop
        $region24: #{ds_forward.2} parent=19 // pred_fallthru
          _
        // Predicated region
        $region87: #{ds_forward.2} parent=19 // pred_check
          %p699 = pneg %p76
        $region88: #{ds_forward.2} parent=19 // pred_check_branch
          %701 = sbr.rel (%p699) target = $region90
        $region89: #{ds_forward.2} parent=19 // pred_region
          %s702 = sand.u32 %s66, 1
          %s703 = sand.u32 %s66, 1
          %s704 = smul.addr %s703, 64
          %s705 = scalar_lea.vmem [#allocation3], %s704
          %s706 = smul.u32 4, %s21
          %s707 = smul.u32 8, %s22
          %s708 = ssub.s32 9, %s707
          %p709 = scmp.lt.s32.totalorder %s708, 8
          %s710 = scalar_select %p709, %s708, 8
          %s711 = smul.u32 64, %s710
          %s712 = smul.u32 %s711, 2
          %p713 = scmp.ne.s32.totalorder 0, %s712
          %s714 = smul.addr %s707, 2
          %s715 = smul.addr %s706, 18
          %s716 = sadd.s32 %s714, %s715
          %s717 = scalar_lea.vmem %s1, %s716
          %s718 = smul.u32 %s710, 2
          // Predicated region
          $region91: #{ds_forward.2} parent=89 // pred_check
            %p719 = pneg %p713
          $region92: #{ds_forward.2} parent=89 // pred_check_branch
            %721 = sbr.rel (%p719) target = $region94
          $region93: #{ds_forward.2} parent=89 // pred_region
            %p722 = scmp.lt.u32.totalorder %s718, 8
            %p723 = pneg %p722
            // Predicated region
            $region95: #{ds_forward.2} parent=93 // pred_check
              _
            $region96: #{ds_forward.2} parent=93 // pred_check_branch
              %725 = sbr.rel (%p722) target = $region98
            $region97: #{ds_forward.2} parent=93 // pred_region
              %s747 = sand.u32 %s718, 7
              %p748 = scmp.eq.s32.totalorder %s747, 0
              // Predicated region
              $region110: #{ds_forward.2} parent=97 // pred_check
                %p749 = pneg %p748
              $region111: #{ds_forward.2} parent=97 // pred_check_branch
                %751 = sbr.rel (%p749) target = $region113
              $region112: #{ds_forward.2} parent=97 // pred_region
                %s752 = sshrl.u32 %s718, 3
                %s753 = sshrl.u32 %s752, 4
                // While loop
                $region114: #{ds_forward.2} parent=112 // loop_pre_header
                  _
                $region115: #{ds_forward.2} parent=112 // loop_header
                  %s757 = sphi 0, %s759
                  %p758 = scmp.ge.s32.totalorder %s757, %s753
                  %s762 = sphi 0, %s895
                  %s763 = sphi %s717, %s898
                  %s764 = sphi %s705, %s899
                $region116: #{ds_forward.2} parent=112 // loop_header_branch
                  %761 = sbr.rel (%p758) target = $region120
                $region117: #{ds_forward.2} parent=112 // loop_body
                  %v765 = vld [vmem:[%s763] sm:$0xff]
                  %766 = vst [vmem:[%s764] sm:$0xff] %v765
                  %v767 = vld [vmem:[%s763 + $0x8] sm:$0xff]
                  %768 = vst [vmem:[%s764 + $0x8] sm:$0xff] %v767
                  %v769 = vld [vmem:[%s763 + $0x10] sm:$0xff]
                  %770 = vst [vmem:[%s764 + $0x10] sm:$0xff] %v769
                  %v771 = vld [vmem:[%s763 + $0x18] sm:$0xff]
                  %772 = vst [vmem:[%s764 + $0x18] sm:$0xff] %v771
                  %v773 = vld [vmem:[%s763 + $0x20] sm:$0xff]
                  %774 = vst [vmem:[%s764 + $0x20] sm:$0xff] %v773
                  %v775 = vld [vmem:[%s763 + $0x28] sm:$0xff]
                  %776 = vst [vmem:[%s764 + $0x28] sm:$0xff] %v775
                  %v777 = vld [vmem:[%s763 + $0x30] sm:$0xff]
                  %778 = vst [vmem:[%s764 + $0x30] sm:$0xff] %v777
                  %v779 = vld [vmem:[%s763 + $0x38] sm:$0xff]
                  %780 = vst [vmem:[%s764 + $0x38] sm:$0xff] %v779
                  %v781 = vld [vmem:[%s763 + $0x40] sm:$0xff]
                  %782 = vst [vmem:[%s764 + $0x40] sm:$0xff] %v781
                  %v783 = vld [vmem:[%s763 + $0x48] sm:$0xff]
                  %784 = vst [vmem:[%s764 + $0x48] sm:$0xff] %v783
                  %v785 = vld [vmem:[%s763 + $0x50] sm:$0xff]
                  %786 = vst [vmem:[%s764 + $0x50] sm:$0xff] %v785
                  %v787 = vld [vmem:[%s763 + $0x58] sm:$0xff]
                  %788 = vst [vmem:[%s764 + $0x58] sm:$0xff] %v787
                  %v789 = vld [vmem:[%s763 + $0x60] sm:$0xff]
                  %790 = vst [vmem:[%s764 + $0x60] sm:$0xff] %v789
                  %v791 = vld [vmem:[%s763 + $0x68] sm:$0xff]
                  %792 = vst [vmem:[%s764 + $0x68] sm:$0xff] %v791
                  %v793 = vld [vmem:[%s763 + $0x70] sm:$0xff]
                  %794 = vst [vmem:[%s764 + $0x70] sm:$0xff] %v793
                  %v795 = vld [vmem:[%s763 + $0x78] sm:$0xff]
                  %796 = vst [vmem:[%s764 + $0x78] sm:$0xff] %v795
                  %v797 = vld [vmem:[%s763 + $0x12] sm:$0xff]
                  %798 = vst [vmem:[%s764 + $0x10] sm:$0xff] %v797
                  %v799 = vld [vmem:[%s763 + $0x1a] sm:$0xff]
                  %800 = vst [vmem:[%s764 + $0x18] sm:$0xff] %v799
                  %v801 = vld [vmem:[%s763 + $0x22] sm:$0xff]
                  %802 = vst [vmem:[%s764 + $0x20] sm:$0xff] %v801
                  %v803 = vld [vmem:[%s763 + $0x2a] sm:$0xff]
                  %804 = vst [vmem:[%s764 + $0x28] sm:$0xff] %v803
                  %v805 = vld [vmem:[%s763 + $0x32] sm:$0xff]
                  %806 = vst [vmem:[%s764 + $0x30] sm:$0xff] %v805
                  %v807 = vld [vmem:[%s763 + $0x3a] sm:$0xff]
                  %808 = vst [vmem:[%s764 + $0x38] sm:$0xff] %v807
                  %v809 = vld [vmem:[%s763 + $0x42] sm:$0xff]
                  %810 = vst [vmem:[%s764 + $0x40] sm:$0xff] %v809
                  %v811 = vld [vmem:[%s763 + $0x4a] sm:$0xff]
                  %812 = vst [vmem:[%s764 + $0x48] sm:$0xff] %v811
                  %v813 = vld [vmem:[%s763 + $0x52] sm:$0xff]
                  %814 = vst [vmem:[%s764 + $0x50] sm:$0xff] %v813
                  %v815 = vld [vmem:[%s763 + $0x5a] sm:$0xff]
                  %816 = vst [vmem:[%s764 + $0x58] sm:$0xff] %v815
                  %v817 = vld [vmem:[%s763 + $0x62] sm:$0xff]
                  %818 = vst [vmem:[%s764 + $0x60] sm:$0xff] %v817
                  %v819 = vld [vmem:[%s763 + $0x6a] sm:$0xff]
                  %820 = vst [vmem:[%s764 + $0x68] sm:$0xff] %v819
                  %v821 = vld [vmem:[%s763 + $0x72] sm:$0xff]
                  %822 = vst [vmem:[%s764 + $0x70] sm:$0xff] %v821
                  %v823 = vld [vmem:[%s763 + $0x7a] sm:$0xff]
                  %824 = vst [vmem:[%s764 + $0x78] sm:$0xff] %v823
                  %v825 = vld [vmem:[%s763 + $0x82] sm:$0xff]
                  %826 = vst [vmem:[%s764 + $0x80] sm:$0xff] %v825
                  %v827 = vld [vmem:[%s763 + $0x8a] sm:$0xff]
                  %828 = vst [vmem:[%s764 + $0x88] sm:$0xff] %v827
                  %v829 = vld [vmem:[%s763 + $0x24] sm:$0xff]
                  %830 = vst [vmem:[%s764 + $0x20] sm:$0xff] %v829
                  %v831 = vld [vmem:[%s763 + $0x2c] sm:$0xff]
                  %832 = vst [vmem:[%s764 + $0x28] sm:$0xff] %v831
                  %v833 = vld [vmem:[%s763 + $0x34] sm:$0xff]
                  %834 = vst [vmem:[%s764 + $0x30] sm:$0xff] %v833
                  %v835 = vld [vmem:[%s763 + $0x3c] sm:$0xff]
                  %836 = vst [vmem:[%s764 + $0x38] sm:$0xff] %v835
                  %v837 = vld [vmem:[%s763 + $0x44] sm:$0xff]
                  %838 = vst [vmem:[%s764 + $0x40] sm:$0xff] %v837
                  %v839 = vld [vmem:[%s763 + $0x4c] sm:$0xff]
                  %840 = vst [vmem:[%s764 + $0x48] sm:$0xff] %v839
                  %v841 = vld [vmem:[%s763 + $0x54] sm:$0xff]
                  %842 = vst [vmem:[%s764 + $0x50] sm:$0xff] %v841
                  %v843 = vld [vmem:[%s763 + $0x5c] sm:$0xff]
                  %844 = vst [vmem:[%s764 + $0x58] sm:$0xff] %v843
                  %v845 = vld [vmem:[%s763 + $0x64] sm:$0xff]
                  %846 = vst [vmem:[%s764 + $0x60] sm:$0xff] %v845
                  %v847 = vld [vmem:[%s763 + $0x6c] sm:$0xff]
                  %848 = vst [vmem:[%s764 + $0x68] sm:$0xff] %v847
                  %v849 = vld [vmem:[%s763 + $0x74] sm:$0xff]
                  %850 = vst [vmem:[%s764 + $0x70] sm:$0xff] %v849
                  %v851 = vld [vmem:[%s763 + $0x7c] sm:$0xff]
                  %852 = vst [vmem:[%s764 + $0x78] sm:$0xff] %v851
                  %v853 = vld [vmem:[%s763 + $0x84] sm:$0xff]
                  %854 = vst [vmem:[%s764 + $0x80] sm:$0xff] %v853
                  %v855 = vld [vmem:[%s763 + $0x8c] sm:$0xff]
                  %856 = vst [vmem:[%s764 + $0x88] sm:$0xff] %v855
                  %v857 = vld [vmem:[%s763 + $0x94] sm:$0xff]
                  %858 = vst [vmem:[%s764 + $0x90] sm:$0xff] %v857
                  %v859 = vld [vmem:[%s763 + $0x9c] sm:$0xff]
                  %860 = vst [vmem:[%s764 + $0x98] sm:$0xff] %v859
                  %v861 = vld [vmem:[%s763 + $0x36] sm:$0xff]
                  %862 = vst [vmem:[%s764 + $0x30] sm:$0xff] %v861
                  %v863 = vld [vmem:[%s763 + $0x3e] sm:$0xff]
                  %864 = vst [vmem:[%s764 + $0x38] sm:$0xff] %v863
                  %v865 = vld [vmem:[%s763 + $0x46] sm:$0xff]
                  %866 = vst [vmem:[%s764 + $0x40] sm:$0xff] %v865
                  %v867 = vld [vmem:[%s763 + $0x4e] sm:$0xff]
                  %868 = vst [vmem:[%s764 + $0x48] sm:$0xff] %v867
                  %v869 = vld [vmem:[%s763 + $0x56] sm:$0xff]
                  %870 = vst [vmem:[%s764 + $0x50] sm:$0xff] %v869
                  %v871 = vld [vmem:[%s763 + $0x5e] sm:$0xff]
                  %872 = vst [vmem:[%s764 + $0x58] sm:$0xff] %v871
                  %v873 = vld [vmem:[%s763 + $0x66] sm:$0xff]
                  %874 = vst [vmem:[%s764 + $0x60] sm:$0xff] %v873
                  %v875 = vld [vmem:[%s763 + $0x6e] sm:$0xff]
                  %876 = vst [vmem:[%s764 + $0x68] sm:$0xff] %v875
                  %v877 = vld [vmem:[%s763 + $0x76] sm:$0xff]
                  %878 = vst [vmem:[%s764 + $0x70] sm:$0xff] %v877
                  %v879 = vld [vmem:[%s763 + $0x7e] sm:$0xff]
                  %880 = vst [vmem:[%s764 + $0x78] sm:$0xff] %v879
                  %v881 = vld [vmem:[%s763 + $0x86] sm:$0xff]
                  %882 = vst [vmem:[%s764 + $0x80] sm:$0xff] %v881
                  %v883 = vld [vmem:[%s763 + $0x8e] sm:$0xff]
                  %884 = vst [vmem:[%s764 + $0x88] sm:$0xff] %v883
                  %v885 = vld [vmem:[%s763 + $0x96] sm:$0xff]
                  %886 = vst [vmem:[%s764 + $0x90] sm:$0xff] %v885
                  %v887 = vld [vmem:[%s763 + $0x9e] sm:$0xff]
                  %888 = vst [vmem:[%s764 + $0x98] sm:$0xff] %v887
                  %v889 = vld [vmem:[%s763 + $0xa6] sm:$0xff]
                  %890 = vst [vmem:[%s764 + $0xa0] sm:$0xff] %v889
                  %v891 = vld [vmem:[%s763 + $0xae] sm:$0xff]
                  %892 = vst [vmem:[%s764 + $0xa8] sm:$0xff] %v891
                  %s893 = sadd.s32 1, %s762
                  %p894 = scmp.ge.s32.totalorder %s893, %s753
                  %s895 = scalar_select %p894, 0, %s893
                  %s896 = smul.u32 %s895, 128
                  %s897 = smul.u32 %s895, 128
                  %s898 = scalar_lea.vmem %s717, %s896
                  %s899 = scalar_lea.vmem %s705, %s897 [#allocation3]
                $region118: #{ds_forward.2} parent=112 // loop_footer
                  %s759 = sadd.s32 %s757, 1
                $region119: #{ds_forward.2} parent=112 // loop_footer_branch
                  %756 = sbr.rel target = $region115
                $region120: #{ds_forward.2} parent=112 // loop_exit
                  _
                %s900 = sshrl.u32 %s752, 4
                %s901 = sand.u32 %s752, 15
                %s902 = smul.u32 %s900, 16
                %s903 = smul.u32 128, %s902
                %s904 = sshra.s32 %s903, 4
                %s905 = scalar_lea.vmem %s717, %s904
                %s906 = smul.u32 128, %s902
                %s907 = sshra.s32 %s906, 4
                %s908 = scalar_lea.vmem %s705, %s907 [#allocation3]
                // While loop
                $region121: #{ds_forward.2} parent=112 // loop_pre_header
                  _
                $region122: #{ds_forward.2} parent=112 // loop_header
                  %s912 = sphi 0, %s914
                  %p913 = scmp.ge.s32.totalorder %s912, %s901
                  %s917 = sphi 0, %s930
                  %s918 = sphi %s905, %s933
                  %s919 = sphi %s908, %s934
                $region123: #{ds_forward.2} parent=112 // loop_header_branch
                  %916 = sbr.rel (%p913) target = $region127
                $region124: #{ds_forward.2} parent=112 // loop_body
                  %v920 = vld [vmem:[%s918] sm:$0xff]
                  %921 = vst [vmem:[%s919] sm:$0xff] %v920
                  %v922 = vld [vmem:[%s918 + $0x12] sm:$0xff]
                  %923 = vst [vmem:[%s919 + $0x10] sm:$0xff] %v922
                  %v924 = vld [vmem:[%s918 + $0x24] sm:$0xff]
                  %925 = vst [vmem:[%s919 + $0x20] sm:$0xff] %v924
                  %v926 = vld [vmem:[%s918 + $0x36] sm:$0xff]
                  %927 = vst [vmem:[%s919 + $0x30] sm:$0xff] %v926
                  %s928 = sadd.s32 1, %s917
                  %p929 = scmp.ge.s32.totalorder %s928, %s901
                  %s930 = scalar_select %p929, 0, %s928
                  %s931 = smul.u32 %s930, 8
                  %s932 = smul.u32 %s930, 8
                  %s933 = scalar_lea.vmem %s905, %s931
                  %s934 = scalar_lea.vmem %s908, %s932 [#allocation3]
                $region125: #{ds_forward.2} parent=112 // loop_footer
                  %s914 = sadd.s32 %s912, 1
                $region126: #{ds_forward.2} parent=112 // loop_footer_branch
                  %911 = sbr.rel target = $region122
                $region127: #{ds_forward.2} parent=112 // loop_exit
                  _
              $region113: #{ds_forward.2} parent=97 // pred_fallthru
                _
              %p935 = pneg %p748
              // Predicated region
              $region128: #{ds_forward.2} parent=97 // pred_check
                _
              $region129: #{ds_forward.2} parent=97 // pred_check_branch
                %937 = sbr.rel (%p748) target = $region131
              $region130: #{ds_forward.2} parent=97 // pred_region
                %s938 = sand.u32 %s718, 7
                %s939 = ssub.s32 %s718, %s938
                %s940 = scalar_lea.vmem %s717, %s939
                %s941 = ssub.s32 %s718, %s938
                %s942 = scalar_lea.vmem %s705, %s941 [#allocation3]
                %s943 = sshrl.u32 %s718, 3
                %s944 = sshrl.u32 %s943, 4
                // While loop
                $region132: #{ds_forward.2} parent=130 // loop_pre_header
                  _
                $region133: #{ds_forward.2} parent=130 // loop_header
                  %s948 = sphi 0, %s950
                  %p949 = scmp.ge.s32.totalorder %s948, %s944
                  %s953 = sphi 0, %s1086
                  %s954 = sphi %s717, %s1089
                  %s955 = sphi %s705, %s1090
                $region134: #{ds_forward.2} parent=130 // loop_header_branch
                  %952 = sbr.rel (%p949) target = $region138
                $region135: #{ds_forward.2} parent=130 // loop_body
                  %v956 = vld [vmem:[%s954] sm:$0xff]
                  %957 = vst [vmem:[%s955] sm:$0xff] %v956
                  %v958 = vld [vmem:[%s954 + $0x8] sm:$0xff]
                  %959 = vst [vmem:[%s955 + $0x8] sm:$0xff] %v958
                  %v960 = vld [vmem:[%s954 + $0x10] sm:$0xff]
                  %961 = vst [vmem:[%s955 + $0x10] sm:$0xff] %v960
                  %v962 = vld [vmem:[%s954 + $0x18] sm:$0xff]
                  %963 = vst [vmem:[%s955 + $0x18] sm:$0xff] %v962
                  %v964 = vld [vmem:[%s954 + $0x20] sm:$0xff]
                  %965 = vst [vmem:[%s955 + $0x20] sm:$0xff] %v964
                  %v966 = vld [vmem:[%s954 + $0x28] sm:$0xff]
                  %967 = vst [vmem:[%s955 + $0x28] sm:$0xff] %v966
                  %v968 = vld [vmem:[%s954 + $0x30] sm:$0xff]
                  %969 = vst [vmem:[%s955 + $0x30] sm:$0xff] %v968
                  %v970 = vld [vmem:[%s954 + $0x38] sm:$0xff]
                  %971 = vst [vmem:[%s955 + $0x38] sm:$0xff] %v970
                  %v972 = vld [vmem:[%s954 + $0x40] sm:$0xff]
                  %973 = vst [vmem:[%s955 + $0x40] sm:$0xff] %v972
                  %v974 = vld [vmem:[%s954 + $0x48] sm:$0xff]
                  %975 = vst [vmem:[%s955 + $0x48] sm:$0xff] %v974
                  %v976 = vld [vmem:[%s954 + $0x50] sm:$0xff]
                  %977 = vst [vmem:[%s955 + $0x50] sm:$0xff] %v976
                  %v978 = vld [vmem:[%s954 + $0x58] sm:$0xff]
                  %979 = vst [vmem:[%s955 + $0x58] sm:$0xff] %v978
                  %v980 = vld [vmem:[%s954 + $0x60] sm:$0xff]
                  %981 = vst [vmem:[%s955 + $0x60] sm:$0xff] %v980
                  %v982 = vld [vmem:[%s954 + $0x68] sm:$0xff]
                  %983 = vst [vmem:[%s955 + $0x68] sm:$0xff] %v982
                  %v984 = vld [vmem:[%s954 + $0x70] sm:$0xff]
                  %985 = vst [vmem:[%s955 + $0x70] sm:$0xff] %v984
                  %v986 = vld [vmem:[%s954 + $0x78] sm:$0xff]
                  %987 = vst [vmem:[%s955 + $0x78] sm:$0xff] %v986
                  %v988 = vld [vmem:[%s954 + $0x12] sm:$0xff]
                  %989 = vst [vmem:[%s955 + $0x10] sm:$0xff] %v988
                  %v990 = vld [vmem:[%s954 + $0x1a] sm:$0xff]
                  %991 = vst [vmem:[%s955 + $0x18] sm:$0xff] %v990
                  %v992 = vld [vmem:[%s954 + $0x22] sm:$0xff]
                  %993 = vst [vmem:[%s955 + $0x20] sm:$0xff] %v992
                  %v994 = vld [vmem:[%s954 + $0x2a] sm:$0xff]
                  %995 = vst [vmem:[%s955 + $0x28] sm:$0xff] %v994
                  %v996 = vld [vmem:[%s954 + $0x32] sm:$0xff]
                  %997 = vst [vmem:[%s955 + $0x30] sm:$0xff] %v996
                  %v998 = vld [vmem:[%s954 + $0x3a] sm:$0xff]
                  %999 = vst [vmem:[%s955 + $0x38] sm:$0xff] %v998
                  %v1000 = vld [vmem:[%s954 + $0x42] sm:$0xff]
                  %1001 = vst [vmem:[%s955 + $0x40] sm:$0xff] %v1000
                  %v1002 = vld [vmem:[%s954 + $0x4a] sm:$0xff]
                  %1003 = vst [vmem:[%s955 + $0x48] sm:$0xff] %v1002
                  %v1004 = vld [vmem:[%s954 + $0x52] sm:$0xff]
                  %1005 = vst [vmem:[%s955 + $0x50] sm:$0xff] %v1004
                  %v1006 = vld [vmem:[%s954 + $0x5a] sm:$0xff]
                  %1007 = vst [vmem:[%s955 + $0x58] sm:$0xff] %v1006
                  %v1008 = vld [vmem:[%s954 + $0x62] sm:$0xff]
                  %1009 = vst [vmem:[%s955 + $0x60] sm:$0xff] %v1008
                  %v1010 = vld [vmem:[%s954 + $0x6a] sm:$0xff]
                  %1011 = vst [vmem:[%s955 + $0x68] sm:$0xff] %v1010
                  %v1012 = vld [vmem:[%s954 + $0x72] sm:$0xff]
                  %1013 = vst [vmem:[%s955 + $0x70] sm:$0xff] %v1012
                  %v1014 = vld [vmem:[%s954 + $0x7a] sm:$0xff]
                  %1015 = vst [vmem:[%s955 + $0x78] sm:$0xff] %v1014
                  %v1016 = vld [vmem:[%s954 + $0x82] sm:$0xff]
                  %1017 = vst [vmem:[%s955 + $0x80] sm:$0xff] %v1016
                  %v1018 = vld [vmem:[%s954 + $0x8a] sm:$0xff]
                  %1019 = vst [vmem:[%s955 + $0x88] sm:$0xff] %v1018
                  %v1020 = vld [vmem:[%s954 + $0x24] sm:$0xff]
                  %1021 = vst [vmem:[%s955 + $0x20] sm:$0xff] %v1020
                  %v1022 = vld [vmem:[%s954 + $0x2c] sm:$0xff]
                  %1023 = vst [vmem:[%s955 + $0x28] sm:$0xff] %v1022
                  %v1024 = vld [vmem:[%s954 + $0x34] sm:$0xff]
                  %1025 = vst [vmem:[%s955 + $0x30] sm:$0xff] %v1024
                  %v1026 = vld [vmem:[%s954 + $0x3c] sm:$0xff]
                  %1027 = vst [vmem:[%s955 + $0x38] sm:$0xff] %v1026
                  %v1028 = vld [vmem:[%s954 + $0x44] sm:$0xff]
                  %1029 = vst [vmem:[%s955 + $0x40] sm:$0xff] %v1028
                  %v1030 = vld [vmem:[%s954 + $0x4c] sm:$0xff]
                  %1031 = vst [vmem:[%s955 + $0x48] sm:$0xff] %v1030
                  %v1032 = vld [vmem:[%s954 + $0x54] sm:$0xff]
                  %1033 = vst [vmem:[%s955 + $0x50] sm:$0xff] %v1032
                  %v1034 = vld [vmem:[%s954 + $0x5c] sm:$0xff]
                  %1035 = vst [vmem:[%s955 + $0x58] sm:$0xff] %v1034
                  %v1036 = vld [vmem:[%s954 + $0x64] sm:$0xff]
                  %1037 = vst [vmem:[%s955 + $0x60] sm:$0xff] %v1036
                  %v1038 = vld [vmem:[%s954 + $0x6c] sm:$0xff]
                  %1039 = vst [vmem:[%s955 + $0x68] sm:$0xff] %v1038
                  %v1040 = vld [vmem:[%s954 + $0x74] sm:$0xff]
                  %1041 = vst [vmem:[%s955 + $0x70] sm:$0xff] %v1040
                  %v1042 = vld [vmem:[%s954 + $0x7c] sm:$0xff]
                  %1043 = vst [vmem:[%s955 + $0x78] sm:$0xff] %v1042
                  %v1044 = vld [vmem:[%s954 + $0x84] sm:$0xff]
                  %1045 = vst [vmem:[%s955 + $0x80] sm:$0xff] %v1044
                  %v1046 = vld [vmem:[%s954 + $0x8c] sm:$0xff]
                  %1047 = vst [vmem:[%s955 + $0x88] sm:$0xff] %v1046
                  %v1048 = vld [vmem:[%s954 + $0x94] sm:$0xff]
                  %1049 = vst [vmem:[%s955 + $0x90] sm:$0xff] %v1048
                  %v1050 = vld [vmem:[%s954 + $0x9c] sm:$0xff]
                  %1051 = vst [vmem:[%s955 + $0x98] sm:$0xff] %v1050
                  %v1052 = vld [vmem:[%s954 + $0x36] sm:$0xff]
                  %1053 = vst [vmem:[%s955 + $0x30] sm:$0xff] %v1052
                  %v1054 = vld [vmem:[%s954 + $0x3e] sm:$0xff]
                  %1055 = vst [vmem:[%s955 + $0x38] sm:$0xff] %v1054
                  %v1056 = vld [vmem:[%s954 + $0x46] sm:$0xff]
                  %1057 = vst [vmem:[%s955 + $0x40] sm:$0xff] %v1056
                  %v1058 = vld [vmem:[%s954 + $0x4e] sm:$0xff]
                  %1059 = vst [vmem:[%s955 + $0x48] sm:$0xff] %v1058
                  %v1060 = vld [vmem:[%s954 + $0x56] sm:$0xff]
                  %1061 = vst [vmem:[%s955 + $0x50] sm:$0xff] %v1060
                  %v1062 = vld [vmem:[%s954 + $0x5e] sm:$0xff]
                  %1063 = vst [vmem:[%s955 + $0x58] sm:$0xff] %v1062
                  %v1064 = vld [vmem:[%s954 + $0x66] sm:$0xff]
                  %1065 = vst [vmem:[%s955 + $0x60] sm:$0xff] %v1064
                  %v1066 = vld [vmem:[%s954 + $0x6e] sm:$0xff]
                  %1067 = vst [vmem:[%s955 + $0x68] sm:$0xff] %v1066
                  %v1068 = vld [vmem:[%s954 + $0x76] sm:$0xff]
                  %1069 = vst [vmem:[%s955 + $0x70] sm:$0xff] %v1068
                  %v1070 = vld [vmem:[%s954 + $0x7e] sm:$0xff]
                  %1071 = vst [vmem:[%s955 + $0x78] sm:$0xff] %v1070
                  %v1072 = vld [vmem:[%s954 + $0x86] sm:$0xff]
                  %1073 = vst [vmem:[%s955 + $0x80] sm:$0xff] %v1072
                  %v1074 = vld [vmem:[%s954 + $0x8e] sm:$0xff]
                  %1075 = vst [vmem:[%s955 + $0x88] sm:$0xff] %v1074
                  %v1076 = vld [vmem:[%s954 + $0x96] sm:$0xff]
                  %1077 = vst [vmem:[%s955 + $0x90] sm:$0xff] %v1076
                  %v1078 = vld [vmem:[%s954 + $0x9e] sm:$0xff]
                  %1079 = vst [vmem:[%s955 + $0x98] sm:$0xff] %v1078
                  %v1080 = vld [vmem:[%s954 + $0xa6] sm:$0xff]
                  %1081 = vst [vmem:[%s955 + $0xa0] sm:$0xff] %v1080
                  %v1082 = vld [vmem:[%s954 + $0xae] sm:$0xff]
                  %1083 = vst [vmem:[%s955 + $0xa8] sm:$0xff] %v1082
                  %s1084 = sadd.s32 1, %s953
                  %p1085 = scmp.ge.s32.totalorder %s1084, %s944
                  %s1086 = scalar_select %p1085, 0, %s1084
                  %s1087 = smul.u32 %s1086, 128
                  %s1088 = smul.u32 %s1086, 128
                  %s1089 = scalar_lea.vmem %s717, %s1087
                  %s1090 = scalar_lea.vmem %s705, %s1088 [#allocation3]
                $region136: #{ds_forward.2} parent=130 // loop_footer
                  %s950 = sadd.s32 %s948, 1
                $region137: #{ds_forward.2} parent=130 // loop_footer_branch
                  %947 = sbr.rel target = $region133
                $region138: #{ds_forward.2} parent=130 // loop_exit
                  _
                %s1091 = sshrl.u32 %s943, 4
                %s1092 = sand.u32 %s943, 15
                %s1093 = smul.u32 %s1091, 16
                %s1094 = smul.u32 128, %s1093
                %s1095 = sshra.s32 %s1094, 4
                %s1096 = scalar_lea.vmem %s717, %s1095
                %s1097 = smul.u32 128, %s1093
                %s1098 = sshra.s32 %s1097, 4
                %s1099 = scalar_lea.vmem %s705, %s1098 [#allocation3]
                // While loop
                $region139: #{ds_forward.2} parent=130 // loop_pre_header
                  _
                $region140: #{ds_forward.2} parent=130 // loop_header
                  %s1103 = sphi 0, %s1105
                  %p1104 = scmp.ge.s32.totalorder %s1103, %s1092
                  %s1108 = sphi 0, %s1121
                  %s1109 = sphi %s1096, %s1124
                  %s1110 = sphi %s1099, %s1125
                $region141: #{ds_forward.2} parent=130 // loop_header_branch
                  %1107 = sbr.rel (%p1104) target = $region145
                $region142: #{ds_forward.2} parent=130 // loop_body
                  %v1111 = vld [vmem:[%s1109] sm:$0xff]
                  %1112 = vst [vmem:[%s1110] sm:$0xff] %v1111
                  %v1113 = vld [vmem:[%s1109 + $0x12] sm:$0xff]
                  %1114 = vst [vmem:[%s1110 + $0x10] sm:$0xff] %v1113
                  %v1115 = vld [vmem:[%s1109 + $0x24] sm:$0xff]
                  %1116 = vst [vmem:[%s1110 + $0x20] sm:$0xff] %v1115
                  %v1117 = vld [vmem:[%s1109 + $0x36] sm:$0xff]
                  %1118 = vst [vmem:[%s1110 + $0x30] sm:$0xff] %v1117
                  %s1119 = sadd.s32 1, %s1108
                  %p1120 = scmp.ge.s32.totalorder %s1119, %s1092
                  %s1121 = scalar_select %p1120, 0, %s1119
                  %s1122 = smul.u32 %s1121, 8
                  %s1123 = smul.u32 %s1121, 8
                  %s1124 = scalar_lea.vmem %s1096, %s1122
                  %s1125 = scalar_lea.vmem %s1099, %s1123 [#allocation3]
                $region143: #{ds_forward.2} parent=130 // loop_footer
                  %s1105 = sadd.s32 %s1103, 1
                $region144: #{ds_forward.2} parent=130 // loop_footer_branch
                  %1102 = sbr.rel target = $region140
                $region145: #{ds_forward.2} parent=130 // loop_exit
                  _
                %s1126 = sshll.u32 1, %s938
                %s1127 = ssub.s32 %s1126, 1
                loop: start=0, step=1, limit=1
                $region146: #{ds_forward.2} parent=130 // loop_pre_header
                  _
                $region147: #{ds_forward.2} parent=130 // loop_header
                  %s1129 = sphi 0, %s1133
                  %p1130 = scmp.ge.s32.totalorder %s1129, 1
                  %s1134 = sphi %s940, %s940
                  %s1135 = sphi %s942, %s942
                $region148: #{ds_forward.2} parent=130 // loop_header_branch
                  %1132 = sbr.rel (%p1130) target = $region152
                $region149: #{ds_forward.2} parent=130 // loop_body
                  %v1136 = vld [vmem:[%s1134] sm:%s1127]
                  %1137 = vst [vmem:[%s1135] sm:%s1127] %v1136
                  %v1138 = vld [vmem:[%s1134 + $0x12] sm:%s1127]
                  %1139 = vst [vmem:[%s1135 + $0x10] sm:%s1127] %v1138
                  %v1140 = vld [vmem:[%s1134 + $0x24] sm:%s1127]
                  %1141 = vst [vmem:[%s1135 + $0x20] sm:%s1127] %v1140
                  %v1142 = vld [vmem:[%s1134 + $0x36] sm:%s1127]
                  %1143 = vst [vmem:[%s1135 + $0x30] sm:%s1127] %v1142
                $region150: #{ds_forward.2} parent=130 // loop_footer
                  %s1133 = sadd.s32 1, %s1129
                $region151: #{ds_forward.2} parent=130 // loop_footer_branch
                  %1128 = sbr.rel target = $region147
                $region152: #{ds_forward.2} parent=130 // loop_exit
                  _
              $region131: #{ds_forward.2} parent=97 // pred_fallthru
                _
            $region98: #{ds_forward.2} parent=93 // pred_fallthru
              _
            // Predicated region
            $region99: #{ds_forward.2} parent=93 // pred_check
              %p726 = pneg %p722
            $region100: #{ds_forward.2} parent=93 // pred_check_branch
              %728 = sbr.rel (%p726) target = $region102
            $region101: #{ds_forward.2} parent=93 // pred_region
              %s729 = sshll.u32 1, %s718
              %s730 = ssub.s32 %s729, 1
              loop: start=0, step=1, limit=1
              $region103: #{ds_forward.2} parent=101 // loop_pre_header
                _
              $region104: #{ds_forward.2} parent=101 // loop_header
                %s732 = sphi 0, %s736
                %p733 = scmp.ge.s32.totalorder %s732, 1
                %s737 = sphi %s717, %s717
                %s738 = sphi %s705, %s705
              $region105: #{ds_forward.2} parent=101 // loop_header_branch
                %735 = sbr.rel (%p733) target = $region109
              $region106: #{ds_forward.2} parent=101 // loop_body
                %v739 = vld [vmem:[%s737] sm:%s730]
                %740 = vst [vmem:[%s738] sm:%s730] %v739
                %v741 = vld [vmem:[%s737 + $0x12] sm:%s730]
                %742 = vst [vmem:[%s738 + $0x10] sm:%s730] %v741
                %v743 = vld [vmem:[%s737 + $0x24] sm:%s730]
                %744 = vst [vmem:[%s738 + $0x20] sm:%s730] %v743
                %v745 = vld [vmem:[%s737 + $0x36] sm:%s730]
                %746 = vst [vmem:[%s738 + $0x30] sm:%s730] %v745
              $region107: #{ds_forward.2} parent=101 // loop_footer
                %s736 = sadd.s32 1, %s732
              $region108: #{ds_forward.2} parent=101 // loop_footer_branch
                %731 = sbr.rel target = $region104
              $region109: #{ds_forward.2} parent=101 // loop_exit
                _
            $region102: #{ds_forward.2} parent=93 // pred_fallthru
              _
          $region94: #{ds_forward.2} parent=89 // pred_fallthru
            _
          %1144 = vnop
        $region90: #{ds_forward.2} parent=19 // pred_fallthru
          _
        // Predicated region
        $region153: #{ds_forward.2} parent=19 // pred_check
          %p1145 = pneg %p108
        $region154: #{ds_forward.2} parent=19 // pred_check_branch
          %1147 = sbr.rel (%p1145) target = $region156
        $region155: #{ds_forward.2} parent=19 // pred_region
          %s1148 = sand.u32 %s98, 1
          %s1149 = sand.u32 %s98, 1
          %s1150 = smul.addr %s1149, 8
          %s1151 = scalar_lea.vmem [#allocation4], %s1150
          %s1152 = sadd.s32 %s22, 1
          %s1153 = smul.u32 %s1152, 8
          %s1154 = smul.u32 4, %s21
          %s1155 = smul.addr %s1153, 2
          %s1156 = smul.addr %s1154, 18
          %s1157 = sadd.s32 %s1155, %s1156
          %s1158 = scalar_lea.vmem %s2, %s1157
          // Predicated region
          $region157: #{ds_forward.2} parent=155 // pred_check
            _
          $region158: #{ds_forward.2} parent=155 // pred_check_branch
            %1160 = sbr.rel (0) target = $region160
          $region159: #{ds_forward.2} parent=155 // pred_region
            // Predicated region
            $region161: #{ds_forward.2} parent=159 // pred_check
              _
            $region162: #{ds_forward.2} parent=159 // pred_check_branch
              %1162 = sbr.rel target = $region164
            $region163: #{ds_forward.2} parent=159 // pred_region
              // Predicated region
              $region176: #{ds_forward.2} parent=163 // pred_check
                _
              $region177: #{ds_forward.2} parent=163 // pred_check_branch
                %1184 = sbr.rel (0) target = $region179
              $region178: #{ds_forward.2} parent=163 // pred_region
                loop: start=0, step=1, limit=1
                $region180: #{ds_forward.2} parent=178 // loop_pre_header
                  _
                $region181: #{ds_forward.2} parent=178 // loop_header
                  %s1186 = sphi 0, %s1190
                  %p1187 = scmp.ge.s32.totalorder %s1186, 1
                  %s1191 = sphi %s1158, %s1158
                  %s1192 = sphi %s1151, %s1151
                $region182: #{ds_forward.2} parent=178 // loop_header_branch
                  %1189 = sbr.rel (%p1187) target = $region186
                $region183: #{ds_forward.2} parent=178 // loop_body
                  _
                $region184: #{ds_forward.2} parent=178 // loop_footer
                  %s1190 = sadd.s32 1, %s1186
                $region185: #{ds_forward.2} parent=178 // loop_footer_branch
                  %1185 = sbr.rel target = $region181
                $region186: #{ds_forward.2} parent=178 // loop_exit
                  _
                %s1194 = ssub.s32 4, 1
                loop: start=0, step=1, limit=1
                $region187: #{ds_forward.2} parent=178 // loop_pre_header
                  _
                $region188: #{ds_forward.2} parent=178 // loop_header
                  %s1196 = sphi 0, %s1200
                  %p1197 = scmp.ge.s32.totalorder %s1196, 1
                  %s1201 = sphi %s1158, %s1158
                  %s1202 = sphi %s1151, %s1151
                $region189: #{ds_forward.2} parent=178 // loop_header_branch
                  %1199 = sbr.rel (%p1197) target = $region193
                $region190: #{ds_forward.2} parent=178 // loop_body
                  %v1203 = vld [vmem:[%s1201] sm:%s1194]
                  %1204 = vst [vmem:[%s1202] sm:%s1194] %v1203
                  %v1205 = vld [vmem:[%s1201 + $0x12] sm:%s1194]
                  %1206 = vst [vmem:[%s1202 + $0x2] sm:%s1194] %v1205
                  %v1207 = vld [vmem:[%s1201 + $0x24] sm:%s1194]
                  %1208 = vst [vmem:[%s1202 + $0x4] sm:%s1194] %v1207
                  %v1209 = vld [vmem:[%s1201 + $0x36] sm:%s1194]
                  %1210 = vst [vmem:[%s1202 + $0x6] sm:%s1194] %v1209
                $region191: #{ds_forward.2} parent=178 // loop_footer
                  %s1200 = sadd.s32 1, %s1196
                $region192: #{ds_forward.2} parent=178 // loop_footer_branch
                  %1195 = sbr.rel target = $region188
                $region193: #{ds_forward.2} parent=178 // loop_exit
                  _
              $region179: #{ds_forward.2} parent=163 // pred_fallthru
                _
            $region164: #{ds_forward.2} parent=159 // pred_fallthru
              _
            // Predicated region
            $region165: #{ds_forward.2} parent=159 // pred_check
              _
            $region166: #{ds_forward.2} parent=159 // pred_check_branch
              %1164 = sbr.rel (0) target = $region168
            $region167: #{ds_forward.2} parent=159 // pred_region
              %s1166 = ssub.s32 4, 1
              loop: start=0, step=1, limit=1
              $region169: #{ds_forward.2} parent=167 // loop_pre_header
                _
              $region170: #{ds_forward.2} parent=167 // loop_header
                %s1168 = sphi 0, %s1172
                %p1169 = scmp.ge.s32.totalorder %s1168, 1
                %s1173 = sphi %s1158, %s1158
                %s1174 = sphi %s1151, %s1151
              $region171: #{ds_forward.2} parent=167 // loop_header_branch
                %1171 = sbr.rel (%p1169) target = $region175
              $region172: #{ds_forward.2} parent=167 // loop_body
                %v1175 = vld [vmem:[%s1173] sm:%s1166]
                %1176 = vst [vmem:[%s1174] sm:%s1166] %v1175
                %v1177 = vld [vmem:[%s1173 + $0x12] sm:%s1166]
                %1178 = vst [vmem:[%s1174 + $0x2] sm:%s1166] %v1177
                %v1179 = vld [vmem:[%s1173 + $0x24] sm:%s1166]
                %1180 = vst [vmem:[%s1174 + $0x4] sm:%s1166] %v1179
                %v1181 = vld [vmem:[%s1173 + $0x36] sm:%s1166]
                %1182 = vst [vmem:[%s1174 + $0x6] sm:%s1166] %v1181
              $region173: #{ds_forward.2} parent=167 // loop_footer
                %s1172 = sadd.s32 1, %s1168
              $region174: #{ds_forward.2} parent=167 // loop_footer_branch
                %1167 = sbr.rel target = $region170
              $region175: #{ds_forward.2} parent=167 // loop_exit
                _
            $region168: #{ds_forward.2} parent=159 // pred_fallthru
              _
          $region160: #{ds_forward.2} parent=155 // pred_fallthru
            _
          %1211 = vnop
        $region156: #{ds_forward.2} parent=19 // pred_fallthru
          _
        // Predicated region
        $region194: #{ds_forward.2} parent=19 // pred_check
          %p1212 = pneg %p140
        $region195: #{ds_forward.2} parent=19 // pred_check_branch
          %1214 = sbr.rel (%p1212) target = $region197
        $region196: #{ds_forward.2} parent=19 // pred_region
          %s1215 = sand.u32 %s130, 1
          %s1216 = sand.u32 %s130, 1
          %s1217 = smul.addr %s1216, 8
          %s1218 = scalar_lea.vmem [#allocation5], %s1217
          %s1219 = sadd.s32 %s22, 1
          %s1220 = smul.u32 %s1219, 8
          %s1221 = smul.u32 4, %s21
          %s1222 = smul.addr %s1220, 2
          %s1223 = smul.addr %s1221, 18
          %s1224 = sadd.s32 %s1222, %s1223
          %s1225 = scalar_lea.vmem %s3, %s1224
          // Predicated region
          $region198: #{ds_forward.2} parent=196 // pred_check
            _
          $region199: #{ds_forward.2} parent=196 // pred_check_branch
            %1227 = sbr.rel (0) target = $region201
          $region200: #{ds_forward.2} parent=196 // pred_region
            // Predicated region
            $region202: #{ds_forward.2} parent=200 // pred_check
              _
            $region203: #{ds_forward.2} parent=200 // pred_check_branch
              %1229 = sbr.rel target = $region205
            $region204: #{ds_forward.2} parent=200 // pred_region
              // Predicated region
              $region217: #{ds_forward.2} parent=204 // pred_check
                _
              $region218: #{ds_forward.2} parent=204 // pred_check_branch
                %1251 = sbr.rel (0) target = $region220
              $region219: #{ds_forward.2} parent=204 // pred_region
                loop: start=0, step=1, limit=1
                $region221: #{ds_forward.2} parent=219 // loop_pre_header
                  _
                $region222: #{ds_forward.2} parent=219 // loop_header
                  %s1253 = sphi 0, %s1257
                  %p1254 = scmp.ge.s32.totalorder %s1253, 1
                  %s1258 = sphi %s1225, %s1225
                  %s1259 = sphi %s1218, %s1218
                $region223: #{ds_forward.2} parent=219 // loop_header_branch
                  %1256 = sbr.rel (%p1254) target = $region227
                $region224: #{ds_forward.2} parent=219 // loop_body
                  _
                $region225: #{ds_forward.2} parent=219 // loop_footer
                  %s1257 = sadd.s32 1, %s1253
                $region226: #{ds_forward.2} parent=219 // loop_footer_branch
                  %1252 = sbr.rel target = $region222
                $region227: #{ds_forward.2} parent=219 // loop_exit
                  _
                %s1261 = ssub.s32 4, 1
                loop: start=0, step=1, limit=1
                $region228: #{ds_forward.2} parent=219 // loop_pre_header
                  _
                $region229: #{ds_forward.2} parent=219 // loop_header
                  %s1263 = sphi 0, %s1267
                  %p1264 = scmp.ge.s32.totalorder %s1263, 1
                  %s1268 = sphi %s1225, %s1225
                  %s1269 = sphi %s1218, %s1218
                $region230: #{ds_forward.2} parent=219 // loop_header_branch
                  %1266 = sbr.rel (%p1264) target = $region234
                $region231: #{ds_forward.2} parent=219 // loop_body
                  %v1270 = vld [vmem:[%s1268] sm:%s1261]
                  %1271 = vst [vmem:[%s1269] sm:%s1261] %v1270
                  %v1272 = vld [vmem:[%s1268 + $0x12] sm:%s1261]
                  %1273 = vst [vmem:[%s1269 + $0x2] sm:%s1261] %v1272
                  %v1274 = vld [vmem:[%s1268 + $0x24] sm:%s1261]
                  %1275 = vst [vmem:[%s1269 + $0x4] sm:%s1261] %v1274
                  %v1276 = vld [vmem:[%s1268 + $0x36] sm:%s1261]
                  %1277 = vst [vmem:[%s1269 + $0x6] sm:%s1261] %v1276
                $region232: #{ds_forward.2} parent=219 // loop_footer
                  %s1267 = sadd.s32 1, %s1263
                $region233: #{ds_forward.2} parent=219 // loop_footer_branch
                  %1262 = sbr.rel target = $region229
                $region234: #{ds_forward.2} parent=219 // loop_exit
                  _
              $region220: #{ds_forward.2} parent=204 // pred_fallthru
                _
            $region205: #{ds_forward.2} parent=200 // pred_fallthru
              _
            // Predicated region
            $region206: #{ds_forward.2} parent=200 // pred_check
              _
            $region207: #{ds_forward.2} parent=200 // pred_check_branch
              %1231 = sbr.rel (0) target = $region209
            $region208: #{ds_forward.2} parent=200 // pred_region
              %s1233 = ssub.s32 4, 1
              loop: start=0, step=1, limit=1
              $region210: #{ds_forward.2} parent=208 // loop_pre_header
                _
              $region211: #{ds_forward.2} parent=208 // loop_header
                %s1235 = sphi 0, %s1239
                %p1236 = scmp.ge.s32.totalorder %s1235, 1
                %s1240 = sphi %s1225, %s1225
                %s1241 = sphi %s1218, %s1218
              $region212: #{ds_forward.2} parent=208 // loop_header_branch
                %1238 = sbr.rel (%p1236) target = $region216
              $region213: #{ds_forward.2} parent=208 // loop_body
                %v1242 = vld [vmem:[%s1240] sm:%s1233]
                %1243 = vst [vmem:[%s1241] sm:%s1233] %v1242
                %v1244 = vld [vmem:[%s1240 + $0x12] sm:%s1233]
                %1245 = vst [vmem:[%s1241 + $0x2] sm:%s1233] %v1244
                %v1246 = vld [vmem:[%s1240 + $0x24] sm:%s1233]
                %1247 = vst [vmem:[%s1241 + $0x4] sm:%s1233] %v1246
                %v1248 = vld [vmem:[%s1240 + $0x36] sm:%s1233]
                %1249 = vst [vmem:[%s1241 + $0x6] sm:%s1233] %v1248
              $region214: #{ds_forward.2} parent=208 // loop_footer
                %s1239 = sadd.s32 1, %s1235
              $region215: #{ds_forward.2} parent=208 // loop_footer_branch
                %1234 = sbr.rel target = $region211
              $region216: #{ds_forward.2} parent=208 // loop_exit
                _
            $region209: #{ds_forward.2} parent=200 // pred_fallthru
              _
          $region201: #{ds_forward.2} parent=196 // pred_fallthru
            _
          %1278 = vnop
        $region197: #{ds_forward.2} parent=19 // pred_fallthru
          _
      $region20: #{ds_forward.2} parent=5 // pred_fallthru
        _
      %p1279 = scmp.le.s32.totalorder 1, %s14
      %p1280 = scmp.lt.s32.totalorder %s14, 3
      %p1281 = pnand %p1279, %p1280
      %p1282 = pneg %p1281
      // Predicated region
      $region235: #{ds_forward.2} parent=5 // pred_check
        _
      $region236: #{ds_forward.2} parent=5 // pred_check_branch
        %1284 = sbr.rel (%p1281) target = $region238
      $region237: #{ds_forward.2} parent=5 // pred_region
        %s1285 = ssub.s32 %s14, 1
        %s1286 = sand.u32 %s41, 1
        %s1287 = sand.u32 %s41, 1
        %s1288 = smul.addr %s1287, 64
        %s1289 = scalar_lea.vmem [#allocation2], %s1288
        // Predicated region
        $region239: #{ds_forward.2} parent=237 // pred_check
          %p1290 = pneg %p54
        $region240: #{ds_forward.2} parent=237 // pred_check_branch
          %1292 = sbr.rel (%p1290) target = $region242
        $region241: #{ds_forward.2} parent=237 // pred_region
          _
        $region242: #{ds_forward.2} parent=237 // pred_fallthru
          _
        %s1293 = sand.u32 %s69, 1
        %s1294 = sand.u32 %s69, 1
        %s1295 = smul.addr %s1294, 64
        %s1296 = scalar_lea.vmem [#allocation3], %s1295
        // Predicated region
        $region243: #{ds_forward.2} parent=237 // pred_check
          %p1297 = pneg %p82
        $region244: #{ds_forward.2} parent=237 // pred_check_branch
          %1299 = sbr.rel (%p1297) target = $region246
        $region245: #{ds_forward.2} parent=237 // pred_region
          _
        $region246: #{ds_forward.2} parent=237 // pred_fallthru
          _
        %s1300 = sand.u32 %s101, 1
        %s1301 = sand.u32 %s101, 1
        %s1302 = smul.addr %s1301, 8
        %s1303 = scalar_lea.vmem [#allocation4], %s1302
        // Predicated region
        $region247: #{ds_forward.2} parent=237 // pred_check
          %p1304 = pneg %p114
        $region248: #{ds_forward.2} parent=237 // pred_check_branch
          %1306 = sbr.rel (%p1304) target = $region250
        $region249: #{ds_forward.2} parent=237 // pred_region
          _
        $region250: #{ds_forward.2} parent=237 // pred_fallthru
          _
        %s1307 = sand.u32 %s133, 1
        %s1308 = sand.u32 %s133, 1
        %s1309 = smul.addr %s1308, 8
        %s1310 = scalar_lea.vmem [#allocation5], %s1309
        // Predicated region
        $region251: #{ds_forward.2} parent=237 // pred_check
          %p1311 = pneg %p146
        $region252: #{ds_forward.2} parent=237 // pred_check_branch
          %1313 = sbr.rel (%p1311) target = $region254
        $region253: #{ds_forward.2} parent=237 // pred_region
          _
        $region254: #{ds_forward.2} parent=237 // pred_fallthru
          _
        // Predicated region
        $region255: #{ds_forward.2} parent=237 // pred_check
          %p1314 = pneg %p167
        $region256: #{ds_forward.2} parent=237 // pred_check_branch
          %1316 = sbr.rel (%p1314) target = $region258
        $region257: #{ds_forward.2} parent=237 // pred_region
          %1317 = dma.done [#allocation7], 128
        $region258: #{ds_forward.2} parent=237 // pred_fallthru
          _
        %1318 = sfence
        %s1319 = sand.u32 %s41, 1
        %s1320 = sand.u32 %s41, 1
        %s1321 = smul.addr %s1320, 64
        %s1322 = scalar_lea.vmem [#allocation2], %s1321
        %p1323 = pneg %p54
        %p1324 = pneg %p51
        %s1325 = sand.u32 %s69, 1
        %s1326 = sand.u32 %s69, 1
        %s1327 = smul.addr %s1326, 64
        %s1328 = scalar_lea.vmem [#allocation3], %s1327
        %p1329 = pneg %p82
        %p1330 = pneg %p79
        %s1331 = sand.u32 %s101, 1
        %s1332 = sand.u32 %s101, 1
        %s1333 = smul.addr %s1332, 8
        %s1334 = scalar_lea.vmem [#allocation4], %s1333
        %p1335 = pneg %p114
        %p1336 = pneg %p111
        %s1337 = sand.u32 %s133, 1
        %s1338 = sand.u32 %s133, 1
        %s1339 = smul.addr %s1338, 8
        %s1340 = scalar_lea.vmem [#allocation5], %s1339
        %p1341 = pneg %p146
        %p1342 = pneg %p143
        %p1343 = pneg %p167
        %p1344 = pneg %p164
        %p1345 = pneg %p195
        %p1346 = pneg %p192
        %s1347 = sadd.s32 %s23, %s24
        %p1348 = scmp.lt.s32.totalorder %s1347, 1
        %s1349 = scalar_select %p1348, %s1347, 1
        %s1350 = smul.addr %s1349, 8
        %s1351 = scalar_lea.vmem %s5, %s1350
        %p1352 = pneg %p223
        %p1353 = pneg %p220
        %s1354 = sadd.s32 %s23, %s24
        %p1355 = scmp.lt.s32.totalorder %s1354, 1
        %s1356 = scalar_select %p1355, %s1354, 1
        %s1357 = smul.addr %s1356, 8
        %s1358 = scalar_lea.vmem %s6, %s1357
        %s1359 = smul.u32 4, %s23
        %s1360 = smul.u32 8, %s24
        %s1361 = ssub.s32 9, %s1360
        %p1362 = scmp.lt.s32.totalorder %s1361, 8
        %s1363 = scalar_select %p1362, %s1361, 8
        %s1364 = smul.u32 64, %s1363
        %s1365 = smul.u32 %s1364, 2
        %s1366 = smul.u32 4, %s23
        %s1367 = smul.u32 8, %s24
        %s1368 = ssub.s32 9, %s1367
        %p1369 = scmp.lt.s32.totalorder %s1368, 8
        %s1370 = scalar_select %p1369, %s1368, 8
        %s1371 = smul.u32 64, %s1370
        %s1372 = smul.u32 %s1371, 2
        %s1373 = sadd.s32 %s24, 1
        %s1374 = smul.u32 %s1373, 8
        %s1375 = smul.u32 4, %s23
        %s1376 = sadd.s32 %s24, 1
        %s1377 = smul.u32 %s1376, 8
        %s1378 = smul.u32 4, %s23
        %s1379 = sadd.s32 %s23, %s24
        %p1380 = scmp.lt.s32.totalorder %s1379, 1
        %s1381 = scalar_select %p1380, %s1379, 1
        %s1382 = smul.addr %s1381, 8
        %s1383 = scalar_lea.vmem %s5, %s1382
        %s1384 = sadd.s32 %s23, %s24
        %s1385 = sadd.s32 %s23, %s24
        %p1386 = scmp.lt.s32.totalorder %s1385, 1
        %s1387 = scalar_select %p1386, %s1385, 1
        %s1388 = smul.addr %s1387, 8
        %s1389 = scalar_lea.vmem %s6, %s1388
        %s1390 = sadd.s32 %s23, %s24
        %v1391 = vld [vmem:[%s1289] sm:$0x1]
        %v1392 = vld [vmem:[%s1289 + $0x1] sm:$0x1]
        %v1393 = vld [vmem:[%s1289 + $0x2] sm:$0x1]
        %v1394 = vld [vmem:[%s1289 + $0x3] sm:$0x1]
        %v1395 = vld [vmem:[%s1289 + $0x4] sm:$0x1]
        %v1396 = vld [vmem:[%s1289 + $0x5] sm:$0x1]
        %v1397 = vld [vmem:[%s1289 + $0x6] sm:$0x1]
        %v1398 = vld [vmem:[%s1289 + $0x7] sm:$0x1]
        %v1399 = vld [vmem:[%s1289 + $0x8] sm:$0x1]
        %v1400 = vld [vmem:[%s1289 + $0x9] sm:$0x1]
        %v1401 = vld [vmem:[%s1289 + $0xa] sm:$0x1]
        %v1402 = vld [vmem:[%s1289 + $0xb] sm:$0x1]
        %v1403 = vld [vmem:[%s1289 + $0xc] sm:$0x1]
        %v1404 = vld [vmem:[%s1289 + $0xd] sm:$0x1]
        %v1405 = vld [vmem:[%s1289 + $0xe] sm:$0x1]
        %v1406 = vld [vmem:[%s1289 + $0xf] sm:$0x1]
        %v1407 = vld [vmem:[%s1289 + $0x10] sm:$0x1]
        %v1408 = vld [vmem:[%s1289 + $0x11] sm:$0x1]
        %v1409 = vld [vmem:[%s1289 + $0x12] sm:$0x1]
        %v1410 = vld [vmem:[%s1289 + $0x13] sm:$0x1]
        %v1411 = vld [vmem:[%s1289 + $0x14] sm:$0x1]
        %v1412 = vld [vmem:[%s1289 + $0x15] sm:$0x1]
        %v1413 = vld [vmem:[%s1289 + $0x16] sm:$0x1]
        %v1414 = vld [vmem:[%s1289 + $0x17] sm:$0x1]
        %v1415 = vld [vmem:[%s1289 + $0x18] sm:$0x1]
        %v1416 = vld [vmem:[%s1289 + $0x19] sm:$0x1]
        %v1417 = vld [vmem:[%s1289 + $0x1a] sm:$0x1]
        %v1418 = vld [vmem:[%s1289 + $0x1b] sm:$0x1]
        %v1419 = vld [vmem:[%s1289 + $0x1c] sm:$0x1]
        %v1420 = vld [vmem:[%s1289 + $0x1d] sm:$0x1]
        %v1421 = vld [vmem:[%s1289 + $0x1e] sm:$0x1]
        %v1422 = vld [vmem:[%s1289 + $0x1f] sm:$0x1]
        %v1423 = vld [vmem:[%s1289 + $0x20] sm:$0x1]
        %v1424 = vld [vmem:[%s1289 + $0x21] sm:$0x1]
        %v1425 = vld [vmem:[%s1289 + $0x22] sm:$0x1]
        %v1426 = vld [vmem:[%s1289 + $0x23] sm:$0x1]
        %v1427 = vld [vmem:[%s1289 + $0x24] sm:$0x1]
        %v1428 = vld [vmem:[%s1289 + $0x25] sm:$0x1]
        %v1429 = vld [vmem:[%s1289 + $0x26] sm:$0x1]
        %v1430 = vld [vmem:[%s1289 + $0x27] sm:$0x1]
        %v1431 = vld [vmem:[%s1289 + $0x28] sm:$0x1]
        %v1432 = vld [vmem:[%s1289 + $0x29] sm:$0x1]
        %v1433 = vld [vmem:[%s1289 + $0x2a] sm:$0x1]
        %v1434 = vld [vmem:[%s1289 + $0x2b] sm:$0x1]
        %v1435 = vld [vmem:[%s1289 + $0x2c] sm:$0x1]
        %v1436 = vld [vmem:[%s1289 + $0x2d] sm:$0x1]
        %v1437 = vld [vmem:[%s1289 + $0x2e] sm:$0x1]
        %v1438 = vld [vmem:[%s1289 + $0x2f] sm:$0x1]
        %v1439 = vld [vmem:[%s1289 + $0x30] sm:$0x1]
        %v1440 = vld [vmem:[%s1289 + $0x31] sm:$0x1]
        %v1441 = vld [vmem:[%s1289 + $0x32] sm:$0x1]
        %v1442 = vld [vmem:[%s1289 + $0x33] sm:$0x1]
        %v1443 = vld [vmem:[%s1289 + $0x34] sm:$0x1]
        %v1444 = vld [vmem:[%s1289 + $0x35] sm:$0x1]
        %v1445 = vld [vmem:[%s1289 + $0x36] sm:$0x1]
        %v1446 = vld [vmem:[%s1289 + $0x37] sm:$0x1]
        %v1447 = vld [vmem:[%s1289 + $0x38] sm:$0x1]
        %v1448 = vld [vmem:[%s1289 + $0x39] sm:$0x1]
        %v1449 = vld [vmem:[%s1289 + $0x3a] sm:$0x1]
        %v1450 = vld [vmem:[%s1289 + $0x3b] sm:$0x1]
        %v1451 = vld [vmem:[%s1289 + $0x3c] sm:$0x1]
        %v1452 = vld [vmem:[%s1289 + $0x3d] sm:$0x1]
        %v1453 = vld [vmem:[%s1289 + $0x3e] sm:$0x1]
        %v1454 = vld [vmem:[%s1289 + $0x3f] sm:$0x1]
        %v1455 = vld [vmem:[%s1296] sm:$0x1]
        %v1456 = vld [vmem:[%s1296 + $0x1] sm:$0x1]
        %v1457 = vld [vmem:[%s1296 + $0x2] sm:$0x1]
        %v1458 = vld [vmem:[%s1296 + $0x3] sm:$0x1]
        %v1459 = vld [vmem:[%s1296 + $0x4] sm:$0x1]
        %v1460 = vld [vmem:[%s1296 + $0x5] sm:$0x1]
        %v1461 = vld [vmem:[%s1296 + $0x6] sm:$0x1]
        %v1462 = vld [vmem:[%s1296 + $0x7] sm:$0x1]
        %v1463 = vld [vmem:[%s1296 + $0x8] sm:$0x1]
        %v1464 = vld [vmem:[%s1296 + $0x9] sm:$0x1]
        %v1465 = vld [vmem:[%s1296 + $0xa] sm:$0x1]
        %v1466 = vld [vmem:[%s1296 + $0xb] sm:$0x1]
        %v1467 = vld [vmem:[%s1296 + $0xc] sm:$0x1]
        %v1468 = vld [vmem:[%s1296 + $0xd] sm:$0x1]
        %v1469 = vld [vmem:[%s1296 + $0xe] sm:$0x1]
        %v1470 = vld [vmem:[%s1296 + $0xf] sm:$0x1]
        %v1471 = vld [vmem:[%s1296 + $0x10] sm:$0x1]
        %v1472 = vld [vmem:[%s1296 + $0x11] sm:$0x1]
        %v1473 = vld [vmem:[%s1296 + $0x12] sm:$0x1]
        %v1474 = vld [vmem:[%s1296 + $0x13] sm:$0x1]
        %v1475 = vld [vmem:[%s1296 + $0x14] sm:$0x1]
        %v1476 = vld [vmem:[%s1296 + $0x15] sm:$0x1]
        %v1477 = vld [vmem:[%s1296 + $0x16] sm:$0x1]
        %v1478 = vld [vmem:[%s1296 + $0x17] sm:$0x1]
        %v1479 = vld [vmem:[%s1296 + $0x18] sm:$0x1]
        %v1480 = vld [vmem:[%s1296 + $0x19] sm:$0x1]
        %v1481 = vld [vmem:[%s1296 + $0x1a] sm:$0x1]
        %v1482 = vld [vmem:[%s1296 + $0x1b] sm:$0x1]
        %v1483 = vld [vmem:[%s1296 + $0x1c] sm:$0x1]
        %v1484 = vld [vmem:[%s1296 + $0x1d] sm:$0x1]
        %v1485 = vld [vmem:[%s1296 + $0x1e] sm:$0x1]
        %v1486 = vld [vmem:[%s1296 + $0x1f] sm:$0x1]
        %v1487 = vld [vmem:[%s1296 + $0x20] sm:$0x1]
        %v1488 = vld [vmem:[%s1296 + $0x21] sm:$0x1]
        %v1489 = vld [vmem:[%s1296 + $0x22] sm:$0x1]
        %v1490 = vld [vmem:[%s1296 + $0x23] sm:$0x1]
        %v1491 = vld [vmem:[%s1296 + $0x24] sm:$0x1]
        %v1492 = vld [vmem:[%s1296 + $0x25] sm:$0x1]
        %v1493 = vld [vmem:[%s1296 + $0x26] sm:$0x1]
        %v1494 = vld [vmem:[%s1296 + $0x27] sm:$0x1]
        %v1495 = vld [vmem:[%s1296 + $0x28] sm:$0x1]
        %v1496 = vld [vmem:[%s1296 + $0x29] sm:$0x1]
        %v1497 = vld [vmem:[%s1296 + $0x2a] sm:$0x1]
        %v1498 = vld [vmem:[%s1296 + $0x2b] sm:$0x1]
        %v1499 = vld [vmem:[%s1296 + $0x2c] sm:$0x1]
        %v1500 = vld [vmem:[%s1296 + $0x2d] sm:$0x1]
        %v1501 = vld [vmem:[%s1296 + $0x2e] sm:$0x1]
        %v1502 = vld [vmem:[%s1296 + $0x2f] sm:$0x1]
        %v1503 = vld [vmem:[%s1296 + $0x30] sm:$0x1]
        %v1504 = vld [vmem:[%s1296 + $0x31] sm:$0x1]
        %v1505 = vld [vmem:[%s1296 + $0x32] sm:$0x1]
        %v1506 = vld [vmem:[%s1296 + $0x33] sm:$0x1]
        %v1507 = vld [vmem:[%s1296 + $0x34] sm:$0x1]
        %v1508 = vld [vmem:[%s1296 + $0x35] sm:$0x1]
        %v1509 = vld [vmem:[%s1296 + $0x36] sm:$0x1]
        %v1510 = vld [vmem:[%s1296 + $0x37] sm:$0x1]
        %v1511 = vld [vmem:[%s1296 + $0x38] sm:$0x1]
        %v1512 = vld [vmem:[%s1296 + $0x39] sm:$0x1]
        %v1513 = vld [vmem:[%s1296 + $0x3a] sm:$0x1]
        %v1514 = vld [vmem:[%s1296 + $0x3b] sm:$0x1]
        %v1515 = vld [vmem:[%s1296 + $0x3c] sm:$0x1]
        %v1516 = vld [vmem:[%s1296 + $0x3d] sm:$0x1]
        %v1517 = vld [vmem:[%s1296 + $0x3e] sm:$0x1]
        %v1518 = vld [vmem:[%s1296 + $0x3f] sm:$0x1]
        %v1519 = vld [vmem:[%s1303] sm:$0x1]
        %v1520 = vld [vmem:[%s1303 + $0x2] sm:$0x1]
        %v1521 = vld [vmem:[%s1303 + $0x4] sm:$0x1]
        %v1522 = vld [vmem:[%s1303 + $0x6] sm:$0x1]
        %v1523 = vld [vmem:[%s1310] sm:$0x1]
        %v1524 = vld [vmem:[%s1310 + $0x2] sm:$0x1]
        %v1525 = vld [vmem:[%s1310 + $0x4] sm:$0x1]
        %v1526 = vld [vmem:[%s1310 + $0x6] sm:$0x1]
        %v1527 = vadd.f32 %v1391, %v1455
        %v1528 = vadd.f32 %v1393, %v1457
        %v1529 = vadd.f32 %v1395, %v1459
        %v1530 = vadd.f32 %v1397, %v1461
        %v1531 = vadd.f32 %v1399, %v1463
        %v1532 = vadd.f32 %v1401, %v1465
        %v1533 = vadd.f32 %v1403, %v1467
        %v1534 = vadd.f32 %v1405, %v1469
        %v1535 = vadd.f32 %v1407, %v1471
        %v1536 = vadd.f32 %v1409, %v1473
        %v1537 = vadd.f32 %v1411, %v1475
        %v1538 = vadd.f32 %v1413, %v1477
        %v1539 = vadd.f32 %v1415, %v1479
        %v1540 = vadd.f32 %v1417, %v1481
        %v1541 = vadd.f32 %v1419, %v1483
        %v1542 = vadd.f32 %v1421, %v1485
        %v1543 = vadd.f32 %v1423, %v1487
        %v1544 = vadd.f32 %v1425, %v1489
        %v1545 = vadd.f32 %v1427, %v1491
        %v1546 = vadd.f32 %v1429, %v1493
        %v1547 = vadd.f32 %v1431, %v1495
        %v1548 = vadd.f32 %v1433, %v1497
        %v1549 = vadd.f32 %v1435, %v1499
        %v1550 = vadd.f32 %v1437, %v1501
        %v1551 = vadd.f32 %v1439, %v1503
        %v1552 = vadd.f32 %v1441, %v1505
        %v1553 = vadd.f32 %v1443, %v1507
        %v1554 = vadd.f32 %v1445, %v1509
        %v1555 = vadd.f32 %v1447, %v1511
        %v1556 = vadd.f32 %v1449, %v1513
        %v1557 = vadd.f32 %v1451, %v1515
        %v1558 = vadd.f32 %v1453, %v1517
        %1591 = vrot.lane.b32.xlu0 %v1391, 127
        %v1592 = vpop.permute.xlu0 %1591
        %1593 = vrot.lane.b32.xlu0 %v1393, 127
        %v1594 = vpop.permute.xlu0 %1593
        %1595 = vrot.lane.b32.xlu0 %v1395, 127
        %v1596 = vpop.permute.xlu0 %1595
        %1597 = vrot.lane.b32.xlu0 %v1397, 127
        %v1598 = vpop.permute.xlu0 %1597
        %1599 = vrot.lane.b32.xlu0 %v1399, 127
        %v1600 = vpop.permute.xlu0 %1599
        %1601 = vrot.lane.b32.xlu0 %v1401, 127
        %v1602 = vpop.permute.xlu0 %1601
        %1603 = vrot.lane.b32.xlu0 %v1403, 127
        %v1604 = vpop.permute.xlu0 %1603
        %1605 = vrot.lane.b32.xlu0 %v1405, 127
        %v1606 = vpop.permute.xlu0 %1605
        %1607 = vrot.lane.b32.xlu0 %v1407, 127
        %v1608 = vpop.permute.xlu0 %1607
        %1609 = vrot.lane.b32.xlu0 %v1409, 127
        %v1610 = vpop.permute.xlu0 %1609
        %1611 = vrot.lane.b32.xlu0 %v1411, 127
        %v1612 = vpop.permute.xlu0 %1611
        %1613 = vrot.lane.b32.xlu0 %v1413, 127
        %v1614 = vpop.permute.xlu0 %1613
        %1615 = vrot.lane.b32.xlu0 %v1415, 127
        %v1616 = vpop.permute.xlu0 %1615
        %1617 = vrot.lane.b32.xlu0 %v1417, 127
        %v1618 = vpop.permute.xlu0 %1617
        %1619 = vrot.lane.b32.xlu0 %v1419, 127
        %v1620 = vpop.permute.xlu0 %1619
        %1621 = vrot.lane.b32.xlu0 %v1421, 127
        %v1622 = vpop.permute.xlu0 %1621
        %1623 = vrot.lane.b32.xlu0 %v1423, 127
        %v1624 = vpop.permute.xlu0 %1623
        %1625 = vrot.lane.b32.xlu0 %v1425, 127
        %v1626 = vpop.permute.xlu0 %1625
        %1627 = vrot.lane.b32.xlu0 %v1427, 127
        %v1628 = vpop.permute.xlu0 %1627
        %1629 = vrot.lane.b32.xlu0 %v1429, 127
        %v1630 = vpop.permute.xlu0 %1629
        %1631 = vrot.lane.b32.xlu0 %v1431, 127
        %v1632 = vpop.permute.xlu0 %1631
        %1633 = vrot.lane.b32.xlu0 %v1433, 127
        %v1634 = vpop.permute.xlu0 %1633
        %1635 = vrot.lane.b32.xlu0 %v1435, 127
        %v1636 = vpop.permute.xlu0 %1635
        %1637 = vrot.lane.b32.xlu0 %v1437, 127
        %v1638 = vpop.permute.xlu0 %1637
        %1639 = vrot.lane.b32.xlu0 %v1439, 127
        %v1640 = vpop.permute.xlu0 %1639
        %1641 = vrot.lane.b32.xlu0 %v1441, 127
        %v1642 = vpop.permute.xlu0 %1641
        %1643 = vrot.lane.b32.xlu0 %v1443, 127
        %v1644 = vpop.permute.xlu0 %1643
        %1645 = vrot.lane.b32.xlu0 %v1445, 127
        %v1646 = vpop.permute.xlu0 %1645
        %1647 = vrot.lane.b32.xlu0 %v1447, 127
        %v1648 = vpop.permute.xlu0 %1647
        %1649 = vrot.lane.b32.xlu0 %v1449, 127
        %v1650 = vpop.permute.xlu0 %1649
        %1651 = vrot.lane.b32.xlu0 %v1451, 127
        %v1652 = vpop.permute.xlu0 %1651
        %1653 = vrot.lane.b32.xlu0 %v1453, 127
        %v1654 = vpop.permute.xlu0 %1653
        %v1687 = vadd.f32 %v1527, %v1592
        %v1688 = vadd.f32 %v1528, %v1594
        %v1689 = vadd.f32 %v1529, %v1596
        %v1690 = vadd.f32 %v1530, %v1598
        %v1691 = vadd.f32 %v1531, %v1600
        %v1692 = vadd.f32 %v1532, %v1602
        %v1693 = vadd.f32 %v1533, %v1604
        %v1694 = vadd.f32 %v1534, %v1606
        %v1695 = vadd.f32 %v1535, %v1608
        %v1696 = vadd.f32 %v1536, %v1610
        %v1697 = vadd.f32 %v1537, %v1612
        %v1698 = vadd.f32 %v1538, %v1614
        %v1699 = vadd.f32 %v1539, %v1616
        %v1700 = vadd.f32 %v1540, %v1618
        %v1701 = vadd.f32 %v1541, %v1620
        %v1702 = vadd.f32 %v1542, %v1622
        %v1703 = vadd.f32 %v1543, %v1624
        %v1704 = vadd.f32 %v1544, %v1626
        %v1705 = vadd.f32 %v1545, %v1628
        %v1706 = vadd.f32 %v1546, %v1630
        %v1707 = vadd.f32 %v1547, %v1632
        %v1708 = vadd.f32 %v1548, %v1634
        %v1709 = vadd.f32 %v1549, %v1636
        %v1710 = vadd.f32 %v1550, %v1638
        %v1711 = vadd.f32 %v1551, %v1640
        %v1712 = vadd.f32 %v1552, %v1642
        %v1713 = vadd.f32 %v1553, %v1644
        %v1714 = vadd.f32 %v1554, %v1646
        %v1715 = vadd.f32 %v1555, %v1648
        %v1716 = vadd.f32 %v1556, %v1650
        %v1717 = vadd.f32 %v1557, %v1652
        %v1718 = vadd.f32 %v1558, %v1654
        %v1719 = vadd.f32 %v1392, %v1456
        %v1720 = vadd.f32 %v1394, %v1458
        %v1721 = vadd.f32 %v1396, %v1460
        %v1722 = vadd.f32 %v1398, %v1462
        %v1723 = vadd.f32 %v1400, %v1464
        %v1724 = vadd.f32 %v1402, %v1466
        %v1725 = vadd.f32 %v1404, %v1468
        %v1726 = vadd.f32 %v1406, %v1470
        %v1727 = vadd.f32 %v1408, %v1472
        %v1728 = vadd.f32 %v1410, %v1474
        %v1729 = vadd.f32 %v1412, %v1476
        %v1730 = vadd.f32 %v1414, %v1478
        %v1731 = vadd.f32 %v1416, %v1480
        %v1732 = vadd.f32 %v1418, %v1482
        %v1733 = vadd.f32 %v1420, %v1484
        %v1734 = vadd.f32 %v1422, %v1486
        %v1735 = vadd.f32 %v1424, %v1488
        %v1736 = vadd.f32 %v1426, %v1490
        %v1737 = vadd.f32 %v1428, %v1492
        %v1738 = vadd.f32 %v1430, %v1494
        %v1739 = vadd.f32 %v1432, %v1496
        %v1740 = vadd.f32 %v1434, %v1498
        %v1741 = vadd.f32 %v1436, %v1500
        %v1742 = vadd.f32 %v1438, %v1502
        %v1743 = vadd.f32 %v1440, %v1504
        %v1744 = vadd.f32 %v1442, %v1506
        %v1745 = vadd.f32 %v1444, %v1508
        %v1746 = vadd.f32 %v1446, %v1510
        %v1747 = vadd.f32 %v1448, %v1512
        %v1748 = vadd.f32 %v1450, %v1514
        %v1749 = vadd.f32 %v1452, %v1516
        %v1750 = vadd.f32 %v1454, %v1518
        %1783 = vrot.lane.b32.xlu0 %v1392, 127
        %v1784 = vpop.permute.xlu0 %1783
        %1785 = vrot.lane.b32.xlu0 %v1394, 127
        %v1786 = vpop.permute.xlu0 %1785
        %1787 = vrot.lane.b32.xlu0 %v1396, 127
        %v1788 = vpop.permute.xlu0 %1787
        %1789 = vrot.lane.b32.xlu0 %v1398, 127
        %v1790 = vpop.permute.xlu0 %1789
        %1791 = vrot.lane.b32.xlu0 %v1400, 127
        %v1792 = vpop.permute.xlu0 %1791
        %1793 = vrot.lane.b32.xlu0 %v1402, 127
        %v1794 = vpop.permute.xlu0 %1793
        %1795 = vrot.lane.b32.xlu0 %v1404, 127
        %v1796 = vpop.permute.xlu0 %1795
        %1797 = vrot.lane.b32.xlu0 %v1406, 127
        %v1798 = vpop.permute.xlu0 %1797
        %1799 = vrot.lane.b32.xlu0 %v1408, 127
        %v1800 = vpop.permute.xlu0 %1799
        %1801 = vrot.lane.b32.xlu0 %v1410, 127
        %v1802 = vpop.permute.xlu0 %1801
        %1803 = vrot.lane.b32.xlu0 %v1412, 127
        %v1804 = vpop.permute.xlu0 %1803
        %1805 = vrot.lane.b32.xlu0 %v1414, 127
        %v1806 = vpop.permute.xlu0 %1805
        %1807 = vrot.lane.b32.xlu0 %v1416, 127
        %v1808 = vpop.permute.xlu0 %1807
        %1809 = vrot.lane.b32.xlu0 %v1418, 127
        %v1810 = vpop.permute.xlu0 %1809
        %1811 = vrot.lane.b32.xlu0 %v1420, 127
        %v1812 = vpop.permute.xlu0 %1811
        %1813 = vrot.lane.b32.xlu0 %v1422, 127
        %v1814 = vpop.permute.xlu0 %1813
        %1815 = vrot.lane.b32.xlu0 %v1424, 127
        %v1816 = vpop.permute.xlu0 %1815
        %1817 = vrot.lane.b32.xlu0 %v1426, 127
        %v1818 = vpop.permute.xlu0 %1817
        %1819 = vrot.lane.b32.xlu0 %v1428, 127
        %v1820 = vpop.permute.xlu0 %1819
        %1821 = vrot.lane.b32.xlu0 %v1430, 127
        %v1822 = vpop.permute.xlu0 %1821
        %1823 = vrot.lane.b32.xlu0 %v1432, 127
        %v1824 = vpop.permute.xlu0 %1823
        %1825 = vrot.lane.b32.xlu0 %v1434, 127
        %v1826 = vpop.permute.xlu0 %1825
        %1827 = vrot.lane.b32.xlu0 %v1436, 127
        %v1828 = vpop.permute.xlu0 %1827
        %1829 = vrot.lane.b32.xlu0 %v1438, 127
        %v1830 = vpop.permute.xlu0 %1829
        %1831 = vrot.lane.b32.xlu0 %v1440, 127
        %v1832 = vpop.permute.xlu0 %1831
        %1833 = vrot.lane.b32.xlu0 %v1442, 127
        %v1834 = vpop.permute.xlu0 %1833
        %1835 = vrot.lane.b32.xlu0 %v1444, 127
        %v1836 = vpop.permute.xlu0 %1835
        %1837 = vrot.lane.b32.xlu0 %v1446, 127
        %v1838 = vpop.permute.xlu0 %1837
        %1839 = vrot.lane.b32.xlu0 %v1448, 127
        %v1840 = vpop.permute.xlu0 %1839
        %1841 = vrot.lane.b32.xlu0 %v1450, 127
        %v1842 = vpop.permute.xlu0 %1841
        %1843 = vrot.lane.b32.xlu0 %v1452, 127
        %v1844 = vpop.permute.xlu0 %1843
        %1845 = vrot.lane.b32.xlu0 %v1454, 127
        %v1846 = vpop.permute.xlu0 %1845
        %v1879 = vadd.f32 %v1719, %v1784
        %v1880 = vadd.f32 %v1720, %v1786
        %v1881 = vadd.f32 %v1721, %v1788
        %v1882 = vadd.f32 %v1722, %v1790
        %v1883 = vadd.f32 %v1723, %v1792
        %v1884 = vadd.f32 %v1724, %v1794
        %v1885 = vadd.f32 %v1725, %v1796
        %v1886 = vadd.f32 %v1726, %v1798
        %v1887 = vadd.f32 %v1727, %v1800
        %v1888 = vadd.f32 %v1728, %v1802
        %v1889 = vadd.f32 %v1729, %v1804
        %v1890 = vadd.f32 %v1730, %v1806
        %v1891 = vadd.f32 %v1731, %v1808
        %v1892 = vadd.f32 %v1732, %v1810
        %v1893 = vadd.f32 %v1733, %v1812
        %v1894 = vadd.f32 %v1734, %v1814
        %v1895 = vadd.f32 %v1735, %v1816
        %v1896 = vadd.f32 %v1736, %v1818
        %v1897 = vadd.f32 %v1737, %v1820
        %v1898 = vadd.f32 %v1738, %v1822
        %v1899 = vadd.f32 %v1739, %v1824
        %v1900 = vadd.f32 %v1740, %v1826
        %v1901 = vadd.f32 %v1741, %v1828
        %v1902 = vadd.f32 %v1742, %v1830
        %v1903 = vadd.f32 %v1743, %v1832
        %v1904 = vadd.f32 %v1744, %v1834
        %v1905 = vadd.f32 %v1745, %v1836
        %v1906 = vadd.f32 %v1746, %v1838
        %v1907 = vadd.f32 %v1747, %v1840
        %v1908 = vadd.f32 %v1748, %v1842
        %v1909 = vadd.f32 %v1749, %v1844
        %v1910 = vadd.f32 %v1750, %v1846
        %v1911 = vadd.f32 %v1687, %v1879
        %v1912 = vadd.f32 %v1688, %v1880
        %v1913 = vadd.f32 %v1689, %v1881
        %v1914 = vadd.f32 %v1690, %v1882
        %v1915 = vadd.f32 %v1691, %v1883
        %v1916 = vadd.f32 %v1692, %v1884
        %v1917 = vadd.f32 %v1693, %v1885
        %v1918 = vadd.f32 %v1694, %v1886
        %v1919 = vadd.f32 %v1695, %v1887
        %v1920 = vadd.f32 %v1696, %v1888
        %v1921 = vadd.f32 %v1697, %v1889
        %v1922 = vadd.f32 %v1698, %v1890
        %v1923 = vadd.f32 %v1699, %v1891
        %v1924 = vadd.f32 %v1700, %v1892
        %v1925 = vadd.f32 %v1701, %v1893
        %v1926 = vadd.f32 %v1702, %v1894
        %v1927 = vadd.f32 %v1703, %v1895
        %v1928 = vadd.f32 %v1704, %v1896
        %v1929 = vadd.f32 %v1705, %v1897
        %v1930 = vadd.f32 %v1706, %v1898
        %v1931 = vadd.f32 %v1707, %v1899
        %v1932 = vadd.f32 %v1708, %v1900
        %v1933 = vadd.f32 %v1709, %v1901
        %v1934 = vadd.f32 %v1710, %v1902
        %v1935 = vadd.f32 %v1711, %v1903
        %v1936 = vadd.f32 %v1712, %v1904
        %v1937 = vadd.f32 %v1713, %v1905
        %v1938 = vadd.f32 %v1714, %v1906
        %v1939 = vadd.f32 %v1715, %v1907
        %v1940 = vadd.f32 %v1716, %v1908
        %v1941 = vadd.f32 %v1717, %v1909
        %v1942 = vadd.f32 %v1718, %v1910
        %v1943 = vadd.f32 %v1519, %v1523
        %v1944 = vadd.f32 %v1520, %v1524
        %v1945 = vadd.f32 %v1521, %v1525
        %v1946 = vadd.f32 %v1522, %v1526
        %1951 = vrot.lane.b32.xlu0 %v1519, 127
        %v1952 = vpop.permute.xlu0 %1951
        %1953 = vrot.lane.b32.xlu0 %v1520, 127
        %v1954 = vpop.permute.xlu0 %1953
        %1955 = vrot.lane.b32.xlu0 %v1521, 127
        %v1956 = vpop.permute.xlu0 %1955
        %1957 = vrot.lane.b32.xlu0 %v1522, 127
        %v1958 = vpop.permute.xlu0 %1957
        %v1963 = vadd.f32 %v1943, %v1952
        %v1964 = vadd.f32 %v1944, %v1954
        %v1965 = vadd.f32 %v1945, %v1956
        %v1966 = vadd.f32 %v1946, %v1958
        %v1967 = vadd.f32 %v1911, %v1688
        %v1968 = vadd.f32 %v1912, %v1689
        %v1969 = vadd.f32 %v1913, %v1690
        %v1970 = vadd.f32 %v1914, %v1691
        %v1971 = vadd.f32 %v1915, %v1692
        %v1972 = vadd.f32 %v1916, %v1693
        %v1973 = vadd.f32 %v1917, %v1694
        %v1974 = vadd.f32 %v1918, %v1963
        %v1975 = vadd.f32 %v1919, %v1696
        %v1976 = vadd.f32 %v1920, %v1697
        %v1977 = vadd.f32 %v1921, %v1698
        %v1978 = vadd.f32 %v1922, %v1699
        %v1979 = vadd.f32 %v1923, %v1700
        %v1980 = vadd.f32 %v1924, %v1701
        %v1981 = vadd.f32 %v1925, %v1702
        %v1982 = vadd.f32 %v1926, %v1964
        %v1983 = vadd.f32 %v1927, %v1704
        %v1984 = vadd.f32 %v1928, %v1705
        %v1985 = vadd.f32 %v1929, %v1706
        %v1986 = vadd.f32 %v1930, %v1707
        %v1987 = vadd.f32 %v1931, %v1708
        %v1988 = vadd.f32 %v1932, %v1709
        %v1989 = vadd.f32 %v1933, %v1710
        %v1990 = vadd.f32 %v1934, %v1965
        %v1991 = vadd.f32 %v1935, %v1712
        %v1992 = vadd.f32 %v1936, %v1713
        %v1993 = vadd.f32 %v1937, %v1714
        %v1994 = vadd.f32 %v1938, %v1715
        %v1995 = vadd.f32 %v1939, %v1716
        %v1996 = vadd.f32 %v1940, %v1717
        %v1997 = vadd.f32 %v1941, %v1718
        %v1998 = vadd.f32 %v1942, %v1966
        %s1999 = sld [smem:[#allocation6]]
        %v2000 = vstv %s1999
        %v2001 = vmul.f32 %v2000, %v1967
        %v2002 = vmul.f32 %v2000, %v1968
        %v2003 = vmul.f32 %v2000, %v1969
        %v2004 = vmul.f32 %v2000, %v1970
        %v2005 = vmul.f32 %v2000, %v1971
        %v2006 = vmul.f32 %v2000, %v1972
        %v2007 = vmul.f32 %v2000, %v1973
        %v2008 = vmul.f32 %v2000, %v1974
        %s2009 = sld [smem:[#allocation6 + $0x1]]
        %v2010 = vstv %s2009
        %v2011 = vmul.f32 %v2010, %v1975
        %v2012 = vmul.f32 %v2010, %v1976
        %v2013 = vmul.f32 %v2010, %v1977
        %v2014 = vmul.f32 %v2010, %v1978
        %v2015 = vmul.f32 %v2010, %v1979
        %v2016 = vmul.f32 %v2010, %v1980
        %v2017 = vmul.f32 %v2010, %v1981
        %v2018 = vmul.f32 %v2010, %v1982
        %v2019 = vadd.f32 %v2001, %v2011
        %v2020 = vadd.f32 %v2002, %v2012
        %v2021 = vadd.f32 %v2003, %v2013
        %v2022 = vadd.f32 %v2004, %v2014
        %v2023 = vadd.f32 %v2005, %v2015
        %v2024 = vadd.f32 %v2006, %v2016
        %v2025 = vadd.f32 %v2007, %v2017
        %v2026 = vadd.f32 %v2008, %v2018
        %s2027 = sld [smem:[#allocation6 + $0x2]]
        %v2028 = vstv %s2027
        %v2029 = vmul.f32 %v2028, %v1983
        %v2030 = vmul.f32 %v2028, %v1984
        %v2031 = vmul.f32 %v2028, %v1985
        %v2032 = vmul.f32 %v2028, %v1986
        %v2033 = vmul.f32 %v2028, %v1987
        %v2034 = vmul.f32 %v2028, %v1988
        %v2035 = vmul.f32 %v2028, %v1989
        %v2036 = vmul.f32 %v2028, %v1990
        %v2037 = vadd.f32 %v2019, %v2029
        %v2038 = vadd.f32 %v2020, %v2030
        %v2039 = vadd.f32 %v2021, %v2031
        %v2040 = vadd.f32 %v2022, %v2032
        %v2041 = vadd.f32 %v2023, %v2033
        %v2042 = vadd.f32 %v2024, %v2034
        %v2043 = vadd.f32 %v2025, %v2035
        %v2044 = vadd.f32 %v2026, %v2036
        %s2045 = sld [smem:[#allocation6 + $0x3]]
        %v2046 = vstv %s2045
        %v2047 = vmul.f32 %v2046, %v1991
        %v2048 = vmul.f32 %v2046, %v1992
        %v2049 = vmul.f32 %v2046, %v1993
        %v2050 = vmul.f32 %v2046, %v1994
        %v2051 = vmul.f32 %v2046, %v1995
        %v2052 = vmul.f32 %v2046, %v1996
        %v2053 = vmul.f32 %v2046, %v1997
        %v2054 = vmul.f32 %v2046, %v1998
        %v2055 = vadd.f32 %v2037, %v2047
        %v2056 = vadd.f32 %v2038, %v2048
        %v2057 = vadd.f32 %v2039, %v2049
        %v2058 = vadd.f32 %v2040, %v2050
        %v2059 = vadd.f32 %v2041, %v2051
        %v2060 = vadd.f32 %v2042, %v2052
        %v2061 = vadd.f32 %v2043, %v2053
        %v2062 = vadd.f32 %v2044, %v2054
        %s2063 = sld [smem:[#allocation6 + $0x80]]
        %v2064 = vstv %s2063
        %v2065 = vmul.f32 %v2064, %v1967
        %v2066 = vmul.f32 %v2064, %v1968
        %v2067 = vmul.f32 %v2064, %v1969
        %v2068 = vmul.f32 %v2064, %v1970
        %v2069 = vmul.f32 %v2064, %v1971
        %v2070 = vmul.f32 %v2064, %v1972
        %v2071 = vmul.f32 %v2064, %v1973
        %v2072 = vmul.f32 %v2064, %v1974
        %s2073 = sld [smem:[#allocation6 + $0x81]]
        %v2074 = vstv %s2073
        %v2075 = vmul.f32 %v2074, %v1975
        %v2076 = vmul.f32 %v2074, %v1976
        %v2077 = vmul.f32 %v2074, %v1977
        %v2078 = vmul.f32 %v2074, %v1978
        %v2079 = vmul.f32 %v2074, %v1979
        %v2080 = vmul.f32 %v2074, %v1980
        %v2081 = vmul.f32 %v2074, %v1981
        %v2082 = vmul.f32 %v2074, %v1982
        %v2083 = vadd.f32 %v2065, %v2075
        %v2084 = vadd.f32 %v2066, %v2076
        %v2085 = vadd.f32 %v2067, %v2077
        %v2086 = vadd.f32 %v2068, %v2078
        %v2087 = vadd.f32 %v2069, %v2079
        %v2088 = vadd.f32 %v2070, %v2080
        %v2089 = vadd.f32 %v2071, %v2081
        %v2090 = vadd.f32 %v2072, %v2082
        %s2091 = sld [smem:[#allocation6 + $0x82]]
        %v2092 = vstv %s2091
        %v2093 = vmul.f32 %v2092, %v1983
        %v2094 = vmul.f32 %v2092, %v1984
        %v2095 = vmul.f32 %v2092, %v1985
        %v2096 = vmul.f32 %v2092, %v1986
        %v2097 = vmul.f32 %v2092, %v1987
        %v2098 = vmul.f32 %v2092, %v1988
        %v2099 = vmul.f32 %v2092, %v1989
        %v2100 = vmul.f32 %v2092, %v1990
        %v2101 = vadd.f32 %v2083, %v2093
        %v2102 = vadd.f32 %v2084, %v2094
        %v2103 = vadd.f32 %v2085, %v2095
        %v2104 = vadd.f32 %v2086, %v2096
        %v2105 = vadd.f32 %v2087, %v2097
        %v2106 = vadd.f32 %v2088, %v2098
        %v2107 = vadd.f32 %v2089, %v2099
        %v2108 = vadd.f32 %v2090, %v2100
        %s2109 = sld [smem:[#allocation6 + $0x83]]
        %v2110 = vstv %s2109
        %v2111 = vmul.f32 %v2110, %v1991
        %v2112 = vmul.f32 %v2110, %v1992
        %v2113 = vmul.f32 %v2110, %v1993
        %v2114 = vmul.f32 %v2110, %v1994
        %v2115 = vmul.f32 %v2110, %v1995
        %v2116 = vmul.f32 %v2110, %v1996
        %v2117 = vmul.f32 %v2110, %v1997
        %v2118 = vmul.f32 %v2110, %v1998
        %v2119 = vadd.f32 %v2101, %v2111
        %v2120 = vadd.f32 %v2102, %v2112
        %v2121 = vadd.f32 %v2103, %v2113
        %v2122 = vadd.f32 %v2104, %v2114
        %v2123 = vadd.f32 %v2105, %v2115
        %v2124 = vadd.f32 %v2106, %v2116
        %v2125 = vadd.f32 %v2107, %v2117
        %v2126 = vadd.f32 %v2108, %v2118
        %s2127 = sld [smem:[#allocation6 + $0x100]]
        %v2128 = vstv %s2127
        %v2129 = vmul.f32 %v2128, %v1967
        %v2130 = vmul.f32 %v2128, %v1968
        %v2131 = vmul.f32 %v2128, %v1969
        %v2132 = vmul.f32 %v2128, %v1970
        %v2133 = vmul.f32 %v2128, %v1971
        %v2134 = vmul.f32 %v2128, %v1972
        %v2135 = vmul.f32 %v2128, %v1973
        %v2136 = vmul.f32 %v2128, %v1974
        %s2137 = sld [smem:[#allocation6 + $0x101]]
        %v2138 = vstv %s2137
        %v2139 = vmul.f32 %v2138, %v1975
        %v2140 = vmul.f32 %v2138, %v1976
        %v2141 = vmul.f32 %v2138, %v1977
        %v2142 = vmul.f32 %v2138, %v1978
        %v2143 = vmul.f32 %v2138, %v1979
        %v2144 = vmul.f32 %v2138, %v1980
        %v2145 = vmul.f32 %v2138, %v1981
        %v2146 = vmul.f32 %v2138, %v1982
        %v2147 = vadd.f32 %v2129, %v2139
        %v2148 = vadd.f32 %v2130, %v2140
        %v2149 = vadd.f32 %v2131, %v2141
        %v2150 = vadd.f32 %v2132, %v2142
        %v2151 = vadd.f32 %v2133, %v2143
        %v2152 = vadd.f32 %v2134, %v2144
        %v2153 = vadd.f32 %v2135, %v2145
        %v2154 = vadd.f32 %v2136, %v2146
        %s2155 = sld [smem:[#allocation6 + $0x102]]
        %v2156 = vstv %s2155
        %v2157 = vmul.f32 %v2156, %v1983
        %v2158 = vmul.f32 %v2156, %v1984
        %v2159 = vmul.f32 %v2156, %v1985
        %v2160 = vmul.f32 %v2156, %v1986
        %v2161 = vmul.f32 %v2156, %v1987
        %v2162 = vmul.f32 %v2156, %v1988
        %v2163 = vmul.f32 %v2156, %v1989
        %v2164 = vmul.f32 %v2156, %v1990
        %v2165 = vadd.f32 %v2147, %v2157
        %v2166 = vadd.f32 %v2148, %v2158
        %v2167 = vadd.f32 %v2149, %v2159
        %v2168 = vadd.f32 %v2150, %v2160
        %v2169 = vadd.f32 %v2151, %v2161
        %v2170 = vadd.f32 %v2152, %v2162
        %v2171 = vadd.f32 %v2153, %v2163
        %v2172 = vadd.f32 %v2154, %v2164
        %s2173 = sld [smem:[#allocation6 + $0x103]]
        %v2174 = vstv %s2173
        %v2175 = vmul.f32 %v2174, %v1991
        %v2176 = vmul.f32 %v2174, %v1992
        %v2177 = vmul.f32 %v2174, %v1993
        %v2178 = vmul.f32 %v2174, %v1994
        %v2179 = vmul.f32 %v2174, %v1995
        %v2180 = vmul.f32 %v2174, %v1996
        %v2181 = vmul.f32 %v2174, %v1997
        %v2182 = vmul.f32 %v2174, %v1998
        %v2183 = vadd.f32 %v2165, %v2175
        %v2184 = vadd.f32 %v2166, %v2176
        %v2185 = vadd.f32 %v2167, %v2177
        %v2186 = vadd.f32 %v2168, %v2178
        %v2187 = vadd.f32 %v2169, %v2179
        %v2188 = vadd.f32 %v2170, %v2180
        %v2189 = vadd.f32 %v2171, %v2181
        %v2190 = vadd.f32 %v2172, %v2182
        %s2191 = sld [smem:[#allocation6 + $0x180]]
        %v2192 = vstv %s2191
        %v2193 = vmul.f32 %v2192, %v1967
        %v2194 = vmul.f32 %v2192, %v1968
        %v2195 = vmul.f32 %v2192, %v1969
        %v2196 = vmul.f32 %v2192, %v1970
        %v2197 = vmul.f32 %v2192, %v1971
        %v2198 = vmul.f32 %v2192, %v1972
        %v2199 = vmul.f32 %v2192, %v1973
        %v2200 = vmul.f32 %v2192, %v1974
        %s2201 = sld [smem:[#allocation6 + $0x181]]
        %v2202 = vstv %s2201
        %v2203 = vmul.f32 %v2202, %v1975
        %v2204 = vmul.f32 %v2202, %v1976
        %v2205 = vmul.f32 %v2202, %v1977
        %v2206 = vmul.f32 %v2202, %v1978
        %v2207 = vmul.f32 %v2202, %v1979
        %v2208 = vmul.f32 %v2202, %v1980
        %v2209 = vmul.f32 %v2202, %v1981
        %v2210 = vmul.f32 %v2202, %v1982
        %v2211 = vadd.f32 %v2193, %v2203
        %v2212 = vadd.f32 %v2194, %v2204
        %v2213 = vadd.f32 %v2195, %v2205
        %v2214 = vadd.f32 %v2196, %v2206
        %v2215 = vadd.f32 %v2197, %v2207
        %v2216 = vadd.f32 %v2198, %v2208
        %v2217 = vadd.f32 %v2199, %v2209
        %v2218 = vadd.f32 %v2200, %v2210
        %s2219 = sld [smem:[#allocation6 + $0x182]]
        %v2220 = vstv %s2219
        %v2221 = vmul.f32 %v2220, %v1983
        %v2222 = vmul.f32 %v2220, %v1984
        %v2223 = vmul.f32 %v2220, %v1985
        %v2224 = vmul.f32 %v2220, %v1986
        %v2225 = vmul.f32 %v2220, %v1987
        %v2226 = vmul.f32 %v2220, %v1988
        %v2227 = vmul.f32 %v2220, %v1989
        %v2228 = vmul.f32 %v2220, %v1990
        %v2229 = vadd.f32 %v2211, %v2221
        %v2230 = vadd.f32 %v2212, %v2222
        %v2231 = vadd.f32 %v2213, %v2223
        %v2232 = vadd.f32 %v2214, %v2224
        %v2233 = vadd.f32 %v2215, %v2225
        %v2234 = vadd.f32 %v2216, %v2226
        %v2235 = vadd.f32 %v2217, %v2227
        %v2236 = vadd.f32 %v2218, %v2228
        %s2237 = sld [smem:[#allocation6 + $0x183]]
        %v2238 = vstv %s2237
        %v2239 = vmul.f32 %v2238, %v1991
        %v2240 = vmul.f32 %v2238, %v1992
        %v2241 = vmul.f32 %v2238, %v1993
        %v2242 = vmul.f32 %v2238, %v1994
        %v2243 = vmul.f32 %v2238, %v1995
        %v2244 = vmul.f32 %v2238, %v1996
        %v2245 = vmul.f32 %v2238, %v1997
        %v2246 = vmul.f32 %v2238, %v1998
        %v2247 = vadd.f32 %v2229, %v2239
        %v2248 = vadd.f32 %v2230, %v2240
        %v2249 = vadd.f32 %v2231, %v2241
        %v2250 = vadd.f32 %v2232, %v2242
        %v2251 = vadd.f32 %v2233, %v2243
        %v2252 = vadd.f32 %v2234, %v2244
        %v2253 = vadd.f32 %v2235, %v2245
        %v2254 = vadd.f32 %v2236, %v2246
        %s2255 = sld [smem:[#allocation6 + $0x200]]
        %v2256 = vstv %s2255
        %v2257 = vmul.f32 %v2256, %v1967
        %v2258 = vmul.f32 %v2256, %v1968
        %v2259 = vmul.f32 %v2256, %v1969
        %v2260 = vmul.f32 %v2256, %v1970
        %v2261 = vmul.f32 %v2256, %v1971
        %v2262 = vmul.f32 %v2256, %v1972
        %v2263 = vmul.f32 %v2256, %v1973
        %v2264 = vmul.f32 %v2256, %v1974
        %s2265 = sld [smem:[#allocation6 + $0x201]]
        %v2266 = vstv %s2265
        %v2267 = vmul.f32 %v2266, %v1975
        %v2268 = vmul.f32 %v2266, %v1976
        %v2269 = vmul.f32 %v2266, %v1977
        %v2270 = vmul.f32 %v2266, %v1978
        %v2271 = vmul.f32 %v2266, %v1979
        %v2272 = vmul.f32 %v2266, %v1980
        %v2273 = vmul.f32 %v2266, %v1981
        %v2274 = vmul.f32 %v2266, %v1982
        %v2275 = vadd.f32 %v2257, %v2267
        %v2276 = vadd.f32 %v2258, %v2268
        %v2277 = vadd.f32 %v2259, %v2269
        %v2278 = vadd.f32 %v2260, %v2270
        %v2279 = vadd.f32 %v2261, %v2271
        %v2280 = vadd.f32 %v2262, %v2272
        %v2281 = vadd.f32 %v2263, %v2273
        %v2282 = vadd.f32 %v2264, %v2274
        %s2283 = sld [smem:[#allocation6 + $0x202]]
        %v2284 = vstv %s2283
        %v2285 = vmul.f32 %v2284, %v1983
        %v2286 = vmul.f32 %v2284, %v1984
        %v2287 = vmul.f32 %v2284, %v1985
        %v2288 = vmul.f32 %v2284, %v1986
        %v2289 = vmul.f32 %v2284, %v1987
        %v2290 = vmul.f32 %v2284, %v1988
        %v2291 = vmul.f32 %v2284, %v1989
        %v2292 = vmul.f32 %v2284, %v1990
        %v2293 = vadd.f32 %v2275, %v2285
        %v2294 = vadd.f32 %v2276, %v2286
        %v2295 = vadd.f32 %v2277, %v2287
        %v2296 = vadd.f32 %v2278, %v2288
        %v2297 = vadd.f32 %v2279, %v2289
        %v2298 = vadd.f32 %v2280, %v2290
        %v2299 = vadd.f32 %v2281, %v2291
        %v2300 = vadd.f32 %v2282, %v2292
        %s2301 = sld [smem:[#allocation6 + $0x203]]
        %v2302 = vstv %s2301
        %v2303 = vmul.f32 %v2302, %v1991
        %v2304 = vmul.f32 %v2302, %v1992
        %v2305 = vmul.f32 %v2302, %v1993
        %v2306 = vmul.f32 %v2302, %v1994
        %v2307 = vmul.f32 %v2302, %v1995
        %v2308 = vmul.f32 %v2302, %v1996
        %v2309 = vmul.f32 %v2302, %v1997
        %v2310 = vmul.f32 %v2302, %v1998
        %v2311 = vadd.f32 %v2293, %v2303
        %v2312 = vadd.f32 %v2294, %v2304
        %v2313 = vadd.f32 %v2295, %v2305
        %v2314 = vadd.f32 %v2296, %v2306
        %v2315 = vadd.f32 %v2297, %v2307
        %v2316 = vadd.f32 %v2298, %v2308
        %v2317 = vadd.f32 %v2299, %v2309
        %v2318 = vadd.f32 %v2300, %v2310
        %s2319 = sld [smem:[#allocation6 + $0x280]]
        %v2320 = vstv %s2319
        %v2321 = vmul.f32 %v2320, %v1967
        %v2322 = vmul.f32 %v2320, %v1968
        %v2323 = vmul.f32 %v2320, %v1969
        %v2324 = vmul.f32 %v2320, %v1970
        %v2325 = vmul.f32 %v2320, %v1971
        %v2326 = vmul.f32 %v2320, %v1972
        %v2327 = vmul.f32 %v2320, %v1973
        %v2328 = vmul.f32 %v2320, %v1974
        %s2329 = sld [smem:[#allocation6 + $0x281]]
        %v2330 = vstv %s2329
        %v2331 = vmul.f32 %v2330, %v1975
        %v2332 = vmul.f32 %v2330, %v1976
        %v2333 = vmul.f32 %v2330, %v1977
        %v2334 = vmul.f32 %v2330, %v1978
        %v2335 = vmul.f32 %v2330, %v1979
        %v2336 = vmul.f32 %v2330, %v1980
        %v2337 = vmul.f32 %v2330, %v1981
        %v2338 = vmul.f32 %v2330, %v1982
        %v2339 = vadd.f32 %v2321, %v2331
        %v2340 = vadd.f32 %v2322, %v2332
        %v2341 = vadd.f32 %v2323, %v2333
        %v2342 = vadd.f32 %v2324, %v2334
        %v2343 = vadd.f32 %v2325, %v2335
        %v2344 = vadd.f32 %v2326, %v2336
        %v2345 = vadd.f32 %v2327, %v2337
        %v2346 = vadd.f32 %v2328, %v2338
        %s2347 = sld [smem:[#allocation6 + $0x282]]
        %v2348 = vstv %s2347
        %v2349 = vmul.f32 %v2348, %v1983
        %v2350 = vmul.f32 %v2348, %v1984
        %v2351 = vmul.f32 %v2348, %v1985
        %v2352 = vmul.f32 %v2348, %v1986
        %v2353 = vmul.f32 %v2348, %v1987
        %v2354 = vmul.f32 %v2348, %v1988
        %v2355 = vmul.f32 %v2348, %v1989
        %v2356 = vmul.f32 %v2348, %v1990
        %v2357 = vadd.f32 %v2339, %v2349
        %v2358 = vadd.f32 %v2340, %v2350
        %v2359 = vadd.f32 %v2341, %v2351
        %v2360 = vadd.f32 %v2342, %v2352
        %v2361 = vadd.f32 %v2343, %v2353
        %v2362 = vadd.f32 %v2344, %v2354
        %v2363 = vadd.f32 %v2345, %v2355
        %v2364 = vadd.f32 %v2346, %v2356
        %s2365 = sld [smem:[#allocation6 + $0x283]]
        %v2366 = vstv %s2365
        %v2367 = vmul.f32 %v2366, %v1991
        %v2368 = vmul.f32 %v2366, %v1992
        %v2369 = vmul.f32 %v2366, %v1993
        %v2370 = vmul.f32 %v2366, %v1994
        %v2371 = vmul.f32 %v2366, %v1995
        %v2372 = vmul.f32 %v2366, %v1996
        %v2373 = vmul.f32 %v2366, %v1997
        %v2374 = vmul.f32 %v2366, %v1998
        %v2375 = vadd.f32 %v2357, %v2367
        %v2376 = vadd.f32 %v2358, %v2368
        %v2377 = vadd.f32 %v2359, %v2369
        %v2378 = vadd.f32 %v2360, %v2370
        %v2379 = vadd.f32 %v2361, %v2371
        %v2380 = vadd.f32 %v2362, %v2372
        %v2381 = vadd.f32 %v2363, %v2373
        %v2382 = vadd.f32 %v2364, %v2374
        %s2383 = sld [smem:[#allocation6 + $0x300]]
        %v2384 = vstv %s2383
        %v2385 = vmul.f32 %v2384, %v1967
        %v2386 = vmul.f32 %v2384, %v1968
        %v2387 = vmul.f32 %v2384, %v1969
        %v2388 = vmul.f32 %v2384, %v1970
        %v2389 = vmul.f32 %v2384, %v1971
        %v2390 = vmul.f32 %v2384, %v1972
        %v2391 = vmul.f32 %v2384, %v1973
        %v2392 = vmul.f32 %v2384, %v1974
        %s2393 = sld [smem:[#allocation6 + $0x301]]
        %v2394 = vstv %s2393
        %v2395 = vmul.f32 %v2394, %v1975
        %v2396 = vmul.f32 %v2394, %v1976
        %v2397 = vmul.f32 %v2394, %v1977
        %v2398 = vmul.f32 %v2394, %v1978
        %v2399 = vmul.f32 %v2394, %v1979
        %v2400 = vmul.f32 %v2394, %v1980
        %v2401 = vmul.f32 %v2394, %v1981
        %v2402 = vmul.f32 %v2394, %v1982
        %v2403 = vadd.f32 %v2385, %v2395
        %v2404 = vadd.f32 %v2386, %v2396
        %v2405 = vadd.f32 %v2387, %v2397
        %v2406 = vadd.f32 %v2388, %v2398
        %v2407 = vadd.f32 %v2389, %v2399
        %v2408 = vadd.f32 %v2390, %v2400
        %v2409 = vadd.f32 %v2391, %v2401
        %v2410 = vadd.f32 %v2392, %v2402
        %s2411 = sld [smem:[#allocation6 + $0x302]]
        %v2412 = vstv %s2411
        %v2413 = vmul.f32 %v2412, %v1983
        %v2414 = vmul.f32 %v2412, %v1984
        %v2415 = vmul.f32 %v2412, %v1985
        %v2416 = vmul.f32 %v2412, %v1986
        %v2417 = vmul.f32 %v2412, %v1987
        %v2418 = vmul.f32 %v2412, %v1988
        %v2419 = vmul.f32 %v2412, %v1989
        %v2420 = vmul.f32 %v2412, %v1990
        %v2421 = vadd.f32 %v2403, %v2413
        %v2422 = vadd.f32 %v2404, %v2414
        %v2423 = vadd.f32 %v2405, %v2415
        %v2424 = vadd.f32 %v2406, %v2416
        %v2425 = vadd.f32 %v2407, %v2417
        %v2426 = vadd.f32 %v2408, %v2418
        %v2427 = vadd.f32 %v2409, %v2419
        %v2428 = vadd.f32 %v2410, %v2420
        %s2429 = sld [smem:[#allocation6 + $0x303]]
        %v2430 = vstv %s2429
        %v2431 = vmul.f32 %v2430, %v1991
        %v2432 = vmul.f32 %v2430, %v1992
        %v2433 = vmul.f32 %v2430, %v1993
        %v2434 = vmul.f32 %v2430, %v1994
        %v2435 = vmul.f32 %v2430, %v1995
        %v2436 = vmul.f32 %v2430, %v1996
        %v2437 = vmul.f32 %v2430, %v1997
        %v2438 = vmul.f32 %v2430, %v1998
        %v2439 = vadd.f32 %v2421, %v2431
        %v2440 = vadd.f32 %v2422, %v2432
        %v2441 = vadd.f32 %v2423, %v2433
        %v2442 = vadd.f32 %v2424, %v2434
        %v2443 = vadd.f32 %v2425, %v2435
        %v2444 = vadd.f32 %v2426, %v2436
        %v2445 = vadd.f32 %v2427, %v2437
        %v2446 = vadd.f32 %v2428, %v2438
        %s2447 = sld [smem:[#allocation6 + $0x380]]
        %v2448 = vstv %s2447
        %v2449 = vmul.f32 %v2448, %v1967
        %v2450 = vmul.f32 %v2448, %v1968
        %v2451 = vmul.f32 %v2448, %v1969
        %v2452 = vmul.f32 %v2448, %v1970
        %v2453 = vmul.f32 %v2448, %v1971
        %v2454 = vmul.f32 %v2448, %v1972
        %v2455 = vmul.f32 %v2448, %v1973
        %v2456 = vmul.f32 %v2448, %v1974
        %s2457 = sld [smem:[#allocation6 + $0x381]]
        %v2458 = vstv %s2457
        %v2459 = vmul.f32 %v2458, %v1975
        %v2460 = vmul.f32 %v2458, %v1976
        %v2461 = vmul.f32 %v2458, %v1977
        %v2462 = vmul.f32 %v2458, %v1978
        %v2463 = vmul.f32 %v2458, %v1979
        %v2464 = vmul.f32 %v2458, %v1980
        %v2465 = vmul.f32 %v2458, %v1981
        %v2466 = vmul.f32 %v2458, %v1982
        %v2467 = vadd.f32 %v2449, %v2459
        %v2468 = vadd.f32 %v2450, %v2460
        %v2469 = vadd.f32 %v2451, %v2461
        %v2470 = vadd.f32 %v2452, %v2462
        %v2471 = vadd.f32 %v2453, %v2463
        %v2472 = vadd.f32 %v2454, %v2464
        %v2473 = vadd.f32 %v2455, %v2465
        %v2474 = vadd.f32 %v2456, %v2466
        %s2475 = sld [smem:[#allocation6 + $0x382]]
        %v2476 = vstv %s2475
        %v2477 = vmul.f32 %v2476, %v1983
        %v2478 = vmul.f32 %v2476, %v1984
        %v2479 = vmul.f32 %v2476, %v1985
        %v2480 = vmul.f32 %v2476, %v1986
        %v2481 = vmul.f32 %v2476, %v1987
        %v2482 = vmul.f32 %v2476, %v1988
        %v2483 = vmul.f32 %v2476, %v1989
        %v2484 = vmul.f32 %v2476, %v1990
        %v2485 = vadd.f32 %v2467, %v2477
        %v2486 = vadd.f32 %v2468, %v2478
        %v2487 = vadd.f32 %v2469, %v2479
        %v2488 = vadd.f32 %v2470, %v2480
        %v2489 = vadd.f32 %v2471, %v2481
        %v2490 = vadd.f32 %v2472, %v2482
        %v2491 = vadd.f32 %v2473, %v2483
        %v2492 = vadd.f32 %v2474, %v2484
        %s2493 = sld [smem:[#allocation6 + $0x383]]
        %v2494 = vstv %s2493
        %v2495 = vmul.f32 %v2494, %v1991
        %v2496 = vmul.f32 %v2494, %v1992
        %v2497 = vmul.f32 %v2494, %v1993
        %v2498 = vmul.f32 %v2494, %v1994
        %v2499 = vmul.f32 %v2494, %v1995
        %v2500 = vmul.f32 %v2494, %v1996
        %v2501 = vmul.f32 %v2494, %v1997
        %v2502 = vmul.f32 %v2494, %v1998
        %v2503 = vadd.f32 %v2485, %v2495
        %v2504 = vadd.f32 %v2486, %v2496
        %v2505 = vadd.f32 %v2487, %v2497
        %v2506 = vadd.f32 %v2488, %v2498
        %v2507 = vadd.f32 %v2489, %v2499
        %v2508 = vadd.f32 %v2490, %v2500
        %v2509 = vadd.f32 %v2491, %v2501
        %v2510 = vadd.f32 %v2492, %v2502
        %vm2511 = vcmask 57344
        %v2512 = vsel %vm2511, %v2055, 0.0
        %v2513 = vsel %vm2511, %v2056, 0.0
        %v2514 = vadd.f32 %v2512, %v2513
        %v2515 = vsel %vm2511, %v2057, 0.0
        %v2516 = vadd.f32 %v2514, %v2515
        %v2517 = vsel %vm2511, %v2058, 0.0
        %v2518 = vadd.f32 %v2516, %v2517
        %v2519 = vsel %vm2511, %v2059, 0.0
        %v2520 = vadd.f32 %v2518, %v2519
        %v2521 = vsel %vm2511, %v2060, 0.0
        %v2522 = vadd.f32 %v2520, %v2521
        %v2523 = vsel %vm2511, %v2061, 0.0
        %v2524 = vadd.f32 %v2522, %v2523
        %v2525 = vsel %vm2511, %v2062, 0.0
        %v2526 = vadd.f32 %v2524, %v2525
        %v2527 = vsel %vm2511, %v2119, 0.0
        %v2528 = vsel %vm2511, %v2120, 0.0
        %v2529 = vadd.f32 %v2527, %v2528
        %v2530 = vsel %vm2511, %v2121, 0.0
        %v2531 = vadd.f32 %v2529, %v2530
        %v2532 = vsel %vm2511, %v2122, 0.0
        %v2533 = vadd.f32 %v2531, %v2532
        %v2534 = vsel %vm2511, %v2123, 0.0
        %v2535 = vadd.f32 %v2533, %v2534
        %v2536 = vsel %vm2511, %v2124, 0.0
        %v2537 = vadd.f32 %v2535, %v2536
        %v2538 = vsel %vm2511, %v2125, 0.0
        %v2539 = vadd.f32 %v2537, %v2538
        %v2540 = vsel %vm2511, %v2126, 0.0
        %v2541 = vadd.f32 %v2539, %v2540
        %v2542 = vsel %vm2511, %v2183, 0.0
        %v2543 = vsel %vm2511, %v2184, 0.0
        %v2544 = vadd.f32 %v2542, %v2543
        %v2545 = vsel %vm2511, %v2185, 0.0
        %v2546 = vadd.f32 %v2544, %v2545
        %v2547 = vsel %vm2511, %v2186, 0.0
        %v2548 = vadd.f32 %v2546, %v2547
        %v2549 = vsel %vm2511, %v2187, 0.0
        %v2550 = vadd.f32 %v2548, %v2549
        %v2551 = vsel %vm2511, %v2188, 0.0
        %v2552 = vadd.f32 %v2550, %v2551
        %v2553 = vsel %vm2511, %v2189, 0.0
        %v2554 = vadd.f32 %v2552, %v2553
        %v2555 = vsel %vm2511, %v2190, 0.0
        %v2556 = vadd.f32 %v2554, %v2555
        %v2557 = vsel %vm2511, %v2247, 0.0
        %v2558 = vsel %vm2511, %v2248, 0.0
        %v2559 = vadd.f32 %v2557, %v2558
        %v2560 = vsel %vm2511, %v2249, 0.0
        %v2561 = vadd.f32 %v2559, %v2560
        %v2562 = vsel %vm2511, %v2250, 0.0
        %v2563 = vadd.f32 %v2561, %v2562
        %v2564 = vsel %vm2511, %v2251, 0.0
        %v2565 = vadd.f32 %v2563, %v2564
        %v2566 = vsel %vm2511, %v2252, 0.0
        %v2567 = vadd.f32 %v2565, %v2566
        %v2568 = vsel %vm2511, %v2253, 0.0
        %v2569 = vadd.f32 %v2567, %v2568
        %v2570 = vsel %vm2511, %v2254, 0.0
        %v2571 = vadd.f32 %v2569, %v2570
        %v2572 = vsel %vm2511, %v2311, 0.0
        %v2573 = vsel %vm2511, %v2312, 0.0
        %v2574 = vadd.f32 %v2572, %v2573
        %v2575 = vsel %vm2511, %v2313, 0.0
        %v2576 = vadd.f32 %v2574, %v2575
        %v2577 = vsel %vm2511, %v2314, 0.0
        %v2578 = vadd.f32 %v2576, %v2577
        %v2579 = vsel %vm2511, %v2315, 0.0
        %v2580 = vadd.f32 %v2578, %v2579
        %v2581 = vsel %vm2511, %v2316, 0.0
        %v2582 = vadd.f32 %v2580, %v2581
        %v2583 = vsel %vm2511, %v2317, 0.0
        %v2584 = vadd.f32 %v2582, %v2583
        %v2585 = vsel %vm2511, %v2318, 0.0
        %v2586 = vadd.f32 %v2584, %v2585
        %v2587 = vsel %vm2511, %v2375, 0.0
        %v2588 = vsel %vm2511, %v2376, 0.0
        %v2589 = vadd.f32 %v2587, %v2588
        %v2590 = vsel %vm2511, %v2377, 0.0
        %v2591 = vadd.f32 %v2589, %v2590
        %v2592 = vsel %vm2511, %v2378, 0.0
        %v2593 = vadd.f32 %v2591, %v2592
        %v2594 = vsel %vm2511, %v2379, 0.0
        %v2595 = vadd.f32 %v2593, %v2594
        %v2596 = vsel %vm2511, %v2380, 0.0
        %v2597 = vadd.f32 %v2595, %v2596
        %v2598 = vsel %vm2511, %v2381, 0.0
        %v2599 = vadd.f32 %v2597, %v2598
        %v2600 = vsel %vm2511, %v2382, 0.0
        %v2601 = vadd.f32 %v2599, %v2600
        %v2602 = vsel %vm2511, %v2439, 0.0
        %v2603 = vsel %vm2511, %v2440, 0.0
        %v2604 = vadd.f32 %v2602, %v2603
        %v2605 = vsel %vm2511, %v2441, 0.0
        %v2606 = vadd.f32 %v2604, %v2605
        %v2607 = vsel %vm2511, %v2442, 0.0
        %v2608 = vadd.f32 %v2606, %v2607
        %v2609 = vsel %vm2511, %v2443, 0.0
        %v2610 = vadd.f32 %v2608, %v2609
        %v2611 = vsel %vm2511, %v2444, 0.0
        %v2612 = vadd.f32 %v2610, %v2611
        %v2613 = vsel %vm2511, %v2445, 0.0
        %v2614 = vadd.f32 %v2612, %v2613
        %v2615 = vsel %vm2511, %v2446, 0.0
        %v2616 = vadd.f32 %v2614, %v2615
        %v2617 = vsel %vm2511, %v2503, 0.0
        %v2618 = vsel %vm2511, %v2504, 0.0
        %v2619 = vadd.f32 %v2617, %v2618
        %v2620 = vsel %vm2511, %v2505, 0.0
        %v2621 = vadd.f32 %v2619, %v2620
        %v2622 = vsel %vm2511, %v2506, 0.0
        %v2623 = vadd.f32 %v2621, %v2622
        %v2624 = vsel %vm2511, %v2507, 0.0
        %v2625 = vadd.f32 %v2623, %v2624
        %v2626 = vsel %vm2511, %v2508, 0.0
        %v2627 = vadd.f32 %v2625, %v2626
        %v2628 = vsel %vm2511, %v2509, 0.0
        %v2629 = vadd.f32 %v2627, %v2628
        %v2630 = vsel %vm2511, %v2510, 0.0
        %v2631 = vadd.f32 %v2629, %v2630
        %v2632 = vsel %vm2511, %v2526, 0.0
        %2633 = vadd.xlane.f32.xlu0 %v2632
        %v2634 = vpop.xlane.xlu0 %2633
        %v2635 = vsel %vm2511, %v2541, 0.0
        %2636 = vadd.xlane.f32.xlu0 %v2635
        %v2637 = vpop.xlane.xlu0 %2636
        %v2638 = vsel %vm2511, %v2556, 0.0
        %2639 = vadd.xlane.f32.xlu0 %v2638
        %v2640 = vpop.xlane.xlu0 %2639
        %v2641 = vsel %vm2511, %v2571, 0.0
        %2642 = vadd.xlane.f32.xlu0 %v2641
        %v2643 = vpop.xlane.xlu0 %2642
        %v2644 = vsel %vm2511, %v2586, 0.0
        %2645 = vadd.xlane.f32.xlu0 %v2644
        %v2646 = vpop.xlane.xlu0 %2645
        %v2647 = vsel %vm2511, %v2601, 0.0
        %2648 = vadd.xlane.f32.xlu0 %v2647
        %v2649 = vpop.xlane.xlu0 %2648
        %v2650 = vsel %vm2511, %v2616, 0.0
        %2651 = vadd.xlane.f32.xlu0 %v2650
        %v2652 = vpop.xlane.xlu0 %2651
        %v2653 = vsel %vm2511, %v2631, 0.0
        %2654 = vadd.xlane.f32.xlu0 %v2653
        %v2655 = vpop.xlane.xlu0 %2654
        %vm2656 = vcmask 0
        %2657 = vst.msk [vmem:[%s1383] sm:$0x1] %vm2656, %v2634
        %2658 = vst.msk [vmem:[%s1383 + $0x1] sm:$0x1] %vm2656, %v2637
        %2659 = vst.msk [vmem:[%s1383 + $0x2] sm:$0x1] %vm2656, %v2640
        %2660 = vst.msk [vmem:[%s1383 + $0x3] sm:$0x1] %vm2656, %v2643
        %2661 = vst.msk [vmem:[%s1383 + $0x4] sm:$0x1] %vm2656, %v2646
        %2662 = vst.msk [vmem:[%s1383 + $0x5] sm:$0x1] %vm2656, %v2649
        %2663 = vst.msk [vmem:[%s1383 + $0x6] sm:$0x1] %vm2656, %v2652
        %2664 = vst.msk [vmem:[%s1383 + $0x7] sm:$0x1] %vm2656, %v2655
        %v2665 = vmul.f32 %v2055, %v2055
        %v2666 = vmul.f32 %v2056, %v2056
        %v2667 = vmul.f32 %v2057, %v2057
        %v2668 = vmul.f32 %v2058, %v2058
        %v2669 = vmul.f32 %v2059, %v2059
        %v2670 = vmul.f32 %v2060, %v2060
        %v2671 = vmul.f32 %v2061, %v2061
        %v2672 = vmul.f32 %v2062, %v2062
        %v2673 = vmul.f32 %v2119, %v2119
        %v2674 = vmul.f32 %v2120, %v2120
        %v2675 = vmul.f32 %v2121, %v2121
        %v2676 = vmul.f32 %v2122, %v2122
        %v2677 = vmul.f32 %v2123, %v2123
        %v2678 = vmul.f32 %v2124, %v2124
        %v2679 = vmul.f32 %v2125, %v2125
        %v2680 = vmul.f32 %v2126, %v2126
        %v2681 = vmul.f32 %v2183, %v2183
        %v2682 = vmul.f32 %v2184, %v2184
        %v2683 = vmul.f32 %v2185, %v2185
        %v2684 = vmul.f32 %v2186, %v2186
        %v2685 = vmul.f32 %v2187, %v2187
        %v2686 = vmul.f32 %v2188, %v2188
        %v2687 = vmul.f32 %v2189, %v2189
        %v2688 = vmul.f32 %v2190, %v2190
        %v2689 = vmul.f32 %v2247, %v2247
        %v2690 = vmul.f32 %v2248, %v2248
        %v2691 = vmul.f32 %v2249, %v2249
        %v2692 = vmul.f32 %v2250, %v2250
        %v2693 = vmul.f32 %v2251, %v2251
        %v2694 = vmul.f32 %v2252, %v2252
        %v2695 = vmul.f32 %v2253, %v2253
        %v2696 = vmul.f32 %v2254, %v2254
        %v2697 = vmul.f32 %v2311, %v2311
        %v2698 = vmul.f32 %v2312, %v2312
        %v2699 = vmul.f32 %v2313, %v2313
        %v2700 = vmul.f32 %v2314, %v2314
        %v2701 = vmul.f32 %v2315, %v2315
        %v2702 = vmul.f32 %v2316, %v2316
        %v2703 = vmul.f32 %v2317, %v2317
        %v2704 = vmul.f32 %v2318, %v2318
        %v2705 = vmul.f32 %v2375, %v2375
        %v2706 = vmul.f32 %v2376, %v2376
        %v2707 = vmul.f32 %v2377, %v2377
        %v2708 = vmul.f32 %v2378, %v2378
        %v2709 = vmul.f32 %v2379, %v2379
        %v2710 = vmul.f32 %v2380, %v2380
        %v2711 = vmul.f32 %v2381, %v2381
        %v2712 = vmul.f32 %v2382, %v2382
        %v2713 = vmul.f32 %v2439, %v2439
        %v2714 = vmul.f32 %v2440, %v2440
        %v2715 = vmul.f32 %v2441, %v2441
        %v2716 = vmul.f32 %v2442, %v2442
        %v2717 = vmul.f32 %v2443, %v2443
        %v2718 = vmul.f32 %v2444, %v2444
        %v2719 = vmul.f32 %v2445, %v2445
        %v2720 = vmul.f32 %v2446, %v2446
        %v2721 = vmul.f32 %v2503, %v2503
        %v2722 = vmul.f32 %v2504, %v2504
        %v2723 = vmul.f32 %v2505, %v2505
        %v2724 = vmul.f32 %v2506, %v2506
        %v2725 = vmul.f32 %v2507, %v2507
        %v2726 = vmul.f32 %v2508, %v2508
        %v2727 = vmul.f32 %v2509, %v2509
        %v2728 = vmul.f32 %v2510, %v2510
        %v2729 = vsel %vm2511, %v2665, 0.0
        %v2730 = vsel %vm2511, %v2666, 0.0
        %v2731 = vadd.f32 %v2729, %v2730
        %v2732 = vsel %vm2511, %v2667, 0.0
        %v2733 = vadd.f32 %v2731, %v2732
        %v2734 = vsel %vm2511, %v2668, 0.0
        %v2735 = vadd.f32 %v2733, %v2734
        %v2736 = vsel %vm2511, %v2669, 0.0
        %v2737 = vadd.f32 %v2735, %v2736
        %v2738 = vsel %vm2511, %v2670, 0.0
        %v2739 = vadd.f32 %v2737, %v2738
        %v2740 = vsel %vm2511, %v2671, 0.0
        %v2741 = vadd.f32 %v2739, %v2740
        %v2742 = vsel %vm2511, %v2672, 0.0
        %v2743 = vadd.f32 %v2741, %v2742
        %v2744 = vsel %vm2511, %v2673, 0.0
        %v2745 = vsel %vm2511, %v2674, 0.0
        %v2746 = vadd.f32 %v2744, %v2745
        %v2747 = vsel %vm2511, %v2675, 0.0
        %v2748 = vadd.f32 %v2746, %v2747
        %v2749 = vsel %vm2511, %v2676, 0.0
        %v2750 = vadd.f32 %v2748, %v2749
        %v2751 = vsel %vm2511, %v2677, 0.0
        %v2752 = vadd.f32 %v2750, %v2751
        %v2753 = vsel %vm2511, %v2678, 0.0
        %v2754 = vadd.f32 %v2752, %v2753
        %v2755 = vsel %vm2511, %v2679, 0.0
        %v2756 = vadd.f32 %v2754, %v2755
        %v2757 = vsel %vm2511, %v2680, 0.0
        %v2758 = vadd.f32 %v2756, %v2757
        %v2759 = vsel %vm2511, %v2681, 0.0
        %v2760 = vsel %vm2511, %v2682, 0.0
        %v2761 = vadd.f32 %v2759, %v2760
        %v2762 = vsel %vm2511, %v2683, 0.0
        %v2763 = vadd.f32 %v2761, %v2762
        %v2764 = vsel %vm2511, %v2684, 0.0
        %v2765 = vadd.f32 %v2763, %v2764
        %v2766 = vsel %vm2511, %v2685, 0.0
        %v2767 = vadd.f32 %v2765, %v2766
        %v2768 = vsel %vm2511, %v2686, 0.0
        %v2769 = vadd.f32 %v2767, %v2768
        %v2770 = vsel %vm2511, %v2687, 0.0
        %v2771 = vadd.f32 %v2769, %v2770
        %v2772 = vsel %vm2511, %v2688, 0.0
        %v2773 = vadd.f32 %v2771, %v2772
        %v2774 = vsel %vm2511, %v2689, 0.0
        %v2775 = vsel %vm2511, %v2690, 0.0
        %v2776 = vadd.f32 %v2774, %v2775
        %v2777 = vsel %vm2511, %v2691, 0.0
        %v2778 = vadd.f32 %v2776, %v2777
        %v2779 = vsel %vm2511, %v2692, 0.0
        %v2780 = vadd.f32 %v2778, %v2779
        %v2781 = vsel %vm2511, %v2693, 0.0
        %v2782 = vadd.f32 %v2780, %v2781
        %v2783 = vsel %vm2511, %v2694, 0.0
        %v2784 = vadd.f32 %v2782, %v2783
        %v2785 = vsel %vm2511, %v2695, 0.0
        %v2786 = vadd.f32 %v2784, %v2785
        %v2787 = vsel %vm2511, %v2696, 0.0
        %v2788 = vadd.f32 %v2786, %v2787
        %v2789 = vsel %vm2511, %v2697, 0.0
        %v2790 = vsel %vm2511, %v2698, 0.0
        %v2791 = vadd.f32 %v2789, %v2790
        %v2792 = vsel %vm2511, %v2699, 0.0
        %v2793 = vadd.f32 %v2791, %v2792
        %v2794 = vsel %vm2511, %v2700, 0.0
        %v2795 = vadd.f32 %v2793, %v2794
        %v2796 = vsel %vm2511, %v2701, 0.0
        %v2797 = vadd.f32 %v2795, %v2796
        %v2798 = vsel %vm2511, %v2702, 0.0
        %v2799 = vadd.f32 %v2797, %v2798
        %v2800 = vsel %vm2511, %v2703, 0.0
        %v2801 = vadd.f32 %v2799, %v2800
        %v2802 = vsel %vm2511, %v2704, 0.0
        %v2803 = vadd.f32 %v2801, %v2802
        %v2804 = vsel %vm2511, %v2705, 0.0
        %v2805 = vsel %vm2511, %v2706, 0.0
        %v2806 = vadd.f32 %v2804, %v2805
        %v2807 = vsel %vm2511, %v2707, 0.0
        %v2808 = vadd.f32 %v2806, %v2807
        %v2809 = vsel %vm2511, %v2708, 0.0
        %v2810 = vadd.f32 %v2808, %v2809
        %v2811 = vsel %vm2511, %v2709, 0.0
        %v2812 = vadd.f32 %v2810, %v2811
        %v2813 = vsel %vm2511, %v2710, 0.0
        %v2814 = vadd.f32 %v2812, %v2813
        %v2815 = vsel %vm2511, %v2711, 0.0
        %v2816 = vadd.f32 %v2814, %v2815
        %v2817 = vsel %vm2511, %v2712, 0.0
        %v2818 = vadd.f32 %v2816, %v2817
        %v2819 = vsel %vm2511, %v2713, 0.0
        %v2820 = vsel %vm2511, %v2714, 0.0
        %v2821 = vadd.f32 %v2819, %v2820
        %v2822 = vsel %vm2511, %v2715, 0.0
        %v2823 = vadd.f32 %v2821, %v2822
        %v2824 = vsel %vm2511, %v2716, 0.0
        %v2825 = vadd.f32 %v2823, %v2824
        %v2826 = vsel %vm2511, %v2717, 0.0
        %v2827 = vadd.f32 %v2825, %v2826
        %v2828 = vsel %vm2511, %v2718, 0.0
        %v2829 = vadd.f32 %v2827, %v2828
        %v2830 = vsel %vm2511, %v2719, 0.0
        %v2831 = vadd.f32 %v2829, %v2830
        %v2832 = vsel %vm2511, %v2720, 0.0
        %v2833 = vadd.f32 %v2831, %v2832
        %v2834 = vsel %vm2511, %v2721, 0.0
        %v2835 = vsel %vm2511, %v2722, 0.0
        %v2836 = vadd.f32 %v2834, %v2835
        %v2837 = vsel %vm2511, %v2723, 0.0
        %v2838 = vadd.f32 %v2836, %v2837
        %v2839 = vsel %vm2511, %v2724, 0.0
        %v2840 = vadd.f32 %v2838, %v2839
        %v2841 = vsel %vm2511, %v2725, 0.0
        %v2842 = vadd.f32 %v2840, %v2841
        %v2843 = vsel %vm2511, %v2726, 0.0
        %v2844 = vadd.f32 %v2842, %v2843
        %v2845 = vsel %vm2511, %v2727, 0.0
        %v2846 = vadd.f32 %v2844, %v2845
        %v2847 = vsel %vm2511, %v2728, 0.0
        %v2848 = vadd.f32 %v2846, %v2847
        %v2849 = vsel %vm2511, %v2743, 0.0
        %2850 = vadd.xlane.f32.xlu0 %v2849
        %v2851 = vpop.xlane.xlu0 %2850
        %v2852 = vsel %vm2511, %v2758, 0.0
        %2853 = vadd.xlane.f32.xlu0 %v2852
        %v2854 = vpop.xlane.xlu0 %2853
        %v2855 = vsel %vm2511, %v2773, 0.0
        %2856 = vadd.xlane.f32.xlu0 %v2855
        %v2857 = vpop.xlane.xlu0 %2856
        %v2858 = vsel %vm2511, %v2788, 0.0
        %2859 = vadd.xlane.f32.xlu0 %v2858
        %v2860 = vpop.xlane.xlu0 %2859
        %v2861 = vsel %vm2511, %v2803, 0.0
        %2862 = vadd.xlane.f32.xlu0 %v2861
        %v2863 = vpop.xlane.xlu0 %2862
        %v2864 = vsel %vm2511, %v2818, 0.0
        %2865 = vadd.xlane.f32.xlu0 %v2864
        %v2866 = vpop.xlane.xlu0 %2865
        %v2867 = vsel %vm2511, %v2833, 0.0
        %2868 = vadd.xlane.f32.xlu0 %v2867
        %v2869 = vpop.xlane.xlu0 %2868
        %v2870 = vsel %vm2511, %v2848, 0.0
        %2871 = vadd.xlane.f32.xlu0 %v2870
        %v2872 = vpop.xlane.xlu0 %2871
        %2873 = vst.msk [vmem:[%s1389] sm:$0x1] %vm2656, %v2851
        %2874 = vst.msk [vmem:[%s1389 + $0x1] sm:$0x1] %vm2656, %v2854
        %2875 = vst.msk [vmem:[%s1389 + $0x2] sm:$0x1] %vm2656, %v2857
        %2876 = vst.msk [vmem:[%s1389 + $0x3] sm:$0x1] %vm2656, %v2860
        %2877 = vst.msk [vmem:[%s1389 + $0x4] sm:$0x1] %vm2656, %v2863
        %2878 = vst.msk [vmem:[%s1389 + $0x5] sm:$0x1] %vm2656, %v2866
        %2879 = vst.msk [vmem:[%s1389 + $0x6] sm:$0x1] %vm2656, %v2869
        %2880 = vst.msk [vmem:[%s1389 + $0x7] sm:$0x1] %vm2656, %v2872
        %s2881 = sadd.s32 %s23, %s24
        %p2882 = scmp.lt.s32.totalorder %s2881, 1
        %s2883 = scalar_select %p2882, %s2881, 1
        %s2884 = smul.addr %s2883, 8
        %s2885 = scalar_lea.vmem %s5, %s2884
        %s2886 = sadd.s32 %s23, %s24
        %p2887 = scmp.lt.s32.totalorder %s2886, 1
        %s2888 = scalar_select %p2887, %s2886, 1
        %s2889 = smul.addr %s2888, 8
        %s2890 = scalar_lea.vmem %s6, %s2889
        // Predicated region
        $region259: #{ds_forward.2} parent=237 // pred_check
          %p2891 = pneg %p192
        $region260: #{ds_forward.2} parent=237 // pred_check_branch
          %2893 = sbr.rel (%p2891) target = $region262
        $region261: #{ds_forward.2} parent=237 // pred_region
          %s2894 = sadd.s32 %s23, %s24
        $region262: #{ds_forward.2} parent=237 // pred_fallthru
          _
        // Predicated region
        $region263: #{ds_forward.2} parent=237 // pred_check
          %p2895 = pneg %p220
        $region264: #{ds_forward.2} parent=237 // pred_check_branch
          %2897 = sbr.rel (%p2895) target = $region266
        $region265: #{ds_forward.2} parent=237 // pred_region
          %s2898 = sadd.s32 %s23, %s24
        $region266: #{ds_forward.2} parent=237 // pred_fallthru
          _
      $region238: #{ds_forward.2} parent=5 // pred_fallthru
        _
      %p2899 = scmp.le.s32.totalorder 2, %s14
      // Predicated region
      $region267: #{ds_forward.2} parent=5 // pred_check
        %p2900 = pneg %p2899
      $region268: #{ds_forward.2} parent=5 // pred_check_branch
        %2902 = sbr.rel (%p2900) target = $region270
      $region269: #{ds_forward.2} parent=5 // pred_region
        %s2903 = ssub.s32 %s14, 2
        // Predicated region
        $region271: #{ds_forward.2} parent=269 // pred_check
          %p2904 = pneg %p198
        $region272: #{ds_forward.2} parent=269 // pred_check_branch
          %2906 = sbr.rel (%p2904) target = $region274
        $region273: #{ds_forward.2} parent=269 // pred_region
          %s2907 = sadd.s32 %s25, %s26
          %p2908 = scmp.lt.s32.totalorder %s2907, 1
          %s2909 = scalar_select %p2908, %s2907, 1
          %s2910 = smul.addr %s2909, 8
          %s2911 = scalar_lea.vmem %s5, %s2910
        $region274: #{ds_forward.2} parent=269 // pred_fallthru
          _
        // Predicated region
        $region275: #{ds_forward.2} parent=269 // pred_check
          %p2912 = pneg %p226
        $region276: #{ds_forward.2} parent=269 // pred_check_branch
          %2914 = sbr.rel (%p2912) target = $region278
        $region277: #{ds_forward.2} parent=269 // pred_region
          %s2915 = sadd.s32 %s25, %s26
          %p2916 = scmp.lt.s32.totalorder %s2915, 1
          %s2917 = scalar_select %p2916, %s2915, 1
          %s2918 = smul.addr %s2917, 8
          %s2919 = scalar_lea.vmem %s6, %s2918
        $region278: #{ds_forward.2} parent=269 // pred_fallthru
          _
      $region270: #{ds_forward.2} parent=5 // pred_fallthru
        _
    $region6: #{ds_forward.2} parent=1 // loop_footer
      %s18 = sadd.s32 1, %s14
    $region7: #{ds_forward.2} parent=1 // loop_footer_branch
      %13 = sbr.rel target = $region3
    $region8: #{ds_forward.2} parent=1 // loop_exit
      _
    %2920 = vsyncpa [#allocation7], 1
    %s2921 = scalar_lea.sflag [#allocation7], 1
    %2922 = vsyncpa %s2921, 1

// kernel: ds_forward.3
$region0: #{ds_forward.3}
  #allocation0 [shape = 'u32[]', space=smem, size = 0x4, offset = 0x4, fixed_abs, tag = 'smem constant byte address 0x4 - core index']
  #allocation1 [shape = 'u32[144,128]{1,0:T(1,128)}', space=vmem, size = 0x12000, scoped, tag = 'internal scratch']
  %s0 = inlined_call_operand.vmem [shape: f32[8,9,2,1,9], index: 0, kind: input, shape index: {}, may-alias: {0,2}]
  %s1 = inlined_call_operand.vmem [shape: f32[8,9,2,1,9], index: 1, kind: input, shape index: {}, may-alias: {1,3}]
  %s2 = inlined_call_operand.vmem [shape: f32[8,9,2,1,9], index: 2, kind: input, shape index: {}, may-alias: {0,2}]
  %s3 = inlined_call_operand.vmem [shape: f32[8,9,2,1,9], index: 3, kind: input, shape index: {}, may-alias: {1,3}]
  %s4 = inlined_call_operand.vmem [shape: f32[8,4], index: 4, kind: input, shape index: {}]
  %s5 = inlined_call_operand.vmem [shape: f32[8], index: 5, kind: input, shape index: {}]
  %s6 = inlined_call_operand.vmem [shape: f32[8], index: 6, kind: input, shape index: {}]
  %s7 = inlined_call_operand.hbm [shape: f32[16,8,1,8], index: 7, kind: output, shape index: {}]
  %s8 = sld [smem:[#allocation0]]
  $region287: #{ds_forward.3} parent=0
    _
  %s10 = ssub.s32 1, %s8
  %s11 = scalar_select 0, %s10, %s8
  $region1: #{ds_forward.3} parent=0
    #allocation2 [shape = 'u8[65536]{0}', space=vmem, size = 0x10000, scoped, tag = 'input window, operand 0']
    #allocation3 [shape = 'u8[65536]{0}', space=vmem, size = 0x10000, scoped, tag = 'input window, operand 1']
    #allocation4 [shape = 'u8[8192]{0}', space=vmem, size = 0x2000, scoped, tag = 'input window, operand 2']
    #allocation5 [shape = 'u8[8192]{0}', space=vmem, size = 0x2000, scoped, tag = 'input window, operand 3']
    #allocation6 [shape = 'u8[4096]{0}', space=smem, size = 0x1000, scoped, tag = 'input window, operand 4, single buffered']
    #allocation7 [shape = 's32[2]{0}', space=sflag, size = 0x8, scoped, tag = 'scoped memory for ds_forward.3']
    #allocation8 [shape = 's32[2]{0}', space=sflag, size = 0x8, scoped, tag = 'scoped memory for ds_forward.3']
    #allocation9 [shape = 'u8[512]{0}', space=smem, size = 0x200, scoped, tag = 'input window, operand 5, single buffered']
    #allocation10 [shape = 's32[1]{0}', space=sflag, size = 0x4, scoped, tag = 'scoped memory for ds_forward.3']
    #allocation11 [shape = 'u8[512]{0}', space=smem, size = 0x200, scoped, tag = 'input window, operand 6, single buffered']
    #allocation12 [shape = 'u8[65536]{0}', space=vmem, size = 0x10000, scoped, tag = 'output window, operand 0']
    %12 = vsyncpa [#allocation8], 0
    %13 = vsyncpa [#allocation10], 0
    %14 = vsyncpa [#allocation7], 0
    %s15 = scalar_lea.sflag [#allocation7], 1
    %16 = vsyncpa %s15, 0
    loop: start=0, step=1, limit=4
    $region2: #{ds_forward.3} parent=1 // loop_pre_header
      _
    $region3: #{ds_forward.3} parent=1 // loop_header
      %s18 = sphi 0, %s22
      %p19 = scmp.ge.s32.totalorder %s18, 4
      %s25 = sphi 0, %s37
      %s26 = sphi 0, %s33
      %s27 = sphi 0, %s25
      %s28 = sphi 0, %s26
      %s29 = sphi 0, %s27
      %s30 = sphi 0, %s28
      %s42 = sphi 0, %s44
      %s45 = sphi 0, %s42
      %s46 = sphi 0, %s45
      %s62 = sphi 0, %s46
      %s70 = sphi 0, %s72
      %s73 = sphi 0, %s70
      %s74 = sphi 0, %s73
      %s90 = sphi 0, %s74
      %s102 = sphi 0, %s104
      %s105 = sphi 0, %s102
      %s106 = sphi 0, %s105
      %s122 = sphi 0, %s106
      %s134 = sphi 0, %s136
      %s137 = sphi 0, %s134
      %s138 = sphi 0, %s137
      %s154 = sphi 0, %s138
      %s158 = sphi 0, %s158
      %s160 = sphi 0, %s158
      %s161 = sphi 0, %s160
      %s175 = sphi 0, %s161
      %s179 = sphi 0, %s179
      %s181 = sphi 0, %s179
      %s182 = sphi 0, %s181
      %s196 = sphi 0, %s182
      %s200 = sphi 0, %s200
      %s202 = sphi 0, %s200
      %s203 = sphi 0, %s202
      %s217 = sphi 0, %s203
      %s225 = sphi 0, %s227
      %s228 = sphi 0, %s225
      %s229 = sphi 0, %s228
      %s245 = sphi 0, %s229
    $region4: #{ds_forward.3} parent=1 // loop_header_branch
      %21 = sbr.rel (%p19) target = $region8
    $region5: #{ds_forward.3} parent=1 // loop_body
      %s23 = ssub.s32 %s18, 1
      %s24 = ssub.s32 %s18, 2
      %s31 = sadd.s32 1, %s26
      %p32 = scmp.ge.s32.totalorder %s31, 1
      %s33 = scalar_select %p32, 0, %s31
      %s34 = sadd.s32 1, %s25
      %s35 = scalar_select %p32, %s34, %s25
      %p36 = scmp.ge.s32.totalorder %s35, 2
      %s37 = scalar_select %p36, 0, %s35
      %s38 = ssub.s32 %s25, %s37
      %s39 = ssub.s32 %s26, %s33
      %s40 = sor.u32 %s38, %s39
      %p41 = scmp.eq.s32.totalorder %s40, 0
      %s43 = sadd.s32 %s42, 1
      %s44 = scalar_select %p41, %s42, %s43
      %p47 = pneg %p41
      %p48 = scmp.eq.s32.totalorder %s18, 1
      %p49 = por %p47, %p48
      %p50 = scmp.ne.s32.totalorder %s42, %s45
      %p51 = scmp.eq.s32.totalorder %s18, 0
      %p52 = por %p50, %p51
      %p53 = scmp.ne.s32.totalorder %s42, %s45
      %p54 = scmp.eq.s32.totalorder %s23, 1
      %p55 = por %p53, %p54
      %p56 = scmp.ne.s32.totalorder %s45, %s46
      %p57 = scmp.eq.s32.totalorder %s23, 0
      %p58 = por %p56, %p57
      %p59 = scmp.ne.s32.totalorder %s45, %s46
      %p60 = scmp.eq.s32.totalorder %s24, 1
      %p61 = por %p59, %p60
      %p63 = scmp.ne.s32.totalorder %s46, %s62
      %p64 = scmp.eq.s32.totalorder %s24, 0
      %p65 = por %p63, %p64
      %s66 = ssub.s32 %s25, %s37
      %s67 = ssub.s32 %s26, %s33
      %s68 = sor.u32 %s66, %s67
      %p69 = scmp.eq.s32.totalorder %s68, 0
      %s71 = sadd.s32 %s70, 1
      %s72 = scalar_select %p69, %s70, %s71
      %p75 = pneg %p69
      %p76 = scmp.eq.s32.totalorder %s18, 1
      %p77 = por %p75, %p76
      %p78 = scmp.ne.s32.totalorder %s70, %s73
      %p79 = scmp.eq.s32.totalorder %s18, 0
      %p80 = por %p78, %p79
      %p81 = scmp.ne.s32.totalorder %s70, %s73
      %p82 = scmp.eq.s32.totalorder %s23, 1
      %p83 = por %p81, %p82
      %p84 = scmp.ne.s32.totalorder %s73, %s74
      %p85 = scmp.eq.s32.totalorder %s23, 0
      %p86 = por %p84, %p85
      %p87 = scmp.ne.s32.totalorder %s73, %s74
      %p88 = scmp.eq.s32.totalorder %s24, 1
      %p89 = por %p87, %p88
      %p91 = scmp.ne.s32.totalorder %s74, %s90
      %p92 = scmp.eq.s32.totalorder %s24, 0
      %p93 = por %p91, %p92
      %s94 = sadd.s32 %s26, 1
      %s95 = smul.u32 %s94, 8
      %s96 = sadd.s32 %s33, 1
      %s97 = smul.u32 %s96, 8
      %s98 = ssub.s32 %s25, %s37
      %s99 = ssub.s32 %s95, %s97
      %s100 = sor.u32 %s98, %s99
      %p101 = scmp.eq.s32.totalorder %s100, 0
      %s103 = sadd.s32 %s102, 1
      %s104 = scalar_select %p101, %s102, %s103
      %p107 = pneg %p101
      %p108 = scmp.eq.s32.totalorder %s18, 1
      %p109 = por %p107, %p108
      %p110 = scmp.ne.s32.totalorder %s102, %s105
      %p111 = scmp.eq.s32.totalorder %s18, 0
      %p112 = por %p110, %p111
      %p113 = scmp.ne.s32.totalorder %s102, %s105
      %p114 = scmp.eq.s32.totalorder %s23, 1
      %p115 = por %p113, %p114
      %p116 = scmp.ne.s32.totalorder %s105, %s106
      %p117 = scmp.eq.s32.totalorder %s23, 0
      %p118 = por %p116, %p117
      %p119 = scmp.ne.s32.totalorder %s105, %s106
      %p120 = scmp.eq.s32.totalorder %s24, 1
      %p121 = por %p119, %p120
      %p123 = scmp.ne.s32.totalorder %s106, %s122
      %p124 = scmp.eq.s32.totalorder %s24, 0
      %p125 = por %p123, %p124
      %s126 = sadd.s32 %s26, 1
      %s127 = smul.u32 %s126, 8
      %s128 = sadd.s32 %s33, 1
      %s129 = smul.u32 %s128, 8
      %s130 = ssub.s32 %s25, %s37
      %s131 = ssub.s32 %s127, %s129
      %s132 = sor.u32 %s130, %s131
      %p133 = scmp.eq.s32.totalorder %s132, 0
      %s135 = sadd.s32 %s134, 1
      %s136 = scalar_select %p133, %s134, %s135
      %p139 = pneg %p133
      %p140 = scmp.eq.s32.totalorder %s18, 1
      %p141 = por %p139, %p140
      %p142 = scmp.ne.s32.totalorder %s134, %s137
      %p143 = scmp.eq.s32.totalorder %s18, 0
      %p144 = por %p142, %p143
      %p145 = scmp.ne.s32.totalorder %s134, %s137
      %p146 = scmp.eq.s32.totalorder %s23, 1
      %p147 = por %p145, %p146
      %p148 = scmp.ne.s32.totalorder %s137, %s138
      %p149 = scmp.eq.s32.totalorder %s23, 0
      %p150 = por %p148, %p149
      %p151 = scmp.ne.s32.totalorder %s137, %s138
      %p152 = scmp.eq.s32.totalorder %s24, 1
      %p153 = por %p151, %p152
      %p155 = scmp.ne.s32.totalorder %s138, %s154
      %p156 = scmp.eq.s32.totalorder %s24, 0
      %p157 = por %p155, %p156
      %s159 = sadd.s32 %s158, 1
      %p162 = scmp.eq.s32.totalorder %s18, 1
      %p163 = scmp.ne.s32.totalorder %s158, %s160
      %p164 = scmp.eq.s32.totalorder %s18, 0
      %p165 = por %p163, %p164
      %p166 = scmp.ne.s32.totalorder %s158, %s160
      %p167 = scmp.eq.s32.totalorder %s23, 1
      %p168 = por %p166, %p167
      %p169 = scmp.ne.s32.totalorder %s160, %s161
      %p170 = scmp.eq.s32.totalorder %s23, 0
      %p171 = por %p169, %p170
      %p172 = scmp.ne.s32.totalorder %s160, %s161
      %p173 = scmp.eq.s32.totalorder %s24, 1
      %p174 = por %p172, %p173
      %p176 = scmp.ne.s32.totalorder %s161, %s175
      %p177 = scmp.eq.s32.totalorder %s24, 0
      %p178 = por %p176, %p177
      %s180 = sadd.s32 %s179, 1
      %p183 = scmp.eq.s32.totalorder %s18, 1
      %p184 = scmp.ne.s32.totalorder %s179, %s181
      %p185 = scmp.eq.s32.totalorder %s18, 0
      %p186 = por %p184, %p185
      %p187 = scmp.ne.s32.totalorder %s179, %s181
      %p188 = scmp.eq.s32.totalorder %s23, 1
      %p189 = por %p187, %p188
      %p190 = scmp.ne.s32.totalorder %s181, %s182
      %p191 = scmp.eq.s32.totalorder %s23, 0
      %p192 = por %p190, %p191
      %p193 = scmp.ne.s32.totalorder %s181, %s182
      %p194 = scmp.eq.s32.totalorder %s24, 1
      %p195 = por %p193, %p194
      %p197 = scmp.ne.s32.totalorder %s182, %s196
      %p198 = scmp.eq.s32.totalorder %s24, 0
      %p199 = por %p197, %p198
      %s201 = sadd.s32 %s200, 1
      %p204 = scmp.eq.s32.totalorder %s18, 1
      %p205 = scmp.ne.s32.totalorder %s200, %s202
      %p206 = scmp.eq.s32.totalorder %s18, 0
      %p207 = por %p205, %p206
      %p208 = scmp.ne.s32.totalorder %s200, %s202
      %p209 = scmp.eq.s32.totalorder %s23, 1
      %p210 = por %p208, %p209
      %p211 = scmp.ne.s32.totalorder %s202, %s203
      %p212 = scmp.eq.s32.totalorder %s23, 0
      %p213 = por %p211, %p212
      %p214 = scmp.ne.s32.totalorder %s202, %s203
      %p215 = scmp.eq.s32.totalorder %s24, 1
      %p216 = por %p214, %p215
      %p218 = scmp.ne.s32.totalorder %s203, %s217
      %p219 = scmp.eq.s32.totalorder %s24, 0
      %p220 = por %p218, %p219
      %s221 = ssub.s32 %s25, %s37
      %s222 = ssub.s32 %s26, %s33
      %s223 = sor.u32 %s221, %s222
      %p224 = scmp.eq.s32.totalorder %s223, 0
      %s226 = sadd.s32 %s225, 1
      %s227 = scalar_select %p224, %s225, %s226
      %p230 = pneg %p224
      %p231 = scmp.eq.s32.totalorder %s18, 1
      %p232 = por %p230, %p231
      %p233 = scmp.ne.s32.totalorder %s225, %s228
      %p234 = scmp.eq.s32.totalorder %s18, 0
      %p235 = por %p233, %p234
      %p236 = scmp.ne.s32.totalorder %s225, %s228
      %p237 = scmp.eq.s32.totalorder %s23, 1
      %p238 = por %p236, %p237
      %p239 = scmp.ne.s32.totalorder %s228, %s229
      %p240 = scmp.eq.s32.totalorder %s23, 0
      %p241 = por %p239, %p240
      %p242 = scmp.ne.s32.totalorder %s228, %s229
      %p243 = scmp.eq.s32.totalorder %s24, 1
      %p244 = por %p242, %p243
      %p246 = scmp.ne.s32.totalorder %s229, %s245
      %p247 = scmp.eq.s32.totalorder %s24, 0
      %p248 = por %p246, %p247
      %p249 = scmp.le.s32.totalorder 1, %s18
      %p250 = scmp.lt.s32.totalorder %s18, 3
      %p251 = pnand %p249, %p250
      %p252 = pneg %p251
      // Predicated region
      $region9: #{ds_forward.3} parent=5 // pred_check
        _
      $region10: #{ds_forward.3} parent=5 // pred_check_branch
        %254 = sbr.rel (%p251) target = $region12
      $region11: #{ds_forward.3} parent=5 // pred_region
        %s255 = ssub.s32 %s18, 1
        // Predicated region
        $region13: #{ds_forward.3} parent=11 // pred_check
          %p256 = pneg %p171
        $region14: #{ds_forward.3} parent=11 // pred_check_branch
          %258 = sbr.rel (%p256) target = $region16
        $region15: #{ds_forward.3} parent=11 // pred_region
          %s260 = ssub.s32 128, 128
          %261 = vsyncadd [#allocation8], %s260
          %s263 = sshll.u32 %s4, 4
          %s264 = int_to_ptr.vmem [resolvable:$true] %s263
          %266 = dma.vmem_to_smem %s264, 128, [#allocation6], [#allocation8]
        $region16: #{ds_forward.3} parent=11 // pred_fallthru
          _
        // Predicated region
        $region17: #{ds_forward.3} parent=11 // pred_check
          %p267 = pneg %p192
        $region18: #{ds_forward.3} parent=11 // pred_check_branch
          %269 = sbr.rel (%p267) target = $region20
        $region19: #{ds_forward.3} parent=11 // pred_region
          %s271 = ssub.s32 16, 16
          %272 = vsyncadd [#allocation10], %s271
          %s274 = sshll.u32 %s5, 4
          %s275 = int_to_ptr.vmem [resolvable:$true] %s274
          %277 = dma.vmem_to_smem %s275, 16, [#allocation9], [#allocation10]
        $region20: #{ds_forward.3} parent=11 // pred_fallthru
          _
        // Predicated region
        $region21: #{ds_forward.3} parent=11 // pred_check
          %p278 = pneg %p213
        $region22: #{ds_forward.3} parent=11 // pred_check_branch
          %280 = sbr.rel (%p278) target = $region24
        $region23: #{ds_forward.3} parent=11 // pred_region
          %s282 = ssub.s32 16, 16
          %283 = vsyncadd [#allocation10], %s282
          %s285 = sshll.u32 %s6, 4
          %s286 = int_to_ptr.vmem [resolvable:$true] %s285
          %288 = dma.vmem_to_smem %s286, 16, [#allocation11], [#allocation10]
        $region24: #{ds_forward.3} parent=11 // pred_fallthru
          _
      $region12: #{ds_forward.3} parent=5 // pred_fallthru
        _
      %p289 = scmp.lt.s32.totalorder %s18, 2
      // Predicated region
      $region25: #{ds_forward.3} parent=5 // pred_check
        %p290 = pneg %p289
      $region26: #{ds_forward.3} parent=5 // pred_check_branch
        %292 = sbr.rel (%p290) target = $region28
      $region27: #{ds_forward.3} parent=5 // pred_region
        // Predicated region
        $region29: #{ds_forward.3} parent=27 // pred_check
          %p293 = pneg %p52
        $region30: #{ds_forward.3} parent=27 // pred_check_branch
          %295 = sbr.rel (%p293) target = $region32
        $region31: #{ds_forward.3} parent=27 // pred_region
          %s296 = sand.u32 %s42, 1
          %s297 = sand.u32 %s42, 1
          %s298 = smul.addr %s297, 64
          %s299 = scalar_lea.vmem [#allocation2], %s298
          %s300 = smul.u32 4, %s25
          %s301 = smul.u32 8, %s26
          %s302 = ssub.s32 9, %s301
          %p303 = scmp.lt.s32.totalorder %s302, 8
          %s304 = scalar_select %p303, %s302, 8
          %s305 = smul.u32 64, %s304
          %s306 = smul.u32 %s305, 2
          %p307 = scmp.ne.s32.totalorder 0, %s306
          %s308 = smul.addr %s301, 2
          %s309 = smul.addr %s300, 18
          %s310 = sadd.s32 %s308, %s309
          %s311 = scalar_lea.vmem %s0, %s310
          %s312 = smul.u32 %s304, 2
          // Predicated region
          $region33: #{ds_forward.3} parent=31 // pred_check
            %p313 = pneg %p307
          $region34: #{ds_forward.3} parent=31 // pred_check_branch
            %315 = sbr.rel (%p313) target = $region36
          $region35: #{ds_forward.3} parent=31 // pred_region
            %p316 = scmp.lt.u32.totalorder %s312, 8
            %p317 = pneg %p316
            // Predicated region
            $region37: #{ds_forward.3} parent=35 // pred_check
              _
            $region38: #{ds_forward.3} parent=35 // pred_check_branch
              %319 = sbr.rel (%p316) target = $region40
            $region39: #{ds_forward.3} parent=35 // pred_region
              %s341 = sand.u32 %s312, 7
              %p342 = scmp.eq.s32.totalorder %s341, 0
              // Predicated region
              $region52: #{ds_forward.3} parent=39 // pred_check
                %p343 = pneg %p342
              $region53: #{ds_forward.3} parent=39 // pred_check_branch
                %345 = sbr.rel (%p343) target = $region55
              $region54: #{ds_forward.3} parent=39 // pred_region
                %s346 = sshrl.u32 %s312, 3
                %s347 = sshrl.u32 %s346, 4
                // While loop
                $region56: #{ds_forward.3} parent=54 // loop_pre_header
                  _
                $region57: #{ds_forward.3} parent=54 // loop_header
                  %s351 = sphi 0, %s353
                  %p352 = scmp.ge.s32.totalorder %s351, %s347
                  %s356 = sphi 0, %s489
                  %s357 = sphi %s311, %s492
                  %s358 = sphi %s299, %s493
                $region58: #{ds_forward.3} parent=54 // loop_header_branch
                  %355 = sbr.rel (%p352) target = $region62
                $region59: #{ds_forward.3} parent=54 // loop_body
                  %v359 = vld [vmem:[%s357] sm:$0xff]
                  %360 = vst [vmem:[%s358] sm:$0xff] %v359
                  %v361 = vld [vmem:[%s357 + $0x8] sm:$0xff]
                  %362 = vst [vmem:[%s358 + $0x8] sm:$0xff] %v361
                  %v363 = vld [vmem:[%s357 + $0x10] sm:$0xff]
                  %364 = vst [vmem:[%s358 + $0x10] sm:$0xff] %v363
                  %v365 = vld [vmem:[%s357 + $0x18] sm:$0xff]
                  %366 = vst [vmem:[%s358 + $0x18] sm:$0xff] %v365
                  %v367 = vld [vmem:[%s357 + $0x20] sm:$0xff]
                  %368 = vst [vmem:[%s358 + $0x20] sm:$0xff] %v367
                  %v369 = vld [vmem:[%s357 + $0x28] sm:$0xff]
                  %370 = vst [vmem:[%s358 + $0x28] sm:$0xff] %v369
                  %v371 = vld [vmem:[%s357 + $0x30] sm:$0xff]
                  %372 = vst [vmem:[%s358 + $0x30] sm:$0xff] %v371
                  %v373 = vld [vmem:[%s357 + $0x38] sm:$0xff]
                  %374 = vst [vmem:[%s358 + $0x38] sm:$0xff] %v373
                  %v375 = vld [vmem:[%s357 + $0x40] sm:$0xff]
                  %376 = vst [vmem:[%s358 + $0x40] sm:$0xff] %v375
                  %v377 = vld [vmem:[%s357 + $0x48] sm:$0xff]
                  %378 = vst [vmem:[%s358 + $0x48] sm:$0xff] %v377
                  %v379 = vld [vmem:[%s357 + $0x50] sm:$0xff]
                  %380 = vst [vmem:[%s358 + $0x50] sm:$0xff] %v379
                  %v381 = vld [vmem:[%s357 + $0x58] sm:$0xff]
                  %382 = vst [vmem:[%s358 + $0x58] sm:$0xff] %v381
                  %v383 = vld [vmem:[%s357 + $0x60] sm:$0xff]
                  %384 = vst [vmem:[%s358 + $0x60] sm:$0xff] %v383
                  %v385 = vld [vmem:[%s357 + $0x68] sm:$0xff]
                  %386 = vst [vmem:[%s358 + $0x68] sm:$0xff] %v385
                  %v387 = vld [vmem:[%s357 + $0x70] sm:$0xff]
                  %388 = vst [vmem:[%s358 + $0x70] sm:$0xff] %v387
                  %v389 = vld [vmem:[%s357 + $0x78] sm:$0xff]
                  %390 = vst [vmem:[%s358 + $0x78] sm:$0xff] %v389
                  %v391 = vld [vmem:[%s357 + $0x12] sm:$0xff]
                  %392 = vst [vmem:[%s358 + $0x10] sm:$0xff] %v391
                  %v393 = vld [vmem:[%s357 + $0x1a] sm:$0xff]
                  %394 = vst [vmem:[%s358 + $0x18] sm:$0xff] %v393
                  %v395 = vld [vmem:[%s357 + $0x22] sm:$0xff]
                  %396 = vst [vmem:[%s358 + $0x20] sm:$0xff] %v395
                  %v397 = vld [vmem:[%s357 + $0x2a] sm:$0xff]
                  %398 = vst [vmem:[%s358 + $0x28] sm:$0xff] %v397
                  %v399 = vld [vmem:[%s357 + $0x32] sm:$0xff]
                  %400 = vst [vmem:[%s358 + $0x30] sm:$0xff] %v399
                  %v401 = vld [vmem:[%s357 + $0x3a] sm:$0xff]
                  %402 = vst [vmem:[%s358 + $0x38] sm:$0xff] %v401
                  %v403 = vld [vmem:[%s357 + $0x42] sm:$0xff]
                  %404 = vst [vmem:[%s358 + $0x40] sm:$0xff] %v403
                  %v405 = vld [vmem:[%s357 + $0x4a] sm:$0xff]
                  %406 = vst [vmem:[%s358 + $0x48] sm:$0xff] %v405
                  %v407 = vld [vmem:[%s357 + $0x52] sm:$0xff]
                  %408 = vst [vmem:[%s358 + $0x50] sm:$0xff] %v407
                  %v409 = vld [vmem:[%s357 + $0x5a] sm:$0xff]
                  %410 = vst [vmem:[%s358 + $0x58] sm:$0xff] %v409
                  %v411 = vld [vmem:[%s357 + $0x62] sm:$0xff]
                  %412 = vst [vmem:[%s358 + $0x60] sm:$0xff] %v411
                  %v413 = vld [vmem:[%s357 + $0x6a] sm:$0xff]
                  %414 = vst [vmem:[%s358 + $0x68] sm:$0xff] %v413
                  %v415 = vld [vmem:[%s357 + $0x72] sm:$0xff]
                  %416 = vst [vmem:[%s358 + $0x70] sm:$0xff] %v415
                  %v417 = vld [vmem:[%s357 + $0x7a] sm:$0xff]
                  %418 = vst [vmem:[%s358 + $0x78] sm:$0xff] %v417
                  %v419 = vld [vmem:[%s357 + $0x82] sm:$0xff]
                  %420 = vst [vmem:[%s358 + $0x80] sm:$0xff] %v419
                  %v421 = vld [vmem:[%s357 + $0x8a] sm:$0xff]
                  %422 = vst [vmem:[%s358 + $0x88] sm:$0xff] %v421
                  %v423 = vld [vmem:[%s357 + $0x24] sm:$0xff]
                  %424 = vst [vmem:[%s358 + $0x20] sm:$0xff] %v423
                  %v425 = vld [vmem:[%s357 + $0x2c] sm:$0xff]
                  %426 = vst [vmem:[%s358 + $0x28] sm:$0xff] %v425
                  %v427 = vld [vmem:[%s357 + $0x34] sm:$0xff]
                  %428 = vst [vmem:[%s358 + $0x30] sm:$0xff] %v427
                  %v429 = vld [vmem:[%s357 + $0x3c] sm:$0xff]
                  %430 = vst [vmem:[%s358 + $0x38] sm:$0xff] %v429
                  %v431 = vld [vmem:[%s357 + $0x44] sm:$0xff]
                  %432 = vst [vmem:[%s358 + $0x40] sm:$0xff] %v431
                  %v433 = vld [vmem:[%s357 + $0x4c] sm:$0xff]
                  %434 = vst [vmem:[%s358 + $0x48] sm:$0xff] %v433
                  %v435 = vld [vmem:[%s357 + $0x54] sm:$0xff]
                  %436 = vst [vmem:[%s358 + $0x50] sm:$0xff] %v435
                  %v437 = vld [vmem:[%s357 + $0x5c] sm:$0xff]
                  %438 = vst [vmem:[%s358 + $0x58] sm:$0xff] %v437
                  %v439 = vld [vmem:[%s357 + $0x64] sm:$0xff]
                  %440 = vst [vmem:[%s358 + $0x60] sm:$0xff] %v439
                  %v441 = vld [vmem:[%s357 + $0x6c] sm:$0xff]
                  %442 = vst [vmem:[%s358 + $0x68] sm:$0xff] %v441
                  %v443 = vld [vmem:[%s357 + $0x74] sm:$0xff]
                  %444 = vst [vmem:[%s358 + $0x70] sm:$0xff] %v443
                  %v445 = vld [vmem:[%s357 + $0x7c] sm:$0xff]
                  %446 = vst [vmem:[%s358 + $0x78] sm:$0xff] %v445
                  %v447 = vld [vmem:[%s357 + $0x84] sm:$0xff]
                  %448 = vst [vmem:[%s358 + $0x80] sm:$0xff] %v447
                  %v449 = vld [vmem:[%s357 + $0x8c] sm:$0xff]
                  %450 = vst [vmem:[%s358 + $0x88] sm:$0xff] %v449
                  %v451 = vld [vmem:[%s357 + $0x94] sm:$0xff]
                  %452 = vst [vmem:[%s358 + $0x90] sm:$0xff] %v451
                  %v453 = vld [vmem:[%s357 + $0x9c] sm:$0xff]
                  %454 = vst [vmem:[%s358 + $0x98] sm:$0xff] %v453
                  %v455 = vld [vmem:[%s357 + $0x36] sm:$0xff]
                  %456 = vst [vmem:[%s358 + $0x30] sm:$0xff] %v455
                  %v457 = vld [vmem:[%s357 + $0x3e] sm:$0xff]
                  %458 = vst [vmem:[%s358 + $0x38] sm:$0xff] %v457
                  %v459 = vld [vmem:[%s357 + $0x46] sm:$0xff]
                  %460 = vst [vmem:[%s358 + $0x40] sm:$0xff] %v459
                  %v461 = vld [vmem:[%s357 + $0x4e] sm:$0xff]
                  %462 = vst [vmem:[%s358 + $0x48] sm:$0xff] %v461
                  %v463 = vld [vmem:[%s357 + $0x56] sm:$0xff]
                  %464 = vst [vmem:[%s358 + $0x50] sm:$0xff] %v463
                  %v465 = vld [vmem:[%s357 + $0x5e] sm:$0xff]
                  %466 = vst [vmem:[%s358 + $0x58] sm:$0xff] %v465
                  %v467 = vld [vmem:[%s357 + $0x66] sm:$0xff]
                  %468 = vst [vmem:[%s358 + $0x60] sm:$0xff] %v467
                  %v469 = vld [vmem:[%s357 + $0x6e] sm:$0xff]
                  %470 = vst [vmem:[%s358 + $0x68] sm:$0xff] %v469
                  %v471 = vld [vmem:[%s357 + $0x76] sm:$0xff]
                  %472 = vst [vmem:[%s358 + $0x70] sm:$0xff] %v471
                  %v473 = vld [vmem:[%s357 + $0x7e] sm:$0xff]
                  %474 = vst [vmem:[%s358 + $0x78] sm:$0xff] %v473
                  %v475 = vld [vmem:[%s357 + $0x86] sm:$0xff]
                  %476 = vst [vmem:[%s358 + $0x80] sm:$0xff] %v475
                  %v477 = vld [vmem:[%s357 + $0x8e] sm:$0xff]
                  %478 = vst [vmem:[%s358 + $0x88] sm:$0xff] %v477
                  %v479 = vld [vmem:[%s357 + $0x96] sm:$0xff]
                  %480 = vst [vmem:[%s358 + $0x90] sm:$0xff] %v479
                  %v481 = vld [vmem:[%s357 + $0x9e] sm:$0xff]
                  %482 = vst [vmem:[%s358 + $0x98] sm:$0xff] %v481
                  %v483 = vld [vmem:[%s357 + $0xa6] sm:$0xff]
                  %484 = vst [vmem:[%s358 + $0xa0] sm:$0xff] %v483
                  %v485 = vld [vmem:[%s357 + $0xae] sm:$0xff]
                  %486 = vst [vmem:[%s358 + $0xa8] sm:$0xff] %v485
                  %s487 = sadd.s32 1, %s356
                  %p488 = scmp.ge.s32.totalorder %s487, %s347
                  %s489 = scalar_select %p488, 0, %s487
                  %s490 = smul.u32 %s489, 128
                  %s491 = smul.u32 %s489, 128
                  %s492 = scalar_lea.vmem %s311, %s490
                  %s493 = scalar_lea.vmem %s299, %s491 [#allocation2]
                $region60: #{ds_forward.3} parent=54 // loop_footer
                  %s353 = sadd.s32 %s351, 1
                $region61: #{ds_forward.3} parent=54 // loop_footer_branch
                  %350 = sbr.rel target = $region57
                $region62: #{ds_forward.3} parent=54 // loop_exit
                  _
                %s494 = sshrl.u32 %s346, 4
                %s495 = sand.u32 %s346, 15
                %s496 = smul.u32 %s494, 16
                %s497 = smul.u32 128, %s496
                %s498 = sshra.s32 %s497, 4
                %s499 = scalar_lea.vmem %s311, %s498
                %s500 = smul.u32 128, %s496
                %s501 = sshra.s32 %s500, 4
                %s502 = scalar_lea.vmem %s299, %s501 [#allocation2]
                // While loop
                $region63: #{ds_forward.3} parent=54 // loop_pre_header
                  _
                $region64: #{ds_forward.3} parent=54 // loop_header
                  %s506 = sphi 0, %s508
                  %p507 = scmp.ge.s32.totalorder %s506, %s495
                  %s511 = sphi 0, %s524
                  %s512 = sphi %s499, %s527
                  %s513 = sphi %s502, %s528
                $region65: #{ds_forward.3} parent=54 // loop_header_branch
                  %510 = sbr.rel (%p507) target = $region69
                $region66: #{ds_forward.3} parent=54 // loop_body
                  %v514 = vld [vmem:[%s512] sm:$0xff]
                  %515 = vst [vmem:[%s513] sm:$0xff] %v514
                  %v516 = vld [vmem:[%s512 + $0x12] sm:$0xff]
                  %517 = vst [vmem:[%s513 + $0x10] sm:$0xff] %v516
                  %v518 = vld [vmem:[%s512 + $0x24] sm:$0xff]
                  %519 = vst [vmem:[%s513 + $0x20] sm:$0xff] %v518
                  %v520 = vld [vmem:[%s512 + $0x36] sm:$0xff]
                  %521 = vst [vmem:[%s513 + $0x30] sm:$0xff] %v520
                  %s522 = sadd.s32 1, %s511
                  %p523 = scmp.ge.s32.totalorder %s522, %s495
                  %s524 = scalar_select %p523, 0, %s522
                  %s525 = smul.u32 %s524, 8
                  %s526 = smul.u32 %s524, 8
                  %s527 = scalar_lea.vmem %s499, %s525
                  %s528 = scalar_lea.vmem %s502, %s526 [#allocation2]
                $region67: #{ds_forward.3} parent=54 // loop_footer
                  %s508 = sadd.s32 %s506, 1
                $region68: #{ds_forward.3} parent=54 // loop_footer_branch
                  %505 = sbr.rel target = $region64
                $region69: #{ds_forward.3} parent=54 // loop_exit
                  _
              $region55: #{ds_forward.3} parent=39 // pred_fallthru
                _
              %p529 = pneg %p342
              // Predicated region
              $region70: #{ds_forward.3} parent=39 // pred_check
                _
              $region71: #{ds_forward.3} parent=39 // pred_check_branch
                %531 = sbr.rel (%p342) target = $region73
              $region72: #{ds_forward.3} parent=39 // pred_region
                %s532 = sand.u32 %s312, 7
                %s533 = ssub.s32 %s312, %s532
                %s534 = scalar_lea.vmem %s311, %s533
                %s535 = ssub.s32 %s312, %s532
                %s536 = scalar_lea.vmem %s299, %s535 [#allocation2]
                %s537 = sshrl.u32 %s312, 3
                %s538 = sshrl.u32 %s537, 4
                // While loop
                $region74: #{ds_forward.3} parent=72 // loop_pre_header
                  _
                $region75: #{ds_forward.3} parent=72 // loop_header
                  %s542 = sphi 0, %s544
                  %p543 = scmp.ge.s32.totalorder %s542, %s538
                  %s547 = sphi 0, %s680
                  %s548 = sphi %s311, %s683
                  %s549 = sphi %s299, %s684
                $region76: #{ds_forward.3} parent=72 // loop_header_branch
                  %546 = sbr.rel (%p543) target = $region80
                $region77: #{ds_forward.3} parent=72 // loop_body
                  %v550 = vld [vmem:[%s548] sm:$0xff]
                  %551 = vst [vmem:[%s549] sm:$0xff] %v550
                  %v552 = vld [vmem:[%s548 + $0x8] sm:$0xff]
                  %553 = vst [vmem:[%s549 + $0x8] sm:$0xff] %v552
                  %v554 = vld [vmem:[%s548 + $0x10] sm:$0xff]
                  %555 = vst [vmem:[%s549 + $0x10] sm:$0xff] %v554
                  %v556 = vld [vmem:[%s548 + $0x18] sm:$0xff]
                  %557 = vst [vmem:[%s549 + $0x18] sm:$0xff] %v556
                  %v558 = vld [vmem:[%s548 + $0x20] sm:$0xff]
                  %559 = vst [vmem:[%s549 + $0x20] sm:$0xff] %v558
                  %v560 = vld [vmem:[%s548 + $0x28] sm:$0xff]
                  %561 = vst [vmem:[%s549 + $0x28] sm:$0xff] %v560
                  %v562 = vld [vmem:[%s548 + $0x30] sm:$0xff]
                  %563 = vst [vmem:[%s549 + $0x30] sm:$0xff] %v562
                  %v564 = vld [vmem:[%s548 + $0x38] sm:$0xff]
                  %565 = vst [vmem:[%s549 + $0x38] sm:$0xff] %v564
                  %v566 = vld [vmem:[%s548 + $0x40] sm:$0xff]
                  %567 = vst [vmem:[%s549 + $0x40] sm:$0xff] %v566
                  %v568 = vld [vmem:[%s548 + $0x48] sm:$0xff]
                  %569 = vst [vmem:[%s549 + $0x48] sm:$0xff] %v568
                  %v570 = vld [vmem:[%s548 + $0x50] sm:$0xff]
                  %571 = vst [vmem:[%s549 + $0x50] sm:$0xff] %v570
                  %v572 = vld [vmem:[%s548 + $0x58] sm:$0xff]
                  %573 = vst [vmem:[%s549 + $0x58] sm:$0xff] %v572
                  %v574 = vld [vmem:[%s548 + $0x60] sm:$0xff]
                  %575 = vst [vmem:[%s549 + $0x60] sm:$0xff] %v574
                  %v576 = vld [vmem:[%s548 + $0x68] sm:$0xff]
                  %577 = vst [vmem:[%s549 + $0x68] sm:$0xff] %v576
                  %v578 = vld [vmem:[%s548 + $0x70] sm:$0xff]
                  %579 = vst [vmem:[%s549 + $0x70] sm:$0xff] %v578
                  %v580 = vld [vmem:[%s548 + $0x78] sm:$0xff]
                  %581 = vst [vmem:[%s549 + $0x78] sm:$0xff] %v580
                  %v582 = vld [vmem:[%s548 + $0x12] sm:$0xff]
                  %583 = vst [vmem:[%s549 + $0x10] sm:$0xff] %v582
                  %v584 = vld [vmem:[%s548 + $0x1a] sm:$0xff]
                  %585 = vst [vmem:[%s549 + $0x18] sm:$0xff] %v584
                  %v586 = vld [vmem:[%s548 + $0x22] sm:$0xff]
                  %587 = vst [vmem:[%s549 + $0x20] sm:$0xff] %v586
                  %v588 = vld [vmem:[%s548 + $0x2a] sm:$0xff]
                  %589 = vst [vmem:[%s549 + $0x28] sm:$0xff] %v588
                  %v590 = vld [vmem:[%s548 + $0x32] sm:$0xff]
                  %591 = vst [vmem:[%s549 + $0x30] sm:$0xff] %v590
                  %v592 = vld [vmem:[%s548 + $0x3a] sm:$0xff]
                  %593 = vst [vmem:[%s549 + $0x38] sm:$0xff] %v592
                  %v594 = vld [vmem:[%s548 + $0x42] sm:$0xff]
                  %595 = vst [vmem:[%s549 + $0x40] sm:$0xff] %v594
                  %v596 = vld [vmem:[%s548 + $0x4a] sm:$0xff]
                  %597 = vst [vmem:[%s549 + $0x48] sm:$0xff] %v596
                  %v598 = vld [vmem:[%s548 + $0x52] sm:$0xff]
                  %599 = vst [vmem:[%s549 + $0x50] sm:$0xff] %v598
                  %v600 = vld [vmem:[%s548 + $0x5a] sm:$0xff]
                  %601 = vst [vmem:[%s549 + $0x58] sm:$0xff] %v600
                  %v602 = vld [vmem:[%s548 + $0x62] sm:$0xff]
                  %603 = vst [vmem:[%s549 + $0x60] sm:$0xff] %v602
                  %v604 = vld [vmem:[%s548 + $0x6a] sm:$0xff]
                  %605 = vst [vmem:[%s549 + $0x68] sm:$0xff] %v604
                  %v606 = vld [vmem:[%s548 + $0x72] sm:$0xff]
                  %607 = vst [vmem:[%s549 + $0x70] sm:$0xff] %v606
                  %v608 = vld [vmem:[%s548 + $0x7a] sm:$0xff]
                  %609 = vst [vmem:[%s549 + $0x78] sm:$0xff] %v608
                  %v610 = vld [vmem:[%s548 + $0x82] sm:$0xff]
                  %611 = vst [vmem:[%s549 + $0x80] sm:$0xff] %v610
                  %v612 = vld [vmem:[%s548 + $0x8a] sm:$0xff]
                  %613 = vst [vmem:[%s549 + $0x88] sm:$0xff] %v612
                  %v614 = vld [vmem:[%s548 + $0x24] sm:$0xff]
                  %615 = vst [vmem:[%s549 + $0x20] sm:$0xff] %v614
                  %v616 = vld [vmem:[%s548 + $0x2c] sm:$0xff]
                  %617 = vst [vmem:[%s549 + $0x28] sm:$0xff] %v616
                  %v618 = vld [vmem:[%s548 + $0x34] sm:$0xff]
                  %619 = vst [vmem:[%s549 + $0x30] sm:$0xff] %v618
                  %v620 = vld [vmem:[%s548 + $0x3c] sm:$0xff]
                  %621 = vst [vmem:[%s549 + $0x38] sm:$0xff] %v620
                  %v622 = vld [vmem:[%s548 + $0x44] sm:$0xff]
                  %623 = vst [vmem:[%s549 + $0x40] sm:$0xff] %v622
                  %v624 = vld [vmem:[%s548 + $0x4c] sm:$0xff]
                  %625 = vst [vmem:[%s549 + $0x48] sm:$0xff] %v624
                  %v626 = vld [vmem:[%s548 + $0x54] sm:$0xff]
                  %627 = vst [vmem:[%s549 + $0x50] sm:$0xff] %v626
                  %v628 = vld [vmem:[%s548 + $0x5c] sm:$0xff]
                  %629 = vst [vmem:[%s549 + $0x58] sm:$0xff] %v628
                  %v630 = vld [vmem:[%s548 + $0x64] sm:$0xff]
                  %631 = vst [vmem:[%s549 + $0x60] sm:$0xff] %v630
                  %v632 = vld [vmem:[%s548 + $0x6c] sm:$0xff]
                  %633 = vst [vmem:[%s549 + $0x68] sm:$0xff] %v632
                  %v634 = vld [vmem:[%s548 + $0x74] sm:$0xff]
                  %635 = vst [vmem:[%s549 + $0x70] sm:$0xff] %v634
                  %v636 = vld [vmem:[%s548 + $0x7c] sm:$0xff]
                  %637 = vst [vmem:[%s549 + $0x78] sm:$0xff] %v636
                  %v638 = vld [vmem:[%s548 + $0x84] sm:$0xff]
                  %639 = vst [vmem:[%s549 + $0x80] sm:$0xff] %v638
                  %v640 = vld [vmem:[%s548 + $0x8c] sm:$0xff]
                  %641 = vst [vmem:[%s549 + $0x88] sm:$0xff] %v640
                  %v642 = vld [vmem:[%s548 + $0x94] sm:$0xff]
                  %643 = vst [vmem:[%s549 + $0x90] sm:$0xff] %v642
                  %v644 = vld [vmem:[%s548 + $0x9c] sm:$0xff]
                  %645 = vst [vmem:[%s549 + $0x98] sm:$0xff] %v644
                  %v646 = vld [vmem:[%s548 + $0x36] sm:$0xff]
                  %647 = vst [vmem:[%s549 + $0x30] sm:$0xff] %v646
                  %v648 = vld [vmem:[%s548 + $0x3e] sm:$0xff]
                  %649 = vst [vmem:[%s549 + $0x38] sm:$0xff] %v648
                  %v650 = vld [vmem:[%s548 + $0x46] sm:$0xff]
                  %651 = vst [vmem:[%s549 + $0x40] sm:$0xff] %v650
                  %v652 = vld [vmem:[%s548 + $0x4e] sm:$0xff]
                  %653 = vst [vmem:[%s549 + $0x48] sm:$0xff] %v652
                  %v654 = vld [vmem:[%s548 + $0x56] sm:$0xff]
                  %655 = vst [vmem:[%s549 + $0x50] sm:$0xff] %v654
                  %v656 = vld [vmem:[%s548 + $0x5e] sm:$0xff]
                  %657 = vst [vmem:[%s549 + $0x58] sm:$0xff] %v656
                  %v658 = vld [vmem:[%s548 + $0x66] sm:$0xff]
                  %659 = vst [vmem:[%s549 + $0x60] sm:$0xff] %v658
                  %v660 = vld [vmem:[%s548 + $0x6e] sm:$0xff]
                  %661 = vst [vmem:[%s549 + $0x68] sm:$0xff] %v660
                  %v662 = vld [vmem:[%s548 + $0x76] sm:$0xff]
                  %663 = vst [vmem:[%s549 + $0x70] sm:$0xff] %v662
                  %v664 = vld [vmem:[%s548 + $0x7e] sm:$0xff]
                  %665 = vst [vmem:[%s549 + $0x78] sm:$0xff] %v664
                  %v666 = vld [vmem:[%s548 + $0x86] sm:$0xff]
                  %667 = vst [vmem:[%s549 + $0x80] sm:$0xff] %v666
                  %v668 = vld [vmem:[%s548 + $0x8e] sm:$0xff]
                  %669 = vst [vmem:[%s549 + $0x88] sm:$0xff] %v668
                  %v670 = vld [vmem:[%s548 + $0x96] sm:$0xff]
                  %671 = vst [vmem:[%s549 + $0x90] sm:$0xff] %v670
                  %v672 = vld [vmem:[%s548 + $0x9e] sm:$0xff]
                  %673 = vst [vmem:[%s549 + $0x98] sm:$0xff] %v672
                  %v674 = vld [vmem:[%s548 + $0xa6] sm:$0xff]
                  %675 = vst [vmem:[%s549 + $0xa0] sm:$0xff] %v674
                  %v676 = vld [vmem:[%s548 + $0xae] sm:$0xff]
                  %677 = vst [vmem:[%s549 + $0xa8] sm:$0xff] %v676
                  %s678 = sadd.s32 1, %s547
                  %p679 = scmp.ge.s32.totalorder %s678, %s538
                  %s680 = scalar_select %p679, 0, %s678
                  %s681 = smul.u32 %s680, 128
                  %s682 = smul.u32 %s680, 128
                  %s683 = scalar_lea.vmem %s311, %s681
                  %s684 = scalar_lea.vmem %s299, %s682 [#allocation2]
                $region78: #{ds_forward.3} parent=72 // loop_footer
                  %s544 = sadd.s32 %s542, 1
                $region79: #{ds_forward.3} parent=72 // loop_footer_branch
                  %541 = sbr.rel target = $region75
                $region80: #{ds_forward.3} parent=72 // loop_exit
                  _
                %s685 = sshrl.u32 %s537, 4
                %s686 = sand.u32 %s537, 15
                %s687 = smul.u32 %s685, 16
                %s688 = smul.u32 128, %s687
                %s689 = sshra.s32 %s688, 4
                %s690 = scalar_lea.vmem %s311, %s689
                %s691 = smul.u32 128, %s687
                %s692 = sshra.s32 %s691, 4
                %s693 = scalar_lea.vmem %s299, %s692 [#allocation2]
                // While loop
                $region81: #{ds_forward.3} parent=72 // loop_pre_header
                  _
                $region82: #{ds_forward.3} parent=72 // loop_header
                  %s697 = sphi 0, %s699
                  %p698 = scmp.ge.s32.totalorder %s697, %s686
                  %s702 = sphi 0, %s715
                  %s703 = sphi %s690, %s718
                  %s704 = sphi %s693, %s719
                $region83: #{ds_forward.3} parent=72 // loop_header_branch
                  %701 = sbr.rel (%p698) target = $region87
                $region84: #{ds_forward.3} parent=72 // loop_body
                  %v705 = vld [vmem:[%s703] sm:$0xff]
                  %706 = vst [vmem:[%s704] sm:$0xff] %v705
                  %v707 = vld [vmem:[%s703 + $0x12] sm:$0xff]
                  %708 = vst [vmem:[%s704 + $0x10] sm:$0xff] %v707
                  %v709 = vld [vmem:[%s703 + $0x24] sm:$0xff]
                  %710 = vst [vmem:[%s704 + $0x20] sm:$0xff] %v709
                  %v711 = vld [vmem:[%s703 + $0x36] sm:$0xff]
                  %712 = vst [vmem:[%s704 + $0x30] sm:$0xff] %v711
                  %s713 = sadd.s32 1, %s702
                  %p714 = scmp.ge.s32.totalorder %s713, %s686
                  %s715 = scalar_select %p714, 0, %s713
                  %s716 = smul.u32 %s715, 8
                  %s717 = smul.u32 %s715, 8
                  %s718 = scalar_lea.vmem %s690, %s716
                  %s719 = scalar_lea.vmem %s693, %s717 [#allocation2]
                $region85: #{ds_forward.3} parent=72 // loop_footer
                  %s699 = sadd.s32 %s697, 1
                $region86: #{ds_forward.3} parent=72 // loop_footer_branch
                  %696 = sbr.rel target = $region82
                $region87: #{ds_forward.3} parent=72 // loop_exit
                  _
                %s720 = sshll.u32 1, %s532
                %s721 = ssub.s32 %s720, 1
                loop: start=0, step=1, limit=1
                $region88: #{ds_forward.3} parent=72 // loop_pre_header
                  _
                $region89: #{ds_forward.3} parent=72 // loop_header
                  %s723 = sphi 0, %s727
                  %p724 = scmp.ge.s32.totalorder %s723, 1
                  %s728 = sphi %s534, %s534
                  %s729 = sphi %s536, %s536
                $region90: #{ds_forward.3} parent=72 // loop_header_branch
                  %726 = sbr.rel (%p724) target = $region94
                $region91: #{ds_forward.3} parent=72 // loop_body
                  %v730 = vld [vmem:[%s728] sm:%s721]
                  %731 = vst [vmem:[%s729] sm:%s721] %v730
                  %v732 = vld [vmem:[%s728 + $0x12] sm:%s721]
                  %733 = vst [vmem:[%s729 + $0x10] sm:%s721] %v732
                  %v734 = vld [vmem:[%s728 + $0x24] sm:%s721]
                  %735 = vst [vmem:[%s729 + $0x20] sm:%s721] %v734
                  %v736 = vld [vmem:[%s728 + $0x36] sm:%s721]
                  %737 = vst [vmem:[%s729 + $0x30] sm:%s721] %v736
                $region92: #{ds_forward.3} parent=72 // loop_footer
                  %s727 = sadd.s32 1, %s723
                $region93: #{ds_forward.3} parent=72 // loop_footer_branch
                  %722 = sbr.rel target = $region89
                $region94: #{ds_forward.3} parent=72 // loop_exit
                  _
              $region73: #{ds_forward.3} parent=39 // pred_fallthru
                _
            $region40: #{ds_forward.3} parent=35 // pred_fallthru
              _
            // Predicated region
            $region41: #{ds_forward.3} parent=35 // pred_check
              %p320 = pneg %p316
            $region42: #{ds_forward.3} parent=35 // pred_check_branch
              %322 = sbr.rel (%p320) target = $region44
            $region43: #{ds_forward.3} parent=35 // pred_region
              %s323 = sshll.u32 1, %s312
              %s324 = ssub.s32 %s323, 1
              loop: start=0, step=1, limit=1
              $region45: #{ds_forward.3} parent=43 // loop_pre_header
                _
              $region46: #{ds_forward.3} parent=43 // loop_header
                %s326 = sphi 0, %s330
                %p327 = scmp.ge.s32.totalorder %s326, 1
                %s331 = sphi %s311, %s311
                %s332 = sphi %s299, %s299
              $region47: #{ds_forward.3} parent=43 // loop_header_branch
                %329 = sbr.rel (%p327) target = $region51
              $region48: #{ds_forward.3} parent=43 // loop_body
                %v333 = vld [vmem:[%s331] sm:%s324]
                %334 = vst [vmem:[%s332] sm:%s324] %v333
                %v335 = vld [vmem:[%s331 + $0x12] sm:%s324]
                %336 = vst [vmem:[%s332 + $0x10] sm:%s324] %v335
                %v337 = vld [vmem:[%s331 + $0x24] sm:%s324]
                %338 = vst [vmem:[%s332 + $0x20] sm:%s324] %v337
                %v339 = vld [vmem:[%s331 + $0x36] sm:%s324]
                %340 = vst [vmem:[%s332 + $0x30] sm:%s324] %v339
              $region49: #{ds_forward.3} parent=43 // loop_footer
                %s330 = sadd.s32 1, %s326
              $region50: #{ds_forward.3} parent=43 // loop_footer_branch
                %325 = sbr.rel target = $region46
              $region51: #{ds_forward.3} parent=43 // loop_exit
                _
            $region44: #{ds_forward.3} parent=35 // pred_fallthru
              _
          $region36: #{ds_forward.3} parent=31 // pred_fallthru
            _
          %738 = vnop
        $region32: #{ds_forward.3} parent=27 // pred_fallthru
          _
        // Predicated region
        $region95: #{ds_forward.3} parent=27 // pred_check
          %p739 = pneg %p80
        $region96: #{ds_forward.3} parent=27 // pred_check_branch
          %741 = sbr.rel (%p739) target = $region98
        $region97: #{ds_forward.3} parent=27 // pred_region
          %s742 = sand.u32 %s70, 1
          %s743 = sand.u32 %s70, 1
          %s744 = smul.addr %s743, 64
          %s745 = scalar_lea.vmem [#allocation3], %s744
          %s746 = smul.u32 4, %s25
          %s747 = smul.u32 8, %s26
          %s748 = ssub.s32 9, %s747
          %p749 = scmp.lt.s32.totalorder %s748, 8
          %s750 = scalar_select %p749, %s748, 8
          %s751 = smul.u32 64, %s750
          %s752 = smul.u32 %s751, 2
          %p753 = scmp.ne.s32.totalorder 0, %s752
          %s754 = smul.addr %s747, 2
          %s755 = smul.addr %s746, 18
          %s756 = sadd.s32 %s754, %s755
          %s757 = scalar_lea.vmem %s1, %s756
          %s758 = smul.u32 %s750, 2
          // Predicated region
          $region99: #{ds_forward.3} parent=97 // pred_check
            %p759 = pneg %p753
          $region100: #{ds_forward.3} parent=97 // pred_check_branch
            %761 = sbr.rel (%p759) target = $region102
          $region101: #{ds_forward.3} parent=97 // pred_region
            %p762 = scmp.lt.u32.totalorder %s758, 8
            %p763 = pneg %p762
            // Predicated region
            $region103: #{ds_forward.3} parent=101 // pred_check
              _
            $region104: #{ds_forward.3} parent=101 // pred_check_branch
              %765 = sbr.rel (%p762) target = $region106
            $region105: #{ds_forward.3} parent=101 // pred_region
              %s787 = sand.u32 %s758, 7
              %p788 = scmp.eq.s32.totalorder %s787, 0
              // Predicated region
              $region118: #{ds_forward.3} parent=105 // pred_check
                %p789 = pneg %p788
              $region119: #{ds_forward.3} parent=105 // pred_check_branch
                %791 = sbr.rel (%p789) target = $region121
              $region120: #{ds_forward.3} parent=105 // pred_region
                %s792 = sshrl.u32 %s758, 3
                %s793 = sshrl.u32 %s792, 4
                // While loop
                $region122: #{ds_forward.3} parent=120 // loop_pre_header
                  _
                $region123: #{ds_forward.3} parent=120 // loop_header
                  %s797 = sphi 0, %s799
                  %p798 = scmp.ge.s32.totalorder %s797, %s793
                  %s802 = sphi 0, %s935
                  %s803 = sphi %s757, %s938
                  %s804 = sphi %s745, %s939
                $region124: #{ds_forward.3} parent=120 // loop_header_branch
                  %801 = sbr.rel (%p798) target = $region128
                $region125: #{ds_forward.3} parent=120 // loop_body
                  %v805 = vld [vmem:[%s803] sm:$0xff]
                  %806 = vst [vmem:[%s804] sm:$0xff] %v805
                  %v807 = vld [vmem:[%s803 + $0x8] sm:$0xff]
                  %808 = vst [vmem:[%s804 + $0x8] sm:$0xff] %v807
                  %v809 = vld [vmem:[%s803 + $0x10] sm:$0xff]
                  %810 = vst [vmem:[%s804 + $0x10] sm:$0xff] %v809
                  %v811 = vld [vmem:[%s803 + $0x18] sm:$0xff]
                  %812 = vst [vmem:[%s804 + $0x18] sm:$0xff] %v811
                  %v813 = vld [vmem:[%s803 + $0x20] sm:$0xff]
                  %814 = vst [vmem:[%s804 + $0x20] sm:$0xff] %v813
                  %v815 = vld [vmem:[%s803 + $0x28] sm:$0xff]
                  %816 = vst [vmem:[%s804 + $0x28] sm:$0xff] %v815
                  %v817 = vld [vmem:[%s803 + $0x30] sm:$0xff]
                  %818 = vst [vmem:[%s804 + $0x30] sm:$0xff] %v817
                  %v819 = vld [vmem:[%s803 + $0x38] sm:$0xff]
                  %820 = vst [vmem:[%s804 + $0x38] sm:$0xff] %v819
                  %v821 = vld [vmem:[%s803 + $0x40] sm:$0xff]
                  %822 = vst [vmem:[%s804 + $0x40] sm:$0xff] %v821
                  %v823 = vld [vmem:[%s803 + $0x48] sm:$0xff]
                  %824 = vst [vmem:[%s804 + $0x48] sm:$0xff] %v823
                  %v825 = vld [vmem:[%s803 + $0x50] sm:$0xff]
                  %826 = vst [vmem:[%s804 + $0x50] sm:$0xff] %v825
                  %v827 = vld [vmem:[%s803 + $0x58] sm:$0xff]
                  %828 = vst [vmem:[%s804 + $0x58] sm:$0xff] %v827
                  %v829 = vld [vmem:[%s803 + $0x60] sm:$0xff]
                  %830 = vst [vmem:[%s804 + $0x60] sm:$0xff] %v829
                  %v831 = vld [vmem:[%s803 + $0x68] sm:$0xff]
                  %832 = vst [vmem:[%s804 + $0x68] sm:$0xff] %v831
                  %v833 = vld [vmem:[%s803 + $0x70] sm:$0xff]
                  %834 = vst [vmem:[%s804 + $0x70] sm:$0xff] %v833
                  %v835 = vld [vmem:[%s803 + $0x78] sm:$0xff]
                  %836 = vst [vmem:[%s804 + $0x78] sm:$0xff] %v835
                  %v837 = vld [vmem:[%s803 + $0x12] sm:$0xff]
                  %838 = vst [vmem:[%s804 + $0x10] sm:$0xff] %v837
                  %v839 = vld [vmem:[%s803 + $0x1a] sm:$0xff]
                  %840 = vst [vmem:[%s804 + $0x18] sm:$0xff] %v839
                  %v841 = vld [vmem:[%s803 + $0x22] sm:$0xff]
                  %842 = vst [vmem:[%s804 + $0x20] sm:$0xff] %v841
                  %v843 = vld [vmem:[%s803 + $0x2a] sm:$0xff]
                  %844 = vst [vmem:[%s804 + $0x28] sm:$0xff] %v843
                  %v845 = vld [vmem:[%s803 + $0x32] sm:$0xff]
                  %846 = vst [vmem:[%s804 + $0x30] sm:$0xff] %v845
                  %v847 = vld [vmem:[%s803 + $0x3a] sm:$0xff]
                  %848 = vst [vmem:[%s804 + $0x38] sm:$0xff] %v847
                  %v849 = vld [vmem:[%s803 + $0x42] sm:$0xff]
                  %850 = vst [vmem:[%s804 + $0x40] sm:$0xff] %v849
                  %v851 = vld [vmem:[%s803 + $0x4a] sm:$0xff]
                  %852 = vst [vmem:[%s804 + $0x48] sm:$0xff] %v851
                  %v853 = vld [vmem:[%s803 + $0x52] sm:$0xff]
                  %854 = vst [vmem:[%s804 + $0x50] sm:$0xff] %v853
                  %v855 = vld [vmem:[%s803 + $0x5a] sm:$0xff]
                  %856 = vst [vmem:[%s804 + $0x58] sm:$0xff] %v855
                  %v857 = vld [vmem:[%s803 + $0x62] sm:$0xff]
                  %858 = vst [vmem:[%s804 + $0x60] sm:$0xff] %v857
                  %v859 = vld [vmem:[%s803 + $0x6a] sm:$0xff]
                  %860 = vst [vmem:[%s804 + $0x68] sm:$0xff] %v859
                  %v861 = vld [vmem:[%s803 + $0x72] sm:$0xff]
                  %862 = vst [vmem:[%s804 + $0x70] sm:$0xff] %v861
                  %v863 = vld [vmem:[%s803 + $0x7a] sm:$0xff]
                  %864 = vst [vmem:[%s804 + $0x78] sm:$0xff] %v863
                  %v865 = vld [vmem:[%s803 + $0x82] sm:$0xff]
                  %866 = vst [vmem:[%s804 + $0x80] sm:$0xff] %v865
                  %v867 = vld [vmem:[%s803 + $0x8a] sm:$0xff]
                  %868 = vst [vmem:[%s804 + $0x88] sm:$0xff] %v867
                  %v869 = vld [vmem:[%s803 + $0x24] sm:$0xff]
                  %870 = vst [vmem:[%s804 + $0x20] sm:$0xff] %v869
                  %v871 = vld [vmem:[%s803 + $0x2c] sm:$0xff]
                  %872 = vst [vmem:[%s804 + $0x28] sm:$0xff] %v871
                  %v873 = vld [vmem:[%s803 + $0x34] sm:$0xff]
                  %874 = vst [vmem:[%s804 + $0x30] sm:$0xff] %v873
                  %v875 = vld [vmem:[%s803 + $0x3c] sm:$0xff]
                  %876 = vst [vmem:[%s804 + $0x38] sm:$0xff] %v875
                  %v877 = vld [vmem:[%s803 + $0x44] sm:$0xff]
                  %878 = vst [vmem:[%s804 + $0x40] sm:$0xff] %v877
                  %v879 = vld [vmem:[%s803 + $0x4c] sm:$0xff]
                  %880 = vst [vmem:[%s804 + $0x48] sm:$0xff] %v879
                  %v881 = vld [vmem:[%s803 + $0x54] sm:$0xff]
                  %882 = vst [vmem:[%s804 + $0x50] sm:$0xff] %v881
                  %v883 = vld [vmem:[%s803 + $0x5c] sm:$0xff]
                  %884 = vst [vmem:[%s804 + $0x58] sm:$0xff] %v883
                  %v885 = vld [vmem:[%s803 + $0x64] sm:$0xff]
                  %886 = vst [vmem:[%s804 + $0x60] sm:$0xff] %v885
                  %v887 = vld [vmem:[%s803 + $0x6c] sm:$0xff]
                  %888 = vst [vmem:[%s804 + $0x68] sm:$0xff] %v887
                  %v889 = vld [vmem:[%s803 + $0x74] sm:$0xff]
                  %890 = vst [vmem:[%s804 + $0x70] sm:$0xff] %v889
                  %v891 = vld [vmem:[%s803 + $0x7c] sm:$0xff]
                  %892 = vst [vmem:[%s804 + $0x78] sm:$0xff] %v891
                  %v893 = vld [vmem:[%s803 + $0x84] sm:$0xff]
                  %894 = vst [vmem:[%s804 + $0x80] sm:$0xff] %v893
                  %v895 = vld [vmem:[%s803 + $0x8c] sm:$0xff]
                  %896 = vst [vmem:[%s804 + $0x88] sm:$0xff] %v895
                  %v897 = vld [vmem:[%s803 + $0x94] sm:$0xff]
                  %898 = vst [vmem:[%s804 + $0x90] sm:$0xff] %v897
                  %v899 = vld [vmem:[%s803 + $0x9c] sm:$0xff]
                  %900 = vst [vmem:[%s804 + $0x98] sm:$0xff] %v899
                  %v901 = vld [vmem:[%s803 + $0x36] sm:$0xff]
                  %902 = vst [vmem:[%s804 + $0x30] sm:$0xff] %v901
                  %v903 = vld [vmem:[%s803 + $0x3e] sm:$0xff]
                  %904 = vst [vmem:[%s804 + $0x38] sm:$0xff] %v903
                  %v905 = vld [vmem:[%s803 + $0x46] sm:$0xff]
                  %906 = vst [vmem:[%s804 + $0x40] sm:$0xff] %v905
                  %v907 = vld [vmem:[%s803 + $0x4e] sm:$0xff]
                  %908 = vst [vmem:[%s804 + $0x48] sm:$0xff] %v907
                  %v909 = vld [vmem:[%s803 + $0x56] sm:$0xff]
                  %910 = vst [vmem:[%s804 + $0x50] sm:$0xff] %v909
                  %v911 = vld [vmem:[%s803 + $0x5e] sm:$0xff]
                  %912 = vst [vmem:[%s804 + $0x58] sm:$0xff] %v911
                  %v913 = vld [vmem:[%s803 + $0x66] sm:$0xff]
                  %914 = vst [vmem:[%s804 + $0x60] sm:$0xff] %v913
                  %v915 = vld [vmem:[%s803 + $0x6e] sm:$0xff]
                  %916 = vst [vmem:[%s804 + $0x68] sm:$0xff] %v915
                  %v917 = vld [vmem:[%s803 + $0x76] sm:$0xff]
                  %918 = vst [vmem:[%s804 + $0x70] sm:$0xff] %v917
                  %v919 = vld [vmem:[%s803 + $0x7e] sm:$0xff]
                  %920 = vst [vmem:[%s804 + $0x78] sm:$0xff] %v919
                  %v921 = vld [vmem:[%s803 + $0x86] sm:$0xff]
                  %922 = vst [vmem:[%s804 + $0x80] sm:$0xff] %v921
                  %v923 = vld [vmem:[%s803 + $0x8e] sm:$0xff]
                  %924 = vst [vmem:[%s804 + $0x88] sm:$0xff] %v923
                  %v925 = vld [vmem:[%s803 + $0x96] sm:$0xff]
                  %926 = vst [vmem:[%s804 + $0x90] sm:$0xff] %v925
                  %v927 = vld [vmem:[%s803 + $0x9e] sm:$0xff]
                  %928 = vst [vmem:[%s804 + $0x98] sm:$0xff] %v927
                  %v929 = vld [vmem:[%s803 + $0xa6] sm:$0xff]
                  %930 = vst [vmem:[%s804 + $0xa0] sm:$0xff] %v929
                  %v931 = vld [vmem:[%s803 + $0xae] sm:$0xff]
                  %932 = vst [vmem:[%s804 + $0xa8] sm:$0xff] %v931
                  %s933 = sadd.s32 1, %s802
                  %p934 = scmp.ge.s32.totalorder %s933, %s793
                  %s935 = scalar_select %p934, 0, %s933
                  %s936 = smul.u32 %s935, 128
                  %s937 = smul.u32 %s935, 128
                  %s938 = scalar_lea.vmem %s757, %s936
                  %s939 = scalar_lea.vmem %s745, %s937 [#allocation3]
                $region126: #{ds_forward.3} parent=120 // loop_footer
                  %s799 = sadd.s32 %s797, 1
                $region127: #{ds_forward.3} parent=120 // loop_footer_branch
                  %796 = sbr.rel target = $region123
                $region128: #{ds_forward.3} parent=120 // loop_exit
                  _
                %s940 = sshrl.u32 %s792, 4
                %s941 = sand.u32 %s792, 15
                %s942 = smul.u32 %s940, 16
                %s943 = smul.u32 128, %s942
                %s944 = sshra.s32 %s943, 4
                %s945 = scalar_lea.vmem %s757, %s944
                %s946 = smul.u32 128, %s942
                %s947 = sshra.s32 %s946, 4
                %s948 = scalar_lea.vmem %s745, %s947 [#allocation3]
                // While loop
                $region129: #{ds_forward.3} parent=120 // loop_pre_header
                  _
                $region130: #{ds_forward.3} parent=120 // loop_header
                  %s952 = sphi 0, %s954
                  %p953 = scmp.ge.s32.totalorder %s952, %s941
                  %s957 = sphi 0, %s970
                  %s958 = sphi %s945, %s973
                  %s959 = sphi %s948, %s974
                $region131: #{ds_forward.3} parent=120 // loop_header_branch
                  %956 = sbr.rel (%p953) target = $region135
                $region132: #{ds_forward.3} parent=120 // loop_body
                  %v960 = vld [vmem:[%s958] sm:$0xff]
                  %961 = vst [vmem:[%s959] sm:$0xff] %v960
                  %v962 = vld [vmem:[%s958 + $0x12] sm:$0xff]
                  %963 = vst [vmem:[%s959 + $0x10] sm:$0xff] %v962
                  %v964 = vld [vmem:[%s958 + $0x24] sm:$0xff]
                  %965 = vst [vmem:[%s959 + $0x20] sm:$0xff] %v964
                  %v966 = vld [vmem:[%s958 + $0x36] sm:$0xff]
                  %967 = vst [vmem:[%s959 + $0x30] sm:$0xff] %v966
                  %s968 = sadd.s32 1, %s957
                  %p969 = scmp.ge.s32.totalorder %s968, %s941
                  %s970 = scalar_select %p969, 0, %s968
                  %s971 = smul.u32 %s970, 8
                  %s972 = smul.u32 %s970, 8
                  %s973 = scalar_lea.vmem %s945, %s971
                  %s974 = scalar_lea.vmem %s948, %s972 [#allocation3]
                $region133: #{ds_forward.3} parent=120 // loop_footer
                  %s954 = sadd.s32 %s952, 1
                $region134: #{ds_forward.3} parent=120 // loop_footer_branch
                  %951 = sbr.rel target = $region130
                $region135: #{ds_forward.3} parent=120 // loop_exit
                  _
              $region121: #{ds_forward.3} parent=105 // pred_fallthru
                _
              %p975 = pneg %p788
              // Predicated region
              $region136: #{ds_forward.3} parent=105 // pred_check
                _
              $region137: #{ds_forward.3} parent=105 // pred_check_branch
                %977 = sbr.rel (%p788) target = $region139
              $region138: #{ds_forward.3} parent=105 // pred_region
                %s978 = sand.u32 %s758, 7
                %s979 = ssub.s32 %s758, %s978
                %s980 = scalar_lea.vmem %s757, %s979
                %s981 = ssub.s32 %s758, %s978
                %s982 = scalar_lea.vmem %s745, %s981 [#allocation3]
                %s983 = sshrl.u32 %s758, 3
                %s984 = sshrl.u32 %s983, 4
                // While loop
                $region140: #{ds_forward.3} parent=138 // loop_pre_header
                  _
                $region141: #{ds_forward.3} parent=138 // loop_header
                  %s988 = sphi 0, %s990
                  %p989 = scmp.ge.s32.totalorder %s988, %s984
                  %s993 = sphi 0, %s1126
                  %s994 = sphi %s757, %s1129
                  %s995 = sphi %s745, %s1130
                $region142: #{ds_forward.3} parent=138 // loop_header_branch
                  %992 = sbr.rel (%p989) target = $region146
                $region143: #{ds_forward.3} parent=138 // loop_body
                  %v996 = vld [vmem:[%s994] sm:$0xff]
                  %997 = vst [vmem:[%s995] sm:$0xff] %v996
                  %v998 = vld [vmem:[%s994 + $0x8] sm:$0xff]
                  %999 = vst [vmem:[%s995 + $0x8] sm:$0xff] %v998
                  %v1000 = vld [vmem:[%s994 + $0x10] sm:$0xff]
                  %1001 = vst [vmem:[%s995 + $0x10] sm:$0xff] %v1000
                  %v1002 = vld [vmem:[%s994 + $0x18] sm:$0xff]
                  %1003 = vst [vmem:[%s995 + $0x18] sm:$0xff] %v1002
                  %v1004 = vld [vmem:[%s994 + $0x20] sm:$0xff]
                  %1005 = vst [vmem:[%s995 + $0x20] sm:$0xff] %v1004
                  %v1006 = vld [vmem:[%s994 + $0x28] sm:$0xff]
                  %1007 = vst [vmem:[%s995 + $0x28] sm:$0xff] %v1006
                  %v1008 = vld [vmem:[%s994 + $0x30] sm:$0xff]
                  %1009 = vst [vmem:[%s995 + $0x30] sm:$0xff] %v1008
                  %v1010 = vld [vmem:[%s994 + $0x38] sm:$0xff]
                  %1011 = vst [vmem:[%s995 + $0x38] sm:$0xff] %v1010
                  %v1012 = vld [vmem:[%s994 + $0x40] sm:$0xff]
                  %1013 = vst [vmem:[%s995 + $0x40] sm:$0xff] %v1012
                  %v1014 = vld [vmem:[%s994 + $0x48] sm:$0xff]
                  %1015 = vst [vmem:[%s995 + $0x48] sm:$0xff] %v1014
                  %v1016 = vld [vmem:[%s994 + $0x50] sm:$0xff]
                  %1017 = vst [vmem:[%s995 + $0x50] sm:$0xff] %v1016
                  %v1018 = vld [vmem:[%s994 + $0x58] sm:$0xff]
                  %1019 = vst [vmem:[%s995 + $0x58] sm:$0xff] %v1018
                  %v1020 = vld [vmem:[%s994 + $0x60] sm:$0xff]
                  %1021 = vst [vmem:[%s995 + $0x60] sm:$0xff] %v1020
                  %v1022 = vld [vmem:[%s994 + $0x68] sm:$0xff]
                  %1023 = vst [vmem:[%s995 + $0x68] sm:$0xff] %v1022
                  %v1024 = vld [vmem:[%s994 + $0x70] sm:$0xff]
                  %1025 = vst [vmem:[%s995 + $0x70] sm:$0xff] %v1024
                  %v1026 = vld [vmem:[%s994 + $0x78] sm:$0xff]
                  %1027 = vst [vmem:[%s995 + $0x78] sm:$0xff] %v1026
                  %v1028 = vld [vmem:[%s994 + $0x12] sm:$0xff]
                  %1029 = vst [vmem:[%s995 + $0x10] sm:$0xff] %v1028
                  %v1030 = vld [vmem:[%s994 + $0x1a] sm:$0xff]
                  %1031 = vst [vmem:[%s995 + $0x18] sm:$0xff] %v1030
                  %v1032 = vld [vmem:[%s994 + $0x22] sm:$0xff]
                  %1033 = vst [vmem:[%s995 + $0x20] sm:$0xff] %v1032
                  %v1034 = vld [vmem:[%s994 + $0x2a] sm:$0xff]
                  %1035 = vst [vmem:[%s995 + $0x28] sm:$0xff] %v1034
                  %v1036 = vld [vmem:[%s994 + $0x32] sm:$0xff]
                  %1037 = vst [vmem:[%s995 + $0x30] sm:$0xff] %v1036
                  %v1038 = vld [vmem:[%s994 + $0x3a] sm:$0xff]
                  %1039 = vst [vmem:[%s995 + $0x38] sm:$0xff] %v1038
                  %v1040 = vld [vmem:[%s994 + $0x42] sm:$0xff]
                  %1041 = vst [vmem:[%s995 + $0x40] sm:$0xff] %v1040
                  %v1042 = vld [vmem:[%s994 + $0x4a] sm:$0xff]
                  %1043 = vst [vmem:[%s995 + $0x48] sm:$0xff] %v1042
                  %v1044 = vld [vmem:[%s994 + $0x52] sm:$0xff]
                  %1045 = vst [vmem:[%s995 + $0x50] sm:$0xff] %v1044
                  %v1046 = vld [vmem:[%s994 + $0x5a] sm:$0xff]
                  %1047 = vst [vmem:[%s995 + $0x58] sm:$0xff] %v1046
                  %v1048 = vld [vmem:[%s994 + $0x62] sm:$0xff]
                  %1049 = vst [vmem:[%s995 + $0x60] sm:$0xff] %v1048
                  %v1050 = vld [vmem:[%s994 + $0x6a] sm:$0xff]
                  %1051 = vst [vmem:[%s995 + $0x68] sm:$0xff] %v1050
                  %v1052 = vld [vmem:[%s994 + $0x72] sm:$0xff]
                  %1053 = vst [vmem:[%s995 + $0x70] sm:$0xff] %v1052
                  %v1054 = vld [vmem:[%s994 + $0x7a] sm:$0xff]
                  %1055 = vst [vmem:[%s995 + $0x78] sm:$0xff] %v1054
                  %v1056 = vld [vmem:[%s994 + $0x82] sm:$0xff]
                  %1057 = vst [vmem:[%s995 + $0x80] sm:$0xff] %v1056
                  %v1058 = vld [vmem:[%s994 + $0x8a] sm:$0xff]
                  %1059 = vst [vmem:[%s995 + $0x88] sm:$0xff] %v1058
                  %v1060 = vld [vmem:[%s994 + $0x24] sm:$0xff]
                  %1061 = vst [vmem:[%s995 + $0x20] sm:$0xff] %v1060
                  %v1062 = vld [vmem:[%s994 + $0x2c] sm:$0xff]
                  %1063 = vst [vmem:[%s995 + $0x28] sm:$0xff] %v1062
                  %v1064 = vld [vmem:[%s994 + $0x34] sm:$0xff]
                  %1065 = vst [vmem:[%s995 + $0x30] sm:$0xff] %v1064
                  %v1066 = vld [vmem:[%s994 + $0x3c] sm:$0xff]
                  %1067 = vst [vmem:[%s995 + $0x38] sm:$0xff] %v1066
                  %v1068 = vld [vmem:[%s994 + $0x44] sm:$0xff]
                  %1069 = vst [vmem:[%s995 + $0x40] sm:$0xff] %v1068
                  %v1070 = vld [vmem:[%s994 + $0x4c] sm:$0xff]
                  %1071 = vst [vmem:[%s995 + $0x48] sm:$0xff] %v1070
                  %v1072 = vld [vmem:[%s994 + $0x54] sm:$0xff]
                  %1073 = vst [vmem:[%s995 + $0x50] sm:$0xff] %v1072
                  %v1074 = vld [vmem:[%s994 + $0x5c] sm:$0xff]
                  %1075 = vst [vmem:[%s995 + $0x58] sm:$0xff] %v1074
                  %v1076 = vld [vmem:[%s994 + $0x64] sm:$0xff]
                  %1077 = vst [vmem:[%s995 + $0x60] sm:$0xff] %v1076
                  %v1078 = vld [vmem:[%s994 + $0x6c] sm:$0xff]
                  %1079 = vst [vmem:[%s995 + $0x68] sm:$0xff] %v1078
                  %v1080 = vld [vmem:[%s994 + $0x74] sm:$0xff]
                  %1081 = vst [vmem:[%s995 + $0x70] sm:$0xff] %v1080
                  %v1082 = vld [vmem:[%s994 + $0x7c] sm:$0xff]
                  %1083 = vst [vmem:[%s995 + $0x78] sm:$0xff] %v1082
                  %v1084 = vld [vmem:[%s994 + $0x84] sm:$0xff]
                  %1085 = vst [vmem:[%s995 + $0x80] sm:$0xff] %v1084
                  %v1086 = vld [vmem:[%s994 + $0x8c] sm:$0xff]
                  %1087 = vst [vmem:[%s995 + $0x88] sm:$0xff] %v1086
                  %v1088 = vld [vmem:[%s994 + $0x94] sm:$0xff]
                  %1089 = vst [vmem:[%s995 + $0x90] sm:$0xff] %v1088
                  %v1090 = vld [vmem:[%s994 + $0x9c] sm:$0xff]
                  %1091 = vst [vmem:[%s995 + $0x98] sm:$0xff] %v1090
                  %v1092 = vld [vmem:[%s994 + $0x36] sm:$0xff]
                  %1093 = vst [vmem:[%s995 + $0x30] sm:$0xff] %v1092
                  %v1094 = vld [vmem:[%s994 + $0x3e] sm:$0xff]
                  %1095 = vst [vmem:[%s995 + $0x38] sm:$0xff] %v1094
                  %v1096 = vld [vmem:[%s994 + $0x46] sm:$0xff]
                  %1097 = vst [vmem:[%s995 + $0x40] sm:$0xff] %v1096
                  %v1098 = vld [vmem:[%s994 + $0x4e] sm:$0xff]
                  %1099 = vst [vmem:[%s995 + $0x48] sm:$0xff] %v1098
                  %v1100 = vld [vmem:[%s994 + $0x56] sm:$0xff]
                  %1101 = vst [vmem:[%s995 + $0x50] sm:$0xff] %v1100
                  %v1102 = vld [vmem:[%s994 + $0x5e] sm:$0xff]
                  %1103 = vst [vmem:[%s995 + $0x58] sm:$0xff] %v1102
                  %v1104 = vld [vmem:[%s994 + $0x66] sm:$0xff]
                  %1105 = vst [vmem:[%s995 + $0x60] sm:$0xff] %v1104
                  %v1106 = vld [vmem:[%s994 + $0x6e] sm:$0xff]
                  %1107 = vst [vmem:[%s995 + $0x68] sm:$0xff] %v1106
                  %v1108 = vld [vmem:[%s994 + $0x76] sm:$0xff]
                  %1109 = vst [vmem:[%s995 + $0x70] sm:$0xff] %v1108
                  %v1110 = vld [vmem:[%s994 + $0x7e] sm:$0xff]
                  %1111 = vst [vmem:[%s995 + $0x78] sm:$0xff] %v1110
                  %v1112 = vld [vmem:[%s994 + $0x86] sm:$0xff]
                  %1113 = vst [vmem:[%s995 + $0x80] sm:$0xff] %v1112
                  %v1114 = vld [vmem:[%s994 + $0x8e] sm:$0xff]
                  %1115 = vst [vmem:[%s995 + $0x88] sm:$0xff] %v1114
                  %v1116 = vld [vmem:[%s994 + $0x96] sm:$0xff]
                  %1117 = vst [vmem:[%s995 + $0x90] sm:$0xff] %v1116
                  %v1118 = vld [vmem:[%s994 + $0x9e] sm:$0xff]
                  %1119 = vst [vmem:[%s995 + $0x98] sm:$0xff] %v1118
                  %v1120 = vld [vmem:[%s994 + $0xa6] sm:$0xff]
                  %1121 = vst [vmem:[%s995 + $0xa0] sm:$0xff] %v1120
                  %v1122 = vld [vmem:[%s994 + $0xae] sm:$0xff]
                  %1123 = vst [vmem:[%s995 + $0xa8] sm:$0xff] %v1122
                  %s1124 = sadd.s32 1, %s993
                  %p1125 = scmp.ge.s32.totalorder %s1124, %s984
                  %s1126 = scalar_select %p1125, 0, %s1124
                  %s1127 = smul.u32 %s1126, 128
                  %s1128 = smul.u32 %s1126, 128
                  %s1129 = scalar_lea.vmem %s757, %s1127
                  %s1130 = scalar_lea.vmem %s745, %s1128 [#allocation3]
                $region144: #{ds_forward.3} parent=138 // loop_footer
                  %s990 = sadd.s32 %s988, 1
                $region145: #{ds_forward.3} parent=138 // loop_footer_branch
                  %987 = sbr.rel target = $region141
                $region146: #{ds_forward.3} parent=138 // loop_exit
                  _
                %s1131 = sshrl.u32 %s983, 4
                %s1132 = sand.u32 %s983, 15
                %s1133 = smul.u32 %s1131, 16
                %s1134 = smul.u32 128, %s1133
                %s1135 = sshra.s32 %s1134, 4
                %s1136 = scalar_lea.vmem %s757, %s1135
                %s1137 = smul.u32 128, %s1133
                %s1138 = sshra.s32 %s1137, 4
                %s1139 = scalar_lea.vmem %s745, %s1138 [#allocation3]
                // While loop
                $region147: #{ds_forward.3} parent=138 // loop_pre_header
                  _
                $region148: #{ds_forward.3} parent=138 // loop_header
                  %s1143 = sphi 0, %s1145
                  %p1144 = scmp.ge.s32.totalorder %s1143, %s1132
                  %s1148 = sphi 0, %s1161
                  %s1149 = sphi %s1136, %s1164
                  %s1150 = sphi %s1139, %s1165
                $region149: #{ds_forward.3} parent=138 // loop_header_branch
                  %1147 = sbr.rel (%p1144) target = $region153
                $region150: #{ds_forward.3} parent=138 // loop_body
                  %v1151 = vld [vmem:[%s1149] sm:$0xff]
                  %1152 = vst [vmem:[%s1150] sm:$0xff] %v1151
                  %v1153 = vld [vmem:[%s1149 + $0x12] sm:$0xff]
                  %1154 = vst [vmem:[%s1150 + $0x10] sm:$0xff] %v1153
                  %v1155 = vld [vmem:[%s1149 + $0x24] sm:$0xff]
                  %1156 = vst [vmem:[%s1150 + $0x20] sm:$0xff] %v1155
                  %v1157 = vld [vmem:[%s1149 + $0x36] sm:$0xff]
                  %1158 = vst [vmem:[%s1150 + $0x30] sm:$0xff] %v1157
                  %s1159 = sadd.s32 1, %s1148
                  %p1160 = scmp.ge.s32.totalorder %s1159, %s1132
                  %s1161 = scalar_select %p1160, 0, %s1159
                  %s1162 = smul.u32 %s1161, 8
                  %s1163 = smul.u32 %s1161, 8
                  %s1164 = scalar_lea.vmem %s1136, %s1162
                  %s1165 = scalar_lea.vmem %s1139, %s1163 [#allocation3]
                $region151: #{ds_forward.3} parent=138 // loop_footer
                  %s1145 = sadd.s32 %s1143, 1
                $region152: #{ds_forward.3} parent=138 // loop_footer_branch
                  %1142 = sbr.rel target = $region148
                $region153: #{ds_forward.3} parent=138 // loop_exit
                  _
                %s1166 = sshll.u32 1, %s978
                %s1167 = ssub.s32 %s1166, 1
                loop: start=0, step=1, limit=1
                $region154: #{ds_forward.3} parent=138 // loop_pre_header
                  _
                $region155: #{ds_forward.3} parent=138 // loop_header
                  %s1169 = sphi 0, %s1173
                  %p1170 = scmp.ge.s32.totalorder %s1169, 1
                  %s1174 = sphi %s980, %s980
                  %s1175 = sphi %s982, %s982
                $region156: #{ds_forward.3} parent=138 // loop_header_branch
                  %1172 = sbr.rel (%p1170) target = $region160
                $region157: #{ds_forward.3} parent=138 // loop_body
                  %v1176 = vld [vmem:[%s1174] sm:%s1167]
                  %1177 = vst [vmem:[%s1175] sm:%s1167] %v1176
                  %v1178 = vld [vmem:[%s1174 + $0x12] sm:%s1167]
                  %1179 = vst [vmem:[%s1175 + $0x10] sm:%s1167] %v1178
                  %v1180 = vld [vmem:[%s1174 + $0x24] sm:%s1167]
                  %1181 = vst [vmem:[%s1175 + $0x20] sm:%s1167] %v1180
                  %v1182 = vld [vmem:[%s1174 + $0x36] sm:%s1167]
                  %1183 = vst [vmem:[%s1175 + $0x30] sm:%s1167] %v1182
                $region158: #{ds_forward.3} parent=138 // loop_footer
                  %s1173 = sadd.s32 1, %s1169
                $region159: #{ds_forward.3} parent=138 // loop_footer_branch
                  %1168 = sbr.rel target = $region155
                $region160: #{ds_forward.3} parent=138 // loop_exit
                  _
              $region139: #{ds_forward.3} parent=105 // pred_fallthru
                _
            $region106: #{ds_forward.3} parent=101 // pred_fallthru
              _
            // Predicated region
            $region107: #{ds_forward.3} parent=101 // pred_check
              %p766 = pneg %p762
            $region108: #{ds_forward.3} parent=101 // pred_check_branch
              %768 = sbr.rel (%p766) target = $region110
            $region109: #{ds_forward.3} parent=101 // pred_region
              %s769 = sshll.u32 1, %s758
              %s770 = ssub.s32 %s769, 1
              loop: start=0, step=1, limit=1
              $region111: #{ds_forward.3} parent=109 // loop_pre_header
                _
              $region112: #{ds_forward.3} parent=109 // loop_header
                %s772 = sphi 0, %s776
                %p773 = scmp.ge.s32.totalorder %s772, 1
                %s777 = sphi %s757, %s757
                %s778 = sphi %s745, %s745
              $region113: #{ds_forward.3} parent=109 // loop_header_branch
                %775 = sbr.rel (%p773) target = $region117
              $region114: #{ds_forward.3} parent=109 // loop_body
                %v779 = vld [vmem:[%s777] sm:%s770]
                %780 = vst [vmem:[%s778] sm:%s770] %v779
                %v781 = vld [vmem:[%s777 + $0x12] sm:%s770]
                %782 = vst [vmem:[%s778 + $0x10] sm:%s770] %v781
                %v783 = vld [vmem:[%s777 + $0x24] sm:%s770]
                %784 = vst [vmem:[%s778 + $0x20] sm:%s770] %v783
                %v785 = vld [vmem:[%s777 + $0x36] sm:%s770]
                %786 = vst [vmem:[%s778 + $0x30] sm:%s770] %v785
              $region115: #{ds_forward.3} parent=109 // loop_footer
                %s776 = sadd.s32 1, %s772
              $region116: #{ds_forward.3} parent=109 // loop_footer_branch
                %771 = sbr.rel target = $region112
              $region117: #{ds_forward.3} parent=109 // loop_exit
                _
            $region110: #{ds_forward.3} parent=101 // pred_fallthru
              _
          $region102: #{ds_forward.3} parent=97 // pred_fallthru
            _
          %1184 = vnop
        $region98: #{ds_forward.3} parent=27 // pred_fallthru
          _
        // Predicated region
        $region161: #{ds_forward.3} parent=27 // pred_check
          %p1185 = pneg %p112
        $region162: #{ds_forward.3} parent=27 // pred_check_branch
          %1187 = sbr.rel (%p1185) target = $region164
        $region163: #{ds_forward.3} parent=27 // pred_region
          %s1188 = sand.u32 %s102, 1
          %s1189 = sand.u32 %s102, 1
          %s1190 = smul.addr %s1189, 8
          %s1191 = scalar_lea.vmem [#allocation4], %s1190
          %s1192 = sadd.s32 %s26, 1
          %s1193 = smul.u32 %s1192, 8
          %s1194 = smul.u32 4, %s25
          %s1195 = smul.addr %s1193, 2
          %s1196 = smul.addr %s1194, 18
          %s1197 = sadd.s32 %s1195, %s1196
          %s1198 = scalar_lea.vmem %s2, %s1197
          // Predicated region
          $region165: #{ds_forward.3} parent=163 // pred_check
            _
          $region166: #{ds_forward.3} parent=163 // pred_check_branch
            %1200 = sbr.rel (0) target = $region168
          $region167: #{ds_forward.3} parent=163 // pred_region
            // Predicated region
            $region169: #{ds_forward.3} parent=167 // pred_check
              _
            $region170: #{ds_forward.3} parent=167 // pred_check_branch
              %1202 = sbr.rel target = $region172
            $region171: #{ds_forward.3} parent=167 // pred_region
              // Predicated region
              $region184: #{ds_forward.3} parent=171 // pred_check
                _
              $region185: #{ds_forward.3} parent=171 // pred_check_branch
                %1224 = sbr.rel (0) target = $region187
              $region186: #{ds_forward.3} parent=171 // pred_region
                loop: start=0, step=1, limit=1
                $region188: #{ds_forward.3} parent=186 // loop_pre_header
                  _
                $region189: #{ds_forward.3} parent=186 // loop_header
                  %s1226 = sphi 0, %s1230
                  %p1227 = scmp.ge.s32.totalorder %s1226, 1
                  %s1231 = sphi %s1198, %s1198
                  %s1232 = sphi %s1191, %s1191
                $region190: #{ds_forward.3} parent=186 // loop_header_branch
                  %1229 = sbr.rel (%p1227) target = $region194
                $region191: #{ds_forward.3} parent=186 // loop_body
                  _
                $region192: #{ds_forward.3} parent=186 // loop_footer
                  %s1230 = sadd.s32 1, %s1226
                $region193: #{ds_forward.3} parent=186 // loop_footer_branch
                  %1225 = sbr.rel target = $region189
                $region194: #{ds_forward.3} parent=186 // loop_exit
                  _
                %s1234 = ssub.s32 4, 1
                loop: start=0, step=1, limit=1
                $region195: #{ds_forward.3} parent=186 // loop_pre_header
                  _
                $region196: #{ds_forward.3} parent=186 // loop_header
                  %s1236 = sphi 0, %s1240
                  %p1237 = scmp.ge.s32.totalorder %s1236, 1
                  %s1241 = sphi %s1198, %s1198
                  %s1242 = sphi %s1191, %s1191
                $region197: #{ds_forward.3} parent=186 // loop_header_branch
                  %1239 = sbr.rel (%p1237) target = $region201
                $region198: #{ds_forward.3} parent=186 // loop_body
                  %v1243 = vld [vmem:[%s1241] sm:%s1234]
                  %1244 = vst [vmem:[%s1242] sm:%s1234] %v1243
                  %v1245 = vld [vmem:[%s1241 + $0x12] sm:%s1234]
                  %1246 = vst [vmem:[%s1242 + $0x2] sm:%s1234] %v1245
                  %v1247 = vld [vmem:[%s1241 + $0x24] sm:%s1234]
                  %1248 = vst [vmem:[%s1242 + $0x4] sm:%s1234] %v1247
                  %v1249 = vld [vmem:[%s1241 + $0x36] sm:%s1234]
                  %1250 = vst [vmem:[%s1242 + $0x6] sm:%s1234] %v1249
                $region199: #{ds_forward.3} parent=186 // loop_footer
                  %s1240 = sadd.s32 1, %s1236
                $region200: #{ds_forward.3} parent=186 // loop_footer_branch
                  %1235 = sbr.rel target = $region196
                $region201: #{ds_forward.3} parent=186 // loop_exit
                  _
              $region187: #{ds_forward.3} parent=171 // pred_fallthru
                _
            $region172: #{ds_forward.3} parent=167 // pred_fallthru
              _
            // Predicated region
            $region173: #{ds_forward.3} parent=167 // pred_check
              _
            $region174: #{ds_forward.3} parent=167 // pred_check_branch
              %1204 = sbr.rel (0) target = $region176
            $region175: #{ds_forward.3} parent=167 // pred_region
              %s1206 = ssub.s32 4, 1
              loop: start=0, step=1, limit=1
              $region177: #{ds_forward.3} parent=175 // loop_pre_header
                _
              $region178: #{ds_forward.3} parent=175 // loop_header
                %s1208 = sphi 0, %s1212
                %p1209 = scmp.ge.s32.totalorder %s1208, 1
                %s1213 = sphi %s1198, %s1198
                %s1214 = sphi %s1191, %s1191
              $region179: #{ds_forward.3} parent=175 // loop_header_branch
                %1211 = sbr.rel (%p1209) target = $region183
              $region180: #{ds_forward.3} parent=175 // loop_body
                %v1215 = vld [vmem:[%s1213] sm:%s1206]
                %1216 = vst [vmem:[%s1214] sm:%s1206] %v1215
                %v1217 = vld [vmem:[%s1213 + $0x12] sm:%s1206]
                %1218 = vst [vmem:[%s1214 + $0x2] sm:%s1206] %v1217
                %v1219 = vld [vmem:[%s1213 + $0x24] sm:%s1206]
                %1220 = vst [vmem:[%s1214 + $0x4] sm:%s1206] %v1219
                %v1221 = vld [vmem:[%s1213 + $0x36] sm:%s1206]
                %1222 = vst [vmem:[%s1214 + $0x6] sm:%s1206] %v1221
              $region181: #{ds_forward.3} parent=175 // loop_footer
                %s1212 = sadd.s32 1, %s1208
              $region182: #{ds_forward.3} parent=175 // loop_footer_branch
                %1207 = sbr.rel target = $region178
              $region183: #{ds_forward.3} parent=175 // loop_exit
                _
            $region176: #{ds_forward.3} parent=167 // pred_fallthru
              _
          $region168: #{ds_forward.3} parent=163 // pred_fallthru
            _
          %1251 = vnop
        $region164: #{ds_forward.3} parent=27 // pred_fallthru
          _
        // Predicated region
        $region202: #{ds_forward.3} parent=27 // pred_check
          %p1252 = pneg %p144
        $region203: #{ds_forward.3} parent=27 // pred_check_branch
          %1254 = sbr.rel (%p1252) target = $region205
        $region204: #{ds_forward.3} parent=27 // pred_region
          %s1255 = sand.u32 %s134, 1
          %s1256 = sand.u32 %s134, 1
          %s1257 = smul.addr %s1256, 8
          %s1258 = scalar_lea.vmem [#allocation5], %s1257
          %s1259 = sadd.s32 %s26, 1
          %s1260 = smul.u32 %s1259, 8
          %s1261 = smul.u32 4, %s25
          %s1262 = smul.addr %s1260, 2
          %s1263 = smul.addr %s1261, 18
          %s1264 = sadd.s32 %s1262, %s1263
          %s1265 = scalar_lea.vmem %s3, %s1264
          // Predicated region
          $region206: #{ds_forward.3} parent=204 // pred_check
            _
          $region207: #{ds_forward.3} parent=204 // pred_check_branch
            %1267 = sbr.rel (0) target = $region209
          $region208: #{ds_forward.3} parent=204 // pred_region
            // Predicated region
            $region210: #{ds_forward.3} parent=208 // pred_check
              _
            $region211: #{ds_forward.3} parent=208 // pred_check_branch
              %1269 = sbr.rel target = $region213
            $region212: #{ds_forward.3} parent=208 // pred_region
              // Predicated region
              $region225: #{ds_forward.3} parent=212 // pred_check
                _
              $region226: #{ds_forward.3} parent=212 // pred_check_branch
                %1291 = sbr.rel (0) target = $region228
              $region227: #{ds_forward.3} parent=212 // pred_region
                loop: start=0, step=1, limit=1
                $region229: #{ds_forward.3} parent=227 // loop_pre_header
                  _
                $region230: #{ds_forward.3} parent=227 // loop_header
                  %s1293 = sphi 0, %s1297
                  %p1294 = scmp.ge.s32.totalorder %s1293, 1
                  %s1298 = sphi %s1265, %s1265
                  %s1299 = sphi %s1258, %s1258
                $region231: #{ds_forward.3} parent=227 // loop_header_branch
                  %1296 = sbr.rel (%p1294) target = $region235
                $region232: #{ds_forward.3} parent=227 // loop_body
                  _
                $region233: #{ds_forward.3} parent=227 // loop_footer
                  %s1297 = sadd.s32 1, %s1293
                $region234: #{ds_forward.3} parent=227 // loop_footer_branch
                  %1292 = sbr.rel target = $region230
                $region235: #{ds_forward.3} parent=227 // loop_exit
                  _
                %s1301 = ssub.s32 4, 1
                loop: start=0, step=1, limit=1
                $region236: #{ds_forward.3} parent=227 // loop_pre_header
                  _
                $region237: #{ds_forward.3} parent=227 // loop_header
                  %s1303 = sphi 0, %s1307
                  %p1304 = scmp.ge.s32.totalorder %s1303, 1
                  %s1308 = sphi %s1265, %s1265
                  %s1309 = sphi %s1258, %s1258
                $region238: #{ds_forward.3} parent=227 // loop_header_branch
                  %1306 = sbr.rel (%p1304) target = $region242
                $region239: #{ds_forward.3} parent=227 // loop_body
                  %v1310 = vld [vmem:[%s1308] sm:%s1301]
                  %1311 = vst [vmem:[%s1309] sm:%s1301] %v1310
                  %v1312 = vld [vmem:[%s1308 + $0x12] sm:%s1301]
                  %1313 = vst [vmem:[%s1309 + $0x2] sm:%s1301] %v1312
                  %v1314 = vld [vmem:[%s1308 + $0x24] sm:%s1301]
                  %1315 = vst [vmem:[%s1309 + $0x4] sm:%s1301] %v1314
                  %v1316 = vld [vmem:[%s1308 + $0x36] sm:%s1301]
                  %1317 = vst [vmem:[%s1309 + $0x6] sm:%s1301] %v1316
                $region240: #{ds_forward.3} parent=227 // loop_footer
                  %s1307 = sadd.s32 1, %s1303
                $region241: #{ds_forward.3} parent=227 // loop_footer_branch
                  %1302 = sbr.rel target = $region237
                $region242: #{ds_forward.3} parent=227 // loop_exit
                  _
              $region228: #{ds_forward.3} parent=212 // pred_fallthru
                _
            $region213: #{ds_forward.3} parent=208 // pred_fallthru
              _
            // Predicated region
            $region214: #{ds_forward.3} parent=208 // pred_check
              _
            $region215: #{ds_forward.3} parent=208 // pred_check_branch
              %1271 = sbr.rel (0) target = $region217
            $region216: #{ds_forward.3} parent=208 // pred_region
              %s1273 = ssub.s32 4, 1
              loop: start=0, step=1, limit=1
              $region218: #{ds_forward.3} parent=216 // loop_pre_header
                _
              $region219: #{ds_forward.3} parent=216 // loop_header
                %s1275 = sphi 0, %s1279
                %p1276 = scmp.ge.s32.totalorder %s1275, 1
                %s1280 = sphi %s1265, %s1265
                %s1281 = sphi %s1258, %s1258
              $region220: #{ds_forward.3} parent=216 // loop_header_branch
                %1278 = sbr.rel (%p1276) target = $region224
              $region221: #{ds_forward.3} parent=216 // loop_body
                %v1282 = vld [vmem:[%s1280] sm:%s1273]
                %1283 = vst [vmem:[%s1281] sm:%s1273] %v1282
                %v1284 = vld [vmem:[%s1280 + $0x12] sm:%s1273]
                %1285 = vst [vmem:[%s1281 + $0x2] sm:%s1273] %v1284
                %v1286 = vld [vmem:[%s1280 + $0x24] sm:%s1273]
                %1287 = vst [vmem:[%s1281 + $0x4] sm:%s1273] %v1286
                %v1288 = vld [vmem:[%s1280 + $0x36] sm:%s1273]
                %1289 = vst [vmem:[%s1281 + $0x6] sm:%s1273] %v1288
              $region222: #{ds_forward.3} parent=216 // loop_footer
                %s1279 = sadd.s32 1, %s1275
              $region223: #{ds_forward.3} parent=216 // loop_footer_branch
                %1274 = sbr.rel target = $region219
              $region224: #{ds_forward.3} parent=216 // loop_exit
                _
            $region217: #{ds_forward.3} parent=208 // pred_fallthru
              _
          $region209: #{ds_forward.3} parent=204 // pred_fallthru
            _
          %1318 = vnop
        $region205: #{ds_forward.3} parent=27 // pred_fallthru
          _
      $region28: #{ds_forward.3} parent=5 // pred_fallthru
        _
      %p1319 = scmp.le.s32.totalorder 1, %s18
      %p1320 = scmp.lt.s32.totalorder %s18, 3
      %p1321 = pnand %p1319, %p1320
      %p1322 = pneg %p1321
      // Predicated region
      $region243: #{ds_forward.3} parent=5 // pred_check
        _
      $region244: #{ds_forward.3} parent=5 // pred_check_branch
        %1324 = sbr.rel (%p1321) target = $region246
      $region245: #{ds_forward.3} parent=5 // pred_region
        %s1325 = ssub.s32 %s18, 1
        %s1326 = sand.u32 %s45, 1
        %s1327 = sand.u32 %s45, 1
        %s1328 = smul.addr %s1327, 64
        %s1329 = scalar_lea.vmem [#allocation2], %s1328
        // Predicated region
        $region247: #{ds_forward.3} parent=245 // pred_check
          %p1330 = pneg %p58
        $region248: #{ds_forward.3} parent=245 // pred_check_branch
          %1332 = sbr.rel (%p1330) target = $region250
        $region249: #{ds_forward.3} parent=245 // pred_region
          _
        $region250: #{ds_forward.3} parent=245 // pred_fallthru
          _
        %s1333 = sand.u32 %s73, 1
        %s1334 = sand.u32 %s73, 1
        %s1335 = smul.addr %s1334, 64
        %s1336 = scalar_lea.vmem [#allocation3], %s1335
        // Predicated region
        $region251: #{ds_forward.3} parent=245 // pred_check
          %p1337 = pneg %p86
        $region252: #{ds_forward.3} parent=245 // pred_check_branch
          %1339 = sbr.rel (%p1337) target = $region254
        $region253: #{ds_forward.3} parent=245 // pred_region
          _
        $region254: #{ds_forward.3} parent=245 // pred_fallthru
          _
        %s1340 = sand.u32 %s105, 1
        %s1341 = sand.u32 %s105, 1
        %s1342 = smul.addr %s1341, 8
        %s1343 = scalar_lea.vmem [#allocation4], %s1342
        // Predicated region
        $region255: #{ds_forward.3} parent=245 // pred_check
          %p1344 = pneg %p118
        $region256: #{ds_forward.3} parent=245 // pred_check_branch
          %1346 = sbr.rel (%p1344) target = $region258
        $region257: #{ds_forward.3} parent=245 // pred_region
          _
        $region258: #{ds_forward.3} parent=245 // pred_fallthru
          _
        %s1347 = sand.u32 %s137, 1
        %s1348 = sand.u32 %s137, 1
        %s1349 = smul.addr %s1348, 8
        %s1350 = scalar_lea.vmem [#allocation5], %s1349
        // Predicated region
        $region259: #{ds_forward.3} parent=245 // pred_check
          %p1351 = pneg %p150
        $region260: #{ds_forward.3} parent=245 // pred_check_branch
          %1353 = sbr.rel (%p1351) target = $region262
        $region261: #{ds_forward.3} parent=245 // pred_region
          _
        $region262: #{ds_forward.3} parent=245 // pred_fallthru
          _
        // Predicated region
        $region263: #{ds_forward.3} parent=245 // pred_check
          %p1354 = pneg %p171
        $region264: #{ds_forward.3} parent=245 // pred_check_branch
          %1356 = sbr.rel (%p1354) target = $region266
        $region265: #{ds_forward.3} parent=245 // pred_region
          %1357 = dma.done [#allocation8], 128
        $region266: #{ds_forward.3} parent=245 // pred_fallthru
          _
        // Predicated region
        $region267: #{ds_forward.3} parent=245 // pred_check
          %p1358 = pneg %p192
        $region268: #{ds_forward.3} parent=245 // pred_check_branch
          %1360 = sbr.rel (%p1358) target = $region270
        $region269: #{ds_forward.3} parent=245 // pred_region
          %1361 = dma.done [#allocation10], 16
        $region270: #{ds_forward.3} parent=245 // pred_fallthru
          _
        // Predicated region
        $region271: #{ds_forward.3} parent=245 // pred_check
          %p1362 = pneg %p213
        $region272: #{ds_forward.3} parent=245 // pred_check_branch
          %1364 = sbr.rel (%p1362) target = $region274
        $region273: #{ds_forward.3} parent=245 // pred_region
          %1365 = dma.done [#allocation10], 16
        $region274: #{ds_forward.3} parent=245 // pred_fallthru
          _
        %1366 = sfence
        %s1367 = sand.u32 %s45, 1
        %s1368 = sand.u32 %s45, 1
        %s1369 = smul.addr %s1368, 64
        %s1370 = scalar_lea.vmem [#allocation2], %s1369
        %p1371 = pneg %p58
        %p1372 = pneg %p55
        %s1373 = sand.u32 %s73, 1
        %s1374 = sand.u32 %s73, 1
        %s1375 = smul.addr %s1374, 64
        %s1376 = scalar_lea.vmem [#allocation3], %s1375
        %p1377 = pneg %p86
        %p1378 = pneg %p83
        %s1379 = sand.u32 %s105, 1
        %s1380 = sand.u32 %s105, 1
        %s1381 = smul.addr %s1380, 8
        %s1382 = scalar_lea.vmem [#allocation4], %s1381
        %p1383 = pneg %p118
        %p1384 = pneg %p115
        %s1385 = sand.u32 %s137, 1
        %s1386 = sand.u32 %s137, 1
        %s1387 = smul.addr %s1386, 8
        %s1388 = scalar_lea.vmem [#allocation5], %s1387
        %p1389 = pneg %p150
        %p1390 = pneg %p147
        %p1391 = pneg %p171
        %p1392 = pneg %p168
        %p1393 = pneg %p192
        %p1394 = pneg %p189
        %p1395 = pneg %p213
        %p1396 = pneg %p210
        %p1397 = pneg %p241
        %p1398 = pneg %p238
        %s1399 = sand.u32 %s228, 1
        %s1400 = scalar_lea.sflag [#allocation7], %s1399
        %s1401 = sand.u32 %s228, 1
        %s1402 = smul.addr %s1401, 64
        %s1403 = scalar_lea.vmem [#allocation12], %s1402
        %s1404 = smul.u32 4, %s27
        %s1405 = smul.u32 8, %s28
        %s1406 = ssub.s32 9, %s1405
        %p1407 = scmp.lt.s32.totalorder %s1406, 8
        %s1408 = scalar_select %p1407, %s1406, 8
        %s1409 = smul.u32 64, %s1408
        %s1410 = smul.u32 %s1409, 2
        %s1411 = smul.u32 4, %s27
        %s1412 = smul.u32 8, %s28
        %s1413 = ssub.s32 9, %s1412
        %p1414 = scmp.lt.s32.totalorder %s1413, 8
        %s1415 = scalar_select %p1414, %s1413, 8
        %s1416 = smul.u32 64, %s1415
        %s1417 = smul.u32 %s1416, 2
        %s1418 = sadd.s32 %s28, 1
        %s1419 = smul.u32 %s1418, 8
        %s1420 = smul.u32 4, %s27
        %s1421 = sadd.s32 %s28, 1
        %s1422 = smul.u32 %s1421, 8
        %s1423 = smul.u32 4, %s27
        %s1424 = smul.u32 8, %s27
        %s1425 = smul.u32 8, %s28
        %v1426 = vld [vmem:[%s1329] sm:$0x1]
        %v1427 = vld [vmem:[%s1329 + $0x1] sm:$0x1]
        %v1428 = vld [vmem:[%s1329 + $0x2] sm:$0x1]
        %v1429 = vld [vmem:[%s1329 + $0x3] sm:$0x1]
        %v1430 = vld [vmem:[%s1329 + $0x4] sm:$0x1]
        %v1431 = vld [vmem:[%s1329 + $0x5] sm:$0x1]
        %v1432 = vld [vmem:[%s1329 + $0x6] sm:$0x1]
        %v1433 = vld [vmem:[%s1329 + $0x7] sm:$0x1]
        %v1434 = vld [vmem:[%s1329 + $0x8] sm:$0x1]
        %v1435 = vld [vmem:[%s1329 + $0x9] sm:$0x1]
        %v1436 = vld [vmem:[%s1329 + $0xa] sm:$0x1]
        %v1437 = vld [vmem:[%s1329 + $0xb] sm:$0x1]
        %v1438 = vld [vmem:[%s1329 + $0xc] sm:$0x1]
        %v1439 = vld [vmem:[%s1329 + $0xd] sm:$0x1]
        %v1440 = vld [vmem:[%s1329 + $0xe] sm:$0x1]
        %v1441 = vld [vmem:[%s1329 + $0xf] sm:$0x1]
        %v1442 = vld [vmem:[%s1329 + $0x10] sm:$0x1]
        %v1443 = vld [vmem:[%s1329 + $0x11] sm:$0x1]
        %v1444 = vld [vmem:[%s1329 + $0x12] sm:$0x1]
        %v1445 = vld [vmem:[%s1329 + $0x13] sm:$0x1]
        %v1446 = vld [vmem:[%s1329 + $0x14] sm:$0x1]
        %v1447 = vld [vmem:[%s1329 + $0x15] sm:$0x1]
        %v1448 = vld [vmem:[%s1329 + $0x16] sm:$0x1]
        %v1449 = vld [vmem:[%s1329 + $0x17] sm:$0x1]
        %v1450 = vld [vmem:[%s1329 + $0x18] sm:$0x1]
        %v1451 = vld [vmem:[%s1329 + $0x19] sm:$0x1]
        %v1452 = vld [vmem:[%s1329 + $0x1a] sm:$0x1]
        %v1453 = vld [vmem:[%s1329 + $0x1b] sm:$0x1]
        %v1454 = vld [vmem:[%s1329 + $0x1c] sm:$0x1]
        %v1455 = vld [vmem:[%s1329 + $0x1d] sm:$0x1]
        %v1456 = vld [vmem:[%s1329 + $0x1e] sm:$0x1]
        %v1457 = vld [vmem:[%s1329 + $0x1f] sm:$0x1]
        %v1458 = vld [vmem:[%s1329 + $0x20] sm:$0x1]
        %v1459 = vld [vmem:[%s1329 + $0x21] sm:$0x1]
        %v1460 = vld [vmem:[%s1329 + $0x22] sm:$0x1]
        %v1461 = vld [vmem:[%s1329 + $0x23] sm:$0x1]
        %v1462 = vld [vmem:[%s1329 + $0x24] sm:$0x1]
        %v1463 = vld [vmem:[%s1329 + $0x25] sm:$0x1]
        %v1464 = vld [vmem:[%s1329 + $0x26] sm:$0x1]
        %v1465 = vld [vmem:[%s1329 + $0x27] sm:$0x1]
        %v1466 = vld [vmem:[%s1329 + $0x28] sm:$0x1]
        %v1467 = vld [vmem:[%s1329 + $0x29] sm:$0x1]
        %v1468 = vld [vmem:[%s1329 + $0x2a] sm:$0x1]
        %v1469 = vld [vmem:[%s1329 + $0x2b] sm:$0x1]
        %v1470 = vld [vmem:[%s1329 + $0x2c] sm:$0x1]
        %v1471 = vld [vmem:[%s1329 + $0x2d] sm:$0x1]
        %v1472 = vld [vmem:[%s1329 + $0x2e] sm:$0x1]
        %v1473 = vld [vmem:[%s1329 + $0x2f] sm:$0x1]
        %v1474 = vld [vmem:[%s1329 + $0x30] sm:$0x1]
        %v1475 = vld [vmem:[%s1329 + $0x31] sm:$0x1]
        %v1476 = vld [vmem:[%s1329 + $0x32] sm:$0x1]
        %v1477 = vld [vmem:[%s1329 + $0x33] sm:$0x1]
        %v1478 = vld [vmem:[%s1329 + $0x34] sm:$0x1]
        %v1479 = vld [vmem:[%s1329 + $0x35] sm:$0x1]
        %v1480 = vld [vmem:[%s1329 + $0x36] sm:$0x1]
        %v1481 = vld [vmem:[%s1329 + $0x37] sm:$0x1]
        %v1482 = vld [vmem:[%s1329 + $0x38] sm:$0x1]
        %v1483 = vld [vmem:[%s1329 + $0x39] sm:$0x1]
        %v1484 = vld [vmem:[%s1329 + $0x3a] sm:$0x1]
        %v1485 = vld [vmem:[%s1329 + $0x3b] sm:$0x1]
        %v1486 = vld [vmem:[%s1329 + $0x3c] sm:$0x1]
        %v1487 = vld [vmem:[%s1329 + $0x3d] sm:$0x1]
        %v1488 = vld [vmem:[%s1329 + $0x3e] sm:$0x1]
        %v1489 = vld [vmem:[%s1329 + $0x3f] sm:$0x1]
        %v1490 = vld [vmem:[%s1336] sm:$0x1]
        %v1491 = vld [vmem:[%s1336 + $0x1] sm:$0x1]
        %v1492 = vld [vmem:[%s1336 + $0x2] sm:$0x1]
        %v1493 = vld [vmem:[%s1336 + $0x3] sm:$0x1]
        %v1494 = vld [vmem:[%s1336 + $0x4] sm:$0x1]
        %v1495 = vld [vmem:[%s1336 + $0x5] sm:$0x1]
        %v1496 = vld [vmem:[%s1336 + $0x6] sm:$0x1]
        %v1497 = vld [vmem:[%s1336 + $0x7] sm:$0x1]
        %v1498 = vld [vmem:[%s1336 + $0x8] sm:$0x1]
        %v1499 = vld [vmem:[%s1336 + $0x9] sm:$0x1]
        %v1500 = vld [vmem:[%s1336 + $0xa] sm:$0x1]
        %v1501 = vld [vmem:[%s1336 + $0xb] sm:$0x1]
        %v1502 = vld [vmem:[%s1336 + $0xc] sm:$0x1]
        %v1503 = vld [vmem:[%s1336 + $0xd] sm:$0x1]
        %v1504 = vld [vmem:[%s1336 + $0xe] sm:$0x1]
        %v1505 = vld [vmem:[%s1336 + $0xf] sm:$0x1]
        %v1506 = vld [vmem:[%s1336 + $0x10] sm:$0x1]
        %v1507 = vld [vmem:[%s1336 + $0x11] sm:$0x1]
        %v1508 = vld [vmem:[%s1336 + $0x12] sm:$0x1]
        %v1509 = vld [vmem:[%s1336 + $0x13] sm:$0x1]
        %v1510 = vld [vmem:[%s1336 + $0x14] sm:$0x1]
        %v1511 = vld [vmem:[%s1336 + $0x15] sm:$0x1]
        %v1512 = vld [vmem:[%s1336 + $0x16] sm:$0x1]
        %v1513 = vld [vmem:[%s1336 + $0x17] sm:$0x1]
        %v1514 = vld [vmem:[%s1336 + $0x18] sm:$0x1]
        %v1515 = vld [vmem:[%s1336 + $0x19] sm:$0x1]
        %v1516 = vld [vmem:[%s1336 + $0x1a] sm:$0x1]
        %v1517 = vld [vmem:[%s1336 + $0x1b] sm:$0x1]
        %v1518 = vld [vmem:[%s1336 + $0x1c] sm:$0x1]
        %v1519 = vld [vmem:[%s1336 + $0x1d] sm:$0x1]
        %v1520 = vld [vmem:[%s1336 + $0x1e] sm:$0x1]
        %v1521 = vld [vmem:[%s1336 + $0x1f] sm:$0x1]
        %v1522 = vld [vmem:[%s1336 + $0x20] sm:$0x1]
        %v1523 = vld [vmem:[%s1336 + $0x21] sm:$0x1]
        %v1524 = vld [vmem:[%s1336 + $0x22] sm:$0x1]
        %v1525 = vld [vmem:[%s1336 + $0x23] sm:$0x1]
        %v1526 = vld [vmem:[%s1336 + $0x24] sm:$0x1]
        %v1527 = vld [vmem:[%s1336 + $0x25] sm:$0x1]
        %v1528 = vld [vmem:[%s1336 + $0x26] sm:$0x1]
        %v1529 = vld [vmem:[%s1336 + $0x27] sm:$0x1]
        %v1530 = vld [vmem:[%s1336 + $0x28] sm:$0x1]
        %v1531 = vld [vmem:[%s1336 + $0x29] sm:$0x1]
        %v1532 = vld [vmem:[%s1336 + $0x2a] sm:$0x1]
        %v1533 = vld [vmem:[%s1336 + $0x2b] sm:$0x1]
        %v1534 = vld [vmem:[%s1336 + $0x2c] sm:$0x1]
        %v1535 = vld [vmem:[%s1336 + $0x2d] sm:$0x1]
        %v1536 = vld [vmem:[%s1336 + $0x2e] sm:$0x1]
        %v1537 = vld [vmem:[%s1336 + $0x2f] sm:$0x1]
        %v1538 = vld [vmem:[%s1336 + $0x30] sm:$0x1]
        %v1539 = vld [vmem:[%s1336 + $0x31] sm:$0x1]
        %v1540 = vld [vmem:[%s1336 + $0x32] sm:$0x1]
        %v1541 = vld [vmem:[%s1336 + $0x33] sm:$0x1]
        %v1542 = vld [vmem:[%s1336 + $0x34] sm:$0x1]
        %v1543 = vld [vmem:[%s1336 + $0x35] sm:$0x1]
        %v1544 = vld [vmem:[%s1336 + $0x36] sm:$0x1]
        %v1545 = vld [vmem:[%s1336 + $0x37] sm:$0x1]
        %v1546 = vld [vmem:[%s1336 + $0x38] sm:$0x1]
        %v1547 = vld [vmem:[%s1336 + $0x39] sm:$0x1]
        %v1548 = vld [vmem:[%s1336 + $0x3a] sm:$0x1]
        %v1549 = vld [vmem:[%s1336 + $0x3b] sm:$0x1]
        %v1550 = vld [vmem:[%s1336 + $0x3c] sm:$0x1]
        %v1551 = vld [vmem:[%s1336 + $0x3d] sm:$0x1]
        %v1552 = vld [vmem:[%s1336 + $0x3e] sm:$0x1]
        %v1553 = vld [vmem:[%s1336 + $0x3f] sm:$0x1]
        %v1554 = vld [vmem:[%s1343] sm:$0x1]
        %v1555 = vld [vmem:[%s1343 + $0x2] sm:$0x1]
        %v1556 = vld [vmem:[%s1343 + $0x4] sm:$0x1]
        %v1557 = vld [vmem:[%s1343 + $0x6] sm:$0x1]
        %v1558 = vld [vmem:[%s1350] sm:$0x1]
        %v1559 = vld [vmem:[%s1350 + $0x2] sm:$0x1]
        %v1560 = vld [vmem:[%s1350 + $0x4] sm:$0x1]
        %v1561 = vld [vmem:[%s1350 + $0x6] sm:$0x1]
        %v1562 = vadd.f32 %v1426, %v1490
        %v1563 = vadd.f32 %v1428, %v1492
        %v1564 = vadd.f32 %v1430, %v1494
        %v1565 = vadd.f32 %v1432, %v1496
        %v1566 = vadd.f32 %v1434, %v1498
        %v1567 = vadd.f32 %v1436, %v1500
        %v1568 = vadd.f32 %v1438, %v1502
        %v1569 = vadd.f32 %v1440, %v1504
        %v1570 = vadd.f32 %v1442, %v1506
        %v1571 = vadd.f32 %v1444, %v1508
        %v1572 = vadd.f32 %v1446, %v1510
        %v1573 = vadd.f32 %v1448, %v1512
        %v1574 = vadd.f32 %v1450, %v1514
        %v1575 = vadd.f32 %v1452, %v1516
        %v1576 = vadd.f32 %v1454, %v1518
        %v1577 = vadd.f32 %v1456, %v1520
        %v1578 = vadd.f32 %v1458, %v1522
        %v1579 = vadd.f32 %v1460, %v1524
        %v1580 = vadd.f32 %v1462, %v1526
        %v1581 = vadd.f32 %v1464, %v1528
        %v1582 = vadd.f32 %v1466, %v1530
        %v1583 = vadd.f32 %v1468, %v1532
        %v1584 = vadd.f32 %v1470, %v1534
        %v1585 = vadd.f32 %v1472, %v1536
        %v1586 = vadd.f32 %v1474, %v1538
        %v1587 = vadd.f32 %v1476, %v1540
        %v1588 = vadd.f32 %v1478, %v1542
        %v1589 = vadd.f32 %v1480, %v1544
        %v1590 = vadd.f32 %v1482, %v1546
        %v1591 = vadd.f32 %v1484, %v1548
        %v1592 = vadd.f32 %v1486, %v1550
        %v1593 = vadd.f32 %v1488, %v1552
        %1626 = vrot.lane.b32.xlu0 %v1426, 127
        %v1627 = vpop.permute.xlu0 %1626
        %1628 = vrot.lane.b32.xlu0 %v1428, 127
        %v1629 = vpop.permute.xlu0 %1628
        %1630 = vrot.lane.b32.xlu0 %v1430, 127
        %v1631 = vpop.permute.xlu0 %1630
        %1632 = vrot.lane.b32.xlu0 %v1432, 127
        %v1633 = vpop.permute.xlu0 %1632
        %1634 = vrot.lane.b32.xlu0 %v1434, 127
        %v1635 = vpop.permute.xlu0 %1634
        %1636 = vrot.lane.b32.xlu0 %v1436, 127
        %v1637 = vpop.permute.xlu0 %1636
        %1638 = vrot.lane.b32.xlu0 %v1438, 127
        %v1639 = vpop.permute.xlu0 %1638
        %1640 = vrot.lane.b32.xlu0 %v1440, 127
        %v1641 = vpop.permute.xlu0 %1640
        %1642 = vrot.lane.b32.xlu0 %v1442, 127
        %v1643 = vpop.permute.xlu0 %1642
        %1644 = vrot.lane.b32.xlu0 %v1444, 127
        %v1645 = vpop.permute.xlu0 %1644
        %1646 = vrot.lane.b32.xlu0 %v1446, 127
        %v1647 = vpop.permute.xlu0 %1646
        %1648 = vrot.lane.b32.xlu0 %v1448, 127
        %v1649 = vpop.permute.xlu0 %1648
        %1650 = vrot.lane.b32.xlu0 %v1450, 127
        %v1651 = vpop.permute.xlu0 %1650
        %1652 = vrot.lane.b32.xlu0 %v1452, 127
        %v1653 = vpop.permute.xlu0 %1652
        %1654 = vrot.lane.b32.xlu0 %v1454, 127
        %v1655 = vpop.permute.xlu0 %1654
        %1656 = vrot.lane.b32.xlu0 %v1456, 127
        %v1657 = vpop.permute.xlu0 %1656
        %1658 = vrot.lane.b32.xlu0 %v1458, 127
        %v1659 = vpop.permute.xlu0 %1658
        %1660 = vrot.lane.b32.xlu0 %v1460, 127
        %v1661 = vpop.permute.xlu0 %1660
        %1662 = vrot.lane.b32.xlu0 %v1462, 127
        %v1663 = vpop.permute.xlu0 %1662
        %1664 = vrot.lane.b32.xlu0 %v1464, 127
        %v1665 = vpop.permute.xlu0 %1664
        %1666 = vrot.lane.b32.xlu0 %v1466, 127
        %v1667 = vpop.permute.xlu0 %1666
        %1668 = vrot.lane.b32.xlu0 %v1468, 127
        %v1669 = vpop.permute.xlu0 %1668
        %1670 = vrot.lane.b32.xlu0 %v1470, 127
        %v1671 = vpop.permute.xlu0 %1670
        %1672 = vrot.lane.b32.xlu0 %v1472, 127
        %v1673 = vpop.permute.xlu0 %1672
        %1674 = vrot.lane.b32.xlu0 %v1474, 127
        %v1675 = vpop.permute.xlu0 %1674
        %1676 = vrot.lane.b32.xlu0 %v1476, 127
        %v1677 = vpop.permute.xlu0 %1676
        %1678 = vrot.lane.b32.xlu0 %v1478, 127
        %v1679 = vpop.permute.xlu0 %1678
        %1680 = vrot.lane.b32.xlu0 %v1480, 127
        %v1681 = vpop.permute.xlu0 %1680
        %1682 = vrot.lane.b32.xlu0 %v1482, 127
        %v1683 = vpop.permute.xlu0 %1682
        %1684 = vrot.lane.b32.xlu0 %v1484, 127
        %v1685 = vpop.permute.xlu0 %1684
        %1686 = vrot.lane.b32.xlu0 %v1486, 127
        %v1687 = vpop.permute.xlu0 %1686
        %1688 = vrot.lane.b32.xlu0 %v1488, 127
        %v1689 = vpop.permute.xlu0 %1688
        %v1722 = vadd.f32 %v1562, %v1627
        %v1723 = vadd.f32 %v1563, %v1629
        %v1724 = vadd.f32 %v1564, %v1631
        %v1725 = vadd.f32 %v1565, %v1633
        %v1726 = vadd.f32 %v1566, %v1635
        %v1727 = vadd.f32 %v1567, %v1637
        %v1728 = vadd.f32 %v1568, %v1639
        %v1729 = vadd.f32 %v1569, %v1641
        %v1730 = vadd.f32 %v1570, %v1643
        %v1731 = vadd.f32 %v1571, %v1645
        %v1732 = vadd.f32 %v1572, %v1647
        %v1733 = vadd.f32 %v1573, %v1649
        %v1734 = vadd.f32 %v1574, %v1651
        %v1735 = vadd.f32 %v1575, %v1653
        %v1736 = vadd.f32 %v1576, %v1655
        %v1737 = vadd.f32 %v1577, %v1657
        %v1738 = vadd.f32 %v1578, %v1659
        %v1739 = vadd.f32 %v1579, %v1661
        %v1740 = vadd.f32 %v1580, %v1663
        %v1741 = vadd.f32 %v1581, %v1665
        %v1742 = vadd.f32 %v1582, %v1667
        %v1743 = vadd.f32 %v1583, %v1669
        %v1744 = vadd.f32 %v1584, %v1671
        %v1745 = vadd.f32 %v1585, %v1673
        %v1746 = vadd.f32 %v1586, %v1675
        %v1747 = vadd.f32 %v1587, %v1677
        %v1748 = vadd.f32 %v1588, %v1679
        %v1749 = vadd.f32 %v1589, %v1681
        %v1750 = vadd.f32 %v1590, %v1683
        %v1751 = vadd.f32 %v1591, %v1685
        %v1752 = vadd.f32 %v1592, %v1687
        %v1753 = vadd.f32 %v1593, %v1689
        %v1754 = vadd.f32 %v1427, %v1491
        %v1755 = vadd.f32 %v1429, %v1493
        %v1756 = vadd.f32 %v1431, %v1495
        %v1757 = vadd.f32 %v1433, %v1497
        %v1758 = vadd.f32 %v1435, %v1499
        %v1759 = vadd.f32 %v1437, %v1501
        %v1760 = vadd.f32 %v1439, %v1503
        %v1761 = vadd.f32 %v1441, %v1505
        %v1762 = vadd.f32 %v1443, %v1507
        %v1763 = vadd.f32 %v1445, %v1509
        %v1764 = vadd.f32 %v1447, %v1511
        %v1765 = vadd.f32 %v1449, %v1513
        %v1766 = vadd.f32 %v1451, %v1515
        %v1767 = vadd.f32 %v1453, %v1517
        %v1768 = vadd.f32 %v1455, %v1519
        %v1769 = vadd.f32 %v1457, %v1521
        %v1770 = vadd.f32 %v1459, %v1523
        %v1771 = vadd.f32 %v1461, %v1525
        %v1772 = vadd.f32 %v1463, %v1527
        %v1773 = vadd.f32 %v1465, %v1529
        %v1774 = vadd.f32 %v1467, %v1531
        %v1775 = vadd.f32 %v1469, %v1533
        %v1776 = vadd.f32 %v1471, %v1535
        %v1777 = vadd.f32 %v1473, %v1537
        %v1778 = vadd.f32 %v1475, %v1539
        %v1779 = vadd.f32 %v1477, %v1541
        %v1780 = vadd.f32 %v1479, %v1543
        %v1781 = vadd.f32 %v1481, %v1545
        %v1782 = vadd.f32 %v1483, %v1547
        %v1783 = vadd.f32 %v1485, %v1549
        %v1784 = vadd.f32 %v1487, %v1551
        %v1785 = vadd.f32 %v1489, %v1553
        %1818 = vrot.lane.b32.xlu0 %v1427, 127
        %v1819 = vpop.permute.xlu0 %1818
        %1820 = vrot.lane.b32.xlu0 %v1429, 127
        %v1821 = vpop.permute.xlu0 %1820
        %1822 = vrot.lane.b32.xlu0 %v1431, 127
        %v1823 = vpop.permute.xlu0 %1822
        %1824 = vrot.lane.b32.xlu0 %v1433, 127
        %v1825 = vpop.permute.xlu0 %1824
        %1826 = vrot.lane.b32.xlu0 %v1435, 127
        %v1827 = vpop.permute.xlu0 %1826
        %1828 = vrot.lane.b32.xlu0 %v1437, 127
        %v1829 = vpop.permute.xlu0 %1828
        %1830 = vrot.lane.b32.xlu0 %v1439, 127
        %v1831 = vpop.permute.xlu0 %1830
        %1832 = vrot.lane.b32.xlu0 %v1441, 127
        %v1833 = vpop.permute.xlu0 %1832
        %1834 = vrot.lane.b32.xlu0 %v1443, 127
        %v1835 = vpop.permute.xlu0 %1834
        %1836 = vrot.lane.b32.xlu0 %v1445, 127
        %v1837 = vpop.permute.xlu0 %1836
        %1838 = vrot.lane.b32.xlu0 %v1447, 127
        %v1839 = vpop.permute.xlu0 %1838
        %1840 = vrot.lane.b32.xlu0 %v1449, 127
        %v1841 = vpop.permute.xlu0 %1840
        %1842 = vrot.lane.b32.xlu0 %v1451, 127
        %v1843 = vpop.permute.xlu0 %1842
        %1844 = vrot.lane.b32.xlu0 %v1453, 127
        %v1845 = vpop.permute.xlu0 %1844
        %1846 = vrot.lane.b32.xlu0 %v1455, 127
        %v1847 = vpop.permute.xlu0 %1846
        %1848 = vrot.lane.b32.xlu0 %v1457, 127
        %v1849 = vpop.permute.xlu0 %1848
        %1850 = vrot.lane.b32.xlu0 %v1459, 127
        %v1851 = vpop.permute.xlu0 %1850
        %1852 = vrot.lane.b32.xlu0 %v1461, 127
        %v1853 = vpop.permute.xlu0 %1852
        %1854 = vrot.lane.b32.xlu0 %v1463, 127
        %v1855 = vpop.permute.xlu0 %1854
        %1856 = vrot.lane.b32.xlu0 %v1465, 127
        %v1857 = vpop.permute.xlu0 %1856
        %1858 = vrot.lane.b32.xlu0 %v1467, 127
        %v1859 = vpop.permute.xlu0 %1858
        %1860 = vrot.lane.b32.xlu0 %v1469, 127
        %v1861 = vpop.permute.xlu0 %1860
        %1862 = vrot.lane.b32.xlu0 %v1471, 127
        %v1863 = vpop.permute.xlu0 %1862
        %1864 = vrot.lane.b32.xlu0 %v1473, 127
        %v1865 = vpop.permute.xlu0 %1864
        %1866 = vrot.lane.b32.xlu0 %v1475, 127
        %v1867 = vpop.permute.xlu0 %1866
        %1868 = vrot.lane.b32.xlu0 %v1477, 127
        %v1869 = vpop.permute.xlu0 %1868
        %1870 = vrot.lane.b32.xlu0 %v1479, 127
        %v1871 = vpop.permute.xlu0 %1870
        %1872 = vrot.lane.b32.xlu0 %v1481, 127
        %v1873 = vpop.permute.xlu0 %1872
        %1874 = vrot.lane.b32.xlu0 %v1483, 127
        %v1875 = vpop.permute.xlu0 %1874
        %1876 = vrot.lane.b32.xlu0 %v1485, 127
        %v1877 = vpop.permute.xlu0 %1876
        %1878 = vrot.lane.b32.xlu0 %v1487, 127
        %v1879 = vpop.permute.xlu0 %1878
        %1880 = vrot.lane.b32.xlu0 %v1489, 127
        %v1881 = vpop.permute.xlu0 %1880
        %v1914 = vadd.f32 %v1754, %v1819
        %v1915 = vadd.f32 %v1755, %v1821
        %v1916 = vadd.f32 %v1756, %v1823
        %v1917 = vadd.f32 %v1757, %v1825
        %v1918 = vadd.f32 %v1758, %v1827
        %v1919 = vadd.f32 %v1759, %v1829
        %v1920 = vadd.f32 %v1760, %v1831
        %v1921 = vadd.f32 %v1761, %v1833
        %v1922 = vadd.f32 %v1762, %v1835
        %v1923 = vadd.f32 %v1763, %v1837
        %v1924 = vadd.f32 %v1764, %v1839
        %v1925 = vadd.f32 %v1765, %v1841
        %v1926 = vadd.f32 %v1766, %v1843
        %v1927 = vadd.f32 %v1767, %v1845
        %v1928 = vadd.f32 %v1768, %v1847
        %v1929 = vadd.f32 %v1769, %v1849
        %v1930 = vadd.f32 %v1770, %v1851
        %v1931 = vadd.f32 %v1771, %v1853
        %v1932 = vadd.f32 %v1772, %v1855
        %v1933 = vadd.f32 %v1773, %v1857
        %v1934 = vadd.f32 %v1774, %v1859
        %v1935 = vadd.f32 %v1775, %v1861
        %v1936 = vadd.f32 %v1776, %v1863
        %v1937 = vadd.f32 %v1777, %v1865
        %v1938 = vadd.f32 %v1778, %v1867
        %v1939 = vadd.f32 %v1779, %v1869
        %v1940 = vadd.f32 %v1780, %v1871
        %v1941 = vadd.f32 %v1781, %v1873
        %v1942 = vadd.f32 %v1782, %v1875
        %v1943 = vadd.f32 %v1783, %v1877
        %v1944 = vadd.f32 %v1784, %v1879
        %v1945 = vadd.f32 %v1785, %v1881
        %v1946 = vadd.f32 %v1722, %v1914
        %v1947 = vadd.f32 %v1723, %v1915
        %v1948 = vadd.f32 %v1724, %v1916
        %v1949 = vadd.f32 %v1725, %v1917
        %v1950 = vadd.f32 %v1726, %v1918
        %v1951 = vadd.f32 %v1727, %v1919
        %v1952 = vadd.f32 %v1728, %v1920
        %v1953 = vadd.f32 %v1729, %v1921
        %v1954 = vadd.f32 %v1730, %v1922
        %v1955 = vadd.f32 %v1731, %v1923
        %v1956 = vadd.f32 %v1732, %v1924
        %v1957 = vadd.f32 %v1733, %v1925
        %v1958 = vadd.f32 %v1734, %v1926
        %v1959 = vadd.f32 %v1735, %v1927
        %v1960 = vadd.f32 %v1736, %v1928
        %v1961 = vadd.f32 %v1737, %v1929
        %v1962 = vadd.f32 %v1738, %v1930
        %v1963 = vadd.f32 %v1739, %v1931
        %v1964 = vadd.f32 %v1740, %v1932
        %v1965 = vadd.f32 %v1741, %v1933
        %v1966 = vadd.f32 %v1742, %v1934
        %v1967 = vadd.f32 %v1743, %v1935
        %v1968 = vadd.f32 %v1744, %v1936
        %v1969 = vadd.f32 %v1745, %v1937
        %v1970 = vadd.f32 %v1746, %v1938
        %v1971 = vadd.f32 %v1747, %v1939
        %v1972 = vadd.f32 %v1748, %v1940
        %v1973 = vadd.f32 %v1749, %v1941
        %v1974 = vadd.f32 %v1750, %v1942
        %v1975 = vadd.f32 %v1751, %v1943
        %v1976 = vadd.f32 %v1752, %v1944
        %v1977 = vadd.f32 %v1753, %v1945
        %v1978 = vadd.f32 %v1554, %v1558
        %v1979 = vadd.f32 %v1555, %v1559
        %v1980 = vadd.f32 %v1556, %v1560
        %v1981 = vadd.f32 %v1557, %v1561
        %1986 = vrot.lane.b32.xlu0 %v1554, 127
        %v1987 = vpop.permute.xlu0 %1986
        %1988 = vrot.lane.b32.xlu0 %v1555, 127
        %v1989 = vpop.permute.xlu0 %1988
        %1990 = vrot.lane.b32.xlu0 %v1556, 127
        %v1991 = vpop.permute.xlu0 %1990
        %1992 = vrot.lane.b32.xlu0 %v1557, 127
        %v1993 = vpop.permute.xlu0 %1992
        %v1998 = vadd.f32 %v1978, %v1987
        %v1999 = vadd.f32 %v1979, %v1989
        %v2000 = vadd.f32 %v1980, %v1991
        %v2001 = vadd.f32 %v1981, %v1993
        %v2002 = vadd.f32 %v1946, %v1723
        %v2003 = vadd.f32 %v1947, %v1724
        %v2004 = vadd.f32 %v1948, %v1725
        %v2005 = vadd.f32 %v1949, %v1726
        %v2006 = vadd.f32 %v1950, %v1727
        %v2007 = vadd.f32 %v1951, %v1728
        %v2008 = vadd.f32 %v1952, %v1729
        %v2009 = vadd.f32 %v1953, %v1998
        %v2010 = vadd.f32 %v1954, %v1731
        %v2011 = vadd.f32 %v1955, %v1732
        %v2012 = vadd.f32 %v1956, %v1733
        %v2013 = vadd.f32 %v1957, %v1734
        %v2014 = vadd.f32 %v1958, %v1735
        %v2015 = vadd.f32 %v1959, %v1736
        %v2016 = vadd.f32 %v1960, %v1737
        %v2017 = vadd.f32 %v1961, %v1999
        %v2018 = vadd.f32 %v1962, %v1739
        %v2019 = vadd.f32 %v1963, %v1740
        %v2020 = vadd.f32 %v1964, %v1741
        %v2021 = vadd.f32 %v1965, %v1742
        %v2022 = vadd.f32 %v1966, %v1743
        %v2023 = vadd.f32 %v1967, %v1744
        %v2024 = vadd.f32 %v1968, %v1745
        %v2025 = vadd.f32 %v1969, %v2000
        %v2026 = vadd.f32 %v1970, %v1747
        %v2027 = vadd.f32 %v1971, %v1748
        %v2028 = vadd.f32 %v1972, %v1749
        %v2029 = vadd.f32 %v1973, %v1750
        %v2030 = vadd.f32 %v1974, %v1751
        %v2031 = vadd.f32 %v1975, %v1752
        %v2032 = vadd.f32 %v1976, %v1753
        %v2033 = vadd.f32 %v1977, %v2001
        %s2034 = sld [smem:[#allocation6]]
        %v2035 = vstv %s2034
        %v2036 = vmul.f32 %v2035, %v2002
        %v2037 = vmul.f32 %v2035, %v2003
        %v2038 = vmul.f32 %v2035, %v2004
        %v2039 = vmul.f32 %v2035, %v2005
        %v2040 = vmul.f32 %v2035, %v2006
        %v2041 = vmul.f32 %v2035, %v2007
        %v2042 = vmul.f32 %v2035, %v2008
        %v2043 = vmul.f32 %v2035, %v2009
        %s2044 = sld [smem:[#allocation6 + $0x1]]
        %v2045 = vstv %s2044
        %v2046 = vmul.f32 %v2045, %v2010
        %v2047 = vmul.f32 %v2045, %v2011
        %v2048 = vmul.f32 %v2045, %v2012
        %v2049 = vmul.f32 %v2045, %v2013
        %v2050 = vmul.f32 %v2045, %v2014
        %v2051 = vmul.f32 %v2045, %v2015
        %v2052 = vmul.f32 %v2045, %v2016
        %v2053 = vmul.f32 %v2045, %v2017
        %v2054 = vadd.f32 %v2036, %v2046
        %v2055 = vadd.f32 %v2037, %v2047
        %v2056 = vadd.f32 %v2038, %v2048
        %v2057 = vadd.f32 %v2039, %v2049
        %v2058 = vadd.f32 %v2040, %v2050
        %v2059 = vadd.f32 %v2041, %v2051
        %v2060 = vadd.f32 %v2042, %v2052
        %v2061 = vadd.f32 %v2043, %v2053
        %s2062 = sld [smem:[#allocation6 + $0x2]]
        %v2063 = vstv %s2062
        %v2064 = vmul.f32 %v2063, %v2018
        %v2065 = vmul.f32 %v2063, %v2019
        %v2066 = vmul.f32 %v2063, %v2020
        %v2067 = vmul.f32 %v2063, %v2021
        %v2068 = vmul.f32 %v2063, %v2022
        %v2069 = vmul.f32 %v2063, %v2023
        %v2070 = vmul.f32 %v2063, %v2024
        %v2071 = vmul.f32 %v2063, %v2025
        %v2072 = vadd.f32 %v2054, %v2064
        %v2073 = vadd.f32 %v2055, %v2065
        %v2074 = vadd.f32 %v2056, %v2066
        %v2075 = vadd.f32 %v2057, %v2067
        %v2076 = vadd.f32 %v2058, %v2068
        %v2077 = vadd.f32 %v2059, %v2069
        %v2078 = vadd.f32 %v2060, %v2070
        %v2079 = vadd.f32 %v2061, %v2071
        %s2080 = sld [smem:[#allocation6 + $0x3]]
        %v2081 = vstv %s2080
        %v2082 = vmul.f32 %v2081, %v2026
        %v2083 = vmul.f32 %v2081, %v2027
        %v2084 = vmul.f32 %v2081, %v2028
        %v2085 = vmul.f32 %v2081, %v2029
        %v2086 = vmul.f32 %v2081, %v2030
        %v2087 = vmul.f32 %v2081, %v2031
        %v2088 = vmul.f32 %v2081, %v2032
        %v2089 = vmul.f32 %v2081, %v2033
        %v2090 = vadd.f32 %v2072, %v2082
        %v2091 = vadd.f32 %v2073, %v2083
        %v2092 = vadd.f32 %v2074, %v2084
        %v2093 = vadd.f32 %v2075, %v2085
        %v2094 = vadd.f32 %v2076, %v2086
        %v2095 = vadd.f32 %v2077, %v2087
        %v2096 = vadd.f32 %v2078, %v2088
        %v2097 = vadd.f32 %v2079, %v2089
        %s2098 = sld [smem:[#allocation6 + $0x80]]
        %v2099 = vstv %s2098
        %v2100 = vmul.f32 %v2099, %v2002
        %v2101 = vmul.f32 %v2099, %v2003
        %v2102 = vmul.f32 %v2099, %v2004
        %v2103 = vmul.f32 %v2099, %v2005
        %v2104 = vmul.f32 %v2099, %v2006
        %v2105 = vmul.f32 %v2099, %v2007
        %v2106 = vmul.f32 %v2099, %v2008
        %v2107 = vmul.f32 %v2099, %v2009
        %s2108 = sld [smem:[#allocation6 + $0x81]]
        %v2109 = vstv %s2108
        %v2110 = vmul.f32 %v2109, %v2010
        %v2111 = vmul.f32 %v2109, %v2011
        %v2112 = vmul.f32 %v2109, %v2012
        %v2113 = vmul.f32 %v2109, %v2013
        %v2114 = vmul.f32 %v2109, %v2014
        %v2115 = vmul.f32 %v2109, %v2015
        %v2116 = vmul.f32 %v2109, %v2016
        %v2117 = vmul.f32 %v2109, %v2017
        %v2118 = vadd.f32 %v2100, %v2110
        %v2119 = vadd.f32 %v2101, %v2111
        %v2120 = vadd.f32 %v2102, %v2112
        %v2121 = vadd.f32 %v2103, %v2113
        %v2122 = vadd.f32 %v2104, %v2114
        %v2123 = vadd.f32 %v2105, %v2115
        %v2124 = vadd.f32 %v2106, %v2116
        %v2125 = vadd.f32 %v2107, %v2117
        %s2126 = sld [smem:[#allocation6 + $0x82]]
        %v2127 = vstv %s2126
        %v2128 = vmul.f32 %v2127, %v2018
        %v2129 = vmul.f32 %v2127, %v2019
        %v2130 = vmul.f32 %v2127, %v2020
        %v2131 = vmul.f32 %v2127, %v2021
        %v2132 = vmul.f32 %v2127, %v2022
        %v2133 = vmul.f32 %v2127, %v2023
        %v2134 = vmul.f32 %v2127, %v2024
        %v2135 = vmul.f32 %v2127, %v2025
        %v2136 = vadd.f32 %v2118, %v2128
        %v2137 = vadd.f32 %v2119, %v2129
        %v2138 = vadd.f32 %v2120, %v2130
        %v2139 = vadd.f32 %v2121, %v2131
        %v2140 = vadd.f32 %v2122, %v2132
        %v2141 = vadd.f32 %v2123, %v2133
        %v2142 = vadd.f32 %v2124, %v2134
        %v2143 = vadd.f32 %v2125, %v2135
        %s2144 = sld [smem:[#allocation6 + $0x83]]
        %v2145 = vstv %s2144
        %v2146 = vmul.f32 %v2145, %v2026
        %v2147 = vmul.f32 %v2145, %v2027
        %v2148 = vmul.f32 %v2145, %v2028
        %v2149 = vmul.f32 %v2145, %v2029
        %v2150 = vmul.f32 %v2145, %v2030
        %v2151 = vmul.f32 %v2145, %v2031
        %v2152 = vmul.f32 %v2145, %v2032
        %v2153 = vmul.f32 %v2145, %v2033
        %v2154 = vadd.f32 %v2136, %v2146
        %v2155 = vadd.f32 %v2137, %v2147
        %v2156 = vadd.f32 %v2138, %v2148
        %v2157 = vadd.f32 %v2139, %v2149
        %v2158 = vadd.f32 %v2140, %v2150
        %v2159 = vadd.f32 %v2141, %v2151
        %v2160 = vadd.f32 %v2142, %v2152
        %v2161 = vadd.f32 %v2143, %v2153
        %s2162 = sld [smem:[#allocation6 + $0x100]]
        %v2163 = vstv %s2162
        %v2164 = vmul.f32 %v2163, %v2002
        %v2165 = vmul.f32 %v2163, %v2003
        %v2166 = vmul.f32 %v2163, %v2004
        %v2167 = vmul.f32 %v2163, %v2005
        %v2168 = vmul.f32 %v2163, %v2006
        %v2169 = vmul.f32 %v2163, %v2007
        %v2170 = vmul.f32 %v2163, %v2008
        %v2171 = vmul.f32 %v2163, %v2009
        %s2172 = sld [smem:[#allocation6 + $0x101]]
        %v2173 = vstv %s2172
        %v2174 = vmul.f32 %v2173, %v2010
        %v2175 = vmul.f32 %v2173, %v2011
        %v2176 = vmul.f32 %v2173, %v2012
        %v2177 = vmul.f32 %v2173, %v2013
        %v2178 = vmul.f32 %v2173, %v2014
        %v2179 = vmul.f32 %v2173, %v2015
        %v2180 = vmul.f32 %v2173, %v2016
        %v2181 = vmul.f32 %v2173, %v2017
        %v2182 = vadd.f32 %v2164, %v2174
        %v2183 = vadd.f32 %v2165, %v2175
        %v2184 = vadd.f32 %v2166, %v2176
        %v2185 = vadd.f32 %v2167, %v2177
        %v2186 = vadd.f32 %v2168, %v2178
        %v2187 = vadd.f32 %v2169, %v2179
        %v2188 = vadd.f32 %v2170, %v2180
        %v2189 = vadd.f32 %v2171, %v2181
        %s2190 = sld [smem:[#allocation6 + $0x102]]
        %v2191 = vstv %s2190
        %v2192 = vmul.f32 %v2191, %v2018
        %v2193 = vmul.f32 %v2191, %v2019
        %v2194 = vmul.f32 %v2191, %v2020
        %v2195 = vmul.f32 %v2191, %v2021
        %v2196 = vmul.f32 %v2191, %v2022
        %v2197 = vmul.f32 %v2191, %v2023
        %v2198 = vmul.f32 %v2191, %v2024
        %v2199 = vmul.f32 %v2191, %v2025
        %v2200 = vadd.f32 %v2182, %v2192
        %v2201 = vadd.f32 %v2183, %v2193
        %v2202 = vadd.f32 %v2184, %v2194
        %v2203 = vadd.f32 %v2185, %v2195
        %v2204 = vadd.f32 %v2186, %v2196
        %v2205 = vadd.f32 %v2187, %v2197
        %v2206 = vadd.f32 %v2188, %v2198
        %v2207 = vadd.f32 %v2189, %v2199
        %s2208 = sld [smem:[#allocation6 + $0x103]]
        %v2209 = vstv %s2208
        %v2210 = vmul.f32 %v2209, %v2026
        %v2211 = vmul.f32 %v2209, %v2027
        %v2212 = vmul.f32 %v2209, %v2028
        %v2213 = vmul.f32 %v2209, %v2029
        %v2214 = vmul.f32 %v2209, %v2030
        %v2215 = vmul.f32 %v2209, %v2031
        %v2216 = vmul.f32 %v2209, %v2032
        %v2217 = vmul.f32 %v2209, %v2033
        %v2218 = vadd.f32 %v2200, %v2210
        %v2219 = vadd.f32 %v2201, %v2211
        %v2220 = vadd.f32 %v2202, %v2212
        %v2221 = vadd.f32 %v2203, %v2213
        %v2222 = vadd.f32 %v2204, %v2214
        %v2223 = vadd.f32 %v2205, %v2215
        %v2224 = vadd.f32 %v2206, %v2216
        %v2225 = vadd.f32 %v2207, %v2217
        %s2226 = sld [smem:[#allocation6 + $0x180]]
        %v2227 = vstv %s2226
        %v2228 = vmul.f32 %v2227, %v2002
        %v2229 = vmul.f32 %v2227, %v2003
        %v2230 = vmul.f32 %v2227, %v2004
        %v2231 = vmul.f32 %v2227, %v2005
        %v2232 = vmul.f32 %v2227, %v2006
        %v2233 = vmul.f32 %v2227, %v2007
        %v2234 = vmul.f32 %v2227, %v2008
        %v2235 = vmul.f32 %v2227, %v2009
        %s2236 = sld [smem:[#allocation6 + $0x181]]
        %v2237 = vstv %s2236
        %v2238 = vmul.f32 %v2237, %v2010
        %v2239 = vmul.f32 %v2237, %v2011
        %v2240 = vmul.f32 %v2237, %v2012
        %v2241 = vmul.f32 %v2237, %v2013
        %v2242 = vmul.f32 %v2237, %v2014
        %v2243 = vmul.f32 %v2237, %v2015
        %v2244 = vmul.f32 %v2237, %v2016
        %v2245 = vmul.f32 %v2237, %v2017
        %v2246 = vadd.f32 %v2228, %v2238
        %v2247 = vadd.f32 %v2229, %v2239
        %v2248 = vadd.f32 %v2230, %v2240
        %v2249 = vadd.f32 %v2231, %v2241
        %v2250 = vadd.f32 %v2232, %v2242
        %v2251 = vadd.f32 %v2233, %v2243
        %v2252 = vadd.f32 %v2234, %v2244
        %v2253 = vadd.f32 %v2235, %v2245
        %s2254 = sld [smem:[#allocation6 + $0x182]]
        %v2255 = vstv %s2254
        %v2256 = vmul.f32 %v2255, %v2018
        %v2257 = vmul.f32 %v2255, %v2019
        %v2258 = vmul.f32 %v2255, %v2020
        %v2259 = vmul.f32 %v2255, %v2021
        %v2260 = vmul.f32 %v2255, %v2022
        %v2261 = vmul.f32 %v2255, %v2023
        %v2262 = vmul.f32 %v2255, %v2024
        %v2263 = vmul.f32 %v2255, %v2025
        %v2264 = vadd.f32 %v2246, %v2256
        %v2265 = vadd.f32 %v2247, %v2257
        %v2266 = vadd.f32 %v2248, %v2258
        %v2267 = vadd.f32 %v2249, %v2259
        %v2268 = vadd.f32 %v2250, %v2260
        %v2269 = vadd.f32 %v2251, %v2261
        %v2270 = vadd.f32 %v2252, %v2262
        %v2271 = vadd.f32 %v2253, %v2263
        %s2272 = sld [smem:[#allocation6 + $0x183]]
        %v2273 = vstv %s2272
        %v2274 = vmul.f32 %v2273, %v2026
        %v2275 = vmul.f32 %v2273, %v2027
        %v2276 = vmul.f32 %v2273, %v2028
        %v2277 = vmul.f32 %v2273, %v2029
        %v2278 = vmul.f32 %v2273, %v2030
        %v2279 = vmul.f32 %v2273, %v2031
        %v2280 = vmul.f32 %v2273, %v2032
        %v2281 = vmul.f32 %v2273, %v2033
        %v2282 = vadd.f32 %v2264, %v2274
        %v2283 = vadd.f32 %v2265, %v2275
        %v2284 = vadd.f32 %v2266, %v2276
        %v2285 = vadd.f32 %v2267, %v2277
        %v2286 = vadd.f32 %v2268, %v2278
        %v2287 = vadd.f32 %v2269, %v2279
        %v2288 = vadd.f32 %v2270, %v2280
        %v2289 = vadd.f32 %v2271, %v2281
        %s2290 = sld [smem:[#allocation6 + $0x200]]
        %v2291 = vstv %s2290
        %v2292 = vmul.f32 %v2291, %v2002
        %v2293 = vmul.f32 %v2291, %v2003
        %v2294 = vmul.f32 %v2291, %v2004
        %v2295 = vmul.f32 %v2291, %v2005
        %v2296 = vmul.f32 %v2291, %v2006
        %v2297 = vmul.f32 %v2291, %v2007
        %v2298 = vmul.f32 %v2291, %v2008
        %v2299 = vmul.f32 %v2291, %v2009
        %s2300 = sld [smem:[#allocation6 + $0x201]]
        %v2301 = vstv %s2300
        %v2302 = vmul.f32 %v2301, %v2010
        %v2303 = vmul.f32 %v2301, %v2011
        %v2304 = vmul.f32 %v2301, %v2012
        %v2305 = vmul.f32 %v2301, %v2013
        %v2306 = vmul.f32 %v2301, %v2014
        %v2307 = vmul.f32 %v2301, %v2015
        %v2308 = vmul.f32 %v2301, %v2016
        %v2309 = vmul.f32 %v2301, %v2017
        %v2310 = vadd.f32 %v2292, %v2302
        %v2311 = vadd.f32 %v2293, %v2303
        %v2312 = vadd.f32 %v2294, %v2304
        %v2313 = vadd.f32 %v2295, %v2305
        %v2314 = vadd.f32 %v2296, %v2306
        %v2315 = vadd.f32 %v2297, %v2307
        %v2316 = vadd.f32 %v2298, %v2308
        %v2317 = vadd.f32 %v2299, %v2309
        %s2318 = sld [smem:[#allocation6 + $0x202]]
        %v2319 = vstv %s2318
        %v2320 = vmul.f32 %v2319, %v2018
        %v2321 = vmul.f32 %v2319, %v2019
        %v2322 = vmul.f32 %v2319, %v2020
        %v2323 = vmul.f32 %v2319, %v2021
        %v2324 = vmul.f32 %v2319, %v2022
        %v2325 = vmul.f32 %v2319, %v2023
        %v2326 = vmul.f32 %v2319, %v2024
        %v2327 = vmul.f32 %v2319, %v2025
        %v2328 = vadd.f32 %v2310, %v2320
        %v2329 = vadd.f32 %v2311, %v2321
        %v2330 = vadd.f32 %v2312, %v2322
        %v2331 = vadd.f32 %v2313, %v2323
        %v2332 = vadd.f32 %v2314, %v2324
        %v2333 = vadd.f32 %v2315, %v2325
        %v2334 = vadd.f32 %v2316, %v2326
        %v2335 = vadd.f32 %v2317, %v2327
        %s2336 = sld [smem:[#allocation6 + $0x203]]
        %v2337 = vstv %s2336
        %v2338 = vmul.f32 %v2337, %v2026
        %v2339 = vmul.f32 %v2337, %v2027
        %v2340 = vmul.f32 %v2337, %v2028
        %v2341 = vmul.f32 %v2337, %v2029
        %v2342 = vmul.f32 %v2337, %v2030
        %v2343 = vmul.f32 %v2337, %v2031
        %v2344 = vmul.f32 %v2337, %v2032
        %v2345 = vmul.f32 %v2337, %v2033
        %v2346 = vadd.f32 %v2328, %v2338
        %v2347 = vadd.f32 %v2329, %v2339
        %v2348 = vadd.f32 %v2330, %v2340
        %v2349 = vadd.f32 %v2331, %v2341
        %v2350 = vadd.f32 %v2332, %v2342
        %v2351 = vadd.f32 %v2333, %v2343
        %v2352 = vadd.f32 %v2334, %v2344
        %v2353 = vadd.f32 %v2335, %v2345
        %s2354 = sld [smem:[#allocation6 + $0x280]]
        %v2355 = vstv %s2354
        %v2356 = vmul.f32 %v2355, %v2002
        %v2357 = vmul.f32 %v2355, %v2003
        %v2358 = vmul.f32 %v2355, %v2004
        %v2359 = vmul.f32 %v2355, %v2005
        %v2360 = vmul.f32 %v2355, %v2006
        %v2361 = vmul.f32 %v2355, %v2007
        %v2362 = vmul.f32 %v2355, %v2008
        %v2363 = vmul.f32 %v2355, %v2009
        %s2364 = sld [smem:[#allocation6 + $0x281]]
        %v2365 = vstv %s2364
        %v2366 = vmul.f32 %v2365, %v2010
        %v2367 = vmul.f32 %v2365, %v2011
        %v2368 = vmul.f32 %v2365, %v2012
        %v2369 = vmul.f32 %v2365, %v2013
        %v2370 = vmul.f32 %v2365, %v2014
        %v2371 = vmul.f32 %v2365, %v2015
        %v2372 = vmul.f32 %v2365, %v2016
        %v2373 = vmul.f32 %v2365, %v2017
        %v2374 = vadd.f32 %v2356, %v2366
        %v2375 = vadd.f32 %v2357, %v2367
        %v2376 = vadd.f32 %v2358, %v2368
        %v2377 = vadd.f32 %v2359, %v2369
        %v2378 = vadd.f32 %v2360, %v2370
        %v2379 = vadd.f32 %v2361, %v2371
        %v2380 = vadd.f32 %v2362, %v2372
        %v2381 = vadd.f32 %v2363, %v2373
        %s2382 = sld [smem:[#allocation6 + $0x282]]
        %v2383 = vstv %s2382
        %v2384 = vmul.f32 %v2383, %v2018
        %v2385 = vmul.f32 %v2383, %v2019
        %v2386 = vmul.f32 %v2383, %v2020
        %v2387 = vmul.f32 %v2383, %v2021
        %v2388 = vmul.f32 %v2383, %v2022
        %v2389 = vmul.f32 %v2383, %v2023
        %v2390 = vmul.f32 %v2383, %v2024
        %v2391 = vmul.f32 %v2383, %v2025
        %v2392 = vadd.f32 %v2374, %v2384
        %v2393 = vadd.f32 %v2375, %v2385
        %v2394 = vadd.f32 %v2376, %v2386
        %v2395 = vadd.f32 %v2377, %v2387
        %v2396 = vadd.f32 %v2378, %v2388
        %v2397 = vadd.f32 %v2379, %v2389
        %v2398 = vadd.f32 %v2380, %v2390
        %v2399 = vadd.f32 %v2381, %v2391
        %s2400 = sld [smem:[#allocation6 + $0x283]]
        %v2401 = vstv %s2400
        %v2402 = vmul.f32 %v2401, %v2026
        %v2403 = vmul.f32 %v2401, %v2027
        %v2404 = vmul.f32 %v2401, %v2028
        %v2405 = vmul.f32 %v2401, %v2029
        %v2406 = vmul.f32 %v2401, %v2030
        %v2407 = vmul.f32 %v2401, %v2031
        %v2408 = vmul.f32 %v2401, %v2032
        %v2409 = vmul.f32 %v2401, %v2033
        %v2410 = vadd.f32 %v2392, %v2402
        %v2411 = vadd.f32 %v2393, %v2403
        %v2412 = vadd.f32 %v2394, %v2404
        %v2413 = vadd.f32 %v2395, %v2405
        %v2414 = vadd.f32 %v2396, %v2406
        %v2415 = vadd.f32 %v2397, %v2407
        %v2416 = vadd.f32 %v2398, %v2408
        %v2417 = vadd.f32 %v2399, %v2409
        %s2418 = sld [smem:[#allocation6 + $0x300]]
        %v2419 = vstv %s2418
        %v2420 = vmul.f32 %v2419, %v2002
        %v2421 = vmul.f32 %v2419, %v2003
        %v2422 = vmul.f32 %v2419, %v2004
        %v2423 = vmul.f32 %v2419, %v2005
        %v2424 = vmul.f32 %v2419, %v2006
        %v2425 = vmul.f32 %v2419, %v2007
        %v2426 = vmul.f32 %v2419, %v2008
        %v2427 = vmul.f32 %v2419, %v2009
        %s2428 = sld [smem:[#allocation6 + $0x301]]
        %v2429 = vstv %s2428
        %v2430 = vmul.f32 %v2429, %v2010
        %v2431 = vmul.f32 %v2429, %v2011
        %v2432 = vmul.f32 %v2429, %v2012
        %v2433 = vmul.f32 %v2429, %v2013
        %v2434 = vmul.f32 %v2429, %v2014
        %v2435 = vmul.f32 %v2429, %v2015
        %v2436 = vmul.f32 %v2429, %v2016
        %v2437 = vmul.f32 %v2429, %v2017
        %v2438 = vadd.f32 %v2420, %v2430
        %v2439 = vadd.f32 %v2421, %v2431
        %v2440 = vadd.f32 %v2422, %v2432
        %v2441 = vadd.f32 %v2423, %v2433
        %v2442 = vadd.f32 %v2424, %v2434
        %v2443 = vadd.f32 %v2425, %v2435
        %v2444 = vadd.f32 %v2426, %v2436
        %v2445 = vadd.f32 %v2427, %v2437
        %s2446 = sld [smem:[#allocation6 + $0x302]]
        %v2447 = vstv %s2446
        %v2448 = vmul.f32 %v2447, %v2018
        %v2449 = vmul.f32 %v2447, %v2019
        %v2450 = vmul.f32 %v2447, %v2020
        %v2451 = vmul.f32 %v2447, %v2021
        %v2452 = vmul.f32 %v2447, %v2022
        %v2453 = vmul.f32 %v2447, %v2023
        %v2454 = vmul.f32 %v2447, %v2024
        %v2455 = vmul.f32 %v2447, %v2025
        %v2456 = vadd.f32 %v2438, %v2448
        %v2457 = vadd.f32 %v2439, %v2449
        %v2458 = vadd.f32 %v2440, %v2450
        %v2459 = vadd.f32 %v2441, %v2451
        %v2460 = vadd.f32 %v2442, %v2452
        %v2461 = vadd.f32 %v2443, %v2453
        %v2462 = vadd.f32 %v2444, %v2454
        %v2463 = vadd.f32 %v2445, %v2455
        %s2464 = sld [smem:[#allocation6 + $0x303]]
        %v2465 = vstv %s2464
        %v2466 = vmul.f32 %v2465, %v2026
        %v2467 = vmul.f32 %v2465, %v2027
        %v2468 = vmul.f32 %v2465, %v2028
        %v2469 = vmul.f32 %v2465, %v2029
        %v2470 = vmul.f32 %v2465, %v2030
        %v2471 = vmul.f32 %v2465, %v2031
        %v2472 = vmul.f32 %v2465, %v2032
        %v2473 = vmul.f32 %v2465, %v2033
        %v2474 = vadd.f32 %v2456, %v2466
        %v2475 = vadd.f32 %v2457, %v2467
        %v2476 = vadd.f32 %v2458, %v2468
        %v2477 = vadd.f32 %v2459, %v2469
        %v2478 = vadd.f32 %v2460, %v2470
        %v2479 = vadd.f32 %v2461, %v2471
        %v2480 = vadd.f32 %v2462, %v2472
        %v2481 = vadd.f32 %v2463, %v2473
        %s2482 = sld [smem:[#allocation6 + $0x380]]
        %v2483 = vstv %s2482
        %v2484 = vmul.f32 %v2483, %v2002
        %v2485 = vmul.f32 %v2483, %v2003
        %v2486 = vmul.f32 %v2483, %v2004
        %v2487 = vmul.f32 %v2483, %v2005
        %v2488 = vmul.f32 %v2483, %v2006
        %v2489 = vmul.f32 %v2483, %v2007
        %v2490 = vmul.f32 %v2483, %v2008
        %v2491 = vmul.f32 %v2483, %v2009
        %s2492 = sld [smem:[#allocation6 + $0x381]]
        %v2493 = vstv %s2492
        %v2494 = vmul.f32 %v2493, %v2010
        %v2495 = vmul.f32 %v2493, %v2011
        %v2496 = vmul.f32 %v2493, %v2012
        %v2497 = vmul.f32 %v2493, %v2013
        %v2498 = vmul.f32 %v2493, %v2014
        %v2499 = vmul.f32 %v2493, %v2015
        %v2500 = vmul.f32 %v2493, %v2016
        %v2501 = vmul.f32 %v2493, %v2017
        %v2502 = vadd.f32 %v2484, %v2494
        %v2503 = vadd.f32 %v2485, %v2495
        %v2504 = vadd.f32 %v2486, %v2496
        %v2505 = vadd.f32 %v2487, %v2497
        %v2506 = vadd.f32 %v2488, %v2498
        %v2507 = vadd.f32 %v2489, %v2499
        %v2508 = vadd.f32 %v2490, %v2500
        %v2509 = vadd.f32 %v2491, %v2501
        %s2510 = sld [smem:[#allocation6 + $0x382]]
        %v2511 = vstv %s2510
        %v2512 = vmul.f32 %v2511, %v2018
        %v2513 = vmul.f32 %v2511, %v2019
        %v2514 = vmul.f32 %v2511, %v2020
        %v2515 = vmul.f32 %v2511, %v2021
        %v2516 = vmul.f32 %v2511, %v2022
        %v2517 = vmul.f32 %v2511, %v2023
        %v2518 = vmul.f32 %v2511, %v2024
        %v2519 = vmul.f32 %v2511, %v2025
        %v2520 = vadd.f32 %v2502, %v2512
        %v2521 = vadd.f32 %v2503, %v2513
        %v2522 = vadd.f32 %v2504, %v2514
        %v2523 = vadd.f32 %v2505, %v2515
        %v2524 = vadd.f32 %v2506, %v2516
        %v2525 = vadd.f32 %v2507, %v2517
        %v2526 = vadd.f32 %v2508, %v2518
        %v2527 = vadd.f32 %v2509, %v2519
        %s2528 = sld [smem:[#allocation6 + $0x383]]
        %v2529 = vstv %s2528
        %v2530 = vmul.f32 %v2529, %v2026
        %v2531 = vmul.f32 %v2529, %v2027
        %v2532 = vmul.f32 %v2529, %v2028
        %v2533 = vmul.f32 %v2529, %v2029
        %v2534 = vmul.f32 %v2529, %v2030
        %v2535 = vmul.f32 %v2529, %v2031
        %v2536 = vmul.f32 %v2529, %v2032
        %v2537 = vmul.f32 %v2529, %v2033
        %v2538 = vadd.f32 %v2520, %v2530
        %v2539 = vadd.f32 %v2521, %v2531
        %v2540 = vadd.f32 %v2522, %v2532
        %v2541 = vadd.f32 %v2523, %v2533
        %v2542 = vadd.f32 %v2524, %v2534
        %v2543 = vadd.f32 %v2525, %v2535
        %v2544 = vadd.f32 %v2526, %v2536
        %v2545 = vadd.f32 %v2527, %v2537
        %s2546 = sld [smem:[#allocation9]]
        %v2547 = vstv %s2546
        %v2548 = vmul.f32 %v2090, %v2547
        %v2549 = vmul.f32 %v2091, %v2547
        %v2550 = vmul.f32 %v2092, %v2547
        %v2551 = vmul.f32 %v2093, %v2547
        %v2552 = vmul.f32 %v2094, %v2547
        %v2553 = vmul.f32 %v2095, %v2547
        %v2554 = vmul.f32 %v2096, %v2547
        %v2555 = vmul.f32 %v2097, %v2547
        %s2556 = sld [smem:[#allocation11]]
        %v2557 = vstv %s2556
        %v2558 = vadd.f32 %v2548, %v2557
        %v2559 = vadd.f32 %v2549, %v2557
        %v2560 = vadd.f32 %v2550, %v2557
        %v2561 = vadd.f32 %v2551, %v2557
        %v2562 = vadd.f32 %v2552, %v2557
        %v2563 = vadd.f32 %v2553, %v2557
        %v2564 = vadd.f32 %v2554, %v2557
        %v2565 = vadd.f32 %v2555, %v2557
        %v2566 = vmax.f32 %v2558, 0.0
        %v2567 = vmax.f32 %v2559, 0.0
        %v2568 = vmax.f32 %v2560, 0.0
        %v2569 = vmax.f32 %v2561, 0.0
        %v2570 = vmax.f32 %v2562, 0.0
        %v2571 = vmax.f32 %v2563, 0.0
        %v2572 = vmax.f32 %v2564, 0.0
        %v2573 = vmax.f32 %v2565, 0.0
        %s2574 = sld [smem:[#allocation9 + $0x1]]
        %v2575 = vstv %s2574
        %v2576 = vmul.f32 %v2154, %v2575
        %v2577 = vmul.f32 %v2155, %v2575
        %v2578 = vmul.f32 %v2156, %v2575
        %v2579 = vmul.f32 %v2157, %v2575
        %v2580 = vmul.f32 %v2158, %v2575
        %v2581 = vmul.f32 %v2159, %v2575
        %v2582 = vmul.f32 %v2160, %v2575
        %v2583 = vmul.f32 %v2161, %v2575
        %s2584 = sld [smem:[#allocation11 + $0x1]]
        %v2585 = vstv %s2584
        %v2586 = vadd.f32 %v2576, %v2585
        %v2587 = vadd.f32 %v2577, %v2585
        %v2588 = vadd.f32 %v2578, %v2585
        %v2589 = vadd.f32 %v2579, %v2585
        %v2590 = vadd.f32 %v2580, %v2585
        %v2591 = vadd.f32 %v2581, %v2585
        %v2592 = vadd.f32 %v2582, %v2585
        %v2593 = vadd.f32 %v2583, %v2585
        %v2594 = vmax.f32 %v2586, 0.0
        %v2595 = vmax.f32 %v2587, 0.0
        %v2596 = vmax.f32 %v2588, 0.0
        %v2597 = vmax.f32 %v2589, 0.0
        %v2598 = vmax.f32 %v2590, 0.0
        %v2599 = vmax.f32 %v2591, 0.0
        %v2600 = vmax.f32 %v2592, 0.0
        %v2601 = vmax.f32 %v2593, 0.0
        %s2602 = sld [smem:[#allocation9 + $0x2]]
        %v2603 = vstv %s2602
        %v2604 = vmul.f32 %v2218, %v2603
        %v2605 = vmul.f32 %v2219, %v2603
        %v2606 = vmul.f32 %v2220, %v2603
        %v2607 = vmul.f32 %v2221, %v2603
        %v2608 = vmul.f32 %v2222, %v2603
        %v2609 = vmul.f32 %v2223, %v2603
        %v2610 = vmul.f32 %v2224, %v2603
        %v2611 = vmul.f32 %v2225, %v2603
        %s2612 = sld [smem:[#allocation11 + $0x2]]
        %v2613 = vstv %s2612
        %v2614 = vadd.f32 %v2604, %v2613
        %v2615 = vadd.f32 %v2605, %v2613
        %v2616 = vadd.f32 %v2606, %v2613
        %v2617 = vadd.f32 %v2607, %v2613
        %v2618 = vadd.f32 %v2608, %v2613
        %v2619 = vadd.f32 %v2609, %v2613
        %v2620 = vadd.f32 %v2610, %v2613
        %v2621 = vadd.f32 %v2611, %v2613
        %v2622 = vmax.f32 %v2614, 0.0
        %v2623 = vmax.f32 %v2615, 0.0
        %v2624 = vmax.f32 %v2616, 0.0
        %v2625 = vmax.f32 %v2617, 0.0
        %v2626 = vmax.f32 %v2618, 0.0
        %v2627 = vmax.f32 %v2619, 0.0
        %v2628 = vmax.f32 %v2620, 0.0
        %v2629 = vmax.f32 %v2621, 0.0
        %s2630 = sld [smem:[#allocation9 + $0x3]]
        %v2631 = vstv %s2630
        %v2632 = vmul.f32 %v2282, %v2631
        %v2633 = vmul.f32 %v2283, %v2631
        %v2634 = vmul.f32 %v2284, %v2631
        %v2635 = vmul.f32 %v2285, %v2631
        %v2636 = vmul.f32 %v2286, %v2631
        %v2637 = vmul.f32 %v2287, %v2631
        %v2638 = vmul.f32 %v2288, %v2631
        %v2639 = vmul.f32 %v2289, %v2631
        %s2640 = sld [smem:[#allocation11 + $0x3]]
        %v2641 = vstv %s2640
        %v2642 = vadd.f32 %v2632, %v2641
        %v2643 = vadd.f32 %v2633, %v2641
        %v2644 = vadd.f32 %v2634, %v2641
        %v2645 = vadd.f32 %v2635, %v2641
        %v2646 = vadd.f32 %v2636, %v2641
        %v2647 = vadd.f32 %v2637, %v2641
        %v2648 = vadd.f32 %v2638, %v2641
        %v2649 = vadd.f32 %v2639, %v2641
        %v2650 = vmax.f32 %v2642, 0.0
        %v2651 = vmax.f32 %v2643, 0.0
        %v2652 = vmax.f32 %v2644, 0.0
        %v2653 = vmax.f32 %v2645, 0.0
        %v2654 = vmax.f32 %v2646, 0.0
        %v2655 = vmax.f32 %v2647, 0.0
        %v2656 = vmax.f32 %v2648, 0.0
        %v2657 = vmax.f32 %v2649, 0.0
        %s2658 = sld [smem:[#allocation9 + $0x4]]
        %v2659 = vstv %s2658
        %v2660 = vmul.f32 %v2346, %v2659
        %v2661 = vmul.f32 %v2347, %v2659
        %v2662 = vmul.f32 %v2348, %v2659
        %v2663 = vmul.f32 %v2349, %v2659
        %v2664 = vmul.f32 %v2350, %v2659
        %v2665 = vmul.f32 %v2351, %v2659
        %v2666 = vmul.f32 %v2352, %v2659
        %v2667 = vmul.f32 %v2353, %v2659
        %s2668 = sld [smem:[#allocation11 + $0x4]]
        %v2669 = vstv %s2668
        %v2670 = vadd.f32 %v2660, %v2669
        %v2671 = vadd.f32 %v2661, %v2669
        %v2672 = vadd.f32 %v2662, %v2669
        %v2673 = vadd.f32 %v2663, %v2669
        %v2674 = vadd.f32 %v2664, %v2669
        %v2675 = vadd.f32 %v2665, %v2669
        %v2676 = vadd.f32 %v2666, %v2669
        %v2677 = vadd.f32 %v2667, %v2669
        %v2678 = vmax.f32 %v2670, 0.0
        %v2679 = vmax.f32 %v2671, 0.0
        %v2680 = vmax.f32 %v2672, 0.0
        %v2681 = vmax.f32 %v2673, 0.0
        %v2682 = vmax.f32 %v2674, 0.0
        %v2683 = vmax.f32 %v2675, 0.0
        %v2684 = vmax.f32 %v2676, 0.0
        %v2685 = vmax.f32 %v2677, 0.0
        %s2686 = sld [smem:[#allocation9 + $0x5]]
        %v2687 = vstv %s2686
        %v2688 = vmul.f32 %v2410, %v2687
        %v2689 = vmul.f32 %v2411, %v2687
        %v2690 = vmul.f32 %v2412, %v2687
        %v2691 = vmul.f32 %v2413, %v2687
        %v2692 = vmul.f32 %v2414, %v2687
        %v2693 = vmul.f32 %v2415, %v2687
        %v2694 = vmul.f32 %v2416, %v2687
        %v2695 = vmul.f32 %v2417, %v2687
        %s2696 = sld [smem:[#allocation11 + $0x5]]
        %v2697 = vstv %s2696
        %v2698 = vadd.f32 %v2688, %v2697
        %v2699 = vadd.f32 %v2689, %v2697
        %v2700 = vadd.f32 %v2690, %v2697
        %v2701 = vadd.f32 %v2691, %v2697
        %v2702 = vadd.f32 %v2692, %v2697
        %v2703 = vadd.f32 %v2693, %v2697
        %v2704 = vadd.f32 %v2694, %v2697
        %v2705 = vadd.f32 %v2695, %v2697
        %v2706 = vmax.f32 %v2698, 0.0
        %v2707 = vmax.f32 %v2699, 0.0
        %v2708 = vmax.f32 %v2700, 0.0
        %v2709 = vmax.f32 %v2701, 0.0
        %v2710 = vmax.f32 %v2702, 0.0
        %v2711 = vmax.f32 %v2703, 0.0
        %v2712 = vmax.f32 %v2704, 0.0
        %v2713 = vmax.f32 %v2705, 0.0
        %s2714 = sld [smem:[#allocation9 + $0x6]]
        %v2715 = vstv %s2714
        %v2716 = vmul.f32 %v2474, %v2715
        %v2717 = vmul.f32 %v2475, %v2715
        %v2718 = vmul.f32 %v2476, %v2715
        %v2719 = vmul.f32 %v2477, %v2715
        %v2720 = vmul.f32 %v2478, %v2715
        %v2721 = vmul.f32 %v2479, %v2715
        %v2722 = vmul.f32 %v2480, %v2715
        %v2723 = vmul.f32 %v2481, %v2715
        %s2724 = sld [smem:[#allocation11 + $0x6]]
        %v2725 = vstv %s2724
        %v2726 = vadd.f32 %v2716, %v2725
        %v2727 = vadd.f32 %v2717, %v2725
        %v2728 = vadd.f32 %v2718, %v2725
        %v2729 = vadd.f32 %v2719, %v2725
        %v2730 = vadd.f32 %v2720, %v2725
        %v2731 = vadd.f32 %v2721, %v2725
        %v2732 = vadd.f32 %v2722, %v2725
        %v2733 = vadd.f32 %v2723, %v2725
        %v2734 = vmax.f32 %v2726, 0.0
        %v2735 = vmax.f32 %v2727, 0.0
        %v2736 = vmax.f32 %v2728, 0.0
        %v2737 = vmax.f32 %v2729, 0.0
        %v2738 = vmax.f32 %v2730, 0.0
        %v2739 = vmax.f32 %v2731, 0.0
        %v2740 = vmax.f32 %v2732, 0.0
        %v2741 = vmax.f32 %v2733, 0.0
        %s2742 = sld [smem:[#allocation9 + $0x7]]
        %v2743 = vstv %s2742
        %v2744 = vmul.f32 %v2538, %v2743
        %v2745 = vmul.f32 %v2539, %v2743
        %v2746 = vmul.f32 %v2540, %v2743
        %v2747 = vmul.f32 %v2541, %v2743
        %v2748 = vmul.f32 %v2542, %v2743
        %v2749 = vmul.f32 %v2543, %v2743
        %v2750 = vmul.f32 %v2544, %v2743
        %v2751 = vmul.f32 %v2545, %v2743
        %s2752 = sld [smem:[#allocation11 + $0x7]]
        %v2753 = vstv %s2752
        %v2754 = vadd.f32 %v2744, %v2753
        %v2755 = vadd.f32 %v2745, %v2753
        %v2756 = vadd.f32 %v2746, %v2753
        %v2757 = vadd.f32 %v2747, %v2753
        %v2758 = vadd.f32 %v2748, %v2753
        %v2759 = vadd.f32 %v2749, %v2753
        %v2760 = vadd.f32 %v2750, %v2753
        %v2761 = vadd.f32 %v2751, %v2753
        %v2762 = vmax.f32 %v2754, 0.0
        %v2763 = vmax.f32 %v2755, 0.0
        %v2764 = vmax.f32 %v2756, 0.0
        %v2765 = vmax.f32 %v2757, 0.0
        %v2766 = vmax.f32 %v2758, 0.0
        %v2767 = vmax.f32 %v2759, 0.0
        %v2768 = vmax.f32 %v2760, 0.0
        %v2769 = vmax.f32 %v2761, 0.0
        %vm2770 = vcmask 57344
        %2771 = vst.msk [vmem:[%s1403] sm:$0x1] %vm2770, %v2566
        %2772 = vst.msk [vmem:[%s1403 + $0x1] sm:$0x1] %vm2770, %v2567
        %2773 = vst.msk [vmem:[%s1403 + $0x2] sm:$0x1] %vm2770, %v2568
        %2774 = vst.msk [vmem:[%s1403 + $0x3] sm:$0x1] %vm2770, %v2569
        %2775 = vst.msk [vmem:[%s1403 + $0x4] sm:$0x1] %vm2770, %v2570
        %2776 = vst.msk [vmem:[%s1403 + $0x5] sm:$0x1] %vm2770, %v2571
        %2777 = vst.msk [vmem:[%s1403 + $0x6] sm:$0x1] %vm2770, %v2572
        %2778 = vst.msk [vmem:[%s1403 + $0x7] sm:$0x1] %vm2770, %v2573
        %2779 = vst.msk [vmem:[%s1403 + $0x8] sm:$0x1] %vm2770, %v2594
        %2780 = vst.msk [vmem:[%s1403 + $0x9] sm:$0x1] %vm2770, %v2595
        %2781 = vst.msk [vmem:[%s1403 + $0xa] sm:$0x1] %vm2770, %v2596
        %2782 = vst.msk [vmem:[%s1403 + $0xb] sm:$0x1] %vm2770, %v2597
        %2783 = vst.msk [vmem:[%s1403 + $0xc] sm:$0x1] %vm2770, %v2598
        %2784 = vst.msk [vmem:[%s1403 + $0xd] sm:$0x1] %vm2770, %v2599
        %2785 = vst.msk [vmem:[%s1403 + $0xe] sm:$0x1] %vm2770, %v2600
        %2786 = vst.msk [vmem:[%s1403 + $0xf] sm:$0x1] %vm2770, %v2601
        %2787 = vst.msk [vmem:[%s1403 + $0x10] sm:$0x1] %vm2770, %v2622
        %2788 = vst.msk [vmem:[%s1403 + $0x11] sm:$0x1] %vm2770, %v2623
        %2789 = vst.msk [vmem:[%s1403 + $0x12] sm:$0x1] %vm2770, %v2624
        %2790 = vst.msk [vmem:[%s1403 + $0x13] sm:$0x1] %vm2770, %v2625
        %2791 = vst.msk [vmem:[%s1403 + $0x14] sm:$0x1] %vm2770, %v2626
        %2792 = vst.msk [vmem:[%s1403 + $0x15] sm:$0x1] %vm2770, %v2627
        %2793 = vst.msk [vmem:[%s1403 + $0x16] sm:$0x1] %vm2770, %v2628
        %2794 = vst.msk [vmem:[%s1403 + $0x17] sm:$0x1] %vm2770, %v2629
        %2795 = vst.msk [vmem:[%s1403 + $0x18] sm:$0x1] %vm2770, %v2650
        %2796 = vst.msk [vmem:[%s1403 + $0x19] sm:$0x1] %vm2770, %v2651
        %2797 = vst.msk [vmem:[%s1403 + $0x1a] sm:$0x1] %vm2770, %v2652
        %2798 = vst.msk [vmem:[%s1403 + $0x1b] sm:$0x1] %vm2770, %v2653
        %2799 = vst.msk [vmem:[%s1403 + $0x1c] sm:$0x1] %vm2770, %v2654
        %2800 = vst.msk [vmem:[%s1403 + $0x1d] sm:$0x1] %vm2770, %v2655
        %2801 = vst.msk [vmem:[%s1403 + $0x1e] sm:$0x1] %vm2770, %v2656
        %2802 = vst.msk [vmem:[%s1403 + $0x1f] sm:$0x1] %vm2770, %v2657
        %2803 = vst.msk [vmem:[%s1403 + $0x20] sm:$0x1] %vm2770, %v2678
        %2804 = vst.msk [vmem:[%s1403 + $0x21] sm:$0x1] %vm2770, %v2679
        %2805 = vst.msk [vmem:[%s1403 + $0x22] sm:$0x1] %vm2770, %v2680
        %2806 = vst.msk [vmem:[%s1403 + $0x23] sm:$0x1] %vm2770, %v2681
        %2807 = vst.msk [vmem:[%s1403 + $0x24] sm:$0x1] %vm2770, %v2682
        %2808 = vst.msk [vmem:[%s1403 + $0x25] sm:$0x1] %vm2770, %v2683
        %2809 = vst.msk [vmem:[%s1403 + $0x26] sm:$0x1] %vm2770, %v2684
        %2810 = vst.msk [vmem:[%s1403 + $0x27] sm:$0x1] %vm2770, %v2685
        %2811 = vst.msk [vmem:[%s1403 + $0x28] sm:$0x1] %vm2770, %v2706
        %2812 = vst.msk [vmem:[%s1403 + $0x29] sm:$0x1] %vm2770, %v2707
        %2813 = vst.msk [vmem:[%s1403 + $0x2a] sm:$0x1] %vm2770, %v2708
        %2814 = vst.msk [vmem:[%s1403 + $0x2b] sm:$0x1] %vm2770, %v2709
        %2815 = vst.msk [vmem:[%s1403 + $0x2c] sm:$0x1] %vm2770, %v2710
        %2816 = vst.msk [vmem:[%s1403 + $0x2d] sm:$0x1] %vm2770, %v2711
        %2817 = vst.msk [vmem:[%s1403 + $0x2e] sm:$0x1] %vm2770, %v2712
        %2818 = vst.msk [vmem:[%s1403 + $0x2f] sm:$0x1] %vm2770, %v2713
        %2819 = vst.msk [vmem:[%s1403 + $0x30] sm:$0x1] %vm2770, %v2734
        %2820 = vst.msk [vmem:[%s1403 + $0x31] sm:$0x1] %vm2770, %v2735
        %2821 = vst.msk [vmem:[%s1403 + $0x32] sm:$0x1] %vm2770, %v2736
        %2822 = vst.msk [vmem:[%s1403 + $0x33] sm:$0x1] %vm2770, %v2737
        %2823 = vst.msk [vmem:[%s1403 + $0x34] sm:$0x1] %vm2770, %v2738
        %2824 = vst.msk [vmem:[%s1403 + $0x35] sm:$0x1] %vm2770, %v2739
        %2825 = vst.msk [vmem:[%s1403 + $0x36] sm:$0x1] %vm2770, %v2740
        %2826 = vst.msk [vmem:[%s1403 + $0x37] sm:$0x1] %vm2770, %v2741
        %2827 = vst.msk [vmem:[%s1403 + $0x38] sm:$0x1] %vm2770, %v2762
        %2828 = vst.msk [vmem:[%s1403 + $0x39] sm:$0x1] %vm2770, %v2763
        %2829 = vst.msk [vmem:[%s1403 + $0x3a] sm:$0x1] %vm2770, %v2764
        %2830 = vst.msk [vmem:[%s1403 + $0x3b] sm:$0x1] %vm2770, %v2765
        %2831 = vst.msk [vmem:[%s1403 + $0x3c] sm:$0x1] %vm2770, %v2766
        %2832 = vst.msk [vmem:[%s1403 + $0x3d] sm:$0x1] %vm2770, %v2767
        %2833 = vst.msk [vmem:[%s1403 + $0x3e] sm:$0x1] %vm2770, %v2768
        %2834 = vst.msk [vmem:[%s1403 + $0x3f] sm:$0x1] %vm2770, %v2769
        %s2835 = sand.u32 %s228, 1
        %s2836 = scalar_lea.sflag [#allocation7], %s2835
        %s2837 = sand.u32 %s228, 1
        %s2838 = smul.addr %s2837, 64
        %s2839 = scalar_lea.vmem [#allocation12], %s2838
        // Predicated region
        $region275: #{ds_forward.3} parent=245 // pred_check
          %p2840 = pneg %p238
        $region276: #{ds_forward.3} parent=245 // pred_check_branch
          %2842 = sbr.rel (%p2840) target = $region278
        $region277: #{ds_forward.3} parent=245 // pred_region
          %s2843 = smul.u32 8, %s27
          %s2844 = smul.u32 8, %s28
          %s2846 = ssub.s32 1024, 1024
          %2847 = vsyncadd %s2836, %s2846
          %s2848 = smul.addr %s2843, 8
          %s2849 = sadd.s32 %s2844, %s2848
          %s2850 = smul.addr %s2849, 16
          %s2851 = scalar_lea.hbm %s7, %s2850
          %s2852 = sshll.u32 %s2839, 4
          %s2853 = int_to_ptr.vmem [resolvable:$true] %s2852
          %2858 = dma.vmem_to_hbm [thread:$0]  %s2853, 1024, %s2851, %s2836, 16, 16, 1
        $region278: #{ds_forward.3} parent=245 // pred_fallthru
          _
      $region246: #{ds_forward.3} parent=5 // pred_fallthru
        _
      %p2859 = scmp.le.s32.totalorder 2, %s18
      // Predicated region
      $region279: #{ds_forward.3} parent=5 // pred_check
        %p2860 = pneg %p2859
      $region280: #{ds_forward.3} parent=5 // pred_check_branch
        %2862 = sbr.rel (%p2860) target = $region282
      $region281: #{ds_forward.3} parent=5 // pred_region
        %s2863 = ssub.s32 %s18, 2
        // Predicated region
        $region283: #{ds_forward.3} parent=281 // pred_check
          %p2864 = pneg %p244
        $region284: #{ds_forward.3} parent=281 // pred_check_branch
          %2866 = sbr.rel (%p2864) target = $region286
        $region285: #{ds_forward.3} parent=281 // pred_region
          %s2867 = sand.u32 %s229, 1
          %s2868 = scalar_lea.sflag [#allocation7], %s2867
          %s2869 = sand.u32 %s229, 1
          %s2870 = smul.addr %s2869, 64
          %s2871 = scalar_lea.vmem [#allocation12], %s2870
          %2872 = dma.done %s2868, 1024
        $region286: #{ds_forward.3} parent=281 // pred_fallthru
          _
      $region282: #{ds_forward.3} parent=5 // pred_fallthru
        _
    $region6: #{ds_forward.3} parent=1 // loop_footer
      %s22 = sadd.s32 1, %s18
    $region7: #{ds_forward.3} parent=1 // loop_footer_branch
      %17 = sbr.rel target = $region3
    $region8: #{ds_forward.3} parent=1 // loop_exit
      _
    %2873 = vsyncpa [#allocation7], 1
    %s2874 = scalar_lea.sflag [#allocation7], 1
    %2875 = vsyncpa %s2874, 1
    %2876 = vsyncpa [#allocation8], 1
    %s2877 = scalar_lea.sflag [#allocation8], 1
    %2878 = vsyncpa %s2877, 1
    %2879 = vsyncpa [#allocation10], 1

</llo_original>
